<compile_context>
chip_gen: v7x
topology: tpu7x:2x2x1
jax: 0.10.0
libtpu: 0.0.40
codegen_flags: <defaults>
</compile_context>

<pallas_src>
import functools

import jax
import jax.numpy as jnp
from jax.experimental import pallas as pl
from jax.experimental.pallas import tpu as pltpu

_LANE = 128
_VMEM_LIMIT = 48 * 1024 * 1024  # above default scoped limit, safe on v5e/v6e/v7x


def _round_up(x, m):
    return (x + m - 1) // m * m


def _pad_to(a, shape):
    return jnp.pad(a, [(0, s - d) for d, s in zip(a.shape, shape)])


def _choose_m(m, block_m):
    if m >= block_m:
        return block_m, _round_up(m, block_m)
    t = max(8, _round_up(m, 8))
    return t, t


def _choose_k(k, block_k):
    if k <= block_k:
        return k, k
    return block_k, _round_up(k, block_k)


# ---------------------------------------------------------------------------
# Pallas kernels
# ---------------------------------------------------------------------------
def _pw_conv_kernel(x_ref, w_ref, bias_ref, mask_ref, o_ref, acc_ref):
    """K-tiled (tm, tk) @ (tk, C) -> +bias -> per-channel-masked ReLU."""
    k = pl.program_id(1)

    @pl.when(k == 0)
    def _():
        acc_ref[...] = jnp.zeros_like(acc_ref)

    acc_ref[...] += jnp.dot(x_ref[...], w_ref[...],
                            preferred_element_type=jnp.float32)

    @pl.when(k == pl.num_programs(1) - 1)
    def _():
        y = acc_ref[...] + bias_ref[...]
        y = jnp.where(mask_ref[...] > 0.5, jnp.maximum(y, 0.0), y)
        o_ref[...] = y.astype(o_ref.dtype)


def _pw_conv_add_relu_kernel(x_ref, w_ref, bias_ref, res_ref, o_ref, acc_ref):
    """K-tiled matmul -> +bias -> +residual -> ReLU (bottleneck tail)."""
    k = pl.program_id(1)

    @pl.when(k == 0)
    def _():
        acc_ref[...] = jnp.zeros_like(acc_ref)

    acc_ref[...] += jnp.dot(x_ref[...], w_ref[...],
                            preferred_element_type=jnp.float32)

    @pl.when(k == pl.num_programs(1) - 1)
    def _():
        y = acc_ref[...] + bias_ref[...] + res_ref[...].astype(jnp.float32)
        o_ref[...] = jnp.maximum(y, 0.0).astype(o_ref.dtype)


def _conv3x3_bias_relu_kernel(hp_ref, w_ref, bias_ref, o_ref, *, dilation,
                              out_h, out_w):
    """Fused 3x3 dilated conv (stride 1) + bias + ReLU for one batch element.

    hp_ref: (1, H+2d, W+2d, Cin) halo-padded activation tile (resident in VMEM).
    w_ref : (9, Cin, Cout) per-tap weights, BN scale already folded in.
    The 9 shifted taps are accumulated in-kernel -> no im2col in HBM.
    """
    d = dilation
    H, W = out_h, out_w
    cin = hp_ref.shape[-1]
    cout = o_ref.shape[-1]
    hp = hp_ref[...]                                   # (1, H+2d, W+2d, Cin)
    acc = jnp.zeros((H * W, cout), jnp.float32)
    for kh in range(3):
        for kw in range(3):
            patch = hp[0, kh * d:kh * d + H, kw * d:kw * d + W, :]
            acc = acc + jnp.dot(patch.reshape(H * W, cin),
                                w_ref[kh * 3 + kw],
                                preferred_element_type=jnp.float32)
    y = jnp.maximum(acc + bias_ref[...], 0.0)
    o_ref[...] = y.reshape(1, H, W, cout).astype(o_ref.dtype)


# ---------------------------------------------------------------------------
# pallas_call wrappers
# ---------------------------------------------------------------------------
def pw_conv_bn(x2d, w, bias, mask, *, out_dtype, block_m=512, block_k=512):
    M, K = x2d.shape
    C = w.shape[1]
    tm, m_pad = _choose_m(M, block_m)
    tk, k_pad = _choose_k(K, block_k)
    if (m_pad, k_pad) != (M, K):
        x2d = _pad_to(x2d, (m_pad, k_pad))
    if k_pad != K:
        w = _pad_to(w, (k_pad, C))
    flops = 2 * m_pad * k_pad * C
    bytes_acc = (m_pad * k_pad * x2d.dtype.itemsize + k_pad * C * w.dtype.itemsize
                 + m_pad * C * jnp.dtype(out_dtype).itemsize + 2 * C * 4)
    out = pl.pallas_call(
        _pw_conv_kernel,
        out_shape=jax.ShapeDtypeStruct((m_pad, C), out_dtype),
        grid=(m_pad // tm, k_pad // tk),
        in_specs=[
            pl.BlockSpec((tm, tk), lambda i, k: (i, k)),
            pl.BlockSpec((tk, C), lambda i, k: (k, 0)),
            pl.BlockSpec((1, C), lambda i, k: (0, 0)),
            pl.BlockSpec((1, C), lambda i, k: (0, 0)),
        ],
        out_specs=pl.BlockSpec((tm, C), lambda i, k: (i, 0)),
        scratch_shapes=[pltpu.VMEM((tm, C), jnp.float32)],
        compiler_params=pltpu.CompilerParams(
            dimension_semantics=("parallel", "arbitrary"),
            vmem_limit_bytes=_VMEM_LIMIT),
        cost_estimate=pl.CostEstimate(flops=int(flops), transcendentals=0,
                                      bytes_accessed=int(bytes_acc)),
    )(x2d, w, bias.reshape(1, C), mask.reshape(1, C))
    return out if m_pad == M else out[:M]


def pw_conv_bn_add_relu(x2d, w, bias, res2d, *, out_dtype, block_m=512,
                        block_k=512):
    M, K = x2d.shape
    C = w.shape[1]
    tm, m_pad = _choose_m(M, block_m)
    tk, k_pad = _choose_k(K, block_k)
    if (m_pad, k_pad) != (M, K):
        x2d = _pad_to(x2d, (m_pad, k_pad))
    if k_pad != K:
        w = _pad_to(w, (k_pad, C))
    if m_pad != M:
        res2d = _pad_to(res2d, (m_pad, C))
    flops = 2 * m_pad * k_pad * C
    bytes_acc = (m_pad * k_pad * x2d.dtype.itemsize + k_pad * C * w.dtype.itemsize
                 + m_pad * C * res2d.dtype.itemsize
                 + m_pad * C * jnp.dtype(out_dtype).itemsize + C * 4)
    out = pl.pallas_call(
        _pw_conv_add_relu_kernel,
        out_shape=jax.ShapeDtypeStruct((m_pad, C), out_dtype),
        grid=(m_pad // tm, k_pad // tk),
        in_specs=[
            pl.BlockSpec((tm, tk), lambda i, k: (i, k)),
            pl.BlockSpec((tk, C), lambda i, k: (k, 0)),
            pl.BlockSpec((1, C), lambda i, k: (0, 0)),
            pl.BlockSpec((tm, C), lambda i, k: (i, 0)),
        ],
        out_specs=pl.BlockSpec((tm, C), lambda i, k: (i, 0)),
        scratch_shapes=[pltpu.VMEM((tm, C), jnp.float32)],
        compiler_params=pltpu.CompilerParams(
            dimension_semantics=("parallel", "arbitrary"),
            vmem_limit_bytes=_VMEM_LIMIT),
        cost_estimate=pl.CostEstimate(flops=int(flops), transcendentals=0,
                                      bytes_accessed=int(bytes_acc)),
    )(x2d, w, bias.reshape(1, C), res2d)
    return out if m_pad == M else out[:M]


def conv3x3_bn_relu(h_nhwc, w9, bias, dilation, *, out_dtype):
    N, H, W, Cin = h_nhwc.shape
    Cout = w9.shape[2]
    d = dilation
    hp = jnp.pad(h_nhwc, ((0, 0), (d, d), (d, d), (0, 0)))
    Hp, Wp = H + 2 * d, W + 2 * d
    kern = functools.partial(_conv3x3_bias_relu_kernel, dilation=d,
                             out_h=H, out_w=W)
    flops = 2 * N * H * W * 9 * Cin * Cout
    bytes_acc = (hp.size * hp.dtype.itemsize + w9.size * w9.dtype.itemsize
                 + N * H * W * Cout * jnp.dtype(out_dtype).itemsize + Cout * 4)
    return pl.pallas_call(
        kern,
        out_shape=jax.ShapeDtypeStruct((N, H, W, Cout), out_dtype),
        grid=(N,),
        in_specs=[
            pl.BlockSpec((1, Hp, Wp, Cin), lambda n: (n, 0, 0, 0)),
            pl.BlockSpec((9, Cin, Cout), lambda n: (0, 0, 0)),
            pl.BlockSpec((1, Cout), lambda n: (0, 0)),
        ],
        out_specs=pl.BlockSpec((1, H, W, Cout), lambda n: (n, 0, 0, 0)),
        compiler_params=pltpu.CompilerParams(
            dimension_semantics=("parallel",),
            vmem_limit_bytes=_VMEM_LIMIT),
        cost_estimate=pl.CostEstimate(flops=int(flops), transcendentals=0,
                                      bytes_accessed=int(bytes_acc)),
    )(hp, w9, bias.reshape(1, Cout))


# ---------------------------------------------------------------------------
# Glue (layout, BN folding, weight prep)
# ---------------------------------------------------------------------------
def fold_bn(gamma, beta, mean, var, eps=1e-5):
    scale = gamma / jnp.sqrt(var + eps)
    return scale, beta - mean * scale


def _prep_pw_weight(w_oihw, bn, cin_p, cout_p):
    """1x1 conv weight + BN -> scale-folded, zero-padded (cin_p, cout_p), f32 bias."""
    scale, bias = fold_bn(*bn)
    w = w_oihw[:, :, 0, 0].T * scale[None, :]          # (Cin, Cout)
    return _pad_to(w, (cin_p, cout_p)), _pad_to(bias, (cout_p,))


def _prep_3x3_weight(w_oihw, bn, cin_p, cout_p):
    """3x3 conv weight + BN -> (9, cin_p, cout_p) per-tap stack, f32 bias."""
    scale, bias = fold_bn(*bn)
    cout, cin = w_oihw.shape[0], w_oihw.shape[1]
    w = jnp.transpose(w_oihw, (2, 3, 1, 0)).reshape(9, cin, cout) * scale[None, None, :]
    return _pad_to(w, (9, cin_p, cout_p)), _pad_to(bias, (cout_p,))


def bottleneck_forward(x_nchw, params, stride, dilation, downsample, *,
                       compute_dtype=jnp.bfloat16, block_m=512):
    f32 = jnp.float32
    cdt = compute_dtype
    x = jnp.transpose(x_nchw, (0, 2, 3, 1))            # NCHW -> NHWC
    N, H, W, Cin = x.shape
    xs = x[:, ::stride, ::stride, :]                   # 1x1 conv w/ stride == subsample
    Ho, Wo = xs.shape[1], xs.shape[2]
    M = N * Ho * Wo

    cin_p = _round_up(Cin, _LANE)
    cmid = params['reduce']['w'].shape[0]
    cmid_p = _round_up(cmid, _LANE)
    cout = params['increase']['w'].shape[0]
    cout_p = _round_up(cout, _LANE)

    w_r, b_r = _prep_pw_weight(params['reduce']['w'], params['reduce']['bn'],
                               cin_p, cmid_p)
    w_i, b_i = _prep_pw_weight(params['increase']['w'], params['increase']['bn'],
                               cmid_p, cout_p)
    w_c, b_c = _prep_3x3_weight(params['conv3x3']['w'], params['conv3x3']['bn'],
                                cmid_p, cmid_p)

    xs2 = _pad_to(xs.reshape(M, Cin), (M, cin_p)).astype(cdt)

    # Stage 1: reduce 1x1 (+ optional proj 1x1) fused into one launch.
    if downsample:
        w_p, b_p = _prep_pw_weight(params['proj']['w'], params['proj']['bn'],
                                   cin_p, cout_p)
        w1 = jnp.concatenate([w_r, w_p], axis=1)
        b1 = jnp.concatenate([b_r, b_p], axis=0)
        m1 = jnp.concatenate([jnp.ones((cmid_p,), f32), jnp.zeros((cout_p,), f32)])
    else:
        w1, b1, m1 = w_r, b_r, jnp.ones((cmid_p,), f32)

    out1 = pw_conv_bn(xs2, w1.astype(cdt), b1, m1, out_dtype=cdt, block_m=block_m)
    h2 = out1[:, :cmid_p]
    if downsample:
        res = out1[:, cmid_p:]
    else:
        res = xs2  # identity residual: requires Cin == Cout (as in the PyTorch module)

    # Stage 2: fused 3x3 dilated conv + BN + ReLU (no HBM im2col).
    h3 = conv3x3_bn_relu(h2.reshape(N, Ho, Wo, cmid_p), w_c.astype(cdt), b_c,
                         dilation, out_dtype=cdt)

    # Stage 3: increase 1x1 + BN + residual add + ReLU.
    out = pw_conv_bn_add_relu(h3.reshape(M, cmid_p), w_i.astype(cdt), b_i, res,
                              out_dtype=f32, block_m=block_m)
    out = out[:, :cout].reshape(N, Ho, Wo, cout)
    return jnp.transpose(out, (0, 3, 1, 2))            # back to NCHW


_bottleneck_jit = jax.jit(
    bottleneck_forward,
    static_argnames=("stride", "dilation", "downsample", "compute_dtype", "block_m"))


# ---------------------------------------------------------------------------
# Deterministic parameter init (shapes per the PyTorch module's __init__)
# ---------------------------------------------------------------------------
def init_params(key, inplanes, midplanes, outplanes, downsample):
    keys = jax.random.split(key, 8)

    def conv_w(k, cout, cin, kh, kw):
        return 0.1 * jax.random.normal(k, (cout, cin, kh, kw), jnp.float32)

    def bn_p(k, c):
        k1, k2, k3, k4 = jax.random.split(k, 4)
        gamma = 1.0 + 0.1 * jax.random.normal(k1, (c,), jnp.float32)
        beta = 0.1 * jax.random.normal(k2, (c,), jnp.float32)
        mean = 0.1 * jax.random.normal(k3, (c,), jnp.float32)
        var = jax.random.uniform(k4, (c,), jnp.float32, minval=0.5, maxval=1.5)
        return (gamma, beta, mean, var)

    params = {
        'reduce':   {'w': conv_w(keys[0], midplanes, inplanes, 1, 1), 'bn': bn_p(keys[1], midplanes)},
        'conv3x3':  {'w': conv_w(keys[2], midplanes, midplanes, 3, 3), 'bn': bn_p(keys[3], midplanes)},
        'increase': {'w': conv_w(keys[4], outplanes, midplanes, 1, 1), 'bn': bn_p(keys[5], outplanes)},
    }
    if downsample:
        params['proj'] = {'w': conv_w(keys[6], outplanes, inplanes, 1, 1), 'bn': bn_p(keys[7], outplanes)}
    return params


# ---------------------------------------------------------------------------
# Pure-JAX reference (NCHW, mirrors the PyTorch forward) for validation
# ---------------------------------------------------------------------------
def reference_forward(x, params, stride, dilation, downsample, eps=1e-5):
    def cbr(x, w, bn, stride, padding, dilation, relu):
        y = jax.lax.conv_general_dilated(
            x, w, (stride, stride), [(padding, padding)] * 2,
            rhs_dilation=(dilation, dilation),
            dimension_numbers=('NCHW', 'OIHW', 'NCHW'))
        gamma, beta, mean, var = bn
        scale = gamma / jnp.sqrt(var + eps)
        bias = beta - mean * scale
        y = y * scale[None, :, None, None] + bias[None, :, None, None]
        return jnp.maximum(y, 0.0) if relu else y

    h = cbr(x, params['reduce']['w'], params['reduce']['bn'], stride, 0, 1, True)
    h = cbr(h, params['conv3x3']['w'], params['conv3x3']['bn'], 1, dilation, dilation, True)
    h = cbr(h, params['increase']['w'], params['increase']['bn'], 1, 0, 1, False)
    if downsample:
        h = h + cbr(x, params['proj']['w'], params['proj']['bn'], stride, 0, 1, False)
    else:
        h = h + x
    return jnp.maximum(h, 0.0)


# ---------------------------------------------------------------------------
if __name__ == "__main__":
    key = jax.random.PRNGKey(0)
    kx, kp = jax.random.split(key)

    N, Cin, H, W = 2, 16, 16, 16
    midplanes, Cout = 8, 32
    stride, dilation, downsample = 1, 2, True

    x = jax.random.normal(kx, (N, Cin, H, W), jnp.float32)
    params = init_params(kp, Cin, midplanes, Cout, downsample)

    ref = reference_forward(x, params, stride, dilation, downsample)

    # f32 MXU path: tight check against the XLA reference.
    out_f32 = jax.block_until_ready(
        _bottleneck_jit(x, params, stride=stride, dilation=dilation,
                        downsample=downsample, compute_dtype=jnp.float32))
    assert out_f32.shape == ref.shape, (out_f32.shape, ref.shape)
    err_f32 = float(jnp.max(jnp.abs(out_f32 - ref)))
    if err_f32 > 2e-3:
        raise AssertionError(f"f32 Pallas mismatch vs reference: max_err={err_f32}")

    # bf16 MXU path (default / fast): scale-relative check.
    out_bf16 = jax.block_until_ready(
        _bottleneck_jit(x, params, stride=stride, dilation=dilation,
                        downsample=downsample, compute_dtype=jnp.bfloat16))
    err_b = float(jnp.max(jnp.abs(out_bf16 - ref)))
    tol_b = 3e-2 * float(jnp.max(jnp.abs(ref))) + 1e-3
    if err_b > tol_b:
        raise AssertionError(f"bf16 Pallas mismatch vs reference: {err_b} > {tol_b}")

    print("KERNEL_OK")
</pallas_src>

<mosaic_0001>
module attributes {stable_mosaic.version = 11 : i64} {
  func.func @_pw_conv_kernel(%arg0: i32, %arg1: i32, %arg2: memref<512x128xf32, #tpu.memory_space<vmem>>, %arg3: memref<128x256xf32, #tpu.memory_space<vmem>>, %arg4: memref<1x256xf32, #tpu.memory_space<vmem>>, %arg5: memref<1x256xf32, #tpu.memory_space<vmem>>, %arg6: memref<512x256xf32, #tpu.memory_space<vmem>>, %arg7: memref<512x256xf32, #tpu.memory_space<vmem>>) attributes {dimension_semantics = [#tpu.dimension_semantics<parallel>, #tpu.dimension_semantics<arbitrary>], iteration_bounds = array<i64: 1, 1>, scalar_prefetch = 0 : i64, scratch_operands = 1 : i64, tpu.core_type = #tpu.core_type<tc>, window_params = [{transform_indices = @transform_0, window_bounds = array<i64: 512, 128>}, {transform_indices = @transform_1, window_bounds = array<i64: 128, 256>}, {pipeline_mode = #tpu.pipeline_mode<synchronous>, transform_indices = @transform_2, window_bounds = array<i64: 1, 256>}, {pipeline_mode = #tpu.pipeline_mode<synchronous>, transform_indices = @transform_3, window_bounds = array<i64: 1, 256>}, {transform_indices = @transform_4, window_bounds = array<i64: 512, 256>}]} {
    %c0_i32 = arith.constant 0 : i32
    %0 = arith.cmpi eq, %arg1, %c0_i32 : i32
    %1 = arith.extui %0 : i1 to i32
    %c0_i32_0 = arith.constant 0 : i32
    %2 = arith.cmpi ne, %1, %c0_i32_0 : i32
    scf.if %2 {
      %cst_10 = arith.constant 0.000000e+00 : f32
      %12 = vector.broadcast %cst_10 : f32 to vector<512x256xf32>
      %c0_11 = arith.constant 0 : index
      %c0_12 = arith.constant 0 : index
      %13 = vector.load %arg7[%c0_11, %c0_12] : memref<512x256xf32, #tpu.memory_space<vmem>>, vector<512x256xf32>
      tpu.vector_store %arg7[%c0_11, %c0_12], %12 {strides = array<i32>} : memref<512x256xf32, #tpu.memory_space<vmem>>, vector<512x256xf32>,
    } else {
    }
    %c0 = arith.constant 0 : index
    %c0_1 = arith.constant 0 : index
    %3 = vector.load %arg7[%c0, %c0_1] : memref<512x256xf32, #tpu.memory_space<vmem>>, vector<512x256xf32>
    %c0_2 = arith.constant 0 : index
    %c0_3 = arith.constant 0 : index
    %4 = vector.load %arg2[%c0_2, %c0_3] : memref<512x128xf32, #tpu.memory_space<vmem>>, vector<512x128xf32>
    %c0_4 = arith.constant 0 : index
    %c0_5 = arith.constant 0 : index
    %5 = vector.load %arg3[%c0_4, %c0_5] : memref<128x256xf32, #tpu.memory_space<vmem>>, vector<128x256xf32>
    %cst = arith.constant dense<0.000000e+00> : vector<512x256xf32>
    %6 = tpu.matmul %4, %5, %cst {dimension_numbers = #tpu.dot_dimension_numbers<[1], [0], [0], [1], [0, 0, 1, 1], [], []>} : vector<512x128xf32>, vector<128x256xf32>, vector<512x256xf32> -> vector<512x256xf32>
    %7 = arith.addf %3, %6 : vector<512x256xf32>
    %c0_6 = arith.constant 0 : index
    %c0_7 = arith.constant 0 : index
    %8 = vector.load %arg7[%c0_6, %c0_7] : memref<512x256xf32, #tpu.memory_space<vmem>>, vector<512x256xf32>
    tpu.vector_store %arg7[%c0_6, %c0_7], %7 {strides = array<i32>} : memref<512x256xf32, #tpu.memory_space<vmem>>, vector<512x256xf32>,
    %c0_i32_8 = arith.constant 0 : i32
    %9 = arith.cmpi eq, %arg1, %c0_i32_8 : i32
    %10 = arith.extui %9 : i1 to i32
    %c0_i32_9 = arith.constant 0 : i32
    %11 = arith.cmpi ne, %10, %c0_i32_9 : i32
    scf.if %11 {
      %c0_10 = arith.constant 0 : index
      %c0_11 = arith.constant 0 : index
      %12 = vector.load %arg7[%c0_10, %c0_11] : memref<512x256xf32, #tpu.memory_space<vmem>>, vector<512x256xf32>
      %c0_12 = arith.constant 0 : index
      %c0_13 = arith.constant 0 : index
      %13 = vector.load %arg4[%c0_12, %c0_13] : memref<1x256xf32, #tpu.memory_space<vmem>>, vector<1x256xf32>
      %14 = vector.broadcast %13 : vector<1x256xf32> to vector<512x256xf32>
      %15 = arith.addf %12, %14 : vector<512x256xf32>
      %c0_14 = arith.constant 0 : index
      %c0_15 = arith.constant 0 : index
      %16 = vector.load %arg5[%c0_14, %c0_15] : memref<1x256xf32, #tpu.memory_space<vmem>>, vector<1x256xf32>
      %cst_16 = arith.constant 5.000000e-01 : f32
      %17 = vector.broadcast %cst_16 : f32 to vector<1x256xf32>
      %18 = arith.cmpf ogt, %16, %17 : vector<1x256xf32>
      %cst_17 = arith.constant 0.000000e+00 : f32
      %19 = vector.broadcast %cst_17 : f32 to vector<512x256xf32>
      %20 = arith.maximumf %15, %19 : vector<512x256xf32>
      %21 = vector.shape_cast %18 : vector<1x256xi1> to vector<1x256xi1>
      %22 = vector.broadcast %21 : vector<1x256xi1> to vector<512x256xi1>
      %23 = arith.select %22, %20, %15 : vector<512x256xi1>, vector<512x256xf32>
      %c0_18 = arith.constant 0 : index
      %c0_19 = arith.constant 0 : index
      %24 = vector.load %arg6[%c0_18, %c0_19] : memref<512x256xf32, #tpu.memory_space<vmem>>, vector<512x256xf32>
      tpu.vector_store %arg6[%c0_18, %c0_19], %23 {strides = array<i32>} : memref<512x256xf32, #tpu.memory_space<vmem>>, vector<512x256xf32>,
    } else {
    }
    return
  }
  func.func @transform_0(%arg0: i32, %arg1: i32) -> (i32, i32) {
    %c0_i32 = arith.constant 0 : i32
    return %arg0, %arg1 : i32, i32
  }
  func.func @transform_1(%arg0: i32, %arg1: i32) -> (i32, i32) {
    %c0_i32 = arith.constant 0 : i32
    %c0_i32_0 = arith.constant 0 : i32
    return %arg1, %c0_i32 : i32, i32
  }
  func.func @transform_2(%arg0: i32, %arg1: i32) -> (i32, i32) {
    %c0_i32 = arith.constant 0 : i32
    %c0_i32_0 = arith.constant 0 : i32
    %c0_i32_1 = arith.constant 0 : i32
    return %c0_i32, %c0_i32_0 : i32, i32
  }
  func.func @transform_3(%arg0: i32, %arg1: i32) -> (i32, i32) {
    %c0_i32 = arith.constant 0 : i32
    %c0_i32_0 = arith.constant 0 : i32
    %c0_i32_1 = arith.constant 0 : i32
    return %c0_i32, %c0_i32_0 : i32, i32
  }
  func.func @transform_4(%arg0: i32, %arg1: i32) -> (i32, i32) {
    %c0_i32 = arith.constant 0 : i32
    %c0_i32_0 = arith.constant 0 : i32
    return %arg0, %c0_i32 : i32, i32
  }
}

module attributes {stable_mosaic.version = 11 : i64} {
  func.func @_conv3x3_bias_relu_kernel(%arg0: i32, %arg1: memref<1x20x20x128xf32, #tpu.memory_space<vmem>>, %arg2: memref<9x128x128xf32, #tpu.memory_space<vmem>>, %arg3: memref<1x128xf32, #tpu.memory_space<vmem>>, %arg4: memref<1x16x16x128xf32, #tpu.memory_space<vmem>>) attributes {dimension_semantics = [#tpu.dimension_semantics<parallel>], iteration_bounds = array<i64: 2>, scalar_prefetch = 0 : i64, scratch_operands = 0 : i64, tpu.core_type = #tpu.core_type<tc>, window_params = [{transform_indices = @transform_0, window_bounds = array<i64: 1, 20, 20, 128>}, {pipeline_mode = #tpu.pipeline_mode<synchronous>, transform_indices = @transform_1, window_bounds = array<i64: 9, 128, 128>}, {pipeline_mode = #tpu.pipeline_mode<synchronous>, transform_indices = @transform_2, window_bounds = array<i64: 1, 128>}, {transform_indices = @transform_3, window_bounds = array<i64: 1, 16, 16, 128>}]} {
    %c0 = arith.constant 0 : index
    %c0_0 = arith.constant 0 : index
    %c0_1 = arith.constant 0 : index
    %c0_2 = arith.constant 0 : index
    %0 = vector.load %arg1[%c0, %c0_0, %c0_1, %c0_2] : memref<1x20x20x128xf32, #tpu.memory_space<vmem>>, vector<1x20x20x128xf32>
    %cst = arith.constant 0.000000e+00 : f32
    %1 = vector.broadcast %cst : f32 to vector<256x128xf32>
    %2 = vector.extract_strided_slice %0 {offsets = [0, 0, 0, 0], sizes = [1, 16, 16, 128], strides = [1, 1, 1, 1]} : vector<1x20x20x128xf32> to vector<1x16x16x128xf32>
    %3 = vector.shape_cast %2 : vector<1x16x16x128xf32> to vector<16x16x128xf32>
    %4 = vector.shape_cast %3 : vector<16x16x128xf32> to vector<256x128xf32>
    %c0_3 = arith.constant 0 : index
    %c0_4 = arith.constant 0 : index
    %c0_5 = arith.constant 0 : index
    %5 = vector.load %arg2[%c0_3, %c0_4, %c0_5] : memref<9x128x128xf32, #tpu.memory_space<vmem>>, vector<1x128x128xf32>
    %6 = vector.shape_cast %5 : vector<1x128x128xf32> to vector<128x128xf32>
    %cst_6 = arith.constant dense<0.000000e+00> : vector<256x128xf32>
    %7 = tpu.matmul %4, %6, %cst_6 {dimension_numbers = #tpu.dot_dimension_numbers<[1], [0], [0], [1], [0, 0, 1, 1], [], []>} : vector<256x128xf32>, vector<128x128xf32>, vector<256x128xf32> -> vector<256x128xf32>
    %8 = arith.addf %1, %7 : vector<256x128xf32>
    %9 = vector.extract_strided_slice %0 {offsets = [0, 0, 2, 0], sizes = [1, 16, 16, 128], strides = [1, 1, 1, 1]} : vector<1x20x20x128xf32> to vector<1x16x16x128xf32>
    %10 = vector.shape_cast %9 : vector<1x16x16x128xf32> to vector<16x16x128xf32>
    %11 = vector.shape_cast %10 : vector<16x16x128xf32> to vector<256x128xf32>
    %c1 = arith.constant 1 : index
    %c0_7 = arith.constant 0 : index
    %c0_8 = arith.constant 0 : index
    %12 = vector.load %arg2[%c1, %c0_7, %c0_8] : memref<9x128x128xf32, #tpu.memory_space<vmem>>, vector<1x128x128xf32>
    %13 = vector.shape_cast %12 : vector<1x128x128xf32> to vector<128x128xf32>
    %cst_9 = arith.constant dense<0.000000e+00> : vector<256x128xf32>
    %14 = tpu.matmul %11, %13, %cst_9 {dimension_numbers = #tpu.dot_dimension_numbers<[1], [0], [0], [1], [0, 0, 1, 1], [], []>} : vector<256x128xf32>, vector<128x128xf32>, vector<256x128xf32> -> vector<256x128xf32>
    %15 = arith.addf %8, %14 : vector<256x128xf32>
    %16 = vector.extract_strided_slice %0 {offsets = [0, 0, 4, 0], sizes = [1, 16, 16, 128], strides = [1, 1, 1, 1]} : vector<1x20x20x128xf32> to vector<1x16x16x128xf32>
    %17 = vector.shape_cast %16 : vector<1x16x16x128xf32> to vector<16x16x128xf32>
    %18 = vector.shape_cast %17 : vector<16x16x128xf32> to vector<256x128xf32>
    %c2 = arith.constant 2 : index
    %c0_10 = arith.constant 0 : index
    %c0_11 = arith.constant 0 : index
    %19 = vector.load %arg2[%c2, %c0_10, %c0_11] : memref<9x128x128xf32, #tpu.memory_space<vmem>>, vector<1x128x128xf32>
    %20 = vector.shape_cast %19 : vector<1x128x128xf32> to vector<128x128xf32>
    %cst_12 = arith.constant dense<0.000000e+00> : vector<256x128xf32>
    %21 = tpu.matmul %18, %20, %cst_12 {dimension_numbers = #tpu.dot_dimension_numbers<[1], [0], [0], [1], [0, 0, 1, 1], [], []>} : vector<256x128xf32>, vector<128x128xf32>, vector<256x128xf32> -> vector<256x128xf32>
    %22 = arith.addf %15, %21 : vector<256x128xf32>
    %23 = vector.extract_strided_slice %0 {offsets = [0, 2, 0, 0], sizes = [1, 16, 16, 128], strides = [1, 1, 1, 1]} : vector<1x20x20x128xf32> to vector<1x16x16x128xf32>
    %24 = vector.shape_cast %23 : vector<1x16x16x128xf32> to vector<16x16x128xf32>
    %25 = vector.shape_cast %24 : vector<16x16x128xf32> to vector<256x128xf32>
    %c3 = arith.constant 3 : index
    %c0_13 = arith.constant 0 : index
    %c0_14 = arith.constant 0 : index
    %26 = vector.load %arg2[%c3, %c0_13, %c0_14] : memref<9x128x128xf32, #tpu.memory_space<vmem>>, vector<1x128x128xf32>
    %27 = vector.shape_cast %26 : vector<1x128x128xf32> to vector<128x128xf32>
    %cst_15 = arith.constant dense<0.000000e+00> : vector<256x128xf32>
    %28 = tpu.matmul %25, %27, %cst_15 {dimension_numbers = #tpu.dot_dimension_numbers<[1], [0], [0], [1], [0, 0, 1, 1], [], []>} : vector<256x128xf32>, vector<128x128xf32>, vector<256x128xf32> -> vector<256x128xf32>
    %29 = arith.addf %22, %28 : vector<256x128xf32>
    %30 = vector.extract_strided_slice %0 {offsets = [0, 2, 2, 0], sizes = [1, 16, 16, 128], strides = [1, 1, 1, 1]} : vector<1x20x20x128xf32> to vector<1x16x16x128xf32>
    %31 = vector.shape_cast %30 : vector<1x16x16x128xf32> to vector<16x16x128xf32>
    %32 = vector.shape_cast %31 : vector<16x16x128xf32> to vector<256x128xf32>
    %c4 = arith.constant 4 : index
    %c0_16 = arith.constant 0 : index
    %c0_17 = arith.constant 0 : index
    %33 = vector.load %arg2[%c4, %c0_16, %c0_17] : memref<9x128x128xf32, #tpu.memory_space<vmem>>, vector<1x128x128xf32>
    %34 = vector.shape_cast %33 : vector<1x128x128xf32> to vector<128x128xf32>
    %cst_18 = arith.constant dense<0.000000e+00> : vector<256x128xf32>
    %35 = tpu.matmul %32, %34, %cst_18 {dimension_numbers = #tpu.dot_dimension_numbers<[1], [0], [0], [1], [0, 0, 1, 1], [], []>} : vector<256x128xf32>, vector<128x128xf32>, vector<256x128xf32> -> vector<256x128xf32>
    %36 = arith.addf %29, %35 : vector<256x128xf32>
    %37 = vector.extract_strided_slice %0 {offsets = [0, 2, 4, 0], sizes = [1, 16, 16, 128], strides = [1, 1, 1, 1]} : vector<1x20x20x128xf32> to vector<1x16x16x128xf32>
    %38 = vector.shape_cast %37 : vector<1x16x16x128xf32> to vector<16x16x128xf32>
    %39 = vector.shape_cast %38 : vector<16x16x128xf32> to vector<256x128xf32>
    %c5 = arith.constant 5 : index
    %c0_19 = arith.constant 0 : index
    %c0_20 = arith.constant 0 : index
    %40 = vector.load %arg2[%c5, %c0_19, %c0_20] : memref<9x128x128xf32, #tpu.memory_space<vmem>>, vector<1x128x128xf32>
    %41 = vector.shape_cast %40 : vector<1x128x128xf32> to vector<128x128xf32>
    %cst_21 = arith.constant dense<0.000000e+00> : vector<256x128xf32>
    %42 = tpu.matmul %39, %41, %cst_21 {dimension_numbers = #tpu.dot_dimension_numbers<[1], [0], [0], [1], [0, 0, 1, 1], [], []>} : vector<256x128xf32>, vector<128x128xf32>, vector<256x128xf32> -> vector<256x128xf32>
    %43 = arith.addf %36, %42 : vector<256x128xf32>
    %44 = vector.extract_strided_slice %0 {offsets = [0, 4, 0, 0], sizes = [1, 16, 16, 128], strides = [1, 1, 1, 1]} : vector<1x20x20x128xf32> to vector<1x16x16x128xf32>
    %45 = vector.shape_cast %44 : vector<1x16x16x128xf32> to vector<16x16x128xf32>
    %46 = vector.shape_cast %45 : vector<16x16x128xf32> to vector<256x128xf32>
    %c6 = arith.constant 6 : index
    %c0_22 = arith.constant 0 : index
    %c0_23 = arith.constant 0 : index
    %47 = vector.load %arg2[%c6, %c0_22, %c0_23] : memref<9x128x128xf32, #tpu.memory_space<vmem>>, vector<1x128x128xf32>
    %48 = vector.shape_cast %47 : vector<1x128x128xf32> to vector<128x128xf32>
    %cst_24 = arith.constant dense<0.000000e+00> : vector<256x128xf32>
    %49 = tpu.matmul %46, %48, %cst_24 {dimension_numbers = #tpu.dot_dimension_numbers<[1], [0], [0], [1], [0, 0, 1, 1], [], []>} : vector<256x128xf32>, vector<128x128xf32>, vector<256x128xf32> -> vector<256x128xf32>
    %50 = arith.addf %43, %49 : vector<256x128xf32>
    %51 = vector.extract_strided_slice %0 {offsets = [0, 4, 2, 0], sizes = [1, 16, 16, 128], strides = [1, 1, 1, 1]} : vector<1x20x20x128xf32> to vector<1x16x16x128xf32>
    %52 = vector.shape_cast %51 : vector<1x16x16x128xf32> to vector<16x16x128xf32>
    %53 = vector.shape_cast %52 : vector<16x16x128xf32> to vector<256x128xf32>
    %c7 = arith.constant 7 : index
    %c0_25 = arith.constant 0 : index
    %c0_26 = arith.constant 0 : index
    %54 = vector.load %arg2[%c7, %c0_25, %c0_26] : memref<9x128x128xf32, #tpu.memory_space<vmem>>, vector<1x128x128xf32>
    %55 = vector.shape_cast %54 : vector<1x128x128xf32> to vector<128x128xf32>
    %cst_27 = arith.constant dense<0.000000e+00> : vector<256x128xf32>
    %56 = tpu.matmul %53, %55, %cst_27 {dimension_numbers = #tpu.dot_dimension_numbers<[1], [0], [0], [1], [0, 0, 1, 1], [], []>} : vector<256x128xf32>, vector<128x128xf32>, vector<256x128xf32> -> vector<256x128xf32>
    %57 = arith.addf %50, %56 : vector<256x128xf32>
    %58 = vector.extract_strided_slice %0 {offsets = [0, 4, 4, 0], sizes = [1, 16, 16, 128], strides = [1, 1, 1, 1]} : vector<1x20x20x128xf32> to vector<1x16x16x128xf32>
    %59 = vector.shape_cast %58 : vector<1x16x16x128xf32> to vector<16x16x128xf32>
    %60 = vector.shape_cast %59 : vector<16x16x128xf32> to vector<256x128xf32>
    %c8 = arith.constant 8 : index
    %c0_28 = arith.constant 0 : index
    %c0_29 = arith.constant 0 : index
    %61 = vector.load %arg2[%c8, %c0_28, %c0_29] : memref<9x128x128xf32, #tpu.memory_space<vmem>>, vector<1x128x128xf32>
    %62 = vector.shape_cast %61 : vector<1x128x128xf32> to vector<128x128xf32>
    %cst_30 = arith.constant dense<0.000000e+00> : vector<256x128xf32>
    %63 = tpu.matmul %60, %62, %cst_30 {dimension_numbers = #tpu.dot_dimension_numbers<[1], [0], [0], [1], [0, 0, 1, 1], [], []>} : vector<256x128xf32>, vector<128x128xf32>, vector<256x128xf32> -> vector<256x128xf32>
    %64 = arith.addf %57, %63 : vector<256x128xf32>
    %c0_31 = arith.constant 0 : index
    %c0_32 = arith.constant 0 : index
    %65 = vector.load %arg3[%c0_31, %c0_32] : memref<1x128xf32, #tpu.memory_space<vmem>>, vector<1x128xf32>
    %66 = vector.broadcast %65 : vector<1x128xf32> to vector<256x128xf32>
    %67 = arith.addf %64, %66 : vector<256x128xf32>
    %cst_33 = arith.constant 0.000000e+00 : f32
    %68 = vector.broadcast %cst_33 : f32 to vector<256x128xf32>
    %69 = arith.maximumf %67, %68 : vector<256x128xf32>
    %70 = vector.shape_cast %69 : vector<256x128xf32> to vector<1x16x16x128xf32>
    %c0_34 = arith.constant 0 : index
    %c0_35 = arith.constant 0 : index
    %c0_36 = arith.constant 0 : index
    %c0_37 = arith.constant 0 : index
    %71 = vector.load %arg4[%c0_34, %c0_35, %c0_36, %c0_37] : memref<1x16x16x128xf32, #tpu.memory_space<vmem>>, vector<1x16x16x128xf32>
    tpu.vector_store %arg4[%c0_34, %c0_35, %c0_36, %c0_37], %70 {strides = array<i32>} : memref<1x16x16x128xf32, #tpu.memory_space<vmem>>, vector<1x16x16x128xf32>,
    return
  }
  func.func @transform_0(%arg0: i32) -> (i32, i32, i32, i32) {
    %c0_i32 = arith.constant 0 : i32
    %c0_i32_0 = arith.constant 0 : i32
    %c0_i32_1 = arith.constant 0 : i32
    %c0_i32_2 = arith.constant 0 : i32
    return %arg0, %c0_i32, %c0_i32_0, %c0_i32_1 : i32, i32, i32, i32
  }
  func.func @transform_1(%arg0: i32) -> (i32, i32, i32) {
    %c0_i32 = arith.constant 0 : i32
    %c0_i32_0 = arith.constant 0 : i32
    %c0_i32_1 = arith.constant 0 : i32
    %c0_i32_2 = arith.constant 0 : i32
    return %c0_i32, %c0_i32_0, %c0_i32_1 : i32, i32, i32
  }
  func.func @transform_2(%arg0: i32) -> (i32, i32) {
    %c0_i32 = arith.constant 0 : i32
    %c0_i32_0 = arith.constant 0 : i32
    %c0_i32_1 = arith.constant 0 : i32
    return %c0_i32, %c0_i32_0 : i32, i32
  }
  func.func @transform_3(%arg0: i32) -> (i32, i32, i32, i32) {
    %c0_i32 = arith.constant 0 : i32
    %c0_i32_0 = arith.constant 0 : i32
    %c0_i32_1 = arith.constant 0 : i32
    %c0_i32_2 = arith.constant 0 : i32
    return %arg0, %c0_i32, %c0_i32_0, %c0_i32_1 : i32, i32, i32, i32
  }
}

module attributes {stable_mosaic.version = 11 : i64} {
  func.func @_pw_conv_add_relu_kernel(%arg0: i32, %arg1: i32, %arg2: memref<512x128xf32, #tpu.memory_space<vmem>>, %arg3: memref<128x128xf32, #tpu.memory_space<vmem>>, %arg4: memref<1x128xf32, #tpu.memory_space<vmem>>, %arg5: memref<512x128xf32, #tpu.memory_space<vmem>>, %arg6: memref<512x128xf32, #tpu.memory_space<vmem>>, %arg7: memref<512x128xf32, #tpu.memory_space<vmem>>) attributes {dimension_semantics = [#tpu.dimension_semantics<parallel>, #tpu.dimension_semantics<arbitrary>], iteration_bounds = array<i64: 1, 1>, scalar_prefetch = 0 : i64, scratch_operands = 1 : i64, tpu.core_type = #tpu.core_type<tc>, window_params = [{transform_indices = @transform_0, window_bounds = array<i64: 512, 128>}, {transform_indices = @transform_1, window_bounds = array<i64: 128, 128>}, {pipeline_mode = #tpu.pipeline_mode<synchronous>, transform_indices = @transform_2, window_bounds = array<i64: 1, 128>}, {transform_indices = @transform_3, window_bounds = array<i64: 512, 128>}, {transform_indices = @transform_4, window_bounds = array<i64: 512, 128>}]} {
    %c0_i32 = arith.constant 0 : i32
    %0 = arith.cmpi eq, %arg1, %c0_i32 : i32
    %1 = arith.extui %0 : i1 to i32
    %c0_i32_0 = arith.constant 0 : i32
    %2 = arith.cmpi ne, %1, %c0_i32_0 : i32
    scf.if %2 {
      %cst_10 = arith.constant 0.000000e+00 : f32
      %12 = vector.broadcast %cst_10 : f32 to vector<512x128xf32>
      %c0_11 = arith.constant 0 : index
      %c0_12 = arith.constant 0 : index
      %13 = vector.load %arg7[%c0_11, %c0_12] : memref<512x128xf32, #tpu.memory_space<vmem>>, vector<512x128xf32>
      tpu.vector_store %arg7[%c0_11, %c0_12], %12 {strides = array<i32>} : memref<512x128xf32, #tpu.memory_space<vmem>>, vector<512x128xf32>,
    } else {
    }
    %c0 = arith.constant 0 : index
    %c0_1 = arith.constant 0 : index
    %3 = vector.load %arg7[%c0, %c0_1] : memref<512x128xf32, #tpu.memory_space<vmem>>, vector<512x128xf32>
    %c0_2 = arith.constant 0 : index
    %c0_3 = arith.constant 0 : index
    %4 = vector.load %arg2[%c0_2, %c0_3] : memref<512x128xf32, #tpu.memory_space<vmem>>, vector<512x128xf32>
    %c0_4 = arith.constant 0 : index
    %c0_5 = arith.constant 0 : index
    %5 = vector.load %arg3[%c0_4, %c0_5] : memref<128x128xf32, #tpu.memory_space<vmem>>, vector<128x128xf32>
    %cst = arith.constant dense<0.000000e+00> : vector<512x128xf32>
    %6 = tpu.matmul %4, %5, %cst {dimension_numbers = #tpu.dot_dimension_numbers<[1], [0], [0], [1], [0, 0, 1, 1], [], []>} : vector<512x128xf32>, vector<128x128xf32>, vector<512x128xf32> -> vector<512x128xf32>
    %7 = arith.addf %3, %6 : vector<512x128xf32>
    %c0_6 = arith.constant 0 : index
    %c0_7 = arith.constant 0 : index
    %8 = vector.load %arg7[%c0_6, %c0_7] : memref<512x128xf32, #tpu.memory_space<vmem>>, vector<512x128xf32>
    tpu.vector_store %arg7[%c0_6, %c0_7], %7 {strides = array<i32>} : memref<512x128xf32, #tpu.memory_space<vmem>>, vector<512x128xf32>,
    %c0_i32_8 = arith.constant 0 : i32
    %9 = arith.cmpi eq, %arg1, %c0_i32_8 : i32
    %10 = arith.extui %9 : i1 to i32
    %c0_i32_9 = arith.constant 0 : i32
    %11 = arith.cmpi ne, %10, %c0_i32_9 : i32
    scf.if %11 {
      %c0_10 = arith.constant 0 : index
      %c0_11 = arith.constant 0 : index
      %12 = vector.load %arg7[%c0_10, %c0_11] : memref<512x128xf32, #tpu.memory_space<vmem>>, vector<512x128xf32>
      %c0_12 = arith.constant 0 : index
      %c0_13 = arith.constant 0 : index
      %13 = vector.load %arg4[%c0_12, %c0_13] : memref<1x128xf32, #tpu.memory_space<vmem>>, vector<1x128xf32>
      %14 = vector.broadcast %13 : vector<1x128xf32> to vector<512x128xf32>
      %15 = arith.addf %12, %14 : vector<512x128xf32>
      %c0_14 = arith.constant 0 : index
      %c0_15 = arith.constant 0 : index
      %16 = vector.load %arg5[%c0_14, %c0_15] : memref<512x128xf32, #tpu.memory_space<vmem>>, vector<512x128xf32>
      %17 = arith.addf %15, %16 : vector<512x128xf32>
      %cst_16 = arith.constant 0.000000e+00 : f32
      %18 = vector.broadcast %cst_16 : f32 to vector<512x128xf32>
      %19 = arith.maximumf %17, %18 : vector<512x128xf32>
      %c0_17 = arith.constant 0 : index
      %c0_18 = arith.constant 0 : index
      %20 = vector.load %arg6[%c0_17, %c0_18] : memref<512x128xf32, #tpu.memory_space<vmem>>, vector<512x128xf32>
      tpu.vector_store %arg6[%c0_17, %c0_18], %19 {strides = array<i32>} : memref<512x128xf32, #tpu.memory_space<vmem>>, vector<512x128xf32>,
    } else {
    }
    return
  }
  func.func @transform_0(%arg0: i32, %arg1: i32) -> (i32, i32) {
    %c0_i32 = arith.constant 0 : i32
    return %arg0, %arg1 : i32, i32
  }
  func.func @transform_1(%arg0: i32, %arg1: i32) -> (i32, i32) {
    %c0_i32 = arith.constant 0 : i32
    %c0_i32_0 = arith.constant 0 : i32
    return %arg1, %c0_i32 : i32, i32
  }
  func.func @transform_2(%arg0: i32, %arg1: i32) -> (i32, i32) {
    %c0_i32 = arith.constant 0 : i32
    %c0_i32_0 = arith.constant 0 : i32
    %c0_i32_1 = arith.constant 0 : i32
    return %c0_i32, %c0_i32_0 : i32, i32
  }
  func.func @transform_3(%arg0: i32, %arg1: i32) -> (i32, i32) {
    %c0_i32 = arith.constant 0 : i32
    %c0_i32_0 = arith.constant 0 : i32
    return %arg0, %c0_i32 : i32, i32
  }
  func.func @transform_4(%arg0: i32, %arg1: i32) -> (i32, i32) {
    %c0_i32 = arith.constant 0 : i32
    %c0_i32_0 = arith.constant 0 : i32
    return %arg0, %c0_i32 : i32, i32
  }
}

</mosaic_0001>

<llo_original>
// kernel: bottleneck_forward.5
$region0: #{bottleneck_forward.5}
  #allocation0 [shape = 'u32[]', space=smem, size = 0x4, offset = 0x4, fixed_abs, tag = 'smem constant byte address 0x4 - core index']
  #allocation1 [shape = 'u32[144,128]{1,0:T(1,128)}', space=vmem, size = 0x12000, scoped, tag = 'internal scratch']
  #allocation2 [shape = 'f32[512,128]{1,0:T(8,128)}', space=vmem, size = 0x40000, scoped, tag = 'scratch operand']
  %s0 = inlined_call_operand.vmem [shape: f32[512,128], index: 0, kind: input, shape index: {}]
  %s1 = inlined_call_operand.vmem [shape: f32[128,128], index: 1, kind: input, shape index: {}]
  %s2 = inlined_call_operand.vmem [shape: f32[1,128], index: 2, kind: input, shape index: {}]
  %s3 = inlined_call_operand.vmem [shape: f32[512,128], index: 3, kind: input, shape index: {}]
  %s4 = inlined_call_operand.hbm [shape: f32[512,128], index: 4, kind: output, shape index: {}]
  %s5 = sld [smem:[#allocation0]]
  $region34: #{bottleneck_forward.5} parent=0
    _
  %s7 = ssub.s32 1, %s5
  %s8 = scalar_select 0, %s7, %s5
  $region1: #{bottleneck_forward.5} parent=0
    #allocation3 [shape = 'u8[262144]{0}', space=vmem, size = 0x40000, scoped, tag = 'output window, operand 0, single buffered']
    #allocation4 [shape = 's32[1]{0}', space=sflag, size = 0x4, scoped, tag = 'scoped memory for bottleneck_forward.5']
    %9 = vsyncpa [#allocation4], 0
    // Predicated region
    $region2: #{bottleneck_forward.5} parent=1 // pred_check
      _
    $region3: #{bottleneck_forward.5} parent=1 // pred_check_branch
      %11 = sbr.rel (0) target = $region5
    $region4: #{bottleneck_forward.5} parent=1 // pred_region
      _
    $region5: #{bottleneck_forward.5} parent=1 // pred_fallthru
      _
    // Predicated region
    $region6: #{bottleneck_forward.5} parent=1 // pred_check
      _
    $region7: #{bottleneck_forward.5} parent=1 // pred_check_branch
      %13 = sbr.rel (0) target = $region9
    $region8: #{bottleneck_forward.5} parent=1 // pred_region
      _
    $region9: #{bottleneck_forward.5} parent=1 // pred_fallthru
      _
    // Predicated region
    $region10: #{bottleneck_forward.5} parent=1 // pred_check
      _
    $region11: #{bottleneck_forward.5} parent=1 // pred_check_branch
      %15 = sbr.rel (0) target = $region13
    $region12: #{bottleneck_forward.5} parent=1 // pred_region
      _
    $region13: #{bottleneck_forward.5} parent=1 // pred_fallthru
      _
    // Predicated region
    $region14: #{bottleneck_forward.5} parent=1 // pred_check
      _
    $region15: #{bottleneck_forward.5} parent=1 // pred_check_branch
      %17 = sbr.rel (0) target = $region17
    $region16: #{bottleneck_forward.5} parent=1 // pred_region
      _
    $region17: #{bottleneck_forward.5} parent=1 // pred_fallthru
      _
    %p18 = scmp.eq.s32.totalorder 0, 0
    // Predicated region
    $region18: #{bottleneck_forward.5} parent=1 // pred_check
      %p19 = pneg %p18
    $region19: #{bottleneck_forward.5} parent=1 // pred_check_branch
      %21 = sbr.rel (%p19) target = $region21
    $region20: #{bottleneck_forward.5} parent=1 // pred_region
      %22 = vst [vmem:[#allocation2] sm:$0xff] 0.0
      %23 = vst [vmem:[#allocation2 + $0x8] sm:$0xff] 0.0
      %24 = vst [vmem:[#allocation2 + $0x10] sm:$0xff] 0.0
      %25 = vst [vmem:[#allocation2 + $0x18] sm:$0xff] 0.0
      %26 = vst [vmem:[#allocation2 + $0x20] sm:$0xff] 0.0
      %27 = vst [vmem:[#allocation2 + $0x28] sm:$0xff] 0.0
      %28 = vst [vmem:[#allocation2 + $0x30] sm:$0xff] 0.0
      %29 = vst [vmem:[#allocation2 + $0x38] sm:$0xff] 0.0
      %30 = vst [vmem:[#allocation2 + $0x40] sm:$0xff] 0.0
      %31 = vst [vmem:[#allocation2 + $0x48] sm:$0xff] 0.0
      %32 = vst [vmem:[#allocation2 + $0x50] sm:$0xff] 0.0
      %33 = vst [vmem:[#allocation2 + $0x58] sm:$0xff] 0.0
      %34 = vst [vmem:[#allocation2 + $0x60] sm:$0xff] 0.0
      %35 = vst [vmem:[#allocation2 + $0x68] sm:$0xff] 0.0
      %36 = vst [vmem:[#allocation2 + $0x70] sm:$0xff] 0.0
      %37 = vst [vmem:[#allocation2 + $0x78] sm:$0xff] 0.0
      %38 = vst [vmem:[#allocation2 + $0x80] sm:$0xff] 0.0
      %39 = vst [vmem:[#allocation2 + $0x88] sm:$0xff] 0.0
      %40 = vst [vmem:[#allocation2 + $0x90] sm:$0xff] 0.0
      %41 = vst [vmem:[#allocation2 + $0x98] sm:$0xff] 0.0
      %42 = vst [vmem:[#allocation2 + $0xa0] sm:$0xff] 0.0
      %43 = vst [vmem:[#allocation2 + $0xa8] sm:$0xff] 0.0
      %44 = vst [vmem:[#allocation2 + $0xb0] sm:$0xff] 0.0
      %45 = vst [vmem:[#allocation2 + $0xb8] sm:$0xff] 0.0
      %46 = vst [vmem:[#allocation2 + $0xc0] sm:$0xff] 0.0
      %47 = vst [vmem:[#allocation2 + $0xc8] sm:$0xff] 0.0
      %48 = vst [vmem:[#allocation2 + $0xd0] sm:$0xff] 0.0
      %49 = vst [vmem:[#allocation2 + $0xd8] sm:$0xff] 0.0
      %50 = vst [vmem:[#allocation2 + $0xe0] sm:$0xff] 0.0
      %51 = vst [vmem:[#allocation2 + $0xe8] sm:$0xff] 0.0
      %52 = vst [vmem:[#allocation2 + $0xf0] sm:$0xff] 0.0
      %53 = vst [vmem:[#allocation2 + $0xf8] sm:$0xff] 0.0
      %54 = vst [vmem:[#allocation2 + $0x100] sm:$0xff] 0.0
      %55 = vst [vmem:[#allocation2 + $0x108] sm:$0xff] 0.0
      %56 = vst [vmem:[#allocation2 + $0x110] sm:$0xff] 0.0
      %57 = vst [vmem:[#allocation2 + $0x118] sm:$0xff] 0.0
      %58 = vst [vmem:[#allocation2 + $0x120] sm:$0xff] 0.0
      %59 = vst [vmem:[#allocation2 + $0x128] sm:$0xff] 0.0
      %60 = vst [vmem:[#allocation2 + $0x130] sm:$0xff] 0.0
      %61 = vst [vmem:[#allocation2 + $0x138] sm:$0xff] 0.0
      %62 = vst [vmem:[#allocation2 + $0x140] sm:$0xff] 0.0
      %63 = vst [vmem:[#allocation2 + $0x148] sm:$0xff] 0.0
      %64 = vst [vmem:[#allocation2 + $0x150] sm:$0xff] 0.0
      %65 = vst [vmem:[#allocation2 + $0x158] sm:$0xff] 0.0
      %66 = vst [vmem:[#allocation2 + $0x160] sm:$0xff] 0.0
      %67 = vst [vmem:[#allocation2 + $0x168] sm:$0xff] 0.0
      %68 = vst [vmem:[#allocation2 + $0x170] sm:$0xff] 0.0
      %69 = vst [vmem:[#allocation2 + $0x178] sm:$0xff] 0.0
      %70 = vst [vmem:[#allocation2 + $0x180] sm:$0xff] 0.0
      %71 = vst [vmem:[#allocation2 + $0x188] sm:$0xff] 0.0
      %72 = vst [vmem:[#allocation2 + $0x190] sm:$0xff] 0.0
      %73 = vst [vmem:[#allocation2 + $0x198] sm:$0xff] 0.0
      %74 = vst [vmem:[#allocation2 + $0x1a0] sm:$0xff] 0.0
      %75 = vst [vmem:[#allocation2 + $0x1a8] sm:$0xff] 0.0
      %76 = vst [vmem:[#allocation2 + $0x1b0] sm:$0xff] 0.0
      %77 = vst [vmem:[#allocation2 + $0x1b8] sm:$0xff] 0.0
      %78 = vst [vmem:[#allocation2 + $0x1c0] sm:$0xff] 0.0
      %79 = vst [vmem:[#allocation2 + $0x1c8] sm:$0xff] 0.0
      %80 = vst [vmem:[#allocation2 + $0x1d0] sm:$0xff] 0.0
      %81 = vst [vmem:[#allocation2 + $0x1d8] sm:$0xff] 0.0
      %82 = vst [vmem:[#allocation2 + $0x1e0] sm:$0xff] 0.0
      %83 = vst [vmem:[#allocation2 + $0x1e8] sm:$0xff] 0.0
      %84 = vst [vmem:[#allocation2 + $0x1f0] sm:$0xff] 0.0
      %85 = vst [vmem:[#allocation2 + $0x1f8] sm:$0xff] 0.0
    $region21: #{bottleneck_forward.5} parent=1 // pred_fallthru
      _
    %v86 = vld [vmem:[#allocation2] sm:$0xff]
    %v87 = vld [vmem:[#allocation2 + $0x8] sm:$0xff]
    %v88 = vld [vmem:[#allocation2 + $0x10] sm:$0xff]
    %v89 = vld [vmem:[#allocation2 + $0x18] sm:$0xff]
    %v90 = vld [vmem:[#allocation2 + $0x20] sm:$0xff]
    %v91 = vld [vmem:[#allocation2 + $0x28] sm:$0xff]
    %v92 = vld [vmem:[#allocation2 + $0x30] sm:$0xff]
    %v93 = vld [vmem:[#allocation2 + $0x38] sm:$0xff]
    %v94 = vld [vmem:[#allocation2 + $0x40] sm:$0xff]
    %v95 = vld [vmem:[#allocation2 + $0x48] sm:$0xff]
    %v96 = vld [vmem:[#allocation2 + $0x50] sm:$0xff]
    %v97 = vld [vmem:[#allocation2 + $0x58] sm:$0xff]
    %v98 = vld [vmem:[#allocation2 + $0x60] sm:$0xff]
    %v99 = vld [vmem:[#allocation2 + $0x68] sm:$0xff]
    %v100 = vld [vmem:[#allocation2 + $0x70] sm:$0xff]
    %v101 = vld [vmem:[#allocation2 + $0x78] sm:$0xff]
    %v102 = vld [vmem:[#allocation2 + $0x80] sm:$0xff]
    %v103 = vld [vmem:[#allocation2 + $0x88] sm:$0xff]
    %v104 = vld [vmem:[#allocation2 + $0x90] sm:$0xff]
    %v105 = vld [vmem:[#allocation2 + $0x98] sm:$0xff]
    %v106 = vld [vmem:[#allocation2 + $0xa0] sm:$0xff]
    %v107 = vld [vmem:[#allocation2 + $0xa8] sm:$0xff]
    %v108 = vld [vmem:[#allocation2 + $0xb0] sm:$0xff]
    %v109 = vld [vmem:[#allocation2 + $0xb8] sm:$0xff]
    %v110 = vld [vmem:[#allocation2 + $0xc0] sm:$0xff]
    %v111 = vld [vmem:[#allocation2 + $0xc8] sm:$0xff]
    %v112 = vld [vmem:[#allocation2 + $0xd0] sm:$0xff]
    %v113 = vld [vmem:[#allocation2 + $0xd8] sm:$0xff]
    %v114 = vld [vmem:[#allocation2 + $0xe0] sm:$0xff]
    %v115 = vld [vmem:[#allocation2 + $0xe8] sm:$0xff]
    %v116 = vld [vmem:[#allocation2 + $0xf0] sm:$0xff]
    %v117 = vld [vmem:[#allocation2 + $0xf8] sm:$0xff]
    %v118 = vld [vmem:[#allocation2 + $0x100] sm:$0xff]
    %v119 = vld [vmem:[#allocation2 + $0x108] sm:$0xff]
    %v120 = vld [vmem:[#allocation2 + $0x110] sm:$0xff]
    %v121 = vld [vmem:[#allocation2 + $0x118] sm:$0xff]
    %v122 = vld [vmem:[#allocation2 + $0x120] sm:$0xff]
    %v123 = vld [vmem:[#allocation2 + $0x128] sm:$0xff]
    %v124 = vld [vmem:[#allocation2 + $0x130] sm:$0xff]
    %v125 = vld [vmem:[#allocation2 + $0x138] sm:$0xff]
    %v126 = vld [vmem:[#allocation2 + $0x140] sm:$0xff]
    %v127 = vld [vmem:[#allocation2 + $0x148] sm:$0xff]
    %v128 = vld [vmem:[#allocation2 + $0x150] sm:$0xff]
    %v129 = vld [vmem:[#allocation2 + $0x158] sm:$0xff]
    %v130 = vld [vmem:[#allocation2 + $0x160] sm:$0xff]
    %v131 = vld [vmem:[#allocation2 + $0x168] sm:$0xff]
    %v132 = vld [vmem:[#allocation2 + $0x170] sm:$0xff]
    %v133 = vld [vmem:[#allocation2 + $0x178] sm:$0xff]
    %v134 = vld [vmem:[#allocation2 + $0x180] sm:$0xff]
    %v135 = vld [vmem:[#allocation2 + $0x188] sm:$0xff]
    %v136 = vld [vmem:[#allocation2 + $0x190] sm:$0xff]
    %v137 = vld [vmem:[#allocation2 + $0x198] sm:$0xff]
    %v138 = vld [vmem:[#allocation2 + $0x1a0] sm:$0xff]
    %v139 = vld [vmem:[#allocation2 + $0x1a8] sm:$0xff]
    %v140 = vld [vmem:[#allocation2 + $0x1b0] sm:$0xff]
    %v141 = vld [vmem:[#allocation2 + $0x1b8] sm:$0xff]
    %v142 = vld [vmem:[#allocation2 + $0x1c0] sm:$0xff]
    %v143 = vld [vmem:[#allocation2 + $0x1c8] sm:$0xff]
    %v144 = vld [vmem:[#allocation2 + $0x1d0] sm:$0xff]
    %v145 = vld [vmem:[#allocation2 + $0x1d8] sm:$0xff]
    %v146 = vld [vmem:[#allocation2 + $0x1e0] sm:$0xff]
    %v147 = vld [vmem:[#allocation2 + $0x1e8] sm:$0xff]
    %v148 = vld [vmem:[#allocation2 + $0x1f0] sm:$0xff]
    %v149 = vld [vmem:[#allocation2 + $0x1f8] sm:$0xff]
    %v150 = vld [vmem:[%s0] sm:$0xff]
    %v151 = vld [vmem:[%s0 + $0x8] sm:$0xff]
    %v152 = vld [vmem:[%s0 + $0x10] sm:$0xff]
    %v153 = vld [vmem:[%s0 + $0x18] sm:$0xff]
    %v154 = vld [vmem:[%s0 + $0x20] sm:$0xff]
    %v155 = vld [vmem:[%s0 + $0x28] sm:$0xff]
    %v156 = vld [vmem:[%s0 + $0x30] sm:$0xff]
    %v157 = vld [vmem:[%s0 + $0x38] sm:$0xff]
    %v158 = vld [vmem:[%s0 + $0x40] sm:$0xff]
    %v159 = vld [vmem:[%s0 + $0x48] sm:$0xff]
    %v160 = vld [vmem:[%s0 + $0x50] sm:$0xff]
    %v161 = vld [vmem:[%s0 + $0x58] sm:$0xff]
    %v162 = vld [vmem:[%s0 + $0x60] sm:$0xff]
    %v163 = vld [vmem:[%s0 + $0x68] sm:$0xff]
    %v164 = vld [vmem:[%s0 + $0x70] sm:$0xff]
    %v165 = vld [vmem:[%s0 + $0x78] sm:$0xff]
    %v166 = vld [vmem:[%s0 + $0x80] sm:$0xff]
    %v167 = vld [vmem:[%s0 + $0x88] sm:$0xff]
    %v168 = vld [vmem:[%s0 + $0x90] sm:$0xff]
    %v169 = vld [vmem:[%s0 + $0x98] sm:$0xff]
    %v170 = vld [vmem:[%s0 + $0xa0] sm:$0xff]
    %v171 = vld [vmem:[%s0 + $0xa8] sm:$0xff]
    %v172 = vld [vmem:[%s0 + $0xb0] sm:$0xff]
    %v173 = vld [vmem:[%s0 + $0xb8] sm:$0xff]
    %v174 = vld [vmem:[%s0 + $0xc0] sm:$0xff]
    %v175 = vld [vmem:[%s0 + $0xc8] sm:$0xff]
    %v176 = vld [vmem:[%s0 + $0xd0] sm:$0xff]
    %v177 = vld [vmem:[%s0 + $0xd8] sm:$0xff]
    %v178 = vld [vmem:[%s0 + $0xe0] sm:$0xff]
    %v179 = vld [vmem:[%s0 + $0xe8] sm:$0xff]
    %v180 = vld [vmem:[%s0 + $0xf0] sm:$0xff]
    %v181 = vld [vmem:[%s0 + $0xf8] sm:$0xff]
    %v182 = vld [vmem:[%s0 + $0x100] sm:$0xff]
    %v183 = vld [vmem:[%s0 + $0x108] sm:$0xff]
    %v184 = vld [vmem:[%s0 + $0x110] sm:$0xff]
    %v185 = vld [vmem:[%s0 + $0x118] sm:$0xff]
    %v186 = vld [vmem:[%s0 + $0x120] sm:$0xff]
    %v187 = vld [vmem:[%s0 + $0x128] sm:$0xff]
    %v188 = vld [vmem:[%s0 + $0x130] sm:$0xff]
    %v189 = vld [vmem:[%s0 + $0x138] sm:$0xff]
    %v190 = vld [vmem:[%s0 + $0x140] sm:$0xff]
    %v191 = vld [vmem:[%s0 + $0x148] sm:$0xff]
    %v192 = vld [vmem:[%s0 + $0x150] sm:$0xff]
    %v193 = vld [vmem:[%s0 + $0x158] sm:$0xff]
    %v194 = vld [vmem:[%s0 + $0x160] sm:$0xff]
    %v195 = vld [vmem:[%s0 + $0x168] sm:$0xff]
    %v196 = vld [vmem:[%s0 + $0x170] sm:$0xff]
    %v197 = vld [vmem:[%s0 + $0x178] sm:$0xff]
    %v198 = vld [vmem:[%s0 + $0x180] sm:$0xff]
    %v199 = vld [vmem:[%s0 + $0x188] sm:$0xff]
    %v200 = vld [vmem:[%s0 + $0x190] sm:$0xff]
    %v201 = vld [vmem:[%s0 + $0x198] sm:$0xff]
    %v202 = vld [vmem:[%s0 + $0x1a0] sm:$0xff]
    %v203 = vld [vmem:[%s0 + $0x1a8] sm:$0xff]
    %v204 = vld [vmem:[%s0 + $0x1b0] sm:$0xff]
    %v205 = vld [vmem:[%s0 + $0x1b8] sm:$0xff]
    %v206 = vld [vmem:[%s0 + $0x1c0] sm:$0xff]
    %v207 = vld [vmem:[%s0 + $0x1c8] sm:$0xff]
    %v208 = vld [vmem:[%s0 + $0x1d0] sm:$0xff]
    %v209 = vld [vmem:[%s0 + $0x1d8] sm:$0xff]
    %v210 = vld [vmem:[%s0 + $0x1e0] sm:$0xff]
    %v211 = vld [vmem:[%s0 + $0x1e8] sm:$0xff]
    %v212 = vld [vmem:[%s0 + $0x1f0] sm:$0xff]
    %v213 = vld [vmem:[%s0 + $0x1f8] sm:$0xff]
    %v214 = vld [vmem:[%s1] sm:$0xff]
    %v215 = vld [vmem:[%s1 + $0x8] sm:$0xff]
    %v216 = vld [vmem:[%s1 + $0x10] sm:$0xff]
    %v217 = vld [vmem:[%s1 + $0x18] sm:$0xff]
    %v218 = vld [vmem:[%s1 + $0x20] sm:$0xff]
    %v219 = vld [vmem:[%s1 + $0x28] sm:$0xff]
    %v220 = vld [vmem:[%s1 + $0x30] sm:$0xff]
    %v221 = vld [vmem:[%s1 + $0x38] sm:$0xff]
    %v222 = vld [vmem:[%s1 + $0x40] sm:$0xff]
    %v223 = vld [vmem:[%s1 + $0x48] sm:$0xff]
    %v224 = vld [vmem:[%s1 + $0x50] sm:$0xff]
    %v225 = vld [vmem:[%s1 + $0x58] sm:$0xff]
    %v226 = vld [vmem:[%s1 + $0x60] sm:$0xff]
    %v227 = vld [vmem:[%s1 + $0x68] sm:$0xff]
    %v228 = vld [vmem:[%s1 + $0x70] sm:$0xff]
    %v229 = vld [vmem:[%s1 + $0x78] sm:$0xff]
    %230 = vmatprep.subr.mxu0 0.0
    %231 = vmatpush1.msra.mxu0 %v214
    %232 = vmatprep.subr.mxu0 0.0
    %233 = vmatpush1.msra.mxu0 %v215
    %234 = vmatprep.subr.mxu0 0.0
    %235 = vmatpush1.msra.mxu0 %v216
    %236 = vmatprep.subr.mxu0 0.0
    %237 = vmatpush1.msra.mxu0 %v217
    %238 = vmatprep.subr.mxu0 0.0
    %239 = vmatpush1.msra.mxu0 %v218
    %240 = vmatprep.subr.mxu0 0.0
    %241 = vmatpush1.msra.mxu0 %v219
    %242 = vmatprep.subr.mxu0 0.0
    %243 = vmatpush1.msra.mxu0 %v220
    %244 = vmatprep.subr.mxu0 0.0
    %245 = vmatpush1.msra.mxu0 %v221
    %246 = vmatprep.subr.mxu0 0.0
    %247 = vmatpush1.msra.mxu0 %v222
    %248 = vmatprep.subr.mxu0 0.0
    %249 = vmatpush1.msra.mxu0 %v223
    %250 = vmatprep.subr.mxu0 0.0
    %251 = vmatpush1.msra.mxu0 %v224
    %252 = vmatprep.subr.mxu0 0.0
    %253 = vmatpush1.msra.mxu0 %v225
    %254 = vmatprep.subr.mxu0 0.0
    %255 = vmatpush1.msra.mxu0 %v226
    %256 = vmatprep.subr.mxu0 0.0
    %257 = vmatpush1.msra.mxu0 %v227
    %258 = vmatprep.subr.mxu0 0.0
    %259 = vmatpush1.msra.mxu0 %v228
    %260 = vmatprep.subr.mxu0 0.0
    %261 = vmatpush1.msra.mxu0 %v229
    %262 = vmatprep.subr.mxu0 0.0
    %263 = vmatpush1.msra.mxu0 0.0
    %264 = vmatprep.subr.mxu0 0.0
    %265 = vmatpush1.msra.mxu0 0.0
    %266 = vmatprep.subr.mxu0 0.0
    %267 = vmatpush1.msra.mxu0 0.0
    %268 = vmatprep.subr.mxu0 0.0
    %269 = vmatpush1.msra.mxu0 0.0
    %270 = vmatprep.subr.mxu0 0.0
    %271 = vmatpush1.msra.mxu0 0.0
    %272 = vmatprep.subr.mxu0 0.0
    %273 = vmatpush1.msra.mxu0 0.0
    %274 = vmatprep.subr.mxu0 0.0
    %275 = vmatpush1.msra.mxu0 0.0
    %276 = vmatprep.subr.mxu0 0.0
    %277 = vmatpush1.msra.mxu0 0.0
    %278 = vmatprep.subr.mxu0 0.0
    %279 = vmatpush1.msra.mxu0 0.0
    %280 = vmatprep.subr.mxu0 0.0
    %281 = vmatpush1.msra.mxu0 0.0
    %282 = vmatprep.subr.mxu0 0.0
    %283 = vmatpush1.msra.mxu0 0.0
    %284 = vmatprep.subr.mxu0 0.0
    %285 = vmatpush1.msra.mxu0 0.0
    %286 = vmatprep.subr.mxu0 0.0
    %287 = vmatpush1.msra.mxu0 0.0
    %288 = vmatprep.subr.mxu0 0.0
    %289 = vmatpush1.msra.mxu0 0.0
    %290 = vmatprep.subr.mxu0 0.0
    %291 = vmatpush1.msra.mxu0 0.0
    %292 = vmatprep.subr.mxu0 0.0
    %293 = vmatpush1.msra.mxu0 0.0
    %294 = vmatprep.mubr.f32.mxu0 0.0
    %295 = vmatmul.mubr.f32.gmra.mrb[0].mxu0 %v150
    %v296 = vpop.f32.mrb[0].mxu0
    %v297 = vadd.f32 0.0, %v296
    %v298 = vpop.f32.mrb[0].mxu0
    %299 = vmatprep.mubr.f32.mxu0 0.0
    %300 = vmatmul.mubr.f32.gmra.mrb[0].mxu0 %v151
    %v301 = vpop.f32.mrb[0].mxu0
    %v302 = vadd.f32 0.0, %v301
    %v303 = vpop.f32.mrb[0].mxu0
    %304 = vmatprep.mubr.f32.mxu0 0.0
    %305 = vmatmul.mubr.f32.gmra.mrb[0].mxu0 %v152
    %v306 = vpop.f32.mrb[0].mxu0
    %v307 = vadd.f32 0.0, %v306
    %v308 = vpop.f32.mrb[0].mxu0
    %309 = vmatprep.mubr.f32.mxu0 0.0
    %310 = vmatmul.mubr.f32.gmra.mrb[0].mxu0 %v153
    %v311 = vpop.f32.mrb[0].mxu0
    %v312 = vadd.f32 0.0, %v311
    %v313 = vpop.f32.mrb[0].mxu0
    %314 = vmatprep.mubr.f32.mxu0 0.0
    %315 = vmatmul.mubr.f32.gmra.mrb[0].mxu0 %v154
    %v316 = vpop.f32.mrb[0].mxu0
    %v317 = vadd.f32 0.0, %v316
    %v318 = vpop.f32.mrb[0].mxu0
    %319 = vmatprep.mubr.f32.mxu0 0.0
    %320 = vmatmul.mubr.f32.gmra.mrb[0].mxu0 %v155
    %v321 = vpop.f32.mrb[0].mxu0
    %v322 = vadd.f32 0.0, %v321
    %v323 = vpop.f32.mrb[0].mxu0
    %324 = vmatprep.mubr.f32.mxu0 0.0
    %325 = vmatmul.mubr.f32.gmra.mrb[0].mxu0 %v156
    %v326 = vpop.f32.mrb[0].mxu0
    %v327 = vadd.f32 0.0, %v326
    %v328 = vpop.f32.mrb[0].mxu0
    %329 = vmatprep.mubr.f32.mxu0 0.0
    %330 = vmatmul.mubr.f32.gmra.mrb[0].mxu0 %v157
    %v331 = vpop.f32.mrb[0].mxu0
    %v332 = vadd.f32 0.0, %v331
    %v333 = vpop.f32.mrb[0].mxu0
    %334 = vmatprep.mubr.f32.mxu0 0.0
    %335 = vmatmul.mubr.f32.gmra.mrb[0].mxu0 %v158
    %v336 = vpop.f32.mrb[0].mxu0
    %v337 = vadd.f32 0.0, %v336
    %v338 = vpop.f32.mrb[0].mxu0
    %339 = vmatprep.mubr.f32.mxu0 0.0
    %340 = vmatmul.mubr.f32.gmra.mrb[0].mxu0 %v159
    %v341 = vpop.f32.mrb[0].mxu0
    %v342 = vadd.f32 0.0, %v341
    %v343 = vpop.f32.mrb[0].mxu0
    %344 = vmatprep.mubr.f32.mxu0 0.0
    %345 = vmatmul.mubr.f32.gmra.mrb[0].mxu0 %v160
    %v346 = vpop.f32.mrb[0].mxu0
    %v347 = vadd.f32 0.0, %v346
    %v348 = vpop.f32.mrb[0].mxu0
    %349 = vmatprep.mubr.f32.mxu0 0.0
    %350 = vmatmul.mubr.f32.gmra.mrb[0].mxu0 %v161
    %v351 = vpop.f32.mrb[0].mxu0
    %v352 = vadd.f32 0.0, %v351
    %v353 = vpop.f32.mrb[0].mxu0
    %354 = vmatprep.mubr.f32.mxu0 0.0
    %355 = vmatmul.mubr.f32.gmra.mrb[0].mxu0 %v162
    %v356 = vpop.f32.mrb[0].mxu0
    %v357 = vadd.f32 0.0, %v356
    %v358 = vpop.f32.mrb[0].mxu0
    %359 = vmatprep.mubr.f32.mxu0 0.0
    %360 = vmatmul.mubr.f32.gmra.mrb[0].mxu0 %v163
    %v361 = vpop.f32.mrb[0].mxu0
    %v362 = vadd.f32 0.0, %v361
    %v363 = vpop.f32.mrb[0].mxu0
    %364 = vmatprep.mubr.f32.mxu0 0.0
    %365 = vmatmul.mubr.f32.gmra.mrb[0].mxu0 %v164
    %v366 = vpop.f32.mrb[0].mxu0
    %v367 = vadd.f32 0.0, %v366
    %v368 = vpop.f32.mrb[0].mxu0
    %369 = vmatprep.mubr.f32.mxu0 0.0
    %370 = vmatmul.mubr.f32.gmra.mrb[0].mxu0 %v165
    %v371 = vpop.f32.mrb[0].mxu0
    %v372 = vadd.f32 0.0, %v371
    %v373 = vpop.f32.mrb[0].mxu0
    %374 = vmatprep.mubr.f32.mxu0 0.0
    %375 = vmatmul.mubr.f32.gmra.mrb[0].mxu0 %v166
    %v376 = vpop.f32.mrb[0].mxu0
    %v377 = vadd.f32 0.0, %v376
    %v378 = vpop.f32.mrb[0].mxu0
    %379 = vmatprep.mubr.f32.mxu0 0.0
    %380 = vmatmul.mubr.f32.gmra.mrb[0].mxu0 %v167
    %v381 = vpop.f32.mrb[0].mxu0
    %v382 = vadd.f32 0.0, %v381
    %v383 = vpop.f32.mrb[0].mxu0
    %384 = vmatprep.mubr.f32.mxu0 0.0
    %385 = vmatmul.mubr.f32.gmra.mrb[0].mxu0 %v168
    %v386 = vpop.f32.mrb[0].mxu0
    %v387 = vadd.f32 0.0, %v386
    %v388 = vpop.f32.mrb[0].mxu0
    %389 = vmatprep.mubr.f32.mxu0 0.0
    %390 = vmatmul.mubr.f32.gmra.mrb[0].mxu0 %v169
    %v391 = vpop.f32.mrb[0].mxu0
    %v392 = vadd.f32 0.0, %v391
    %v393 = vpop.f32.mrb[0].mxu0
    %394 = vmatprep.mubr.f32.mxu0 0.0
    %395 = vmatmul.mubr.f32.gmra.mrb[0].mxu0 %v170
    %v396 = vpop.f32.mrb[0].mxu0
    %v397 = vadd.f32 0.0, %v396
    %v398 = vpop.f32.mrb[0].mxu0
    %399 = vmatprep.mubr.f32.mxu0 0.0
    %400 = vmatmul.mubr.f32.gmra.mrb[0].mxu0 %v171
    %v401 = vpop.f32.mrb[0].mxu0
    %v402 = vadd.f32 0.0, %v401
    %v403 = vpop.f32.mrb[0].mxu0
    %404 = vmatprep.mubr.f32.mxu0 0.0
    %405 = vmatmul.mubr.f32.gmra.mrb[0].mxu0 %v172
    %v406 = vpop.f32.mrb[0].mxu0
    %v407 = vadd.f32 0.0, %v406
    %v408 = vpop.f32.mrb[0].mxu0
    %409 = vmatprep.mubr.f32.mxu0 0.0
    %410 = vmatmul.mubr.f32.gmra.mrb[0].mxu0 %v173
    %v411 = vpop.f32.mrb[0].mxu0
    %v412 = vadd.f32 0.0, %v411
    %v413 = vpop.f32.mrb[0].mxu0
    %414 = vmatprep.mubr.f32.mxu0 0.0
    %415 = vmatmul.mubr.f32.gmra.mrb[0].mxu0 %v174
    %v416 = vpop.f32.mrb[0].mxu0
    %v417 = vadd.f32 0.0, %v416
    %v418 = vpop.f32.mrb[0].mxu0
    %419 = vmatprep.mubr.f32.mxu0 0.0
    %420 = vmatmul.mubr.f32.gmra.mrb[0].mxu0 %v175
    %v421 = vpop.f32.mrb[0].mxu0
    %v422 = vadd.f32 0.0, %v421
    %v423 = vpop.f32.mrb[0].mxu0
    %424 = vmatprep.mubr.f32.mxu0 0.0
    %425 = vmatmul.mubr.f32.gmra.mrb[0].mxu0 %v176
    %v426 = vpop.f32.mrb[0].mxu0
    %v427 = vadd.f32 0.0, %v426
    %v428 = vpop.f32.mrb[0].mxu0
    %429 = vmatprep.mubr.f32.mxu0 0.0
    %430 = vmatmul.mubr.f32.gmra.mrb[0].mxu0 %v177
    %v431 = vpop.f32.mrb[0].mxu0
    %v432 = vadd.f32 0.0, %v431
    %v433 = vpop.f32.mrb[0].mxu0
    %434 = vmatprep.mubr.f32.mxu0 0.0
    %435 = vmatmul.mubr.f32.gmra.mrb[0].mxu0 %v178
    %v436 = vpop.f32.mrb[0].mxu0
    %v437 = vadd.f32 0.0, %v436
    %v438 = vpop.f32.mrb[0].mxu0
    %439 = vmatprep.mubr.f32.mxu0 0.0
    %440 = vmatmul.mubr.f32.gmra.mrb[0].mxu0 %v179
    %v441 = vpop.f32.mrb[0].mxu0
    %v442 = vadd.f32 0.0, %v441
    %v443 = vpop.f32.mrb[0].mxu0
    %444 = vmatprep.mubr.f32.mxu0 0.0
    %445 = vmatmul.mubr.f32.gmra.mrb[0].mxu0 %v180
    %v446 = vpop.f32.mrb[0].mxu0
    %v447 = vadd.f32 0.0, %v446
    %v448 = vpop.f32.mrb[0].mxu0
    %449 = vmatprep.mubr.f32.mxu0 0.0
    %450 = vmatmul.mubr.f32.gmra.mrb[0].mxu0 %v181
    %v451 = vpop.f32.mrb[0].mxu0
    %v452 = vadd.f32 0.0, %v451
    %v453 = vpop.f32.mrb[0].mxu0
    %454 = vmatprep.mubr.f32.mxu0 0.0
    %455 = vmatmul.mubr.f32.gmra.mrb[0].mxu0 %v182
    %v456 = vpop.f32.mrb[0].mxu0
    %v457 = vadd.f32 0.0, %v456
    %v458 = vpop.f32.mrb[0].mxu0
    %459 = vmatprep.mubr.f32.mxu0 0.0
    %460 = vmatmul.mubr.f32.gmra.mrb[0].mxu0 %v183
    %v461 = vpop.f32.mrb[0].mxu0
    %v462 = vadd.f32 0.0, %v461
    %v463 = vpop.f32.mrb[0].mxu0
    %464 = vmatprep.mubr.f32.mxu0 0.0
    %465 = vmatmul.mubr.f32.gmra.mrb[0].mxu0 %v184
    %v466 = vpop.f32.mrb[0].mxu0
    %v467 = vadd.f32 0.0, %v466
    %v468 = vpop.f32.mrb[0].mxu0
    %469 = vmatprep.mubr.f32.mxu0 0.0
    %470 = vmatmul.mubr.f32.gmra.mrb[0].mxu0 %v185
    %v471 = vpop.f32.mrb[0].mxu0
    %v472 = vadd.f32 0.0, %v471
    %v473 = vpop.f32.mrb[0].mxu0
    %474 = vmatprep.mubr.f32.mxu0 0.0
    %475 = vmatmul.mubr.f32.gmra.mrb[0].mxu0 %v186
    %v476 = vpop.f32.mrb[0].mxu0
    %v477 = vadd.f32 0.0, %v476
    %v478 = vpop.f32.mrb[0].mxu0
    %479 = vmatprep.mubr.f32.mxu0 0.0
    %480 = vmatmul.mubr.f32.gmra.mrb[0].mxu0 %v187
    %v481 = vpop.f32.mrb[0].mxu0
    %v482 = vadd.f32 0.0, %v481
    %v483 = vpop.f32.mrb[0].mxu0
    %484 = vmatprep.mubr.f32.mxu0 0.0
    %485 = vmatmul.mubr.f32.gmra.mrb[0].mxu0 %v188
    %v486 = vpop.f32.mrb[0].mxu0
    %v487 = vadd.f32 0.0, %v486
    %v488 = vpop.f32.mrb[0].mxu0
    %489 = vmatprep.mubr.f32.mxu0 0.0
    %490 = vmatmul.mubr.f32.gmra.mrb[0].mxu0 %v189
    %v491 = vpop.f32.mrb[0].mxu0
    %v492 = vadd.f32 0.0, %v491
    %v493 = vpop.f32.mrb[0].mxu0
    %494 = vmatprep.mubr.f32.mxu0 0.0
    %495 = vmatmul.mubr.f32.gmra.mrb[0].mxu0 %v190
    %v496 = vpop.f32.mrb[0].mxu0
    %v497 = vadd.f32 0.0, %v496
    %v498 = vpop.f32.mrb[0].mxu0
    %499 = vmatprep.mubr.f32.mxu0 0.0
    %500 = vmatmul.mubr.f32.gmra.mrb[0].mxu0 %v191
    %v501 = vpop.f32.mrb[0].mxu0
    %v502 = vadd.f32 0.0, %v501
    %v503 = vpop.f32.mrb[0].mxu0
    %504 = vmatprep.mubr.f32.mxu0 0.0
    %505 = vmatmul.mubr.f32.gmra.mrb[0].mxu0 %v192
    %v506 = vpop.f32.mrb[0].mxu0
    %v507 = vadd.f32 0.0, %v506
    %v508 = vpop.f32.mrb[0].mxu0
    %509 = vmatprep.mubr.f32.mxu0 0.0
    %510 = vmatmul.mubr.f32.gmra.mrb[0].mxu0 %v193
    %v511 = vpop.f32.mrb[0].mxu0
    %v512 = vadd.f32 0.0, %v511
    %v513 = vpop.f32.mrb[0].mxu0
    %514 = vmatprep.mubr.f32.mxu0 0.0
    %515 = vmatmul.mubr.f32.gmra.mrb[0].mxu0 %v194
    %v516 = vpop.f32.mrb[0].mxu0
    %v517 = vadd.f32 0.0, %v516
    %v518 = vpop.f32.mrb[0].mxu0
    %519 = vmatprep.mubr.f32.mxu0 0.0
    %520 = vmatmul.mubr.f32.gmra.mrb[0].mxu0 %v195
    %v521 = vpop.f32.mrb[0].mxu0
    %v522 = vadd.f32 0.0, %v521
    %v523 = vpop.f32.mrb[0].mxu0
    %524 = vmatprep.mubr.f32.mxu0 0.0
    %525 = vmatmul.mubr.f32.gmra.mrb[0].mxu0 %v196
    %v526 = vpop.f32.mrb[0].mxu0
    %v527 = vadd.f32 0.0, %v526
    %v528 = vpop.f32.mrb[0].mxu0
    %529 = vmatprep.mubr.f32.mxu0 0.0
    %530 = vmatmul.mubr.f32.gmra.mrb[0].mxu0 %v197
    %v531 = vpop.f32.mrb[0].mxu0
    %v532 = vadd.f32 0.0, %v531
    %v533 = vpop.f32.mrb[0].mxu0
    %534 = vmatprep.mubr.f32.mxu0 0.0
    %535 = vmatmul.mubr.f32.gmra.mrb[0].mxu0 %v198
    %v536 = vpop.f32.mrb[0].mxu0
    %v537 = vadd.f32 0.0, %v536
    %v538 = vpop.f32.mrb[0].mxu0
    %539 = vmatprep.mubr.f32.mxu0 0.0
    %540 = vmatmul.mubr.f32.gmra.mrb[0].mxu0 %v199
    %v541 = vpop.f32.mrb[0].mxu0
    %v542 = vadd.f32 0.0, %v541
    %v543 = vpop.f32.mrb[0].mxu0
    %544 = vmatprep.mubr.f32.mxu0 0.0
    %545 = vmatmul.mubr.f32.gmra.mrb[0].mxu0 %v200
    %v546 = vpop.f32.mrb[0].mxu0
    %v547 = vadd.f32 0.0, %v546
    %v548 = vpop.f32.mrb[0].mxu0
    %549 = vmatprep.mubr.f32.mxu0 0.0
    %550 = vmatmul.mubr.f32.gmra.mrb[0].mxu0 %v201
    %v551 = vpop.f32.mrb[0].mxu0
    %v552 = vadd.f32 0.0, %v551
    %v553 = vpop.f32.mrb[0].mxu0
    %554 = vmatprep.mubr.f32.mxu0 0.0
    %555 = vmatmul.mubr.f32.gmra.mrb[0].mxu0 %v202
    %v556 = vpop.f32.mrb[0].mxu0
    %v557 = vadd.f32 0.0, %v556
    %v558 = vpop.f32.mrb[0].mxu0
    %559 = vmatprep.mubr.f32.mxu0 0.0
    %560 = vmatmul.mubr.f32.gmra.mrb[0].mxu0 %v203
    %v561 = vpop.f32.mrb[0].mxu0
    %v562 = vadd.f32 0.0, %v561
    %v563 = vpop.f32.mrb[0].mxu0
    %564 = vmatprep.mubr.f32.mxu0 0.0
    %565 = vmatmul.mubr.f32.gmra.mrb[0].mxu0 %v204
    %v566 = vpop.f32.mrb[0].mxu0
    %v567 = vadd.f32 0.0, %v566
    %v568 = vpop.f32.mrb[0].mxu0
    %569 = vmatprep.mubr.f32.mxu0 0.0
    %570 = vmatmul.mubr.f32.gmra.mrb[0].mxu0 %v205
    %v571 = vpop.f32.mrb[0].mxu0
    %v572 = vadd.f32 0.0, %v571
    %v573 = vpop.f32.mrb[0].mxu0
    %574 = vmatprep.mubr.f32.mxu0 0.0
    %575 = vmatmul.mubr.f32.gmra.mrb[0].mxu0 %v206
    %v576 = vpop.f32.mrb[0].mxu0
    %v577 = vadd.f32 0.0, %v576
    %v578 = vpop.f32.mrb[0].mxu0
    %579 = vmatprep.mubr.f32.mxu0 0.0
    %580 = vmatmul.mubr.f32.gmra.mrb[0].mxu0 %v207
    %v581 = vpop.f32.mrb[0].mxu0
    %v582 = vadd.f32 0.0, %v581
    %v583 = vpop.f32.mrb[0].mxu0
    %584 = vmatprep.mubr.f32.mxu0 0.0
    %585 = vmatmul.mubr.f32.gmra.mrb[0].mxu0 %v208
    %v586 = vpop.f32.mrb[0].mxu0
    %v587 = vadd.f32 0.0, %v586
    %v588 = vpop.f32.mrb[0].mxu0
    %589 = vmatprep.mubr.f32.mxu0 0.0
    %590 = vmatmul.mubr.f32.gmra.mrb[0].mxu0 %v209
    %v591 = vpop.f32.mrb[0].mxu0
    %v592 = vadd.f32 0.0, %v591
    %v593 = vpop.f32.mrb[0].mxu0
    %594 = vmatprep.mubr.f32.mxu0 0.0
    %595 = vmatmul.mubr.f32.gmra.mrb[0].mxu0 %v210
    %v596 = vpop.f32.mrb[0].mxu0
    %v597 = vadd.f32 0.0, %v596
    %v598 = vpop.f32.mrb[0].mxu0
    %599 = vmatprep.mubr.f32.mxu0 0.0
    %600 = vmatmul.mubr.f32.gmra.mrb[0].mxu0 %v211
    %v601 = vpop.f32.mrb[0].mxu0
    %v602 = vadd.f32 0.0, %v601
    %v603 = vpop.f32.mrb[0].mxu0
    %604 = vmatprep.mubr.f32.mxu0 0.0
    %605 = vmatmul.mubr.f32.gmra.mrb[0].mxu0 %v212
    %v606 = vpop.f32.mrb[0].mxu0
    %v607 = vadd.f32 0.0, %v606
    %v608 = vpop.f32.mrb[0].mxu0
    %609 = vmatprep.mubr.f32.mxu0 0.0
    %610 = vmatmul.mubr.f32.gmra.mrb[0].mxu0 %v213
    %v611 = vpop.f32.mrb[0].mxu0
    %v612 = vadd.f32 0.0, %v611
    %v613 = vpop.f32.mrb[0].mxu0
    %614 = vdwg.mxu0
    %v615 = vadd.f32 %v86, %v297
    %v616 = vadd.f32 %v87, %v302
    %v617 = vadd.f32 %v88, %v307
    %v618 = vadd.f32 %v89, %v312
    %v619 = vadd.f32 %v90, %v317
    %v620 = vadd.f32 %v91, %v322
    %v621 = vadd.f32 %v92, %v327
    %v622 = vadd.f32 %v93, %v332
    %v623 = vadd.f32 %v94, %v337
    %v624 = vadd.f32 %v95, %v342
    %v625 = vadd.f32 %v96, %v347
    %v626 = vadd.f32 %v97, %v352
    %v627 = vadd.f32 %v98, %v357
    %v628 = vadd.f32 %v99, %v362
    %v629 = vadd.f32 %v100, %v367
    %v630 = vadd.f32 %v101, %v372
    %v631 = vadd.f32 %v102, %v377
    %v632 = vadd.f32 %v103, %v382
    %v633 = vadd.f32 %v104, %v387
    %v634 = vadd.f32 %v105, %v392
    %v635 = vadd.f32 %v106, %v397
    %v636 = vadd.f32 %v107, %v402
    %v637 = vadd.f32 %v108, %v407
    %v638 = vadd.f32 %v109, %v412
    %v639 = vadd.f32 %v110, %v417
    %v640 = vadd.f32 %v111, %v422
    %v641 = vadd.f32 %v112, %v427
    %v642 = vadd.f32 %v113, %v432
    %v643 = vadd.f32 %v114, %v437
    %v644 = vadd.f32 %v115, %v442
    %v645 = vadd.f32 %v116, %v447
    %v646 = vadd.f32 %v117, %v452
    %v647 = vadd.f32 %v118, %v457
    %v648 = vadd.f32 %v119, %v462
    %v649 = vadd.f32 %v120, %v467
    %v650 = vadd.f32 %v121, %v472
    %v651 = vadd.f32 %v122, %v477
    %v652 = vadd.f32 %v123, %v482
    %v653 = vadd.f32 %v124, %v487
    %v654 = vadd.f32 %v125, %v492
    %v655 = vadd.f32 %v126, %v497
    %v656 = vadd.f32 %v127, %v502
    %v657 = vadd.f32 %v128, %v507
    %v658 = vadd.f32 %v129, %v512
    %v659 = vadd.f32 %v130, %v517
    %v660 = vadd.f32 %v131, %v522
    %v661 = vadd.f32 %v132, %v527
    %v662 = vadd.f32 %v133, %v532
    %v663 = vadd.f32 %v134, %v537
    %v664 = vadd.f32 %v135, %v542
    %v665 = vadd.f32 %v136, %v547
    %v666 = vadd.f32 %v137, %v552
    %v667 = vadd.f32 %v138, %v557
    %v668 = vadd.f32 %v139, %v562
    %v669 = vadd.f32 %v140, %v567
    %v670 = vadd.f32 %v141, %v572
    %v671 = vadd.f32 %v142, %v577
    %v672 = vadd.f32 %v143, %v582
    %v673 = vadd.f32 %v144, %v587
    %v674 = vadd.f32 %v145, %v592
    %v675 = vadd.f32 %v146, %v597
    %v676 = vadd.f32 %v147, %v602
    %v677 = vadd.f32 %v148, %v607
    %v678 = vadd.f32 %v149, %v612
    %679 = vst [vmem:[#allocation2] sm:$0xff] %v615
    %680 = vst [vmem:[#allocation2 + $0x8] sm:$0xff] %v616
    %681 = vst [vmem:[#allocation2 + $0x10] sm:$0xff] %v617
    %682 = vst [vmem:[#allocation2 + $0x18] sm:$0xff] %v618
    %683 = vst [vmem:[#allocation2 + $0x20] sm:$0xff] %v619
    %684 = vst [vmem:[#allocation2 + $0x28] sm:$0xff] %v620
    %685 = vst [vmem:[#allocation2 + $0x30] sm:$0xff] %v621
    %686 = vst [vmem:[#allocation2 + $0x38] sm:$0xff] %v622
    %687 = vst [vmem:[#allocation2 + $0x40] sm:$0xff] %v623
    %688 = vst [vmem:[#allocation2 + $0x48] sm:$0xff] %v624
    %689 = vst [vmem:[#allocation2 + $0x50] sm:$0xff] %v625
    %690 = vst [vmem:[#allocation2 + $0x58] sm:$0xff] %v626
    %691 = vst [vmem:[#allocation2 + $0x60] sm:$0xff] %v627
    %692 = vst [vmem:[#allocation2 + $0x68] sm:$0xff] %v628
    %693 = vst [vmem:[#allocation2 + $0x70] sm:$0xff] %v629
    %694 = vst [vmem:[#allocation2 + $0x78] sm:$0xff] %v630
    %695 = vst [vmem:[#allocation2 + $0x80] sm:$0xff] %v631
    %696 = vst [vmem:[#allocation2 + $0x88] sm:$0xff] %v632
    %697 = vst [vmem:[#allocation2 + $0x90] sm:$0xff] %v633
    %698 = vst [vmem:[#allocation2 + $0x98] sm:$0xff] %v634
    %699 = vst [vmem:[#allocation2 + $0xa0] sm:$0xff] %v635
    %700 = vst [vmem:[#allocation2 + $0xa8] sm:$0xff] %v636
    %701 = vst [vmem:[#allocation2 + $0xb0] sm:$0xff] %v637
    %702 = vst [vmem:[#allocation2 + $0xb8] sm:$0xff] %v638
    %703 = vst [vmem:[#allocation2 + $0xc0] sm:$0xff] %v639
    %704 = vst [vmem:[#allocation2 + $0xc8] sm:$0xff] %v640
    %705 = vst [vmem:[#allocation2 + $0xd0] sm:$0xff] %v641
    %706 = vst [vmem:[#allocation2 + $0xd8] sm:$0xff] %v642
    %707 = vst [vmem:[#allocation2 + $0xe0] sm:$0xff] %v643
    %708 = vst [vmem:[#allocation2 + $0xe8] sm:$0xff] %v644
    %709 = vst [vmem:[#allocation2 + $0xf0] sm:$0xff] %v645
    %710 = vst [vmem:[#allocation2 + $0xf8] sm:$0xff] %v646
    %711 = vst [vmem:[#allocation2 + $0x100] sm:$0xff] %v647
    %712 = vst [vmem:[#allocation2 + $0x108] sm:$0xff] %v648
    %713 = vst [vmem:[#allocation2 + $0x110] sm:$0xff] %v649
    %714 = vst [vmem:[#allocation2 + $0x118] sm:$0xff] %v650
    %715 = vst [vmem:[#allocation2 + $0x120] sm:$0xff] %v651
    %716 = vst [vmem:[#allocation2 + $0x128] sm:$0xff] %v652
    %717 = vst [vmem:[#allocation2 + $0x130] sm:$0xff] %v653
    %718 = vst [vmem:[#allocation2 + $0x138] sm:$0xff] %v654
    %719 = vst [vmem:[#allocation2 + $0x140] sm:$0xff] %v655
    %720 = vst [vmem:[#allocation2 + $0x148] sm:$0xff] %v656
    %721 = vst [vmem:[#allocation2 + $0x150] sm:$0xff] %v657
    %722 = vst [vmem:[#allocation2 + $0x158] sm:$0xff] %v658
    %723 = vst [vmem:[#allocation2 + $0x160] sm:$0xff] %v659
    %724 = vst [vmem:[#allocation2 + $0x168] sm:$0xff] %v660
    %725 = vst [vmem:[#allocation2 + $0x170] sm:$0xff] %v661
    %726 = vst [vmem:[#allocation2 + $0x178] sm:$0xff] %v662
    %727 = vst [vmem:[#allocation2 + $0x180] sm:$0xff] %v663
    %728 = vst [vmem:[#allocation2 + $0x188] sm:$0xff] %v664
    %729 = vst [vmem:[#allocation2 + $0x190] sm:$0xff] %v665
    %730 = vst [vmem:[#allocation2 + $0x198] sm:$0xff] %v666
    %731 = vst [vmem:[#allocation2 + $0x1a0] sm:$0xff] %v667
    %732 = vst [vmem:[#allocation2 + $0x1a8] sm:$0xff] %v668
    %733 = vst [vmem:[#allocation2 + $0x1b0] sm:$0xff] %v669
    %734 = vst [vmem:[#allocation2 + $0x1b8] sm:$0xff] %v670
    %735 = vst [vmem:[#allocation2 + $0x1c0] sm:$0xff] %v671
    %736 = vst [vmem:[#allocation2 + $0x1c8] sm:$0xff] %v672
    %737 = vst [vmem:[#allocation2 + $0x1d0] sm:$0xff] %v673
    %738 = vst [vmem:[#allocation2 + $0x1d8] sm:$0xff] %v674
    %739 = vst [vmem:[#allocation2 + $0x1e0] sm:$0xff] %v675
    %740 = vst [vmem:[#allocation2 + $0x1e8] sm:$0xff] %v676
    %741 = vst [vmem:[#allocation2 + $0x1f0] sm:$0xff] %v677
    %742 = vst [vmem:[#allocation2 + $0x1f8] sm:$0xff] %v678
    // Predicated region
    $region22: #{bottleneck_forward.5} parent=1 // pred_check
      %p743 = pneg %p18
    $region23: #{bottleneck_forward.5} parent=1 // pred_check_branch
      %745 = sbr.rel (%p743) target = $region25
    $region24: #{bottleneck_forward.5} parent=1 // pred_region
      %v746 = vld [vmem:[#allocation2] sm:$0xff]
      %v747 = vld [vmem:[#allocation2 + $0x8] sm:$0xff]
      %v748 = vld [vmem:[#allocation2 + $0x10] sm:$0xff]
      %v749 = vld [vmem:[#allocation2 + $0x18] sm:$0xff]
      %v750 = vld [vmem:[#allocation2 + $0x20] sm:$0xff]
      %v751 = vld [vmem:[#allocation2 + $0x28] sm:$0xff]
      %v752 = vld [vmem:[#allocation2 + $0x30] sm:$0xff]
      %v753 = vld [vmem:[#allocation2 + $0x38] sm:$0xff]
      %v754 = vld [vmem:[#allocation2 + $0x40] sm:$0xff]
      %v755 = vld [vmem:[#allocation2 + $0x48] sm:$0xff]
      %v756 = vld [vmem:[#allocation2 + $0x50] sm:$0xff]
      %v757 = vld [vmem:[#allocation2 + $0x58] sm:$0xff]
      %v758 = vld [vmem:[#allocation2 + $0x60] sm:$0xff]
      %v759 = vld [vmem:[#allocation2 + $0x68] sm:$0xff]
      %v760 = vld [vmem:[#allocation2 + $0x70] sm:$0xff]
      %v761 = vld [vmem:[#allocation2 + $0x78] sm:$0xff]
      %v762 = vld [vmem:[#allocation2 + $0x80] sm:$0xff]
      %v763 = vld [vmem:[#allocation2 + $0x88] sm:$0xff]
      %v764 = vld [vmem:[#allocation2 + $0x90] sm:$0xff]
      %v765 = vld [vmem:[#allocation2 + $0x98] sm:$0xff]
      %v766 = vld [vmem:[#allocation2 + $0xa0] sm:$0xff]
      %v767 = vld [vmem:[#allocation2 + $0xa8] sm:$0xff]
      %v768 = vld [vmem:[#allocation2 + $0xb0] sm:$0xff]
      %v769 = vld [vmem:[#allocation2 + $0xb8] sm:$0xff]
      %v770 = vld [vmem:[#allocation2 + $0xc0] sm:$0xff]
      %v771 = vld [vmem:[#allocation2 + $0xc8] sm:$0xff]
      %v772 = vld [vmem:[#allocation2 + $0xd0] sm:$0xff]
      %v773 = vld [vmem:[#allocation2 + $0xd8] sm:$0xff]
      %v774 = vld [vmem:[#allocation2 + $0xe0] sm:$0xff]
      %v775 = vld [vmem:[#allocation2 + $0xe8] sm:$0xff]
      %v776 = vld [vmem:[#allocation2 + $0xf0] sm:$0xff]
      %v777 = vld [vmem:[#allocation2 + $0xf8] sm:$0xff]
      %v778 = vld [vmem:[#allocation2 + $0x100] sm:$0xff]
      %v779 = vld [vmem:[#allocation2 + $0x108] sm:$0xff]
      %v780 = vld [vmem:[#allocation2 + $0x110] sm:$0xff]
      %v781 = vld [vmem:[#allocation2 + $0x118] sm:$0xff]
      %v782 = vld [vmem:[#allocation2 + $0x120] sm:$0xff]
      %v783 = vld [vmem:[#allocation2 + $0x128] sm:$0xff]
      %v784 = vld [vmem:[#allocation2 + $0x130] sm:$0xff]
      %v785 = vld [vmem:[#allocation2 + $0x138] sm:$0xff]
      %v786 = vld [vmem:[#allocation2 + $0x140] sm:$0xff]
      %v787 = vld [vmem:[#allocation2 + $0x148] sm:$0xff]
      %v788 = vld [vmem:[#allocation2 + $0x150] sm:$0xff]
      %v789 = vld [vmem:[#allocation2 + $0x158] sm:$0xff]
      %v790 = vld [vmem:[#allocation2 + $0x160] sm:$0xff]
      %v791 = vld [vmem:[#allocation2 + $0x168] sm:$0xff]
      %v792 = vld [vmem:[#allocation2 + $0x170] sm:$0xff]
      %v793 = vld [vmem:[#allocation2 + $0x178] sm:$0xff]
      %v794 = vld [vmem:[#allocation2 + $0x180] sm:$0xff]
      %v795 = vld [vmem:[#allocation2 + $0x188] sm:$0xff]
      %v796 = vld [vmem:[#allocation2 + $0x190] sm:$0xff]
      %v797 = vld [vmem:[#allocation2 + $0x198] sm:$0xff]
      %v798 = vld [vmem:[#allocation2 + $0x1a0] sm:$0xff]
      %v799 = vld [vmem:[#allocation2 + $0x1a8] sm:$0xff]
      %v800 = vld [vmem:[#allocation2 + $0x1b0] sm:$0xff]
      %v801 = vld [vmem:[#allocation2 + $0x1b8] sm:$0xff]
      %v802 = vld [vmem:[#allocation2 + $0x1c0] sm:$0xff]
      %v803 = vld [vmem:[#allocation2 + $0x1c8] sm:$0xff]
      %v804 = vld [vmem:[#allocation2 + $0x1d0] sm:$0xff]
      %v805 = vld [vmem:[#allocation2 + $0x1d8] sm:$0xff]
      %v806 = vld [vmem:[#allocation2 + $0x1e0] sm:$0xff]
      %v807 = vld [vmem:[#allocation2 + $0x1e8] sm:$0xff]
      %v808 = vld [vmem:[#allocation2 + $0x1f0] sm:$0xff]
      %v809 = vld [vmem:[#allocation2 + $0x1f8] sm:$0xff]
      %v810 = vld [vmem:[%s2] sm:$0x1]
      %v812 = vlaneseq
      %v813 = vshrl.u32 %v812, 7
      %v814 = vsub.s32 0, %v813
      %v815 = vrot.slane %v810, %v814
      %v817 = vadd.f32 %v746, %v815
      %v818 = vadd.f32 %v747, %v815
      %v819 = vadd.f32 %v748, %v815
      %v820 = vadd.f32 %v749, %v815
      %v821 = vadd.f32 %v750, %v815
      %v822 = vadd.f32 %v751, %v815
      %v823 = vadd.f32 %v752, %v815
      %v824 = vadd.f32 %v753, %v815
      %v825 = vadd.f32 %v754, %v815
      %v826 = vadd.f32 %v755, %v815
      %v827 = vadd.f32 %v756, %v815
      %v828 = vadd.f32 %v757, %v815
      %v829 = vadd.f32 %v758, %v815
      %v830 = vadd.f32 %v759, %v815
      %v831 = vadd.f32 %v760, %v815
      %v832 = vadd.f32 %v761, %v815
      %v833 = vadd.f32 %v762, %v815
      %v834 = vadd.f32 %v763, %v815
      %v835 = vadd.f32 %v764, %v815
      %v836 = vadd.f32 %v765, %v815
      %v837 = vadd.f32 %v766, %v815
      %v838 = vadd.f32 %v767, %v815
      %v839 = vadd.f32 %v768, %v815
      %v840 = vadd.f32 %v769, %v815
      %v841 = vadd.f32 %v770, %v815
      %v842 = vadd.f32 %v771, %v815
      %v843 = vadd.f32 %v772, %v815
      %v844 = vadd.f32 %v773, %v815
      %v845 = vadd.f32 %v774, %v815
      %v846 = vadd.f32 %v775, %v815
      %v847 = vadd.f32 %v776, %v815
      %v848 = vadd.f32 %v777, %v815
      %v849 = vadd.f32 %v778, %v815
      %v850 = vadd.f32 %v779, %v815
      %v851 = vadd.f32 %v780, %v815
      %v852 = vadd.f32 %v781, %v815
      %v853 = vadd.f32 %v782, %v815
      %v854 = vadd.f32 %v783, %v815
      %v855 = vadd.f32 %v784, %v815
      %v856 = vadd.f32 %v785, %v815
      %v857 = vadd.f32 %v786, %v815
      %v858 = vadd.f32 %v787, %v815
      %v859 = vadd.f32 %v788, %v815
      %v860 = vadd.f32 %v789, %v815
      %v861 = vadd.f32 %v790, %v815
      %v862 = vadd.f32 %v791, %v815
      %v863 = vadd.f32 %v792, %v815
      %v864 = vadd.f32 %v793, %v815
      %v865 = vadd.f32 %v794, %v815
      %v866 = vadd.f32 %v795, %v815
      %v867 = vadd.f32 %v796, %v815
      %v868 = vadd.f32 %v797, %v815
      %v869 = vadd.f32 %v798, %v815
      %v870 = vadd.f32 %v799, %v815
      %v871 = vadd.f32 %v800, %v815
      %v872 = vadd.f32 %v801, %v815
      %v873 = vadd.f32 %v802, %v815
      %v874 = vadd.f32 %v803, %v815
      %v875 = vadd.f32 %v804, %v815
      %v876 = vadd.f32 %v805, %v815
      %v877 = vadd.f32 %v806, %v815
      %v878 = vadd.f32 %v807, %v815
      %v879 = vadd.f32 %v808, %v815
      %v880 = vadd.f32 %v809, %v815
      %v881 = vld [vmem:[%s3] sm:$0xff]
      %v882 = vld [vmem:[%s3 + $0x8] sm:$0xff]
      %v883 = vld [vmem:[%s3 + $0x10] sm:$0xff]
      %v884 = vld [vmem:[%s3 + $0x18] sm:$0xff]
      %v885 = vld [vmem:[%s3 + $0x20] sm:$0xff]
      %v886 = vld [vmem:[%s3 + $0x28] sm:$0xff]
      %v887 = vld [vmem:[%s3 + $0x30] sm:$0xff]
      %v888 = vld [vmem:[%s3 + $0x38] sm:$0xff]
      %v889 = vld [vmem:[%s3 + $0x40] sm:$0xff]
      %v890 = vld [vmem:[%s3 + $0x48] sm:$0xff]
      %v891 = vld [vmem:[%s3 + $0x50] sm:$0xff]
      %v892 = vld [vmem:[%s3 + $0x58] sm:$0xff]
      %v893 = vld [vmem:[%s3 + $0x60] sm:$0xff]
      %v894 = vld [vmem:[%s3 + $0x68] sm:$0xff]
      %v895 = vld [vmem:[%s3 + $0x70] sm:$0xff]
      %v896 = vld [vmem:[%s3 + $0x78] sm:$0xff]
      %v897 = vld [vmem:[%s3 + $0x80] sm:$0xff]
      %v898 = vld [vmem:[%s3 + $0x88] sm:$0xff]
      %v899 = vld [vmem:[%s3 + $0x90] sm:$0xff]
      %v900 = vld [vmem:[%s3 + $0x98] sm:$0xff]
      %v901 = vld [vmem:[%s3 + $0xa0] sm:$0xff]
      %v902 = vld [vmem:[%s3 + $0xa8] sm:$0xff]
      %v903 = vld [vmem:[%s3 + $0xb0] sm:$0xff]
      %v904 = vld [vmem:[%s3 + $0xb8] sm:$0xff]
      %v905 = vld [vmem:[%s3 + $0xc0] sm:$0xff]
      %v906 = vld [vmem:[%s3 + $0xc8] sm:$0xff]
      %v907 = vld [vmem:[%s3 + $0xd0] sm:$0xff]
      %v908 = vld [vmem:[%s3 + $0xd8] sm:$0xff]
      %v909 = vld [vmem:[%s3 + $0xe0] sm:$0xff]
      %v910 = vld [vmem:[%s3 + $0xe8] sm:$0xff]
      %v911 = vld [vmem:[%s3 + $0xf0] sm:$0xff]
      %v912 = vld [vmem:[%s3 + $0xf8] sm:$0xff]
      %v913 = vld [vmem:[%s3 + $0x100] sm:$0xff]
      %v914 = vld [vmem:[%s3 + $0x108] sm:$0xff]
      %v915 = vld [vmem:[%s3 + $0x110] sm:$0xff]
      %v916 = vld [vmem:[%s3 + $0x118] sm:$0xff]
      %v917 = vld [vmem:[%s3 + $0x120] sm:$0xff]
      %v918 = vld [vmem:[%s3 + $0x128] sm:$0xff]
      %v919 = vld [vmem:[%s3 + $0x130] sm:$0xff]
      %v920 = vld [vmem:[%s3 + $0x138] sm:$0xff]
      %v921 = vld [vmem:[%s3 + $0x140] sm:$0xff]
      %v922 = vld [vmem:[%s3 + $0x148] sm:$0xff]
      %v923 = vld [vmem:[%s3 + $0x150] sm:$0xff]
      %v924 = vld [vmem:[%s3 + $0x158] sm:$0xff]
      %v925 = vld [vmem:[%s3 + $0x160] sm:$0xff]
      %v926 = vld [vmem:[%s3 + $0x168] sm:$0xff]
      %v927 = vld [vmem:[%s3 + $0x170] sm:$0xff]
      %v928 = vld [vmem:[%s3 + $0x178] sm:$0xff]
      %v929 = vld [vmem:[%s3 + $0x180] sm:$0xff]
      %v930 = vld [vmem:[%s3 + $0x188] sm:$0xff]
      %v931 = vld [vmem:[%s3 + $0x190] sm:$0xff]
      %v932 = vld [vmem:[%s3 + $0x198] sm:$0xff]
      %v933 = vld [vmem:[%s3 + $0x1a0] sm:$0xff]
      %v934 = vld [vmem:[%s3 + $0x1a8] sm:$0xff]
      %v935 = vld [vmem:[%s3 + $0x1b0] sm:$0xff]
      %v936 = vld [vmem:[%s3 + $0x1b8] sm:$0xff]
      %v937 = vld [vmem:[%s3 + $0x1c0] sm:$0xff]
      %v938 = vld [vmem:[%s3 + $0x1c8] sm:$0xff]
      %v939 = vld [vmem:[%s3 + $0x1d0] sm:$0xff]
      %v940 = vld [vmem:[%s3 + $0x1d8] sm:$0xff]
      %v941 = vld [vmem:[%s3 + $0x1e0] sm:$0xff]
      %v942 = vld [vmem:[%s3 + $0x1e8] sm:$0xff]
      %v943 = vld [vmem:[%s3 + $0x1f0] sm:$0xff]
      %v944 = vld [vmem:[%s3 + $0x1f8] sm:$0xff]
      %v945 = vadd.f32 %v817, %v881
      %v946 = vadd.f32 %v818, %v882
      %v947 = vadd.f32 %v819, %v883
      %v948 = vadd.f32 %v820, %v884
      %v949 = vadd.f32 %v821, %v885
      %v950 = vadd.f32 %v822, %v886
      %v951 = vadd.f32 %v823, %v887
      %v952 = vadd.f32 %v824, %v888
      %v953 = vadd.f32 %v825, %v889
      %v954 = vadd.f32 %v826, %v890
      %v955 = vadd.f32 %v827, %v891
      %v956 = vadd.f32 %v828, %v892
      %v957 = vadd.f32 %v829, %v893
      %v958 = vadd.f32 %v830, %v894
      %v959 = vadd.f32 %v831, %v895
      %v960 = vadd.f32 %v832, %v896
      %v961 = vadd.f32 %v833, %v897
      %v962 = vadd.f32 %v834, %v898
      %v963 = vadd.f32 %v835, %v899
      %v964 = vadd.f32 %v836, %v900
      %v965 = vadd.f32 %v837, %v901
      %v966 = vadd.f32 %v838, %v902
      %v967 = vadd.f32 %v839, %v903
      %v968 = vadd.f32 %v840, %v904
      %v969 = vadd.f32 %v841, %v905
      %v970 = vadd.f32 %v842, %v906
      %v971 = vadd.f32 %v843, %v907
      %v972 = vadd.f32 %v844, %v908
      %v973 = vadd.f32 %v845, %v909
      %v974 = vadd.f32 %v846, %v910
      %v975 = vadd.f32 %v847, %v911
      %v976 = vadd.f32 %v848, %v912
      %v977 = vadd.f32 %v849, %v913
      %v978 = vadd.f32 %v850, %v914
      %v979 = vadd.f32 %v851, %v915
      %v980 = vadd.f32 %v852, %v916
      %v981 = vadd.f32 %v853, %v917
      %v982 = vadd.f32 %v854, %v918
      %v983 = vadd.f32 %v855, %v919
      %v984 = vadd.f32 %v856, %v920
      %v985 = vadd.f32 %v857, %v921
      %v986 = vadd.f32 %v858, %v922
      %v987 = vadd.f32 %v859, %v923
      %v988 = vadd.f32 %v860, %v924
      %v989 = vadd.f32 %v861, %v925
      %v990 = vadd.f32 %v862, %v926
      %v991 = vadd.f32 %v863, %v927
      %v992 = vadd.f32 %v864, %v928
      %v993 = vadd.f32 %v865, %v929
      %v994 = vadd.f32 %v866, %v930
      %v995 = vadd.f32 %v867, %v931
      %v996 = vadd.f32 %v868, %v932
      %v997 = vadd.f32 %v869, %v933
      %v998 = vadd.f32 %v870, %v934
      %v999 = vadd.f32 %v871, %v935
      %v1000 = vadd.f32 %v872, %v936
      %v1001 = vadd.f32 %v873, %v937
      %v1002 = vadd.f32 %v874, %v938
      %v1003 = vadd.f32 %v875, %v939
      %v1004 = vadd.f32 %v876, %v940
      %v1005 = vadd.f32 %v877, %v941
      %v1006 = vadd.f32 %v878, %v942
      %v1007 = vadd.f32 %v879, %v943
      %v1008 = vadd.f32 %v880, %v944
      %v1009 = vmax.f32 %v945, 0.0
      %v1010 = vmax.f32 %v946, 0.0
      %v1011 = vmax.f32 %v947, 0.0
      %v1012 = vmax.f32 %v948, 0.0
      %v1013 = vmax.f32 %v949, 0.0
      %v1014 = vmax.f32 %v950, 0.0
      %v1015 = vmax.f32 %v951, 0.0
      %v1016 = vmax.f32 %v952, 0.0
      %v1017 = vmax.f32 %v953, 0.0
      %v1018 = vmax.f32 %v954, 0.0
      %v1019 = vmax.f32 %v955, 0.0
      %v1020 = vmax.f32 %v956, 0.0
      %v1021 = vmax.f32 %v957, 0.0
      %v1022 = vmax.f32 %v958, 0.0
      %v1023 = vmax.f32 %v959, 0.0
      %v1024 = vmax.f32 %v960, 0.0
      %v1025 = vmax.f32 %v961, 0.0
      %v1026 = vmax.f32 %v962, 0.0
      %v1027 = vmax.f32 %v963, 0.0
      %v1028 = vmax.f32 %v964, 0.0
      %v1029 = vmax.f32 %v965, 0.0
      %v1030 = vmax.f32 %v966, 0.0
      %v1031 = vmax.f32 %v967, 0.0
      %v1032 = vmax.f32 %v968, 0.0
      %v1033 = vmax.f32 %v969, 0.0
      %v1034 = vmax.f32 %v970, 0.0
      %v1035 = vmax.f32 %v971, 0.0
      %v1036 = vmax.f32 %v972, 0.0
      %v1037 = vmax.f32 %v973, 0.0
      %v1038 = vmax.f32 %v974, 0.0
      %v1039 = vmax.f32 %v975, 0.0
      %v1040 = vmax.f32 %v976, 0.0
      %v1041 = vmax.f32 %v977, 0.0
      %v1042 = vmax.f32 %v978, 0.0
      %v1043 = vmax.f32 %v979, 0.0
      %v1044 = vmax.f32 %v980, 0.0
      %v1045 = vmax.f32 %v981, 0.0
      %v1046 = vmax.f32 %v982, 0.0
      %v1047 = vmax.f32 %v983, 0.0
      %v1048 = vmax.f32 %v984, 0.0
      %v1049 = vmax.f32 %v985, 0.0
      %v1050 = vmax.f32 %v986, 0.0
      %v1051 = vmax.f32 %v987, 0.0
      %v1052 = vmax.f32 %v988, 0.0
      %v1053 = vmax.f32 %v989, 0.0
      %v1054 = vmax.f32 %v990, 0.0
      %v1055 = vmax.f32 %v991, 0.0
      %v1056 = vmax.f32 %v992, 0.0
      %v1057 = vmax.f32 %v993, 0.0
      %v1058 = vmax.f32 %v994, 0.0
      %v1059 = vmax.f32 %v995, 0.0
      %v1060 = vmax.f32 %v996, 0.0
      %v1061 = vmax.f32 %v997, 0.0
      %v1062 = vmax.f32 %v998, 0.0
      %v1063 = vmax.f32 %v999, 0.0
      %v1064 = vmax.f32 %v1000, 0.0
      %v1065 = vmax.f32 %v1001, 0.0
      %v1066 = vmax.f32 %v1002, 0.0
      %v1067 = vmax.f32 %v1003, 0.0
      %v1068 = vmax.f32 %v1004, 0.0
      %v1069 = vmax.f32 %v1005, 0.0
      %v1070 = vmax.f32 %v1006, 0.0
      %v1071 = vmax.f32 %v1007, 0.0
      %v1072 = vmax.f32 %v1008, 0.0
      %1073 = vst [vmem:[#allocation3] sm:$0xff] %v1009
      %1074 = vst [vmem:[#allocation3 + $0x8] sm:$0xff] %v1010
      %1075 = vst [vmem:[#allocation3 + $0x10] sm:$0xff] %v1011
      %1076 = vst [vmem:[#allocation3 + $0x18] sm:$0xff] %v1012
      %1077 = vst [vmem:[#allocation3 + $0x20] sm:$0xff] %v1013
      %1078 = vst [vmem:[#allocation3 + $0x28] sm:$0xff] %v1014
      %1079 = vst [vmem:[#allocation3 + $0x30] sm:$0xff] %v1015
      %1080 = vst [vmem:[#allocation3 + $0x38] sm:$0xff] %v1016
      %1081 = vst [vmem:[#allocation3 + $0x40] sm:$0xff] %v1017
      %1082 = vst [vmem:[#allocation3 + $0x48] sm:$0xff] %v1018
      %1083 = vst [vmem:[#allocation3 + $0x50] sm:$0xff] %v1019
      %1084 = vst [vmem:[#allocation3 + $0x58] sm:$0xff] %v1020
      %1085 = vst [vmem:[#allocation3 + $0x60] sm:$0xff] %v1021
      %1086 = vst [vmem:[#allocation3 + $0x68] sm:$0xff] %v1022
      %1087 = vst [vmem:[#allocation3 + $0x70] sm:$0xff] %v1023
      %1088 = vst [vmem:[#allocation3 + $0x78] sm:$0xff] %v1024
      %1089 = vst [vmem:[#allocation3 + $0x80] sm:$0xff] %v1025
      %1090 = vst [vmem:[#allocation3 + $0x88] sm:$0xff] %v1026
      %1091 = vst [vmem:[#allocation3 + $0x90] sm:$0xff] %v1027
      %1092 = vst [vmem:[#allocation3 + $0x98] sm:$0xff] %v1028
      %1093 = vst [vmem:[#allocation3 + $0xa0] sm:$0xff] %v1029
      %1094 = vst [vmem:[#allocation3 + $0xa8] sm:$0xff] %v1030
      %1095 = vst [vmem:[#allocation3 + $0xb0] sm:$0xff] %v1031
      %1096 = vst [vmem:[#allocation3 + $0xb8] sm:$0xff] %v1032
      %1097 = vst [vmem:[#allocation3 + $0xc0] sm:$0xff] %v1033
      %1098 = vst [vmem:[#allocation3 + $0xc8] sm:$0xff] %v1034
      %1099 = vst [vmem:[#allocation3 + $0xd0] sm:$0xff] %v1035
      %1100 = vst [vmem:[#allocation3 + $0xd8] sm:$0xff] %v1036
      %1101 = vst [vmem:[#allocation3 + $0xe0] sm:$0xff] %v1037
      %1102 = vst [vmem:[#allocation3 + $0xe8] sm:$0xff] %v1038
      %1103 = vst [vmem:[#allocation3 + $0xf0] sm:$0xff] %v1039
      %1104 = vst [vmem:[#allocation3 + $0xf8] sm:$0xff] %v1040
      %1105 = vst [vmem:[#allocation3 + $0x100] sm:$0xff] %v1041
      %1106 = vst [vmem:[#allocation3 + $0x108] sm:$0xff] %v1042
      %1107 = vst [vmem:[#allocation3 + $0x110] sm:$0xff] %v1043
      %1108 = vst [vmem:[#allocation3 + $0x118] sm:$0xff] %v1044
      %1109 = vst [vmem:[#allocation3 + $0x120] sm:$0xff] %v1045
      %1110 = vst [vmem:[#allocation3 + $0x128] sm:$0xff] %v1046
      %1111 = vst [vmem:[#allocation3 + $0x130] sm:$0xff] %v1047
      %1112 = vst [vmem:[#allocation3 + $0x138] sm:$0xff] %v1048
      %1113 = vst [vmem:[#allocation3 + $0x140] sm:$0xff] %v1049
      %1114 = vst [vmem:[#allocation3 + $0x148] sm:$0xff] %v1050
      %1115 = vst [vmem:[#allocation3 + $0x150] sm:$0xff] %v1051
      %1116 = vst [vmem:[#allocation3 + $0x158] sm:$0xff] %v1052
      %1117 = vst [vmem:[#allocation3 + $0x160] sm:$0xff] %v1053
      %1118 = vst [vmem:[#allocation3 + $0x168] sm:$0xff] %v1054
      %1119 = vst [vmem:[#allocation3 + $0x170] sm:$0xff] %v1055
      %1120 = vst [vmem:[#allocation3 + $0x178] sm:$0xff] %v1056
      %1121 = vst [vmem:[#allocation3 + $0x180] sm:$0xff] %v1057
      %1122 = vst [vmem:[#allocation3 + $0x188] sm:$0xff] %v1058
      %1123 = vst [vmem:[#allocation3 + $0x190] sm:$0xff] %v1059
      %1124 = vst [vmem:[#allocation3 + $0x198] sm:$0xff] %v1060
      %1125 = vst [vmem:[#allocation3 + $0x1a0] sm:$0xff] %v1061
      %1126 = vst [vmem:[#allocation3 + $0x1a8] sm:$0xff] %v1062
      %1127 = vst [vmem:[#allocation3 + $0x1b0] sm:$0xff] %v1063
      %1128 = vst [vmem:[#allocation3 + $0x1b8] sm:$0xff] %v1064
      %1129 = vst [vmem:[#allocation3 + $0x1c0] sm:$0xff] %v1065
      %1130 = vst [vmem:[#allocation3 + $0x1c8] sm:$0xff] %v1066
      %1131 = vst [vmem:[#allocation3 + $0x1d0] sm:$0xff] %v1067
      %1132 = vst [vmem:[#allocation3 + $0x1d8] sm:$0xff] %v1068
      %1133 = vst [vmem:[#allocation3 + $0x1e0] sm:$0xff] %v1069
      %1134 = vst [vmem:[#allocation3 + $0x1e8] sm:$0xff] %v1070
      %1135 = vst [vmem:[#allocation3 + $0x1f0] sm:$0xff] %v1071
      %1136 = vst [vmem:[#allocation3 + $0x1f8] sm:$0xff] %v1072
    $region25: #{bottleneck_forward.5} parent=1 // pred_fallthru
      _
    // Predicated region
    $region26: #{bottleneck_forward.5} parent=1 // pred_check
      _
    $region27: #{bottleneck_forward.5} parent=1 // pred_check_branch
      %1138 = sbr.rel (0) target = $region29
    $region28: #{bottleneck_forward.5} parent=1 // pred_region
      %s1140 = ssub.s32 8192, 8192
      %1141 = vsyncadd [#allocation4], %s1140
      %s1142 = sshll.u32 [#allocation3], 4
      %s1143 = int_to_ptr.vmem [resolvable:$true] %s1142
      %1148 = dma.vmem_to_hbm [thread:$0]  %s1143, 8192, %s4, [#allocation4], 128, 128, 8
    $region29: #{bottleneck_forward.5} parent=1 // pred_fallthru
      _
    // Predicated region
    $region30: #{bottleneck_forward.5} parent=1 // pred_check
      _
    $region31: #{bottleneck_forward.5} parent=1 // pred_check_branch
      %1150 = sbr.rel (0) target = $region33
    $region32: #{bottleneck_forward.5} parent=1 // pred_region
      %1151 = dma.done [#allocation4], 8192
    $region33: #{bottleneck_forward.5} parent=1 // pred_fallthru
      _
    %1152 = vsyncpa [#allocation4], 1

// kernel: bottleneck_forward.3
$region0: #{bottleneck_forward.3}
  #allocation0 [shape = 'u32[]', space=smem, size = 0x4, offset = 0x4, fixed_abs, tag = 'smem constant byte address 0x4 - core index']
  #allocation1 [shape = 'u32[144,128]{1,0:T(1,128)}', space=vmem, size = 0x12000, scoped, tag = 'internal scratch']
  #allocation2 [shape = 'f32[512,256]{1,0:T(8,128)}', space=vmem, size = 0x80000, scoped, tag = 'scratch operand']
  %s0 = inlined_call_operand.vmem [shape: f32[512,128], index: 0, kind: input, shape index: {}]
  %s1 = inlined_call_operand.vmem [shape: f32[128,256], index: 1, kind: input, shape index: {}]
  %s2 = inlined_call_operand.vmem [shape: f32[1,256], index: 2, kind: input, shape index: {}]
  %s3 = inlined_call_operand.vmem [shape: f32[1,256], index: 3, kind: input, shape index: {}]
  %s4 = inlined_call_operand.vmem [shape: f32[512,256], index: 4, kind: output, shape index: {}]
  %s5 = sld [smem:[#allocation0]]
  $region34: #{bottleneck_forward.3} parent=0
    _
  %s7 = ssub.s32 1, %s5
  %s8 = scalar_select 0, %s7, %s5
  // Predicated region
  $region2: #{bottleneck_forward.3} parent=0 // pred_check
    _
  $region3: #{bottleneck_forward.3} parent=0 // pred_check_branch
    %10 = sbr.rel (0) target = $region5
  $region4: #{bottleneck_forward.3} parent=0 // pred_region
    _
  $region5: #{bottleneck_forward.3} parent=0 // pred_fallthru
    _
  // Predicated region
  $region6: #{bottleneck_forward.3} parent=0 // pred_check
    _
  $region7: #{bottleneck_forward.3} parent=0 // pred_check_branch
    %12 = sbr.rel (0) target = $region9
  $region8: #{bottleneck_forward.3} parent=0 // pred_region
    _
  $region9: #{bottleneck_forward.3} parent=0 // pred_fallthru
    _
  // Predicated region
  $region10: #{bottleneck_forward.3} parent=0 // pred_check
    _
  $region11: #{bottleneck_forward.3} parent=0 // pred_check_branch
    %14 = sbr.rel (0) target = $region13
  $region12: #{bottleneck_forward.3} parent=0 // pred_region
    _
  $region13: #{bottleneck_forward.3} parent=0 // pred_fallthru
    _
  // Predicated region
  $region14: #{bottleneck_forward.3} parent=0 // pred_check
    _
  $region15: #{bottleneck_forward.3} parent=0 // pred_check_branch
    %16 = sbr.rel (0) target = $region17
  $region16: #{bottleneck_forward.3} parent=0 // pred_region
    _
  $region17: #{bottleneck_forward.3} parent=0 // pred_fallthru
    _
  %p17 = scmp.eq.s32.totalorder 0, 0
  // Predicated region
  $region18: #{bottleneck_forward.3} parent=0 // pred_check
    %p18 = pneg %p17
  $region19: #{bottleneck_forward.3} parent=0 // pred_check_branch
    %20 = sbr.rel (%p18) target = $region21
  $region20: #{bottleneck_forward.3} parent=0 // pred_region
    %21 = vst [vmem:[#allocation2] sm:$0xff] 0.0
    %22 = vst [vmem:[#allocation2 + $0x8] sm:$0xff] 0.0
    %23 = vst [vmem:[#allocation2 + $0x10] sm:$0xff] 0.0
    %24 = vst [vmem:[#allocation2 + $0x18] sm:$0xff] 0.0
    %25 = vst [vmem:[#allocation2 + $0x20] sm:$0xff] 0.0
    %26 = vst [vmem:[#allocation2 + $0x28] sm:$0xff] 0.0
    %27 = vst [vmem:[#allocation2 + $0x30] sm:$0xff] 0.0
    %28 = vst [vmem:[#allocation2 + $0x38] sm:$0xff] 0.0
    %29 = vst [vmem:[#allocation2 + $0x40] sm:$0xff] 0.0
    %30 = vst [vmem:[#allocation2 + $0x48] sm:$0xff] 0.0
    %31 = vst [vmem:[#allocation2 + $0x50] sm:$0xff] 0.0
    %32 = vst [vmem:[#allocation2 + $0x58] sm:$0xff] 0.0
    %33 = vst [vmem:[#allocation2 + $0x60] sm:$0xff] 0.0
    %34 = vst [vmem:[#allocation2 + $0x68] sm:$0xff] 0.0
    %35 = vst [vmem:[#allocation2 + $0x70] sm:$0xff] 0.0
    %36 = vst [vmem:[#allocation2 + $0x78] sm:$0xff] 0.0
    %37 = vst [vmem:[#allocation2 + $0x80] sm:$0xff] 0.0
    %38 = vst [vmem:[#allocation2 + $0x88] sm:$0xff] 0.0
    %39 = vst [vmem:[#allocation2 + $0x90] sm:$0xff] 0.0
    %40 = vst [vmem:[#allocation2 + $0x98] sm:$0xff] 0.0
    %41 = vst [vmem:[#allocation2 + $0xa0] sm:$0xff] 0.0
    %42 = vst [vmem:[#allocation2 + $0xa8] sm:$0xff] 0.0
    %43 = vst [vmem:[#allocation2 + $0xb0] sm:$0xff] 0.0
    %44 = vst [vmem:[#allocation2 + $0xb8] sm:$0xff] 0.0
    %45 = vst [vmem:[#allocation2 + $0xc0] sm:$0xff] 0.0
    %46 = vst [vmem:[#allocation2 + $0xc8] sm:$0xff] 0.0
    %47 = vst [vmem:[#allocation2 + $0xd0] sm:$0xff] 0.0
    %48 = vst [vmem:[#allocation2 + $0xd8] sm:$0xff] 0.0
    %49 = vst [vmem:[#allocation2 + $0xe0] sm:$0xff] 0.0
    %50 = vst [vmem:[#allocation2 + $0xe8] sm:$0xff] 0.0
    %51 = vst [vmem:[#allocation2 + $0xf0] sm:$0xff] 0.0
    %52 = vst [vmem:[#allocation2 + $0xf8] sm:$0xff] 0.0
    %53 = vst [vmem:[#allocation2 + $0x100] sm:$0xff] 0.0
    %54 = vst [vmem:[#allocation2 + $0x108] sm:$0xff] 0.0
    %55 = vst [vmem:[#allocation2 + $0x110] sm:$0xff] 0.0
    %56 = vst [vmem:[#allocation2 + $0x118] sm:$0xff] 0.0
    %57 = vst [vmem:[#allocation2 + $0x120] sm:$0xff] 0.0
    %58 = vst [vmem:[#allocation2 + $0x128] sm:$0xff] 0.0
    %59 = vst [vmem:[#allocation2 + $0x130] sm:$0xff] 0.0
    %60 = vst [vmem:[#allocation2 + $0x138] sm:$0xff] 0.0
    %61 = vst [vmem:[#allocation2 + $0x140] sm:$0xff] 0.0
    %62 = vst [vmem:[#allocation2 + $0x148] sm:$0xff] 0.0
    %63 = vst [vmem:[#allocation2 + $0x150] sm:$0xff] 0.0
    %64 = vst [vmem:[#allocation2 + $0x158] sm:$0xff] 0.0
    %65 = vst [vmem:[#allocation2 + $0x160] sm:$0xff] 0.0
    %66 = vst [vmem:[#allocation2 + $0x168] sm:$0xff] 0.0
    %67 = vst [vmem:[#allocation2 + $0x170] sm:$0xff] 0.0
    %68 = vst [vmem:[#allocation2 + $0x178] sm:$0xff] 0.0
    %69 = vst [vmem:[#allocation2 + $0x180] sm:$0xff] 0.0
    %70 = vst [vmem:[#allocation2 + $0x188] sm:$0xff] 0.0
    %71 = vst [vmem:[#allocation2 + $0x190] sm:$0xff] 0.0
    %72 = vst [vmem:[#allocation2 + $0x198] sm:$0xff] 0.0
    %73 = vst [vmem:[#allocation2 + $0x1a0] sm:$0xff] 0.0
    %74 = vst [vmem:[#allocation2 + $0x1a8] sm:$0xff] 0.0
    %75 = vst [vmem:[#allocation2 + $0x1b0] sm:$0xff] 0.0
    %76 = vst [vmem:[#allocation2 + $0x1b8] sm:$0xff] 0.0
    %77 = vst [vmem:[#allocation2 + $0x1c0] sm:$0xff] 0.0
    %78 = vst [vmem:[#allocation2 + $0x1c8] sm:$0xff] 0.0
    %79 = vst [vmem:[#allocation2 + $0x1d0] sm:$0xff] 0.0
    %80 = vst [vmem:[#allocation2 + $0x1d8] sm:$0xff] 0.0
    %81 = vst [vmem:[#allocation2 + $0x1e0] sm:$0xff] 0.0
    %82 = vst [vmem:[#allocation2 + $0x1e8] sm:$0xff] 0.0
    %83 = vst [vmem:[#allocation2 + $0x1f0] sm:$0xff] 0.0
    %84 = vst [vmem:[#allocation2 + $0x1f8] sm:$0xff] 0.0
    %85 = vst [vmem:[#allocation2 + $0x200] sm:$0xff] 0.0
    %86 = vst [vmem:[#allocation2 + $0x208] sm:$0xff] 0.0
    %87 = vst [vmem:[#allocation2 + $0x210] sm:$0xff] 0.0
    %88 = vst [vmem:[#allocation2 + $0x218] sm:$0xff] 0.0
    %89 = vst [vmem:[#allocation2 + $0x220] sm:$0xff] 0.0
    %90 = vst [vmem:[#allocation2 + $0x228] sm:$0xff] 0.0
    %91 = vst [vmem:[#allocation2 + $0x230] sm:$0xff] 0.0
    %92 = vst [vmem:[#allocation2 + $0x238] sm:$0xff] 0.0
    %93 = vst [vmem:[#allocation2 + $0x240] sm:$0xff] 0.0
    %94 = vst [vmem:[#allocation2 + $0x248] sm:$0xff] 0.0
    %95 = vst [vmem:[#allocation2 + $0x250] sm:$0xff] 0.0
    %96 = vst [vmem:[#allocation2 + $0x258] sm:$0xff] 0.0
    %97 = vst [vmem:[#allocation2 + $0x260] sm:$0xff] 0.0
    %98 = vst [vmem:[#allocation2 + $0x268] sm:$0xff] 0.0
    %99 = vst [vmem:[#allocation2 + $0x270] sm:$0xff] 0.0
    %100 = vst [vmem:[#allocation2 + $0x278] sm:$0xff] 0.0
    %101 = vst [vmem:[#allocation2 + $0x280] sm:$0xff] 0.0
    %102 = vst [vmem:[#allocation2 + $0x288] sm:$0xff] 0.0
    %103 = vst [vmem:[#allocation2 + $0x290] sm:$0xff] 0.0
    %104 = vst [vmem:[#allocation2 + $0x298] sm:$0xff] 0.0
    %105 = vst [vmem:[#allocation2 + $0x2a0] sm:$0xff] 0.0
    %106 = vst [vmem:[#allocation2 + $0x2a8] sm:$0xff] 0.0
    %107 = vst [vmem:[#allocation2 + $0x2b0] sm:$0xff] 0.0
    %108 = vst [vmem:[#allocation2 + $0x2b8] sm:$0xff] 0.0
    %109 = vst [vmem:[#allocation2 + $0x2c0] sm:$0xff] 0.0
    %110 = vst [vmem:[#allocation2 + $0x2c8] sm:$0xff] 0.0
    %111 = vst [vmem:[#allocation2 + $0x2d0] sm:$0xff] 0.0
    %112 = vst [vmem:[#allocation2 + $0x2d8] sm:$0xff] 0.0
    %113 = vst [vmem:[#allocation2 + $0x2e0] sm:$0xff] 0.0
    %114 = vst [vmem:[#allocation2 + $0x2e8] sm:$0xff] 0.0
    %115 = vst [vmem:[#allocation2 + $0x2f0] sm:$0xff] 0.0
    %116 = vst [vmem:[#allocation2 + $0x2f8] sm:$0xff] 0.0
    %117 = vst [vmem:[#allocation2 + $0x300] sm:$0xff] 0.0
    %118 = vst [vmem:[#allocation2 + $0x308] sm:$0xff] 0.0
    %119 = vst [vmem:[#allocation2 + $0x310] sm:$0xff] 0.0
    %120 = vst [vmem:[#allocation2 + $0x318] sm:$0xff] 0.0
    %121 = vst [vmem:[#allocation2 + $0x320] sm:$0xff] 0.0
    %122 = vst [vmem:[#allocation2 + $0x328] sm:$0xff] 0.0
    %123 = vst [vmem:[#allocation2 + $0x330] sm:$0xff] 0.0
    %124 = vst [vmem:[#allocation2 + $0x338] sm:$0xff] 0.0
    %125 = vst [vmem:[#allocation2 + $0x340] sm:$0xff] 0.0
    %126 = vst [vmem:[#allocation2 + $0x348] sm:$0xff] 0.0
    %127 = vst [vmem:[#allocation2 + $0x350] sm:$0xff] 0.0
    %128 = vst [vmem:[#allocation2 + $0x358] sm:$0xff] 0.0
    %129 = vst [vmem:[#allocation2 + $0x360] sm:$0xff] 0.0
    %130 = vst [vmem:[#allocation2 + $0x368] sm:$0xff] 0.0
    %131 = vst [vmem:[#allocation2 + $0x370] sm:$0xff] 0.0
    %132 = vst [vmem:[#allocation2 + $0x378] sm:$0xff] 0.0
    %133 = vst [vmem:[#allocation2 + $0x380] sm:$0xff] 0.0
    %134 = vst [vmem:[#allocation2 + $0x388] sm:$0xff] 0.0
    %135 = vst [vmem:[#allocation2 + $0x390] sm:$0xff] 0.0
    %136 = vst [vmem:[#allocation2 + $0x398] sm:$0xff] 0.0
    %137 = vst [vmem:[#allocation2 + $0x3a0] sm:$0xff] 0.0
    %138 = vst [vmem:[#allocation2 + $0x3a8] sm:$0xff] 0.0
    %139 = vst [vmem:[#allocation2 + $0x3b0] sm:$0xff] 0.0
    %140 = vst [vmem:[#allocation2 + $0x3b8] sm:$0xff] 0.0
    %141 = vst [vmem:[#allocation2 + $0x3c0] sm:$0xff] 0.0
    %142 = vst [vmem:[#allocation2 + $0x3c8] sm:$0xff] 0.0
    %143 = vst [vmem:[#allocation2 + $0x3d0] sm:$0xff] 0.0
    %144 = vst [vmem:[#allocation2 + $0x3d8] sm:$0xff] 0.0
    %145 = vst [vmem:[#allocation2 + $0x3e0] sm:$0xff] 0.0
    %146 = vst [vmem:[#allocation2 + $0x3e8] sm:$0xff] 0.0
    %147 = vst [vmem:[#allocation2 + $0x3f0] sm:$0xff] 0.0
    %148 = vst [vmem:[#allocation2 + $0x3f8] sm:$0xff] 0.0
  $region21: #{bottleneck_forward.3} parent=0 // pred_fallthru
    _
  %v149 = vld [vmem:[#allocation2] sm:$0xff]
  %v150 = vld [vmem:[#allocation2 + $0x8] sm:$0xff]
  %v151 = vld [vmem:[#allocation2 + $0x10] sm:$0xff]
  %v152 = vld [vmem:[#allocation2 + $0x18] sm:$0xff]
  %v153 = vld [vmem:[#allocation2 + $0x20] sm:$0xff]
  %v154 = vld [vmem:[#allocation2 + $0x28] sm:$0xff]
  %v155 = vld [vmem:[#allocation2 + $0x30] sm:$0xff]
  %v156 = vld [vmem:[#allocation2 + $0x38] sm:$0xff]
  %v157 = vld [vmem:[#allocation2 + $0x40] sm:$0xff]
  %v158 = vld [vmem:[#allocation2 + $0x48] sm:$0xff]
  %v159 = vld [vmem:[#allocation2 + $0x50] sm:$0xff]
  %v160 = vld [vmem:[#allocation2 + $0x58] sm:$0xff]
  %v161 = vld [vmem:[#allocation2 + $0x60] sm:$0xff]
  %v162 = vld [vmem:[#allocation2 + $0x68] sm:$0xff]
  %v163 = vld [vmem:[#allocation2 + $0x70] sm:$0xff]
  %v164 = vld [vmem:[#allocation2 + $0x78] sm:$0xff]
  %v165 = vld [vmem:[#allocation2 + $0x80] sm:$0xff]
  %v166 = vld [vmem:[#allocation2 + $0x88] sm:$0xff]
  %v167 = vld [vmem:[#allocation2 + $0x90] sm:$0xff]
  %v168 = vld [vmem:[#allocation2 + $0x98] sm:$0xff]
  %v169 = vld [vmem:[#allocation2 + $0xa0] sm:$0xff]
  %v170 = vld [vmem:[#allocation2 + $0xa8] sm:$0xff]
  %v171 = vld [vmem:[#allocation2 + $0xb0] sm:$0xff]
  %v172 = vld [vmem:[#allocation2 + $0xb8] sm:$0xff]
  %v173 = vld [vmem:[#allocation2 + $0xc0] sm:$0xff]
  %v174 = vld [vmem:[#allocation2 + $0xc8] sm:$0xff]
  %v175 = vld [vmem:[#allocation2 + $0xd0] sm:$0xff]
  %v176 = vld [vmem:[#allocation2 + $0xd8] sm:$0xff]
  %v177 = vld [vmem:[#allocation2 + $0xe0] sm:$0xff]
  %v178 = vld [vmem:[#allocation2 + $0xe8] sm:$0xff]
  %v179 = vld [vmem:[#allocation2 + $0xf0] sm:$0xff]
  %v180 = vld [vmem:[#allocation2 + $0xf8] sm:$0xff]
  %v181 = vld [vmem:[#allocation2 + $0x100] sm:$0xff]
  %v182 = vld [vmem:[#allocation2 + $0x108] sm:$0xff]
  %v183 = vld [vmem:[#allocation2 + $0x110] sm:$0xff]
  %v184 = vld [vmem:[#allocation2 + $0x118] sm:$0xff]
  %v185 = vld [vmem:[#allocation2 + $0x120] sm:$0xff]
  %v186 = vld [vmem:[#allocation2 + $0x128] sm:$0xff]
  %v187 = vld [vmem:[#allocation2 + $0x130] sm:$0xff]
  %v188 = vld [vmem:[#allocation2 + $0x138] sm:$0xff]
  %v189 = vld [vmem:[#allocation2 + $0x140] sm:$0xff]
  %v190 = vld [vmem:[#allocation2 + $0x148] sm:$0xff]
  %v191 = vld [vmem:[#allocation2 + $0x150] sm:$0xff]
  %v192 = vld [vmem:[#allocation2 + $0x158] sm:$0xff]
  %v193 = vld [vmem:[#allocation2 + $0x160] sm:$0xff]
  %v194 = vld [vmem:[#allocation2 + $0x168] sm:$0xff]
  %v195 = vld [vmem:[#allocation2 + $0x170] sm:$0xff]
  %v196 = vld [vmem:[#allocation2 + $0x178] sm:$0xff]
  %v197 = vld [vmem:[#allocation2 + $0x180] sm:$0xff]
  %v198 = vld [vmem:[#allocation2 + $0x188] sm:$0xff]
  %v199 = vld [vmem:[#allocation2 + $0x190] sm:$0xff]
  %v200 = vld [vmem:[#allocation2 + $0x198] sm:$0xff]
  %v201 = vld [vmem:[#allocation2 + $0x1a0] sm:$0xff]
  %v202 = vld [vmem:[#allocation2 + $0x1a8] sm:$0xff]
  %v203 = vld [vmem:[#allocation2 + $0x1b0] sm:$0xff]
  %v204 = vld [vmem:[#allocation2 + $0x1b8] sm:$0xff]
  %v205 = vld [vmem:[#allocation2 + $0x1c0] sm:$0xff]
  %v206 = vld [vmem:[#allocation2 + $0x1c8] sm:$0xff]
  %v207 = vld [vmem:[#allocation2 + $0x1d0] sm:$0xff]
  %v208 = vld [vmem:[#allocation2 + $0x1d8] sm:$0xff]
  %v209 = vld [vmem:[#allocation2 + $0x1e0] sm:$0xff]
  %v210 = vld [vmem:[#allocation2 + $0x1e8] sm:$0xff]
  %v211 = vld [vmem:[#allocation2 + $0x1f0] sm:$0xff]
  %v212 = vld [vmem:[#allocation2 + $0x1f8] sm:$0xff]
  %v213 = vld [vmem:[#allocation2 + $0x200] sm:$0xff]
  %v214 = vld [vmem:[#allocation2 + $0x208] sm:$0xff]
  %v215 = vld [vmem:[#allocation2 + $0x210] sm:$0xff]
  %v216 = vld [vmem:[#allocation2 + $0x218] sm:$0xff]
  %v217 = vld [vmem:[#allocation2 + $0x220] sm:$0xff]
  %v218 = vld [vmem:[#allocation2 + $0x228] sm:$0xff]
  %v219 = vld [vmem:[#allocation2 + $0x230] sm:$0xff]
  %v220 = vld [vmem:[#allocation2 + $0x238] sm:$0xff]
  %v221 = vld [vmem:[#allocation2 + $0x240] sm:$0xff]
  %v222 = vld [vmem:[#allocation2 + $0x248] sm:$0xff]
  %v223 = vld [vmem:[#allocation2 + $0x250] sm:$0xff]
  %v224 = vld [vmem:[#allocation2 + $0x258] sm:$0xff]
  %v225 = vld [vmem:[#allocation2 + $0x260] sm:$0xff]
  %v226 = vld [vmem:[#allocation2 + $0x268] sm:$0xff]
  %v227 = vld [vmem:[#allocation2 + $0x270] sm:$0xff]
  %v228 = vld [vmem:[#allocation2 + $0x278] sm:$0xff]
  %v229 = vld [vmem:[#allocation2 + $0x280] sm:$0xff]
  %v230 = vld [vmem:[#allocation2 + $0x288] sm:$0xff]
  %v231 = vld [vmem:[#allocation2 + $0x290] sm:$0xff]
  %v232 = vld [vmem:[#allocation2 + $0x298] sm:$0xff]
  %v233 = vld [vmem:[#allocation2 + $0x2a0] sm:$0xff]
  %v234 = vld [vmem:[#allocation2 + $0x2a8] sm:$0xff]
  %v235 = vld [vmem:[#allocation2 + $0x2b0] sm:$0xff]
  %v236 = vld [vmem:[#allocation2 + $0x2b8] sm:$0xff]
  %v237 = vld [vmem:[#allocation2 + $0x2c0] sm:$0xff]
  %v238 = vld [vmem:[#allocation2 + $0x2c8] sm:$0xff]
  %v239 = vld [vmem:[#allocation2 + $0x2d0] sm:$0xff]
  %v240 = vld [vmem:[#allocation2 + $0x2d8] sm:$0xff]
  %v241 = vld [vmem:[#allocation2 + $0x2e0] sm:$0xff]
  %v242 = vld [vmem:[#allocation2 + $0x2e8] sm:$0xff]
  %v243 = vld [vmem:[#allocation2 + $0x2f0] sm:$0xff]
  %v244 = vld [vmem:[#allocation2 + $0x2f8] sm:$0xff]
  %v245 = vld [vmem:[#allocation2 + $0x300] sm:$0xff]
  %v246 = vld [vmem:[#allocation2 + $0x308] sm:$0xff]
  %v247 = vld [vmem:[#allocation2 + $0x310] sm:$0xff]
  %v248 = vld [vmem:[#allocation2 + $0x318] sm:$0xff]
  %v249 = vld [vmem:[#allocation2 + $0x320] sm:$0xff]
  %v250 = vld [vmem:[#allocation2 + $0x328] sm:$0xff]
  %v251 = vld [vmem:[#allocation2 + $0x330] sm:$0xff]
  %v252 = vld [vmem:[#allocation2 + $0x338] sm:$0xff]
  %v253 = vld [vmem:[#allocation2 + $0x340] sm:$0xff]
  %v254 = vld [vmem:[#allocation2 + $0x348] sm:$0xff]
  %v255 = vld [vmem:[#allocation2 + $0x350] sm:$0xff]
  %v256 = vld [vmem:[#allocation2 + $0x358] sm:$0xff]
  %v257 = vld [vmem:[#allocation2 + $0x360] sm:$0xff]
  %v258 = vld [vmem:[#allocation2 + $0x368] sm:$0xff]
  %v259 = vld [vmem:[#allocation2 + $0x370] sm:$0xff]
  %v260 = vld [vmem:[#allocation2 + $0x378] sm:$0xff]
  %v261 = vld [vmem:[#allocation2 + $0x380] sm:$0xff]
  %v262 = vld [vmem:[#allocation2 + $0x388] sm:$0xff]
  %v263 = vld [vmem:[#allocation2 + $0x390] sm:$0xff]
  %v264 = vld [vmem:[#allocation2 + $0x398] sm:$0xff]
  %v265 = vld [vmem:[#allocation2 + $0x3a0] sm:$0xff]
  %v266 = vld [vmem:[#allocation2 + $0x3a8] sm:$0xff]
  %v267 = vld [vmem:[#allocation2 + $0x3b0] sm:$0xff]
  %v268 = vld [vmem:[#allocation2 + $0x3b8] sm:$0xff]
  %v269 = vld [vmem:[#allocation2 + $0x3c0] sm:$0xff]
  %v270 = vld [vmem:[#allocation2 + $0x3c8] sm:$0xff]
  %v271 = vld [vmem:[#allocation2 + $0x3d0] sm:$0xff]
  %v272 = vld [vmem:[#allocation2 + $0x3d8] sm:$0xff]
  %v273 = vld [vmem:[#allocation2 + $0x3e0] sm:$0xff]
  %v274 = vld [vmem:[#allocation2 + $0x3e8] sm:$0xff]
  %v275 = vld [vmem:[#allocation2 + $0x3f0] sm:$0xff]
  %v276 = vld [vmem:[#allocation2 + $0x3f8] sm:$0xff]
  %v277 = vld [vmem:[%s0] sm:$0xff]
  %v278 = vld [vmem:[%s0 + $0x8] sm:$0xff]
  %v279 = vld [vmem:[%s0 + $0x10] sm:$0xff]
  %v280 = vld [vmem:[%s0 + $0x18] sm:$0xff]
  %v281 = vld [vmem:[%s0 + $0x20] sm:$0xff]
  %v282 = vld [vmem:[%s0 + $0x28] sm:$0xff]
  %v283 = vld [vmem:[%s0 + $0x30] sm:$0xff]
  %v284 = vld [vmem:[%s0 + $0x38] sm:$0xff]
  %v285 = vld [vmem:[%s0 + $0x40] sm:$0xff]
  %v286 = vld [vmem:[%s0 + $0x48] sm:$0xff]
  %v287 = vld [vmem:[%s0 + $0x50] sm:$0xff]
  %v288 = vld [vmem:[%s0 + $0x58] sm:$0xff]
  %v289 = vld [vmem:[%s0 + $0x60] sm:$0xff]
  %v290 = vld [vmem:[%s0 + $0x68] sm:$0xff]
  %v291 = vld [vmem:[%s0 + $0x70] sm:$0xff]
  %v292 = vld [vmem:[%s0 + $0x78] sm:$0xff]
  %v293 = vld [vmem:[%s0 + $0x80] sm:$0xff]
  %v294 = vld [vmem:[%s0 + $0x88] sm:$0xff]
  %v295 = vld [vmem:[%s0 + $0x90] sm:$0xff]
  %v296 = vld [vmem:[%s0 + $0x98] sm:$0xff]
  %v297 = vld [vmem:[%s0 + $0xa0] sm:$0xff]
  %v298 = vld [vmem:[%s0 + $0xa8] sm:$0xff]
  %v299 = vld [vmem:[%s0 + $0xb0] sm:$0xff]
  %v300 = vld [vmem:[%s0 + $0xb8] sm:$0xff]
  %v301 = vld [vmem:[%s0 + $0xc0] sm:$0xff]
  %v302 = vld [vmem:[%s0 + $0xc8] sm:$0xff]
  %v303 = vld [vmem:[%s0 + $0xd0] sm:$0xff]
  %v304 = vld [vmem:[%s0 + $0xd8] sm:$0xff]
  %v305 = vld [vmem:[%s0 + $0xe0] sm:$0xff]
  %v306 = vld [vmem:[%s0 + $0xe8] sm:$0xff]
  %v307 = vld [vmem:[%s0 + $0xf0] sm:$0xff]
  %v308 = vld [vmem:[%s0 + $0xf8] sm:$0xff]
  %v309 = vld [vmem:[%s0 + $0x100] sm:$0xff]
  %v310 = vld [vmem:[%s0 + $0x108] sm:$0xff]
  %v311 = vld [vmem:[%s0 + $0x110] sm:$0xff]
  %v312 = vld [vmem:[%s0 + $0x118] sm:$0xff]
  %v313 = vld [vmem:[%s0 + $0x120] sm:$0xff]
  %v314 = vld [vmem:[%s0 + $0x128] sm:$0xff]
  %v315 = vld [vmem:[%s0 + $0x130] sm:$0xff]
  %v316 = vld [vmem:[%s0 + $0x138] sm:$0xff]
  %v317 = vld [vmem:[%s0 + $0x140] sm:$0xff]
  %v318 = vld [vmem:[%s0 + $0x148] sm:$0xff]
  %v319 = vld [vmem:[%s0 + $0x150] sm:$0xff]
  %v320 = vld [vmem:[%s0 + $0x158] sm:$0xff]
  %v321 = vld [vmem:[%s0 + $0x160] sm:$0xff]
  %v322 = vld [vmem:[%s0 + $0x168] sm:$0xff]
  %v323 = vld [vmem:[%s0 + $0x170] sm:$0xff]
  %v324 = vld [vmem:[%s0 + $0x178] sm:$0xff]
  %v325 = vld [vmem:[%s0 + $0x180] sm:$0xff]
  %v326 = vld [vmem:[%s0 + $0x188] sm:$0xff]
  %v327 = vld [vmem:[%s0 + $0x190] sm:$0xff]
  %v328 = vld [vmem:[%s0 + $0x198] sm:$0xff]
  %v329 = vld [vmem:[%s0 + $0x1a0] sm:$0xff]
  %v330 = vld [vmem:[%s0 + $0x1a8] sm:$0xff]
  %v331 = vld [vmem:[%s0 + $0x1b0] sm:$0xff]
  %v332 = vld [vmem:[%s0 + $0x1b8] sm:$0xff]
  %v333 = vld [vmem:[%s0 + $0x1c0] sm:$0xff]
  %v334 = vld [vmem:[%s0 + $0x1c8] sm:$0xff]
  %v335 = vld [vmem:[%s0 + $0x1d0] sm:$0xff]
  %v336 = vld [vmem:[%s0 + $0x1d8] sm:$0xff]
  %v337 = vld [vmem:[%s0 + $0x1e0] sm:$0xff]
  %v338 = vld [vmem:[%s0 + $0x1e8] sm:$0xff]
  %v339 = vld [vmem:[%s0 + $0x1f0] sm:$0xff]
  %v340 = vld [vmem:[%s0 + $0x1f8] sm:$0xff]
  %v341 = vld [vmem:[%s1] sm:$0xff]
  %v342 = vld [vmem:[%s1 + $0x8] sm:$0xff]
  %v343 = vld [vmem:[%s1 + $0x10] sm:$0xff]
  %v344 = vld [vmem:[%s1 + $0x18] sm:$0xff]
  %v345 = vld [vmem:[%s1 + $0x20] sm:$0xff]
  %v346 = vld [vmem:[%s1 + $0x28] sm:$0xff]
  %v347 = vld [vmem:[%s1 + $0x30] sm:$0xff]
  %v348 = vld [vmem:[%s1 + $0x38] sm:$0xff]
  %v349 = vld [vmem:[%s1 + $0x40] sm:$0xff]
  %v350 = vld [vmem:[%s1 + $0x48] sm:$0xff]
  %v351 = vld [vmem:[%s1 + $0x50] sm:$0xff]
  %v352 = vld [vmem:[%s1 + $0x58] sm:$0xff]
  %v353 = vld [vmem:[%s1 + $0x60] sm:$0xff]
  %v354 = vld [vmem:[%s1 + $0x68] sm:$0xff]
  %v355 = vld [vmem:[%s1 + $0x70] sm:$0xff]
  %v356 = vld [vmem:[%s1 + $0x78] sm:$0xff]
  %v357 = vld [vmem:[%s1 + $0x80] sm:$0xff]
  %v358 = vld [vmem:[%s1 + $0x88] sm:$0xff]
  %v359 = vld [vmem:[%s1 + $0x90] sm:$0xff]
  %v360 = vld [vmem:[%s1 + $0x98] sm:$0xff]
  %v361 = vld [vmem:[%s1 + $0xa0] sm:$0xff]
  %v362 = vld [vmem:[%s1 + $0xa8] sm:$0xff]
  %v363 = vld [vmem:[%s1 + $0xb0] sm:$0xff]
  %v364 = vld [vmem:[%s1 + $0xb8] sm:$0xff]
  %v365 = vld [vmem:[%s1 + $0xc0] sm:$0xff]
  %v366 = vld [vmem:[%s1 + $0xc8] sm:$0xff]
  %v367 = vld [vmem:[%s1 + $0xd0] sm:$0xff]
  %v368 = vld [vmem:[%s1 + $0xd8] sm:$0xff]
  %v369 = vld [vmem:[%s1 + $0xe0] sm:$0xff]
  %v370 = vld [vmem:[%s1 + $0xe8] sm:$0xff]
  %v371 = vld [vmem:[%s1 + $0xf0] sm:$0xff]
  %v372 = vld [vmem:[%s1 + $0xf8] sm:$0xff]
  %373 = vmatprep.subr.mxu0 %v342
  %374 = vmatpush1.msra.mxu0 %v341
  %375 = vmatprep.subr.mxu0 %v344
  %376 = vmatpush1.msra.mxu0 %v343
  %377 = vmatprep.subr.mxu0 %v346
  %378 = vmatpush1.msra.mxu0 %v345
  %379 = vmatprep.subr.mxu0 %v348
  %380 = vmatpush1.msra.mxu0 %v347
  %381 = vmatprep.subr.mxu0 %v350
  %382 = vmatpush1.msra.mxu0 %v349
  %383 = vmatprep.subr.mxu0 %v352
  %384 = vmatpush1.msra.mxu0 %v351
  %385 = vmatprep.subr.mxu0 %v354
  %386 = vmatpush1.msra.mxu0 %v353
  %387 = vmatprep.subr.mxu0 %v356
  %388 = vmatpush1.msra.mxu0 %v355
  %389 = vmatprep.subr.mxu0 %v358
  %390 = vmatpush1.msra.mxu0 %v357
  %391 = vmatprep.subr.mxu0 %v360
  %392 = vmatpush1.msra.mxu0 %v359
  %393 = vmatprep.subr.mxu0 %v362
  %394 = vmatpush1.msra.mxu0 %v361
  %395 = vmatprep.subr.mxu0 %v364
  %396 = vmatpush1.msra.mxu0 %v363
  %397 = vmatprep.subr.mxu0 %v366
  %398 = vmatpush1.msra.mxu0 %v365
  %399 = vmatprep.subr.mxu0 %v368
  %400 = vmatpush1.msra.mxu0 %v367
  %401 = vmatprep.subr.mxu0 %v370
  %402 = vmatpush1.msra.mxu0 %v369
  %403 = vmatprep.subr.mxu0 %v372
  %404 = vmatpush1.msra.mxu0 %v371
  %405 = vmatprep.subr.mxu0 0.0
  %406 = vmatpush1.msra.mxu0 0.0
  %407 = vmatprep.subr.mxu0 0.0
  %408 = vmatpush1.msra.mxu0 0.0
  %409 = vmatprep.subr.mxu0 0.0
  %410 = vmatpush1.msra.mxu0 0.0
  %411 = vmatprep.subr.mxu0 0.0
  %412 = vmatpush1.msra.mxu0 0.0
  %413 = vmatprep.subr.mxu0 0.0
  %414 = vmatpush1.msra.mxu0 0.0
  %415 = vmatprep.subr.mxu0 0.0
  %416 = vmatpush1.msra.mxu0 0.0
  %417 = vmatprep.subr.mxu0 0.0
  %418 = vmatpush1.msra.mxu0 0.0
  %419 = vmatprep.subr.mxu0 0.0
  %420 = vmatpush1.msra.mxu0 0.0
  %421 = vmatprep.subr.mxu0 0.0
  %422 = vmatpush1.msra.mxu0 0.0
  %423 = vmatprep.subr.mxu0 0.0
  %424 = vmatpush1.msra.mxu0 0.0
  %425 = vmatprep.subr.mxu0 0.0
  %426 = vmatpush1.msra.mxu0 0.0
  %427 = vmatprep.subr.mxu0 0.0
  %428 = vmatpush1.msra.mxu0 0.0
  %429 = vmatprep.subr.mxu0 0.0
  %430 = vmatpush1.msra.mxu0 0.0
  %431 = vmatprep.subr.mxu0 0.0
  %432 = vmatpush1.msra.mxu0 0.0
  %433 = vmatprep.subr.mxu0 0.0
  %434 = vmatpush1.msra.mxu0 0.0
  %435 = vmatprep.subr.mxu0 0.0
  %436 = vmatpush1.msra.mxu0 0.0
  %437 = vmatprep.mubr.f32.mxu0 0.0
  %438 = vmatmul.mubr.f32.gmra.mrb[0].mxu0 %v277
  %v439 = vpop.f32.mrb[0].mxu0
  %v440 = vadd.f32 0.0, %v439
  %v441 = vpop.f32.mrb[0].mxu0
  %v442 = vadd.f32 0.0, %v441
  %443 = vmatprep.mubr.f32.mxu0 0.0
  %444 = vmatmul.mubr.f32.gmra.mrb[0].mxu0 %v278
  %v445 = vpop.f32.mrb[0].mxu0
  %v446 = vadd.f32 0.0, %v445
  %v447 = vpop.f32.mrb[0].mxu0
  %v448 = vadd.f32 0.0, %v447
  %449 = vmatprep.mubr.f32.mxu0 0.0
  %450 = vmatmul.mubr.f32.gmra.mrb[0].mxu0 %v279
  %v451 = vpop.f32.mrb[0].mxu0
  %v452 = vadd.f32 0.0, %v451
  %v453 = vpop.f32.mrb[0].mxu0
  %v454 = vadd.f32 0.0, %v453
  %455 = vmatprep.mubr.f32.mxu0 0.0
  %456 = vmatmul.mubr.f32.gmra.mrb[0].mxu0 %v280
  %v457 = vpop.f32.mrb[0].mxu0
  %v458 = vadd.f32 0.0, %v457
  %v459 = vpop.f32.mrb[0].mxu0
  %v460 = vadd.f32 0.0, %v459
  %461 = vmatprep.mubr.f32.mxu0 0.0
  %462 = vmatmul.mubr.f32.gmra.mrb[0].mxu0 %v281
  %v463 = vpop.f32.mrb[0].mxu0
  %v464 = vadd.f32 0.0, %v463
  %v465 = vpop.f32.mrb[0].mxu0
  %v466 = vadd.f32 0.0, %v465
  %467 = vmatprep.mubr.f32.mxu0 0.0
  %468 = vmatmul.mubr.f32.gmra.mrb[0].mxu0 %v282
  %v469 = vpop.f32.mrb[0].mxu0
  %v470 = vadd.f32 0.0, %v469
  %v471 = vpop.f32.mrb[0].mxu0
  %v472 = vadd.f32 0.0, %v471
  %473 = vmatprep.mubr.f32.mxu0 0.0
  %474 = vmatmul.mubr.f32.gmra.mrb[0].mxu0 %v283
  %v475 = vpop.f32.mrb[0].mxu0
  %v476 = vadd.f32 0.0, %v475
  %v477 = vpop.f32.mrb[0].mxu0
  %v478 = vadd.f32 0.0, %v477
  %479 = vmatprep.mubr.f32.mxu0 0.0
  %480 = vmatmul.mubr.f32.gmra.mrb[0].mxu0 %v284
  %v481 = vpop.f32.mrb[0].mxu0
  %v482 = vadd.f32 0.0, %v481
  %v483 = vpop.f32.mrb[0].mxu0
  %v484 = vadd.f32 0.0, %v483
  %485 = vmatprep.mubr.f32.mxu0 0.0
  %486 = vmatmul.mubr.f32.gmra.mrb[0].mxu0 %v285
  %v487 = vpop.f32.mrb[0].mxu0
  %v488 = vadd.f32 0.0, %v487
  %v489 = vpop.f32.mrb[0].mxu0
  %v490 = vadd.f32 0.0, %v489
  %491 = vmatprep.mubr.f32.mxu0 0.0
  %492 = vmatmul.mubr.f32.gmra.mrb[0].mxu0 %v286
  %v493 = vpop.f32.mrb[0].mxu0
  %v494 = vadd.f32 0.0, %v493
  %v495 = vpop.f32.mrb[0].mxu0
  %v496 = vadd.f32 0.0, %v495
  %497 = vmatprep.mubr.f32.mxu0 0.0
  %498 = vmatmul.mubr.f32.gmra.mrb[0].mxu0 %v287
  %v499 = vpop.f32.mrb[0].mxu0
  %v500 = vadd.f32 0.0, %v499
  %v501 = vpop.f32.mrb[0].mxu0
  %v502 = vadd.f32 0.0, %v501
  %503 = vmatprep.mubr.f32.mxu0 0.0
  %504 = vmatmul.mubr.f32.gmra.mrb[0].mxu0 %v288
  %v505 = vpop.f32.mrb[0].mxu0
  %v506 = vadd.f32 0.0, %v505
  %v507 = vpop.f32.mrb[0].mxu0
  %v508 = vadd.f32 0.0, %v507
  %509 = vmatprep.mubr.f32.mxu0 0.0
  %510 = vmatmul.mubr.f32.gmra.mrb[0].mxu0 %v289
  %v511 = vpop.f32.mrb[0].mxu0
  %v512 = vadd.f32 0.0, %v511
  %v513 = vpop.f32.mrb[0].mxu0
  %v514 = vadd.f32 0.0, %v513
  %515 = vmatprep.mubr.f32.mxu0 0.0
  %516 = vmatmul.mubr.f32.gmra.mrb[0].mxu0 %v290
  %v517 = vpop.f32.mrb[0].mxu0
  %v518 = vadd.f32 0.0, %v517
  %v519 = vpop.f32.mrb[0].mxu0
  %v520 = vadd.f32 0.0, %v519
  %521 = vmatprep.mubr.f32.mxu0 0.0
  %522 = vmatmul.mubr.f32.gmra.mrb[0].mxu0 %v291
  %v523 = vpop.f32.mrb[0].mxu0
  %v524 = vadd.f32 0.0, %v523
  %v525 = vpop.f32.mrb[0].mxu0
  %v526 = vadd.f32 0.0, %v525
  %527 = vmatprep.mubr.f32.mxu0 0.0
  %528 = vmatmul.mubr.f32.gmra.mrb[0].mxu0 %v292
  %v529 = vpop.f32.mrb[0].mxu0
  %v530 = vadd.f32 0.0, %v529
  %v531 = vpop.f32.mrb[0].mxu0
  %v532 = vadd.f32 0.0, %v531
  %533 = vmatprep.mubr.f32.mxu0 0.0
  %534 = vmatmul.mubr.f32.gmra.mrb[0].mxu0 %v293
  %v535 = vpop.f32.mrb[0].mxu0
  %v536 = vadd.f32 0.0, %v535
  %v537 = vpop.f32.mrb[0].mxu0
  %v538 = vadd.f32 0.0, %v537
  %539 = vmatprep.mubr.f32.mxu0 0.0
  %540 = vmatmul.mubr.f32.gmra.mrb[0].mxu0 %v294
  %v541 = vpop.f32.mrb[0].mxu0
  %v542 = vadd.f32 0.0, %v541
  %v543 = vpop.f32.mrb[0].mxu0
  %v544 = vadd.f32 0.0, %v543
  %545 = vmatprep.mubr.f32.mxu0 0.0
  %546 = vmatmul.mubr.f32.gmra.mrb[0].mxu0 %v295
  %v547 = vpop.f32.mrb[0].mxu0
  %v548 = vadd.f32 0.0, %v547
  %v549 = vpop.f32.mrb[0].mxu0
  %v550 = vadd.f32 0.0, %v549
  %551 = vmatprep.mubr.f32.mxu0 0.0
  %552 = vmatmul.mubr.f32.gmra.mrb[0].mxu0 %v296
  %v553 = vpop.f32.mrb[0].mxu0
  %v554 = vadd.f32 0.0, %v553
  %v555 = vpop.f32.mrb[0].mxu0
  %v556 = vadd.f32 0.0, %v555
  %557 = vmatprep.mubr.f32.mxu0 0.0
  %558 = vmatmul.mubr.f32.gmra.mrb[0].mxu0 %v297
  %v559 = vpop.f32.mrb[0].mxu0
  %v560 = vadd.f32 0.0, %v559
  %v561 = vpop.f32.mrb[0].mxu0
  %v562 = vadd.f32 0.0, %v561
  %563 = vmatprep.mubr.f32.mxu0 0.0
  %564 = vmatmul.mubr.f32.gmra.mrb[0].mxu0 %v298
  %v565 = vpop.f32.mrb[0].mxu0
  %v566 = vadd.f32 0.0, %v565
  %v567 = vpop.f32.mrb[0].mxu0
  %v568 = vadd.f32 0.0, %v567
  %569 = vmatprep.mubr.f32.mxu0 0.0
  %570 = vmatmul.mubr.f32.gmra.mrb[0].mxu0 %v299
  %v571 = vpop.f32.mrb[0].mxu0
  %v572 = vadd.f32 0.0, %v571
  %v573 = vpop.f32.mrb[0].mxu0
  %v574 = vadd.f32 0.0, %v573
  %575 = vmatprep.mubr.f32.mxu0 0.0
  %576 = vmatmul.mubr.f32.gmra.mrb[0].mxu0 %v300
  %v577 = vpop.f32.mrb[0].mxu0
  %v578 = vadd.f32 0.0, %v577
  %v579 = vpop.f32.mrb[0].mxu0
  %v580 = vadd.f32 0.0, %v579
  %581 = vmatprep.mubr.f32.mxu0 0.0
  %582 = vmatmul.mubr.f32.gmra.mrb[0].mxu0 %v301
  %v583 = vpop.f32.mrb[0].mxu0
  %v584 = vadd.f32 0.0, %v583
  %v585 = vpop.f32.mrb[0].mxu0
  %v586 = vadd.f32 0.0, %v585
  %587 = vmatprep.mubr.f32.mxu0 0.0
  %588 = vmatmul.mubr.f32.gmra.mrb[0].mxu0 %v302
  %v589 = vpop.f32.mrb[0].mxu0
  %v590 = vadd.f32 0.0, %v589
  %v591 = vpop.f32.mrb[0].mxu0
  %v592 = vadd.f32 0.0, %v591
  %593 = vmatprep.mubr.f32.mxu0 0.0
  %594 = vmatmul.mubr.f32.gmra.mrb[0].mxu0 %v303
  %v595 = vpop.f32.mrb[0].mxu0
  %v596 = vadd.f32 0.0, %v595
  %v597 = vpop.f32.mrb[0].mxu0
  %v598 = vadd.f32 0.0, %v597
  %599 = vmatprep.mubr.f32.mxu0 0.0
  %600 = vmatmul.mubr.f32.gmra.mrb[0].mxu0 %v304
  %v601 = vpop.f32.mrb[0].mxu0
  %v602 = vadd.f32 0.0, %v601
  %v603 = vpop.f32.mrb[0].mxu0
  %v604 = vadd.f32 0.0, %v603
  %605 = vmatprep.mubr.f32.mxu0 0.0
  %606 = vmatmul.mubr.f32.gmra.mrb[0].mxu0 %v305
  %v607 = vpop.f32.mrb[0].mxu0
  %v608 = vadd.f32 0.0, %v607
  %v609 = vpop.f32.mrb[0].mxu0
  %v610 = vadd.f32 0.0, %v609
  %611 = vmatprep.mubr.f32.mxu0 0.0
  %612 = vmatmul.mubr.f32.gmra.mrb[0].mxu0 %v306
  %v613 = vpop.f32.mrb[0].mxu0
  %v614 = vadd.f32 0.0, %v613
  %v615 = vpop.f32.mrb[0].mxu0
  %v616 = vadd.f32 0.0, %v615
  %617 = vmatprep.mubr.f32.mxu0 0.0
  %618 = vmatmul.mubr.f32.gmra.mrb[0].mxu0 %v307
  %v619 = vpop.f32.mrb[0].mxu0
  %v620 = vadd.f32 0.0, %v619
  %v621 = vpop.f32.mrb[0].mxu0
  %v622 = vadd.f32 0.0, %v621
  %623 = vmatprep.mubr.f32.mxu0 0.0
  %624 = vmatmul.mubr.f32.gmra.mrb[0].mxu0 %v308
  %v625 = vpop.f32.mrb[0].mxu0
  %v626 = vadd.f32 0.0, %v625
  %v627 = vpop.f32.mrb[0].mxu0
  %v628 = vadd.f32 0.0, %v627
  %629 = vmatprep.mubr.f32.mxu0 0.0
  %630 = vmatmul.mubr.f32.gmra.mrb[0].mxu0 %v309
  %v631 = vpop.f32.mrb[0].mxu0
  %v632 = vadd.f32 0.0, %v631
  %v633 = vpop.f32.mrb[0].mxu0
  %v634 = vadd.f32 0.0, %v633
  %635 = vmatprep.mubr.f32.mxu0 0.0
  %636 = vmatmul.mubr.f32.gmra.mrb[0].mxu0 %v310
  %v637 = vpop.f32.mrb[0].mxu0
  %v638 = vadd.f32 0.0, %v637
  %v639 = vpop.f32.mrb[0].mxu0
  %v640 = vadd.f32 0.0, %v639
  %641 = vmatprep.mubr.f32.mxu0 0.0
  %642 = vmatmul.mubr.f32.gmra.mrb[0].mxu0 %v311
  %v643 = vpop.f32.mrb[0].mxu0
  %v644 = vadd.f32 0.0, %v643
  %v645 = vpop.f32.mrb[0].mxu0
  %v646 = vadd.f32 0.0, %v645
  %647 = vmatprep.mubr.f32.mxu0 0.0
  %648 = vmatmul.mubr.f32.gmra.mrb[0].mxu0 %v312
  %v649 = vpop.f32.mrb[0].mxu0
  %v650 = vadd.f32 0.0, %v649
  %v651 = vpop.f32.mrb[0].mxu0
  %v652 = vadd.f32 0.0, %v651
  %653 = vmatprep.mubr.f32.mxu0 0.0
  %654 = vmatmul.mubr.f32.gmra.mrb[0].mxu0 %v313
  %v655 = vpop.f32.mrb[0].mxu0
  %v656 = vadd.f32 0.0, %v655
  %v657 = vpop.f32.mrb[0].mxu0
  %v658 = vadd.f32 0.0, %v657
  %659 = vmatprep.mubr.f32.mxu0 0.0
  %660 = vmatmul.mubr.f32.gmra.mrb[0].mxu0 %v314
  %v661 = vpop.f32.mrb[0].mxu0
  %v662 = vadd.f32 0.0, %v661
  %v663 = vpop.f32.mrb[0].mxu0
  %v664 = vadd.f32 0.0, %v663
  %665 = vmatprep.mubr.f32.mxu0 0.0
  %666 = vmatmul.mubr.f32.gmra.mrb[0].mxu0 %v315
  %v667 = vpop.f32.mrb[0].mxu0
  %v668 = vadd.f32 0.0, %v667
  %v669 = vpop.f32.mrb[0].mxu0
  %v670 = vadd.f32 0.0, %v669
  %671 = vmatprep.mubr.f32.mxu0 0.0
  %672 = vmatmul.mubr.f32.gmra.mrb[0].mxu0 %v316
  %v673 = vpop.f32.mrb[0].mxu0
  %v674 = vadd.f32 0.0, %v673
  %v675 = vpop.f32.mrb[0].mxu0
  %v676 = vadd.f32 0.0, %v675
  %677 = vmatprep.mubr.f32.mxu0 0.0
  %678 = vmatmul.mubr.f32.gmra.mrb[0].mxu0 %v317
  %v679 = vpop.f32.mrb[0].mxu0
  %v680 = vadd.f32 0.0, %v679
  %v681 = vpop.f32.mrb[0].mxu0
  %v682 = vadd.f32 0.0, %v681
  %683 = vmatprep.mubr.f32.mxu0 0.0
  %684 = vmatmul.mubr.f32.gmra.mrb[0].mxu0 %v318
  %v685 = vpop.f32.mrb[0].mxu0
  %v686 = vadd.f32 0.0, %v685
  %v687 = vpop.f32.mrb[0].mxu0
  %v688 = vadd.f32 0.0, %v687
  %689 = vmatprep.mubr.f32.mxu0 0.0
  %690 = vmatmul.mubr.f32.gmra.mrb[0].mxu0 %v319
  %v691 = vpop.f32.mrb[0].mxu0
  %v692 = vadd.f32 0.0, %v691
  %v693 = vpop.f32.mrb[0].mxu0
  %v694 = vadd.f32 0.0, %v693
  %695 = vmatprep.mubr.f32.mxu0 0.0
  %696 = vmatmul.mubr.f32.gmra.mrb[0].mxu0 %v320
  %v697 = vpop.f32.mrb[0].mxu0
  %v698 = vadd.f32 0.0, %v697
  %v699 = vpop.f32.mrb[0].mxu0
  %v700 = vadd.f32 0.0, %v699
  %701 = vmatprep.mubr.f32.mxu0 0.0
  %702 = vmatmul.mubr.f32.gmra.mrb[0].mxu0 %v321
  %v703 = vpop.f32.mrb[0].mxu0
  %v704 = vadd.f32 0.0, %v703
  %v705 = vpop.f32.mrb[0].mxu0
  %v706 = vadd.f32 0.0, %v705
  %707 = vmatprep.mubr.f32.mxu0 0.0
  %708 = vmatmul.mubr.f32.gmra.mrb[0].mxu0 %v322
  %v709 = vpop.f32.mrb[0].mxu0
  %v710 = vadd.f32 0.0, %v709
  %v711 = vpop.f32.mrb[0].mxu0
  %v712 = vadd.f32 0.0, %v711
  %713 = vmatprep.mubr.f32.mxu0 0.0
  %714 = vmatmul.mubr.f32.gmra.mrb[0].mxu0 %v323
  %v715 = vpop.f32.mrb[0].mxu0
  %v716 = vadd.f32 0.0, %v715
  %v717 = vpop.f32.mrb[0].mxu0
  %v718 = vadd.f32 0.0, %v717
  %719 = vmatprep.mubr.f32.mxu0 0.0
  %720 = vmatmul.mubr.f32.gmra.mrb[0].mxu0 %v324
  %v721 = vpop.f32.mrb[0].mxu0
  %v722 = vadd.f32 0.0, %v721
  %v723 = vpop.f32.mrb[0].mxu0
  %v724 = vadd.f32 0.0, %v723
  %725 = vmatprep.mubr.f32.mxu0 0.0
  %726 = vmatmul.mubr.f32.gmra.mrb[0].mxu0 %v325
  %v727 = vpop.f32.mrb[0].mxu0
  %v728 = vadd.f32 0.0, %v727
  %v729 = vpop.f32.mrb[0].mxu0
  %v730 = vadd.f32 0.0, %v729
  %731 = vmatprep.mubr.f32.mxu0 0.0
  %732 = vmatmul.mubr.f32.gmra.mrb[0].mxu0 %v326
  %v733 = vpop.f32.mrb[0].mxu0
  %v734 = vadd.f32 0.0, %v733
  %v735 = vpop.f32.mrb[0].mxu0
  %v736 = vadd.f32 0.0, %v735
  %737 = vmatprep.mubr.f32.mxu0 0.0
  %738 = vmatmul.mubr.f32.gmra.mrb[0].mxu0 %v327
  %v739 = vpop.f32.mrb[0].mxu0
  %v740 = vadd.f32 0.0, %v739
  %v741 = vpop.f32.mrb[0].mxu0
  %v742 = vadd.f32 0.0, %v741
  %743 = vmatprep.mubr.f32.mxu0 0.0
  %744 = vmatmul.mubr.f32.gmra.mrb[0].mxu0 %v328
  %v745 = vpop.f32.mrb[0].mxu0
  %v746 = vadd.f32 0.0, %v745
  %v747 = vpop.f32.mrb[0].mxu0
  %v748 = vadd.f32 0.0, %v747
  %749 = vmatprep.mubr.f32.mxu0 0.0
  %750 = vmatmul.mubr.f32.gmra.mrb[0].mxu0 %v329
  %v751 = vpop.f32.mrb[0].mxu0
  %v752 = vadd.f32 0.0, %v751
  %v753 = vpop.f32.mrb[0].mxu0
  %v754 = vadd.f32 0.0, %v753
  %755 = vmatprep.mubr.f32.mxu0 0.0
  %756 = vmatmul.mubr.f32.gmra.mrb[0].mxu0 %v330
  %v757 = vpop.f32.mrb[0].mxu0
  %v758 = vadd.f32 0.0, %v757
  %v759 = vpop.f32.mrb[0].mxu0
  %v760 = vadd.f32 0.0, %v759
  %761 = vmatprep.mubr.f32.mxu0 0.0
  %762 = vmatmul.mubr.f32.gmra.mrb[0].mxu0 %v331
  %v763 = vpop.f32.mrb[0].mxu0
  %v764 = vadd.f32 0.0, %v763
  %v765 = vpop.f32.mrb[0].mxu0
  %v766 = vadd.f32 0.0, %v765
  %767 = vmatprep.mubr.f32.mxu0 0.0
  %768 = vmatmul.mubr.f32.gmra.mrb[0].mxu0 %v332
  %v769 = vpop.f32.mrb[0].mxu0
  %v770 = vadd.f32 0.0, %v769
  %v771 = vpop.f32.mrb[0].mxu0
  %v772 = vadd.f32 0.0, %v771
  %773 = vmatprep.mubr.f32.mxu0 0.0
  %774 = vmatmul.mubr.f32.gmra.mrb[0].mxu0 %v333
  %v775 = vpop.f32.mrb[0].mxu0
  %v776 = vadd.f32 0.0, %v775
  %v777 = vpop.f32.mrb[0].mxu0
  %v778 = vadd.f32 0.0, %v777
  %779 = vmatprep.mubr.f32.mxu0 0.0
  %780 = vmatmul.mubr.f32.gmra.mrb[0].mxu0 %v334
  %v781 = vpop.f32.mrb[0].mxu0
  %v782 = vadd.f32 0.0, %v781
  %v783 = vpop.f32.mrb[0].mxu0
  %v784 = vadd.f32 0.0, %v783
  %785 = vmatprep.mubr.f32.mxu0 0.0
  %786 = vmatmul.mubr.f32.gmra.mrb[0].mxu0 %v335
  %v787 = vpop.f32.mrb[0].mxu0
  %v788 = vadd.f32 0.0, %v787
  %v789 = vpop.f32.mrb[0].mxu0
  %v790 = vadd.f32 0.0, %v789
  %791 = vmatprep.mubr.f32.mxu0 0.0
  %792 = vmatmul.mubr.f32.gmra.mrb[0].mxu0 %v336
  %v793 = vpop.f32.mrb[0].mxu0
  %v794 = vadd.f32 0.0, %v793
  %v795 = vpop.f32.mrb[0].mxu0
  %v796 = vadd.f32 0.0, %v795
  %797 = vmatprep.mubr.f32.mxu0 0.0
  %798 = vmatmul.mubr.f32.gmra.mrb[0].mxu0 %v337
  %v799 = vpop.f32.mrb[0].mxu0
  %v800 = vadd.f32 0.0, %v799
  %v801 = vpop.f32.mrb[0].mxu0
  %v802 = vadd.f32 0.0, %v801
  %803 = vmatprep.mubr.f32.mxu0 0.0
  %804 = vmatmul.mubr.f32.gmra.mrb[0].mxu0 %v338
  %v805 = vpop.f32.mrb[0].mxu0
  %v806 = vadd.f32 0.0, %v805
  %v807 = vpop.f32.mrb[0].mxu0
  %v808 = vadd.f32 0.0, %v807
  %809 = vmatprep.mubr.f32.mxu0 0.0
  %810 = vmatmul.mubr.f32.gmra.mrb[0].mxu0 %v339
  %v811 = vpop.f32.mrb[0].mxu0
  %v812 = vadd.f32 0.0, %v811
  %v813 = vpop.f32.mrb[0].mxu0
  %v814 = vadd.f32 0.0, %v813
  %815 = vmatprep.mubr.f32.mxu0 0.0
  %816 = vmatmul.mubr.f32.gmra.mrb[0].mxu0 %v340
  %v817 = vpop.f32.mrb[0].mxu0
  %v818 = vadd.f32 0.0, %v817
  %v819 = vpop.f32.mrb[0].mxu0
  %v820 = vadd.f32 0.0, %v819
  %821 = vdwg.mxu0
  %v822 = vadd.f32 %v149, %v440
  %v823 = vadd.f32 %v150, %v442
  %v824 = vadd.f32 %v151, %v446
  %v825 = vadd.f32 %v152, %v448
  %v826 = vadd.f32 %v153, %v452
  %v827 = vadd.f32 %v154, %v454
  %v828 = vadd.f32 %v155, %v458
  %v829 = vadd.f32 %v156, %v460
  %v830 = vadd.f32 %v157, %v464
  %v831 = vadd.f32 %v158, %v466
  %v832 = vadd.f32 %v159, %v470
  %v833 = vadd.f32 %v160, %v472
  %v834 = vadd.f32 %v161, %v476
  %v835 = vadd.f32 %v162, %v478
  %v836 = vadd.f32 %v163, %v482
  %v837 = vadd.f32 %v164, %v484
  %v838 = vadd.f32 %v165, %v488
  %v839 = vadd.f32 %v166, %v490
  %v840 = vadd.f32 %v167, %v494
  %v841 = vadd.f32 %v168, %v496
  %v842 = vadd.f32 %v169, %v500
  %v843 = vadd.f32 %v170, %v502
  %v844 = vadd.f32 %v171, %v506
  %v845 = vadd.f32 %v172, %v508
  %v846 = vadd.f32 %v173, %v512
  %v847 = vadd.f32 %v174, %v514
  %v848 = vadd.f32 %v175, %v518
  %v849 = vadd.f32 %v176, %v520
  %v850 = vadd.f32 %v177, %v524
  %v851 = vadd.f32 %v178, %v526
  %v852 = vadd.f32 %v179, %v530
  %v853 = vadd.f32 %v180, %v532
  %v854 = vadd.f32 %v181, %v536
  %v855 = vadd.f32 %v182, %v538
  %v856 = vadd.f32 %v183, %v542
  %v857 = vadd.f32 %v184, %v544
  %v858 = vadd.f32 %v185, %v548
  %v859 = vadd.f32 %v186, %v550
  %v860 = vadd.f32 %v187, %v554
  %v861 = vadd.f32 %v188, %v556
  %v862 = vadd.f32 %v189, %v560
  %v863 = vadd.f32 %v190, %v562
  %v864 = vadd.f32 %v191, %v566
  %v865 = vadd.f32 %v192, %v568
  %v866 = vadd.f32 %v193, %v572
  %v867 = vadd.f32 %v194, %v574
  %v868 = vadd.f32 %v195, %v578
  %v869 = vadd.f32 %v196, %v580
  %v870 = vadd.f32 %v197, %v584
  %v871 = vadd.f32 %v198, %v586
  %v872 = vadd.f32 %v199, %v590
  %v873 = vadd.f32 %v200, %v592
  %v874 = vadd.f32 %v201, %v596
  %v875 = vadd.f32 %v202, %v598
  %v876 = vadd.f32 %v203, %v602
  %v877 = vadd.f32 %v204, %v604
  %v878 = vadd.f32 %v205, %v608
  %v879 = vadd.f32 %v206, %v610
  %v880 = vadd.f32 %v207, %v614
  %v881 = vadd.f32 %v208, %v616
  %v882 = vadd.f32 %v209, %v620
  %v883 = vadd.f32 %v210, %v622
  %v884 = vadd.f32 %v211, %v626
  %v885 = vadd.f32 %v212, %v628
  %v886 = vadd.f32 %v213, %v632
  %v887 = vadd.f32 %v214, %v634
  %v888 = vadd.f32 %v215, %v638
  %v889 = vadd.f32 %v216, %v640
  %v890 = vadd.f32 %v217, %v644
  %v891 = vadd.f32 %v218, %v646
  %v892 = vadd.f32 %v219, %v650
  %v893 = vadd.f32 %v220, %v652
  %v894 = vadd.f32 %v221, %v656
  %v895 = vadd.f32 %v222, %v658
  %v896 = vadd.f32 %v223, %v662
  %v897 = vadd.f32 %v224, %v664
  %v898 = vadd.f32 %v225, %v668
  %v899 = vadd.f32 %v226, %v670
  %v900 = vadd.f32 %v227, %v674
  %v901 = vadd.f32 %v228, %v676
  %v902 = vadd.f32 %v229, %v680
  %v903 = vadd.f32 %v230, %v682
  %v904 = vadd.f32 %v231, %v686
  %v905 = vadd.f32 %v232, %v688
  %v906 = vadd.f32 %v233, %v692
  %v907 = vadd.f32 %v234, %v694
  %v908 = vadd.f32 %v235, %v698
  %v909 = vadd.f32 %v236, %v700
  %v910 = vadd.f32 %v237, %v704
  %v911 = vadd.f32 %v238, %v706
  %v912 = vadd.f32 %v239, %v710
  %v913 = vadd.f32 %v240, %v712
  %v914 = vadd.f32 %v241, %v716
  %v915 = vadd.f32 %v242, %v718
  %v916 = vadd.f32 %v243, %v722
  %v917 = vadd.f32 %v244, %v724
  %v918 = vadd.f32 %v245, %v728
  %v919 = vadd.f32 %v246, %v730
  %v920 = vadd.f32 %v247, %v734
  %v921 = vadd.f32 %v248, %v736
  %v922 = vadd.f32 %v249, %v740
  %v923 = vadd.f32 %v250, %v742
  %v924 = vadd.f32 %v251, %v746
  %v925 = vadd.f32 %v252, %v748
  %v926 = vadd.f32 %v253, %v752
  %v927 = vadd.f32 %v254, %v754
  %v928 = vadd.f32 %v255, %v758
  %v929 = vadd.f32 %v256, %v760
  %v930 = vadd.f32 %v257, %v764
  %v931 = vadd.f32 %v258, %v766
  %v932 = vadd.f32 %v259, %v770
  %v933 = vadd.f32 %v260, %v772
  %v934 = vadd.f32 %v261, %v776
  %v935 = vadd.f32 %v262, %v778
  %v936 = vadd.f32 %v263, %v782
  %v937 = vadd.f32 %v264, %v784
  %v938 = vadd.f32 %v265, %v788
  %v939 = vadd.f32 %v266, %v790
  %v940 = vadd.f32 %v267, %v794
  %v941 = vadd.f32 %v268, %v796
  %v942 = vadd.f32 %v269, %v800
  %v943 = vadd.f32 %v270, %v802
  %v944 = vadd.f32 %v271, %v806
  %v945 = vadd.f32 %v272, %v808
  %v946 = vadd.f32 %v273, %v812
  %v947 = vadd.f32 %v274, %v814
  %v948 = vadd.f32 %v275, %v818
  %v949 = vadd.f32 %v276, %v820
  %950 = vst [vmem:[#allocation2] sm:$0xff] %v822
  %951 = vst [vmem:[#allocation2 + $0x8] sm:$0xff] %v823
  %952 = vst [vmem:[#allocation2 + $0x10] sm:$0xff] %v824
  %953 = vst [vmem:[#allocation2 + $0x18] sm:$0xff] %v825
  %954 = vst [vmem:[#allocation2 + $0x20] sm:$0xff] %v826
  %955 = vst [vmem:[#allocation2 + $0x28] sm:$0xff] %v827
  %956 = vst [vmem:[#allocation2 + $0x30] sm:$0xff] %v828
  %957 = vst [vmem:[#allocation2 + $0x38] sm:$0xff] %v829
  %958 = vst [vmem:[#allocation2 + $0x40] sm:$0xff] %v830
  %959 = vst [vmem:[#allocation2 + $0x48] sm:$0xff] %v831
  %960 = vst [vmem:[#allocation2 + $0x50] sm:$0xff] %v832
  %961 = vst [vmem:[#allocation2 + $0x58] sm:$0xff] %v833
  %962 = vst [vmem:[#allocation2 + $0x60] sm:$0xff] %v834
  %963 = vst [vmem:[#allocation2 + $0x68] sm:$0xff] %v835
  %964 = vst [vmem:[#allocation2 + $0x70] sm:$0xff] %v836
  %965 = vst [vmem:[#allocation2 + $0x78] sm:$0xff] %v837
  %966 = vst [vmem:[#allocation2 + $0x80] sm:$0xff] %v838
  %967 = vst [vmem:[#allocation2 + $0x88] sm:$0xff] %v839
  %968 = vst [vmem:[#allocation2 + $0x90] sm:$0xff] %v840
  %969 = vst [vmem:[#allocation2 + $0x98] sm:$0xff] %v841
  %970 = vst [vmem:[#allocation2 + $0xa0] sm:$0xff] %v842
  %971 = vst [vmem:[#allocation2 + $0xa8] sm:$0xff] %v843
  %972 = vst [vmem:[#allocation2 + $0xb0] sm:$0xff] %v844
  %973 = vst [vmem:[#allocation2 + $0xb8] sm:$0xff] %v845
  %974 = vst [vmem:[#allocation2 + $0xc0] sm:$0xff] %v846
  %975 = vst [vmem:[#allocation2 + $0xc8] sm:$0xff] %v847
  %976 = vst [vmem:[#allocation2 + $0xd0] sm:$0xff] %v848
  %977 = vst [vmem:[#allocation2 + $0xd8] sm:$0xff] %v849
  %978 = vst [vmem:[#allocation2 + $0xe0] sm:$0xff] %v850
  %979 = vst [vmem:[#allocation2 + $0xe8] sm:$0xff] %v851
  %980 = vst [vmem:[#allocation2 + $0xf0] sm:$0xff] %v852
  %981 = vst [vmem:[#allocation2 + $0xf8] sm:$0xff] %v853
  %982 = vst [vmem:[#allocation2 + $0x100] sm:$0xff] %v854
  %983 = vst [vmem:[#allocation2 + $0x108] sm:$0xff] %v855
  %984 = vst [vmem:[#allocation2 + $0x110] sm:$0xff] %v856
  %985 = vst [vmem:[#allocation2 + $0x118] sm:$0xff] %v857
  %986 = vst [vmem:[#allocation2 + $0x120] sm:$0xff] %v858
  %987 = vst [vmem:[#allocation2 + $0x128] sm:$0xff] %v859
  %988 = vst [vmem:[#allocation2 + $0x130] sm:$0xff] %v860
  %989 = vst [vmem:[#allocation2 + $0x138] sm:$0xff] %v861
  %990 = vst [vmem:[#allocation2 + $0x140] sm:$0xff] %v862
  %991 = vst [vmem:[#allocation2 + $0x148] sm:$0xff] %v863
  %992 = vst [vmem:[#allocation2 + $0x150] sm:$0xff] %v864
  %993 = vst [vmem:[#allocation2 + $0x158] sm:$0xff] %v865
  %994 = vst [vmem:[#allocation2 + $0x160] sm:$0xff] %v866
  %995 = vst [vmem:[#allocation2 + $0x168] sm:$0xff] %v867
  %996 = vst [vmem:[#allocation2 + $0x170] sm:$0xff] %v868
  %997 = vst [vmem:[#allocation2 + $0x178] sm:$0xff] %v869
  %998 = vst [vmem:[#allocation2 + $0x180] sm:$0xff] %v870
  %999 = vst [vmem:[#allocation2 + $0x188] sm:$0xff] %v871
  %1000 = vst [vmem:[#allocation2 + $0x190] sm:$0xff] %v872
  %1001 = vst [vmem:[#allocation2 + $0x198] sm:$0xff] %v873
  %1002 = vst [vmem:[#allocation2 + $0x1a0] sm:$0xff] %v874
  %1003 = vst [vmem:[#allocation2 + $0x1a8] sm:$0xff] %v875
  %1004 = vst [vmem:[#allocation2 + $0x1b0] sm:$0xff] %v876
  %1005 = vst [vmem:[#allocation2 + $0x1b8] sm:$0xff] %v877
  %1006 = vst [vmem:[#allocation2 + $0x1c0] sm:$0xff] %v878
  %1007 = vst [vmem:[#allocation2 + $0x1c8] sm:$0xff] %v879
  %1008 = vst [vmem:[#allocation2 + $0x1d0] sm:$0xff] %v880
  %1009 = vst [vmem:[#allocation2 + $0x1d8] sm:$0xff] %v881
  %1010 = vst [vmem:[#allocation2 + $0x1e0] sm:$0xff] %v882
  %1011 = vst [vmem:[#allocation2 + $0x1e8] sm:$0xff] %v883
  %1012 = vst [vmem:[#allocation2 + $0x1f0] sm:$0xff] %v884
  %1013 = vst [vmem:[#allocation2 + $0x1f8] sm:$0xff] %v885
  %1014 = vst [vmem:[#allocation2 + $0x200] sm:$0xff] %v886
  %1015 = vst [vmem:[#allocation2 + $0x208] sm:$0xff] %v887
  %1016 = vst [vmem:[#allocation2 + $0x210] sm:$0xff] %v888
  %1017 = vst [vmem:[#allocation2 + $0x218] sm:$0xff] %v889
  %1018 = vst [vmem:[#allocation2 + $0x220] sm:$0xff] %v890
  %1019 = vst [vmem:[#allocation2 + $0x228] sm:$0xff] %v891
  %1020 = vst [vmem:[#allocation2 + $0x230] sm:$0xff] %v892
  %1021 = vst [vmem:[#allocation2 + $0x238] sm:$0xff] %v893
  %1022 = vst [vmem:[#allocation2 + $0x240] sm:$0xff] %v894
  %1023 = vst [vmem:[#allocation2 + $0x248] sm:$0xff] %v895
  %1024 = vst [vmem:[#allocation2 + $0x250] sm:$0xff] %v896
  %1025 = vst [vmem:[#allocation2 + $0x258] sm:$0xff] %v897
  %1026 = vst [vmem:[#allocation2 + $0x260] sm:$0xff] %v898
  %1027 = vst [vmem:[#allocation2 + $0x268] sm:$0xff] %v899
  %1028 = vst [vmem:[#allocation2 + $0x270] sm:$0xff] %v900
  %1029 = vst [vmem:[#allocation2 + $0x278] sm:$0xff] %v901
  %1030 = vst [vmem:[#allocation2 + $0x280] sm:$0xff] %v902
  %1031 = vst [vmem:[#allocation2 + $0x288] sm:$0xff] %v903
  %1032 = vst [vmem:[#allocation2 + $0x290] sm:$0xff] %v904
  %1033 = vst [vmem:[#allocation2 + $0x298] sm:$0xff] %v905
  %1034 = vst [vmem:[#allocation2 + $0x2a0] sm:$0xff] %v906
  %1035 = vst [vmem:[#allocation2 + $0x2a8] sm:$0xff] %v907
  %1036 = vst [vmem:[#allocation2 + $0x2b0] sm:$0xff] %v908
  %1037 = vst [vmem:[#allocation2 + $0x2b8] sm:$0xff] %v909
  %1038 = vst [vmem:[#allocation2 + $0x2c0] sm:$0xff] %v910
  %1039 = vst [vmem:[#allocation2 + $0x2c8] sm:$0xff] %v911
  %1040 = vst [vmem:[#allocation2 + $0x2d0] sm:$0xff] %v912
  %1041 = vst [vmem:[#allocation2 + $0x2d8] sm:$0xff] %v913
  %1042 = vst [vmem:[#allocation2 + $0x2e0] sm:$0xff] %v914
  %1043 = vst [vmem:[#allocation2 + $0x2e8] sm:$0xff] %v915
  %1044 = vst [vmem:[#allocation2 + $0x2f0] sm:$0xff] %v916
  %1045 = vst [vmem:[#allocation2 + $0x2f8] sm:$0xff] %v917
  %1046 = vst [vmem:[#allocation2 + $0x300] sm:$0xff] %v918
  %1047 = vst [vmem:[#allocation2 + $0x308] sm:$0xff] %v919
  %1048 = vst [vmem:[#allocation2 + $0x310] sm:$0xff] %v920
  %1049 = vst [vmem:[#allocation2 + $0x318] sm:$0xff] %v921
  %1050 = vst [vmem:[#allocation2 + $0x320] sm:$0xff] %v922
  %1051 = vst [vmem:[#allocation2 + $0x328] sm:$0xff] %v923
  %1052 = vst [vmem:[#allocation2 + $0x330] sm:$0xff] %v924
  %1053 = vst [vmem:[#allocation2 + $0x338] sm:$0xff] %v925
  %1054 = vst [vmem:[#allocation2 + $0x340] sm:$0xff] %v926
  %1055 = vst [vmem:[#allocation2 + $0x348] sm:$0xff] %v927
  %1056 = vst [vmem:[#allocation2 + $0x350] sm:$0xff] %v928
  %1057 = vst [vmem:[#allocation2 + $0x358] sm:$0xff] %v929
  %1058 = vst [vmem:[#allocation2 + $0x360] sm:$0xff] %v930
  %1059 = vst [vmem:[#allocation2 + $0x368] sm:$0xff] %v931
  %1060 = vst [vmem:[#allocation2 + $0x370] sm:$0xff] %v932
  %1061 = vst [vmem:[#allocation2 + $0x378] sm:$0xff] %v933
  %1062 = vst [vmem:[#allocation2 + $0x380] sm:$0xff] %v934
  %1063 = vst [vmem:[#allocation2 + $0x388] sm:$0xff] %v935
  %1064 = vst [vmem:[#allocation2 + $0x390] sm:$0xff] %v936
  %1065 = vst [vmem:[#allocation2 + $0x398] sm:$0xff] %v937
  %1066 = vst [vmem:[#allocation2 + $0x3a0] sm:$0xff] %v938
  %1067 = vst [vmem:[#allocation2 + $0x3a8] sm:$0xff] %v939
  %1068 = vst [vmem:[#allocation2 + $0x3b0] sm:$0xff] %v940
  %1069 = vst [vmem:[#allocation2 + $0x3b8] sm:$0xff] %v941
  %1070 = vst [vmem:[#allocation2 + $0x3c0] sm:$0xff] %v942
  %1071 = vst [vmem:[#allocation2 + $0x3c8] sm:$0xff] %v943
  %1072 = vst [vmem:[#allocation2 + $0x3d0] sm:$0xff] %v944
  %1073 = vst [vmem:[#allocation2 + $0x3d8] sm:$0xff] %v945
  %1074 = vst [vmem:[#allocation2 + $0x3e0] sm:$0xff] %v946
  %1075 = vst [vmem:[#allocation2 + $0x3e8] sm:$0xff] %v947
  %1076 = vst [vmem:[#allocation2 + $0x3f0] sm:$0xff] %v948
  %1077 = vst [vmem:[#allocation2 + $0x3f8] sm:$0xff] %v949
  // Predicated region
  $region22: #{bottleneck_forward.3} parent=0 // pred_check
    %p1078 = pneg %p17
  $region23: #{bottleneck_forward.3} parent=0 // pred_check_branch
    %1080 = sbr.rel (%p1078) target = $region25
  $region24: #{bottleneck_forward.3} parent=0 // pred_region
    %v1081 = vld [vmem:[#allocation2] sm:$0xff]
    %v1082 = vld [vmem:[#allocation2 + $0x8] sm:$0xff]
    %v1083 = vld [vmem:[#allocation2 + $0x10] sm:$0xff]
    %v1084 = vld [vmem:[#allocation2 + $0x18] sm:$0xff]
    %v1085 = vld [vmem:[#allocation2 + $0x20] sm:$0xff]
    %v1086 = vld [vmem:[#allocation2 + $0x28] sm:$0xff]
    %v1087 = vld [vmem:[#allocation2 + $0x30] sm:$0xff]
    %v1088 = vld [vmem:[#allocation2 + $0x38] sm:$0xff]
    %v1089 = vld [vmem:[#allocation2 + $0x40] sm:$0xff]
    %v1090 = vld [vmem:[#allocation2 + $0x48] sm:$0xff]
    %v1091 = vld [vmem:[#allocation2 + $0x50] sm:$0xff]
    %v1092 = vld [vmem:[#allocation2 + $0x58] sm:$0xff]
    %v1093 = vld [vmem:[#allocation2 + $0x60] sm:$0xff]
    %v1094 = vld [vmem:[#allocation2 + $0x68] sm:$0xff]
    %v1095 = vld [vmem:[#allocation2 + $0x70] sm:$0xff]
    %v1096 = vld [vmem:[#allocation2 + $0x78] sm:$0xff]
    %v1097 = vld [vmem:[#allocation2 + $0x80] sm:$0xff]
    %v1098 = vld [vmem:[#allocation2 + $0x88] sm:$0xff]
    %v1099 = vld [vmem:[#allocation2 + $0x90] sm:$0xff]
    %v1100 = vld [vmem:[#allocation2 + $0x98] sm:$0xff]
    %v1101 = vld [vmem:[#allocation2 + $0xa0] sm:$0xff]
    %v1102 = vld [vmem:[#allocation2 + $0xa8] sm:$0xff]
    %v1103 = vld [vmem:[#allocation2 + $0xb0] sm:$0xff]
    %v1104 = vld [vmem:[#allocation2 + $0xb8] sm:$0xff]
    %v1105 = vld [vmem:[#allocation2 + $0xc0] sm:$0xff]
    %v1106 = vld [vmem:[#allocation2 + $0xc8] sm:$0xff]
    %v1107 = vld [vmem:[#allocation2 + $0xd0] sm:$0xff]
    %v1108 = vld [vmem:[#allocation2 + $0xd8] sm:$0xff]
    %v1109 = vld [vmem:[#allocation2 + $0xe0] sm:$0xff]
    %v1110 = vld [vmem:[#allocation2 + $0xe8] sm:$0xff]
    %v1111 = vld [vmem:[#allocation2 + $0xf0] sm:$0xff]
    %v1112 = vld [vmem:[#allocation2 + $0xf8] sm:$0xff]
    %v1113 = vld [vmem:[#allocation2 + $0x100] sm:$0xff]
    %v1114 = vld [vmem:[#allocation2 + $0x108] sm:$0xff]
    %v1115 = vld [vmem:[#allocation2 + $0x110] sm:$0xff]
    %v1116 = vld [vmem:[#allocation2 + $0x118] sm:$0xff]
    %v1117 = vld [vmem:[#allocation2 + $0x120] sm:$0xff]
    %v1118 = vld [vmem:[#allocation2 + $0x128] sm:$0xff]
    %v1119 = vld [vmem:[#allocation2 + $0x130] sm:$0xff]
    %v1120 = vld [vmem:[#allocation2 + $0x138] sm:$0xff]
    %v1121 = vld [vmem:[#allocation2 + $0x140] sm:$0xff]
    %v1122 = vld [vmem:[#allocation2 + $0x148] sm:$0xff]
    %v1123 = vld [vmem:[#allocation2 + $0x150] sm:$0xff]
    %v1124 = vld [vmem:[#allocation2 + $0x158] sm:$0xff]
    %v1125 = vld [vmem:[#allocation2 + $0x160] sm:$0xff]
    %v1126 = vld [vmem:[#allocation2 + $0x168] sm:$0xff]
    %v1127 = vld [vmem:[#allocation2 + $0x170] sm:$0xff]
    %v1128 = vld [vmem:[#allocation2 + $0x178] sm:$0xff]
    %v1129 = vld [vmem:[#allocation2 + $0x180] sm:$0xff]
    %v1130 = vld [vmem:[#allocation2 + $0x188] sm:$0xff]
    %v1131 = vld [vmem:[#allocation2 + $0x190] sm:$0xff]
    %v1132 = vld [vmem:[#allocation2 + $0x198] sm:$0xff]
    %v1133 = vld [vmem:[#allocation2 + $0x1a0] sm:$0xff]
    %v1134 = vld [vmem:[#allocation2 + $0x1a8] sm:$0xff]
    %v1135 = vld [vmem:[#allocation2 + $0x1b0] sm:$0xff]
    %v1136 = vld [vmem:[#allocation2 + $0x1b8] sm:$0xff]
    %v1137 = vld [vmem:[#allocation2 + $0x1c0] sm:$0xff]
    %v1138 = vld [vmem:[#allocation2 + $0x1c8] sm:$0xff]
    %v1139 = vld [vmem:[#allocation2 + $0x1d0] sm:$0xff]
    %v1140 = vld [vmem:[#allocation2 + $0x1d8] sm:$0xff]
    %v1141 = vld [vmem:[#allocation2 + $0x1e0] sm:$0xff]
    %v1142 = vld [vmem:[#allocation2 + $0x1e8] sm:$0xff]
    %v1143 = vld [vmem:[#allocation2 + $0x1f0] sm:$0xff]
    %v1144 = vld [vmem:[#allocation2 + $0x1f8] sm:$0xff]
    %v1145 = vld [vmem:[#allocation2 + $0x200] sm:$0xff]
    %v1146 = vld [vmem:[#allocation2 + $0x208] sm:$0xff]
    %v1147 = vld [vmem:[#allocation2 + $0x210] sm:$0xff]
    %v1148 = vld [vmem:[#allocation2 + $0x218] sm:$0xff]
    %v1149 = vld [vmem:[#allocation2 + $0x220] sm:$0xff]
    %v1150 = vld [vmem:[#allocation2 + $0x228] sm:$0xff]
    %v1151 = vld [vmem:[#allocation2 + $0x230] sm:$0xff]
    %v1152 = vld [vmem:[#allocation2 + $0x238] sm:$0xff]
    %v1153 = vld [vmem:[#allocation2 + $0x240] sm:$0xff]
    %v1154 = vld [vmem:[#allocation2 + $0x248] sm:$0xff]
    %v1155 = vld [vmem:[#allocation2 + $0x250] sm:$0xff]
    %v1156 = vld [vmem:[#allocation2 + $0x258] sm:$0xff]
    %v1157 = vld [vmem:[#allocation2 + $0x260] sm:$0xff]
    %v1158 = vld [vmem:[#allocation2 + $0x268] sm:$0xff]
    %v1159 = vld [vmem:[#allocation2 + $0x270] sm:$0xff]
    %v1160 = vld [vmem:[#allocation2 + $0x278] sm:$0xff]
    %v1161 = vld [vmem:[#allocation2 + $0x280] sm:$0xff]
    %v1162 = vld [vmem:[#allocation2 + $0x288] sm:$0xff]
    %v1163 = vld [vmem:[#allocation2 + $0x290] sm:$0xff]
    %v1164 = vld [vmem:[#allocation2 + $0x298] sm:$0xff]
    %v1165 = vld [vmem:[#allocation2 + $0x2a0] sm:$0xff]
    %v1166 = vld [vmem:[#allocation2 + $0x2a8] sm:$0xff]
    %v1167 = vld [vmem:[#allocation2 + $0x2b0] sm:$0xff]
    %v1168 = vld [vmem:[#allocation2 + $0x2b8] sm:$0xff]
    %v1169 = vld [vmem:[#allocation2 + $0x2c0] sm:$0xff]
    %v1170 = vld [vmem:[#allocation2 + $0x2c8] sm:$0xff]
    %v1171 = vld [vmem:[#allocation2 + $0x2d0] sm:$0xff]
    %v1172 = vld [vmem:[#allocation2 + $0x2d8] sm:$0xff]
    %v1173 = vld [vmem:[#allocation2 + $0x2e0] sm:$0xff]
    %v1174 = vld [vmem:[#allocation2 + $0x2e8] sm:$0xff]
    %v1175 = vld [vmem:[#allocation2 + $0x2f0] sm:$0xff]
    %v1176 = vld [vmem:[#allocation2 + $0x2f8] sm:$0xff]
    %v1177 = vld [vmem:[#allocation2 + $0x300] sm:$0xff]
    %v1178 = vld [vmem:[#allocation2 + $0x308] sm:$0xff]
    %v1179 = vld [vmem:[#allocation2 + $0x310] sm:$0xff]
    %v1180 = vld [vmem:[#allocation2 + $0x318] sm:$0xff]
    %v1181 = vld [vmem:[#allocation2 + $0x320] sm:$0xff]
    %v1182 = vld [vmem:[#allocation2 + $0x328] sm:$0xff]
    %v1183 = vld [vmem:[#allocation2 + $0x330] sm:$0xff]
    %v1184 = vld [vmem:[#allocation2 + $0x338] sm:$0xff]
    %v1185 = vld [vmem:[#allocation2 + $0x340] sm:$0xff]
    %v1186 = vld [vmem:[#allocation2 + $0x348] sm:$0xff]
    %v1187 = vld [vmem:[#allocation2 + $0x350] sm:$0xff]
    %v1188 = vld [vmem:[#allocation2 + $0x358] sm:$0xff]
    %v1189 = vld [vmem:[#allocation2 + $0x360] sm:$0xff]
    %v1190 = vld [vmem:[#allocation2 + $0x368] sm:$0xff]
    %v1191 = vld [vmem:[#allocation2 + $0x370] sm:$0xff]
    %v1192 = vld [vmem:[#allocation2 + $0x378] sm:$0xff]
    %v1193 = vld [vmem:[#allocation2 + $0x380] sm:$0xff]
    %v1194 = vld [vmem:[#allocation2 + $0x388] sm:$0xff]
    %v1195 = vld [vmem:[#allocation2 + $0x390] sm:$0xff]
    %v1196 = vld [vmem:[#allocation2 + $0x398] sm:$0xff]
    %v1197 = vld [vmem:[#allocation2 + $0x3a0] sm:$0xff]
    %v1198 = vld [vmem:[#allocation2 + $0x3a8] sm:$0xff]
    %v1199 = vld [vmem:[#allocation2 + $0x3b0] sm:$0xff]
    %v1200 = vld [vmem:[#allocation2 + $0x3b8] sm:$0xff]
    %v1201 = vld [vmem:[#allocation2 + $0x3c0] sm:$0xff]
    %v1202 = vld [vmem:[#allocation2 + $0x3c8] sm:$0xff]
    %v1203 = vld [vmem:[#allocation2 + $0x3d0] sm:$0xff]
    %v1204 = vld [vmem:[#allocation2 + $0x3d8] sm:$0xff]
    %v1205 = vld [vmem:[#allocation2 + $0x3e0] sm:$0xff]
    %v1206 = vld [vmem:[#allocation2 + $0x3e8] sm:$0xff]
    %v1207 = vld [vmem:[#allocation2 + $0x3f0] sm:$0xff]
    %v1208 = vld [vmem:[#allocation2 + $0x3f8] sm:$0xff]
    %v1209 = vld [vmem:[%s2] sm:$0x3]
    %v1211 = vlaneseq
    %v1212 = vshrl.u32 %v1211, 7
    %v1213 = vsub.s32 0, %v1212
    %v1214 = vrot.slane %v1209, %v1213
    %v1215 = vlaneseq
    %v1216 = vshrl.u32 %v1215, 7
    %v1217 = vsub.s32 1, %v1216
    %v1218 = vrot.slane %v1209, %v1217
    %v1221 = vadd.f32 %v1081, %v1214
    %v1222 = vadd.f32 %v1082, %v1218
    %v1223 = vadd.f32 %v1083, %v1214
    %v1224 = vadd.f32 %v1084, %v1218
    %v1225 = vadd.f32 %v1085, %v1214
    %v1226 = vadd.f32 %v1086, %v1218
    %v1227 = vadd.f32 %v1087, %v1214
    %v1228 = vadd.f32 %v1088, %v1218
    %v1229 = vadd.f32 %v1089, %v1214
    %v1230 = vadd.f32 %v1090, %v1218
    %v1231 = vadd.f32 %v1091, %v1214
    %v1232 = vadd.f32 %v1092, %v1218
    %v1233 = vadd.f32 %v1093, %v1214
    %v1234 = vadd.f32 %v1094, %v1218
    %v1235 = vadd.f32 %v1095, %v1214
    %v1236 = vadd.f32 %v1096, %v1218
    %v1237 = vadd.f32 %v1097, %v1214
    %v1238 = vadd.f32 %v1098, %v1218
    %v1239 = vadd.f32 %v1099, %v1214
    %v1240 = vadd.f32 %v1100, %v1218
    %v1241 = vadd.f32 %v1101, %v1214
    %v1242 = vadd.f32 %v1102, %v1218
    %v1243 = vadd.f32 %v1103, %v1214
    %v1244 = vadd.f32 %v1104, %v1218
    %v1245 = vadd.f32 %v1105, %v1214
    %v1246 = vadd.f32 %v1106, %v1218
    %v1247 = vadd.f32 %v1107, %v1214
    %v1248 = vadd.f32 %v1108, %v1218
    %v1249 = vadd.f32 %v1109, %v1214
    %v1250 = vadd.f32 %v1110, %v1218
    %v1251 = vadd.f32 %v1111, %v1214
    %v1252 = vadd.f32 %v1112, %v1218
    %v1253 = vadd.f32 %v1113, %v1214
    %v1254 = vadd.f32 %v1114, %v1218
    %v1255 = vadd.f32 %v1115, %v1214
    %v1256 = vadd.f32 %v1116, %v1218
    %v1257 = vadd.f32 %v1117, %v1214
    %v1258 = vadd.f32 %v1118, %v1218
    %v1259 = vadd.f32 %v1119, %v1214
    %v1260 = vadd.f32 %v1120, %v1218
    %v1261 = vadd.f32 %v1121, %v1214
    %v1262 = vadd.f32 %v1122, %v1218
    %v1263 = vadd.f32 %v1123, %v1214
    %v1264 = vadd.f32 %v1124, %v1218
    %v1265 = vadd.f32 %v1125, %v1214
    %v1266 = vadd.f32 %v1126, %v1218
    %v1267 = vadd.f32 %v1127, %v1214
    %v1268 = vadd.f32 %v1128, %v1218
    %v1269 = vadd.f32 %v1129, %v1214
    %v1270 = vadd.f32 %v1130, %v1218
    %v1271 = vadd.f32 %v1131, %v1214
    %v1272 = vadd.f32 %v1132, %v1218
    %v1273 = vadd.f32 %v1133, %v1214
    %v1274 = vadd.f32 %v1134, %v1218
    %v1275 = vadd.f32 %v1135, %v1214
    %v1276 = vadd.f32 %v1136, %v1218
    %v1277 = vadd.f32 %v1137, %v1214
    %v1278 = vadd.f32 %v1138, %v1218
    %v1279 = vadd.f32 %v1139, %v1214
    %v1280 = vadd.f32 %v1140, %v1218
    %v1281 = vadd.f32 %v1141, %v1214
    %v1282 = vadd.f32 %v1142, %v1218
    %v1283 = vadd.f32 %v1143, %v1214
    %v1284 = vadd.f32 %v1144, %v1218
    %v1285 = vadd.f32 %v1145, %v1214
    %v1286 = vadd.f32 %v1146, %v1218
    %v1287 = vadd.f32 %v1147, %v1214
    %v1288 = vadd.f32 %v1148, %v1218
    %v1289 = vadd.f32 %v1149, %v1214
    %v1290 = vadd.f32 %v1150, %v1218
    %v1291 = vadd.f32 %v1151, %v1214
    %v1292 = vadd.f32 %v1152, %v1218
    %v1293 = vadd.f32 %v1153, %v1214
    %v1294 = vadd.f32 %v1154, %v1218
    %v1295 = vadd.f32 %v1155, %v1214
    %v1296 = vadd.f32 %v1156, %v1218
    %v1297 = vadd.f32 %v1157, %v1214
    %v1298 = vadd.f32 %v1158, %v1218
    %v1299 = vadd.f32 %v1159, %v1214
    %v1300 = vadd.f32 %v1160, %v1218
    %v1301 = vadd.f32 %v1161, %v1214
    %v1302 = vadd.f32 %v1162, %v1218
    %v1303 = vadd.f32 %v1163, %v1214
    %v1304 = vadd.f32 %v1164, %v1218
    %v1305 = vadd.f32 %v1165, %v1214
    %v1306 = vadd.f32 %v1166, %v1218
    %v1307 = vadd.f32 %v1167, %v1214
    %v1308 = vadd.f32 %v1168, %v1218
    %v1309 = vadd.f32 %v1169, %v1214
    %v1310 = vadd.f32 %v1170, %v1218
    %v1311 = vadd.f32 %v1171, %v1214
    %v1312 = vadd.f32 %v1172, %v1218
    %v1313 = vadd.f32 %v1173, %v1214
    %v1314 = vadd.f32 %v1174, %v1218
    %v1315 = vadd.f32 %v1175, %v1214
    %v1316 = vadd.f32 %v1176, %v1218
    %v1317 = vadd.f32 %v1177, %v1214
    %v1318 = vadd.f32 %v1178, %v1218
    %v1319 = vadd.f32 %v1179, %v1214
    %v1320 = vadd.f32 %v1180, %v1218
    %v1321 = vadd.f32 %v1181, %v1214
    %v1322 = vadd.f32 %v1182, %v1218
    %v1323 = vadd.f32 %v1183, %v1214
    %v1324 = vadd.f32 %v1184, %v1218
    %v1325 = vadd.f32 %v1185, %v1214
    %v1326 = vadd.f32 %v1186, %v1218
    %v1327 = vadd.f32 %v1187, %v1214
    %v1328 = vadd.f32 %v1188, %v1218
    %v1329 = vadd.f32 %v1189, %v1214
    %v1330 = vadd.f32 %v1190, %v1218
    %v1331 = vadd.f32 %v1191, %v1214
    %v1332 = vadd.f32 %v1192, %v1218
    %v1333 = vadd.f32 %v1193, %v1214
    %v1334 = vadd.f32 %v1194, %v1218
    %v1335 = vadd.f32 %v1195, %v1214
    %v1336 = vadd.f32 %v1196, %v1218
    %v1337 = vadd.f32 %v1197, %v1214
    %v1338 = vadd.f32 %v1198, %v1218
    %v1339 = vadd.f32 %v1199, %v1214
    %v1340 = vadd.f32 %v1200, %v1218
    %v1341 = vadd.f32 %v1201, %v1214
    %v1342 = vadd.f32 %v1202, %v1218
    %v1343 = vadd.f32 %v1203, %v1214
    %v1344 = vadd.f32 %v1204, %v1218
    %v1345 = vadd.f32 %v1205, %v1214
    %v1346 = vadd.f32 %v1206, %v1218
    %v1347 = vadd.f32 %v1207, %v1214
    %v1348 = vadd.f32 %v1208, %v1218
    %v1349 = vld [vmem:[%s3] sm:$0x3]
    %vm1350 = vcmp.gt.f32.partialorder %v1349, 0.5
    %v1351 = vmax.f32 %v1221, 0.0
    %v1352 = vmax.f32 %v1222, 0.0
    %v1353 = vmax.f32 %v1223, 0.0
    %v1354 = vmax.f32 %v1224, 0.0
    %v1355 = vmax.f32 %v1225, 0.0
    %v1356 = vmax.f32 %v1226, 0.0
    %v1357 = vmax.f32 %v1227, 0.0
    %v1358 = vmax.f32 %v1228, 0.0
    %v1359 = vmax.f32 %v1229, 0.0
    %v1360 = vmax.f32 %v1230, 0.0
    %v1361 = vmax.f32 %v1231, 0.0
    %v1362 = vmax.f32 %v1232, 0.0
    %v1363 = vmax.f32 %v1233, 0.0
    %v1364 = vmax.f32 %v1234, 0.0
    %v1365 = vmax.f32 %v1235, 0.0
    %v1366 = vmax.f32 %v1236, 0.0
    %v1367 = vmax.f32 %v1237, 0.0
    %v1368 = vmax.f32 %v1238, 0.0
    %v1369 = vmax.f32 %v1239, 0.0
    %v1370 = vmax.f32 %v1240, 0.0
    %v1371 = vmax.f32 %v1241, 0.0
    %v1372 = vmax.f32 %v1242, 0.0
    %v1373 = vmax.f32 %v1243, 0.0
    %v1374 = vmax.f32 %v1244, 0.0
    %v1375 = vmax.f32 %v1245, 0.0
    %v1376 = vmax.f32 %v1246, 0.0
    %v1377 = vmax.f32 %v1247, 0.0
    %v1378 = vmax.f32 %v1248, 0.0
    %v1379 = vmax.f32 %v1249, 0.0
    %v1380 = vmax.f32 %v1250, 0.0
    %v1381 = vmax.f32 %v1251, 0.0
    %v1382 = vmax.f32 %v1252, 0.0
    %v1383 = vmax.f32 %v1253, 0.0
    %v1384 = vmax.f32 %v1254, 0.0
    %v1385 = vmax.f32 %v1255, 0.0
    %v1386 = vmax.f32 %v1256, 0.0
    %v1387 = vmax.f32 %v1257, 0.0
    %v1388 = vmax.f32 %v1258, 0.0
    %v1389 = vmax.f32 %v1259, 0.0
    %v1390 = vmax.f32 %v1260, 0.0
    %v1391 = vmax.f32 %v1261, 0.0
    %v1392 = vmax.f32 %v1262, 0.0
    %v1393 = vmax.f32 %v1263, 0.0
    %v1394 = vmax.f32 %v1264, 0.0
    %v1395 = vmax.f32 %v1265, 0.0
    %v1396 = vmax.f32 %v1266, 0.0
    %v1397 = vmax.f32 %v1267, 0.0
    %v1398 = vmax.f32 %v1268, 0.0
    %v1399 = vmax.f32 %v1269, 0.0
    %v1400 = vmax.f32 %v1270, 0.0
    %v1401 = vmax.f32 %v1271, 0.0
    %v1402 = vmax.f32 %v1272, 0.0
    %v1403 = vmax.f32 %v1273, 0.0
    %v1404 = vmax.f32 %v1274, 0.0
    %v1405 = vmax.f32 %v1275, 0.0
    %v1406 = vmax.f32 %v1276, 0.0
    %v1407 = vmax.f32 %v1277, 0.0
    %v1408 = vmax.f32 %v1278, 0.0
    %v1409 = vmax.f32 %v1279, 0.0
    %v1410 = vmax.f32 %v1280, 0.0
    %v1411 = vmax.f32 %v1281, 0.0
    %v1412 = vmax.f32 %v1282, 0.0
    %v1413 = vmax.f32 %v1283, 0.0
    %v1414 = vmax.f32 %v1284, 0.0
    %v1415 = vmax.f32 %v1285, 0.0
    %v1416 = vmax.f32 %v1286, 0.0
    %v1417 = vmax.f32 %v1287, 0.0
    %v1418 = vmax.f32 %v1288, 0.0
    %v1419 = vmax.f32 %v1289, 0.0
    %v1420 = vmax.f32 %v1290, 0.0
    %v1421 = vmax.f32 %v1291, 0.0
    %v1422 = vmax.f32 %v1292, 0.0
    %v1423 = vmax.f32 %v1293, 0.0
    %v1424 = vmax.f32 %v1294, 0.0
    %v1425 = vmax.f32 %v1295, 0.0
    %v1426 = vmax.f32 %v1296, 0.0
    %v1427 = vmax.f32 %v1297, 0.0
    %v1428 = vmax.f32 %v1298, 0.0
    %v1429 = vmax.f32 %v1299, 0.0
    %v1430 = vmax.f32 %v1300, 0.0
    %v1431 = vmax.f32 %v1301, 0.0
    %v1432 = vmax.f32 %v1302, 0.0
    %v1433 = vmax.f32 %v1303, 0.0
    %v1434 = vmax.f32 %v1304, 0.0
    %v1435 = vmax.f32 %v1305, 0.0
    %v1436 = vmax.f32 %v1306, 0.0
    %v1437 = vmax.f32 %v1307, 0.0
    %v1438 = vmax.f32 %v1308, 0.0
    %v1439 = vmax.f32 %v1309, 0.0
    %v1440 = vmax.f32 %v1310, 0.0
    %v1441 = vmax.f32 %v1311, 0.0
    %v1442 = vmax.f32 %v1312, 0.0
    %v1443 = vmax.f32 %v1313, 0.0
    %v1444 = vmax.f32 %v1314, 0.0
    %v1445 = vmax.f32 %v1315, 0.0
    %v1446 = vmax.f32 %v1316, 0.0
    %v1447 = vmax.f32 %v1317, 0.0
    %v1448 = vmax.f32 %v1318, 0.0
    %v1449 = vmax.f32 %v1319, 0.0
    %v1450 = vmax.f32 %v1320, 0.0
    %v1451 = vmax.f32 %v1321, 0.0
    %v1452 = vmax.f32 %v1322, 0.0
    %v1453 = vmax.f32 %v1323, 0.0
    %v1454 = vmax.f32 %v1324, 0.0
    %v1455 = vmax.f32 %v1325, 0.0
    %v1456 = vmax.f32 %v1326, 0.0
    %v1457 = vmax.f32 %v1327, 0.0
    %v1458 = vmax.f32 %v1328, 0.0
    %v1459 = vmax.f32 %v1329, 0.0
    %v1460 = vmax.f32 %v1330, 0.0
    %v1461 = vmax.f32 %v1331, 0.0
    %v1462 = vmax.f32 %v1332, 0.0
    %v1463 = vmax.f32 %v1333, 0.0
    %v1464 = vmax.f32 %v1334, 0.0
    %v1465 = vmax.f32 %v1335, 0.0
    %v1466 = vmax.f32 %v1336, 0.0
    %v1467 = vmax.f32 %v1337, 0.0
    %v1468 = vmax.f32 %v1338, 0.0
    %v1469 = vmax.f32 %v1339, 0.0
    %v1470 = vmax.f32 %v1340, 0.0
    %v1471 = vmax.f32 %v1341, 0.0
    %v1472 = vmax.f32 %v1342, 0.0
    %v1473 = vmax.f32 %v1343, 0.0
    %v1474 = vmax.f32 %v1344, 0.0
    %v1475 = vmax.f32 %v1345, 0.0
    %v1476 = vmax.f32 %v1346, 0.0
    %v1477 = vmax.f32 %v1347, 0.0
    %v1478 = vmax.f32 %v1348, 0.0
    %v1479 = vsel %vm1350, 1, 0
    %v1480 = vlaneseq
    %v1481 = vshrl.u32 %v1480, 7
    %v1482 = vsub.s32 0, %v1481
    %v1483 = vrot.slane %v1479, %v1482
    %v1484 = vlaneseq
    %v1485 = vshrl.u32 %v1484, 7
    %v1486 = vsub.s32 1, %v1485
    %v1487 = vrot.slane %v1479, %v1486
    %vm1488 = vcmp.eq.s32.totalorder %v1483, 1
    %vm1489 = vcmp.eq.s32.totalorder %v1487, 1
    %v1490 = vsel %vm1488, %v1351, %v1221
    %v1491 = vsel %vm1489, %v1352, %v1222
    %v1492 = vsel %vm1488, %v1353, %v1223
    %v1493 = vsel %vm1489, %v1354, %v1224
    %v1494 = vsel %vm1488, %v1355, %v1225
    %v1495 = vsel %vm1489, %v1356, %v1226
    %v1496 = vsel %vm1488, %v1357, %v1227
    %v1497 = vsel %vm1489, %v1358, %v1228
    %v1498 = vsel %vm1488, %v1359, %v1229
    %v1499 = vsel %vm1489, %v1360, %v1230
    %v1500 = vsel %vm1488, %v1361, %v1231
    %v1501 = vsel %vm1489, %v1362, %v1232
    %v1502 = vsel %vm1488, %v1363, %v1233
    %v1503 = vsel %vm1489, %v1364, %v1234
    %v1504 = vsel %vm1488, %v1365, %v1235
    %v1505 = vsel %vm1489, %v1366, %v1236
    %v1506 = vsel %vm1488, %v1367, %v1237
    %v1507 = vsel %vm1489, %v1368, %v1238
    %v1508 = vsel %vm1488, %v1369, %v1239
    %v1509 = vsel %vm1489, %v1370, %v1240
    %v1510 = vsel %vm1488, %v1371, %v1241
    %v1511 = vsel %vm1489, %v1372, %v1242
    %v1512 = vsel %vm1488, %v1373, %v1243
    %v1513 = vsel %vm1489, %v1374, %v1244
    %v1514 = vsel %vm1488, %v1375, %v1245
    %v1515 = vsel %vm1489, %v1376, %v1246
    %v1516 = vsel %vm1488, %v1377, %v1247
    %v1517 = vsel %vm1489, %v1378, %v1248
    %v1518 = vsel %vm1488, %v1379, %v1249
    %v1519 = vsel %vm1489, %v1380, %v1250
    %v1520 = vsel %vm1488, %v1381, %v1251
    %v1521 = vsel %vm1489, %v1382, %v1252
    %v1522 = vsel %vm1488, %v1383, %v1253
    %v1523 = vsel %vm1489, %v1384, %v1254
    %v1524 = vsel %vm1488, %v1385, %v1255
    %v1525 = vsel %vm1489, %v1386, %v1256
    %v1526 = vsel %vm1488, %v1387, %v1257
    %v1527 = vsel %vm1489, %v1388, %v1258
    %v1528 = vsel %vm1488, %v1389, %v1259
    %v1529 = vsel %vm1489, %v1390, %v1260
    %v1530 = vsel %vm1488, %v1391, %v1261
    %v1531 = vsel %vm1489, %v1392, %v1262
    %v1532 = vsel %vm1488, %v1393, %v1263
    %v1533 = vsel %vm1489, %v1394, %v1264
    %v1534 = vsel %vm1488, %v1395, %v1265
    %v1535 = vsel %vm1489, %v1396, %v1266
    %v1536 = vsel %vm1488, %v1397, %v1267
    %v1537 = vsel %vm1489, %v1398, %v1268
    %v1538 = vsel %vm1488, %v1399, %v1269
    %v1539 = vsel %vm1489, %v1400, %v1270
    %v1540 = vsel %vm1488, %v1401, %v1271
    %v1541 = vsel %vm1489, %v1402, %v1272
    %v1542 = vsel %vm1488, %v1403, %v1273
    %v1543 = vsel %vm1489, %v1404, %v1274
    %v1544 = vsel %vm1488, %v1405, %v1275
    %v1545 = vsel %vm1489, %v1406, %v1276
    %v1546 = vsel %vm1488, %v1407, %v1277
    %v1547 = vsel %vm1489, %v1408, %v1278
    %v1548 = vsel %vm1488, %v1409, %v1279
    %v1549 = vsel %vm1489, %v1410, %v1280
    %v1550 = vsel %vm1488, %v1411, %v1281
    %v1551 = vsel %vm1489, %v1412, %v1282
    %v1552 = vsel %vm1488, %v1413, %v1283
    %v1553 = vsel %vm1489, %v1414, %v1284
    %v1554 = vsel %vm1488, %v1415, %v1285
    %v1555 = vsel %vm1489, %v1416, %v1286
    %v1556 = vsel %vm1488, %v1417, %v1287
    %v1557 = vsel %vm1489, %v1418, %v1288
    %v1558 = vsel %vm1488, %v1419, %v1289
    %v1559 = vsel %vm1489, %v1420, %v1290
    %v1560 = vsel %vm1488, %v1421, %v1291
    %v1561 = vsel %vm1489, %v1422, %v1292
    %v1562 = vsel %vm1488, %v1423, %v1293
    %v1563 = vsel %vm1489, %v1424, %v1294
    %v1564 = vsel %vm1488, %v1425, %v1295
    %v1565 = vsel %vm1489, %v1426, %v1296
    %v1566 = vsel %vm1488, %v1427, %v1297
    %v1567 = vsel %vm1489, %v1428, %v1298
    %v1568 = vsel %vm1488, %v1429, %v1299
    %v1569 = vsel %vm1489, %v1430, %v1300
    %v1570 = vsel %vm1488, %v1431, %v1301
    %v1571 = vsel %vm1489, %v1432, %v1302
    %v1572 = vsel %vm1488, %v1433, %v1303
    %v1573 = vsel %vm1489, %v1434, %v1304
    %v1574 = vsel %vm1488, %v1435, %v1305
    %v1575 = vsel %vm1489, %v1436, %v1306
    %v1576 = vsel %vm1488, %v1437, %v1307
    %v1577 = vsel %vm1489, %v1438, %v1308
    %v1578 = vsel %vm1488, %v1439, %v1309
    %v1579 = vsel %vm1489, %v1440, %v1310
    %v1580 = vsel %vm1488, %v1441, %v1311
    %v1581 = vsel %vm1489, %v1442, %v1312
    %v1582 = vsel %vm1488, %v1443, %v1313
    %v1583 = vsel %vm1489, %v1444, %v1314
    %v1584 = vsel %vm1488, %v1445, %v1315
    %v1585 = vsel %vm1489, %v1446, %v1316
    %v1586 = vsel %vm1488, %v1447, %v1317
    %v1587 = vsel %vm1489, %v1448, %v1318
    %v1588 = vsel %vm1488, %v1449, %v1319
    %v1589 = vsel %vm1489, %v1450, %v1320
    %v1590 = vsel %vm1488, %v1451, %v1321
    %v1591 = vsel %vm1489, %v1452, %v1322
    %v1592 = vsel %vm1488, %v1453, %v1323
    %v1593 = vsel %vm1489, %v1454, %v1324
    %v1594 = vsel %vm1488, %v1455, %v1325
    %v1595 = vsel %vm1489, %v1456, %v1326
    %v1596 = vsel %vm1488, %v1457, %v1327
    %v1597 = vsel %vm1489, %v1458, %v1328
    %v1598 = vsel %vm1488, %v1459, %v1329
    %v1599 = vsel %vm1489, %v1460, %v1330
    %v1600 = vsel %vm1488, %v1461, %v1331
    %v1601 = vsel %vm1489, %v1462, %v1332
    %v1602 = vsel %vm1488, %v1463, %v1333
    %v1603 = vsel %vm1489, %v1464, %v1334
    %v1604 = vsel %vm1488, %v1465, %v1335
    %v1605 = vsel %vm1489, %v1466, %v1336
    %v1606 = vsel %vm1488, %v1467, %v1337
    %v1607 = vsel %vm1489, %v1468, %v1338
    %v1608 = vsel %vm1488, %v1469, %v1339
    %v1609 = vsel %vm1489, %v1470, %v1340
    %v1610 = vsel %vm1488, %v1471, %v1341
    %v1611 = vsel %vm1489, %v1472, %v1342
    %v1612 = vsel %vm1488, %v1473, %v1343
    %v1613 = vsel %vm1489, %v1474, %v1344
    %v1614 = vsel %vm1488, %v1475, %v1345
    %v1615 = vsel %vm1489, %v1476, %v1346
    %v1616 = vsel %vm1488, %v1477, %v1347
    %v1617 = vsel %vm1489, %v1478, %v1348
    %1618 = vst [vmem:[%s4] sm:$0xff] %v1490
    %1619 = vst [vmem:[%s4 + $0x8] sm:$0xff] %v1491
    %1620 = vst [vmem:[%s4 + $0x10] sm:$0xff] %v1492
    %1621 = vst [vmem:[%s4 + $0x18] sm:$0xff] %v1493
    %1622 = vst [vmem:[%s4 + $0x20] sm:$0xff] %v1494
    %1623 = vst [vmem:[%s4 + $0x28] sm:$0xff] %v1495
    %1624 = vst [vmem:[%s4 + $0x30] sm:$0xff] %v1496
    %1625 = vst [vmem:[%s4 + $0x38] sm:$0xff] %v1497
    %1626 = vst [vmem:[%s4 + $0x40] sm:$0xff] %v1498
    %1627 = vst [vmem:[%s4 + $0x48] sm:$0xff] %v1499
    %1628 = vst [vmem:[%s4 + $0x50] sm:$0xff] %v1500
    %1629 = vst [vmem:[%s4 + $0x58] sm:$0xff] %v1501
    %1630 = vst [vmem:[%s4 + $0x60] sm:$0xff] %v1502
    %1631 = vst [vmem:[%s4 + $0x68] sm:$0xff] %v1503
    %1632 = vst [vmem:[%s4 + $0x70] sm:$0xff] %v1504
    %1633 = vst [vmem:[%s4 + $0x78] sm:$0xff] %v1505
    %1634 = vst [vmem:[%s4 + $0x80] sm:$0xff] %v1506
    %1635 = vst [vmem:[%s4 + $0x88] sm:$0xff] %v1507
    %1636 = vst [vmem:[%s4 + $0x90] sm:$0xff] %v1508
    %1637 = vst [vmem:[%s4 + $0x98] sm:$0xff] %v1509
    %1638 = vst [vmem:[%s4 + $0xa0] sm:$0xff] %v1510
    %1639 = vst [vmem:[%s4 + $0xa8] sm:$0xff] %v1511
    %1640 = vst [vmem:[%s4 + $0xb0] sm:$0xff] %v1512
    %1641 = vst [vmem:[%s4 + $0xb8] sm:$0xff] %v1513
    %1642 = vst [vmem:[%s4 + $0xc0] sm:$0xff] %v1514
    %1643 = vst [vmem:[%s4 + $0xc8] sm:$0xff] %v1515
    %1644 = vst [vmem:[%s4 + $0xd0] sm:$0xff] %v1516
    %1645 = vst [vmem:[%s4 + $0xd8] sm:$0xff] %v1517
    %1646 = vst [vmem:[%s4 + $0xe0] sm:$0xff] %v1518
    %1647 = vst [vmem:[%s4 + $0xe8] sm:$0xff] %v1519
    %1648 = vst [vmem:[%s4 + $0xf0] sm:$0xff] %v1520
    %1649 = vst [vmem:[%s4 + $0xf8] sm:$0xff] %v1521
    %1650 = vst [vmem:[%s4 + $0x100] sm:$0xff] %v1522
    %1651 = vst [vmem:[%s4 + $0x108] sm:$0xff] %v1523
    %1652 = vst [vmem:[%s4 + $0x110] sm:$0xff] %v1524
    %1653 = vst [vmem:[%s4 + $0x118] sm:$0xff] %v1525
    %1654 = vst [vmem:[%s4 + $0x120] sm:$0xff] %v1526
    %1655 = vst [vmem:[%s4 + $0x128] sm:$0xff] %v1527
    %1656 = vst [vmem:[%s4 + $0x130] sm:$0xff] %v1528
    %1657 = vst [vmem:[%s4 + $0x138] sm:$0xff] %v1529
    %1658 = vst [vmem:[%s4 + $0x140] sm:$0xff] %v1530
    %1659 = vst [vmem:[%s4 + $0x148] sm:$0xff] %v1531
    %1660 = vst [vmem:[%s4 + $0x150] sm:$0xff] %v1532
    %1661 = vst [vmem:[%s4 + $0x158] sm:$0xff] %v1533
    %1662 = vst [vmem:[%s4 + $0x160] sm:$0xff] %v1534
    %1663 = vst [vmem:[%s4 + $0x168] sm:$0xff] %v1535
    %1664 = vst [vmem:[%s4 + $0x170] sm:$0xff] %v1536
    %1665 = vst [vmem:[%s4 + $0x178] sm:$0xff] %v1537
    %1666 = vst [vmem:[%s4 + $0x180] sm:$0xff] %v1538
    %1667 = vst [vmem:[%s4 + $0x188] sm:$0xff] %v1539
    %1668 = vst [vmem:[%s4 + $0x190] sm:$0xff] %v1540
    %1669 = vst [vmem:[%s4 + $0x198] sm:$0xff] %v1541
    %1670 = vst [vmem:[%s4 + $0x1a0] sm:$0xff] %v1542
    %1671 = vst [vmem:[%s4 + $0x1a8] sm:$0xff] %v1543
    %1672 = vst [vmem:[%s4 + $0x1b0] sm:$0xff] %v1544
    %1673 = vst [vmem:[%s4 + $0x1b8] sm:$0xff] %v1545
    %1674 = vst [vmem:[%s4 + $0x1c0] sm:$0xff] %v1546
    %1675 = vst [vmem:[%s4 + $0x1c8] sm:$0xff] %v1547
    %1676 = vst [vmem:[%s4 + $0x1d0] sm:$0xff] %v1548
    %1677 = vst [vmem:[%s4 + $0x1d8] sm:$0xff] %v1549
    %1678 = vst [vmem:[%s4 + $0x1e0] sm:$0xff] %v1550
    %1679 = vst [vmem:[%s4 + $0x1e8] sm:$0xff] %v1551
    %1680 = vst [vmem:[%s4 + $0x1f0] sm:$0xff] %v1552
    %1681 = vst [vmem:[%s4 + $0x1f8] sm:$0xff] %v1553
    %1682 = vst [vmem:[%s4 + $0x200] sm:$0xff] %v1554
    %1683 = vst [vmem:[%s4 + $0x208] sm:$0xff] %v1555
    %1684 = vst [vmem:[%s4 + $0x210] sm:$0xff] %v1556
    %1685 = vst [vmem:[%s4 + $0x218] sm:$0xff] %v1557
    %1686 = vst [vmem:[%s4 + $0x220] sm:$0xff] %v1558
    %1687 = vst [vmem:[%s4 + $0x228] sm:$0xff] %v1559
    %1688 = vst [vmem:[%s4 + $0x230] sm:$0xff] %v1560
    %1689 = vst [vmem:[%s4 + $0x238] sm:$0xff] %v1561
    %1690 = vst [vmem:[%s4 + $0x240] sm:$0xff] %v1562
    %1691 = vst [vmem:[%s4 + $0x248] sm:$0xff] %v1563
    %1692 = vst [vmem:[%s4 + $0x250] sm:$0xff] %v1564
    %1693 = vst [vmem:[%s4 + $0x258] sm:$0xff] %v1565
    %1694 = vst [vmem:[%s4 + $0x260] sm:$0xff] %v1566
    %1695 = vst [vmem:[%s4 + $0x268] sm:$0xff] %v1567
    %1696 = vst [vmem:[%s4 + $0x270] sm:$0xff] %v1568
    %1697 = vst [vmem:[%s4 + $0x278] sm:$0xff] %v1569
    %1698 = vst [vmem:[%s4 + $0x280] sm:$0xff] %v1570
    %1699 = vst [vmem:[%s4 + $0x288] sm:$0xff] %v1571
    %1700 = vst [vmem:[%s4 + $0x290] sm:$0xff] %v1572
    %1701 = vst [vmem:[%s4 + $0x298] sm:$0xff] %v1573
    %1702 = vst [vmem:[%s4 + $0x2a0] sm:$0xff] %v1574
    %1703 = vst [vmem:[%s4 + $0x2a8] sm:$0xff] %v1575
    %1704 = vst [vmem:[%s4 + $0x2b0] sm:$0xff] %v1576
    %1705 = vst [vmem:[%s4 + $0x2b8] sm:$0xff] %v1577
    %1706 = vst [vmem:[%s4 + $0x2c0] sm:$0xff] %v1578
    %1707 = vst [vmem:[%s4 + $0x2c8] sm:$0xff] %v1579
    %1708 = vst [vmem:[%s4 + $0x2d0] sm:$0xff] %v1580
    %1709 = vst [vmem:[%s4 + $0x2d8] sm:$0xff] %v1581
    %1710 = vst [vmem:[%s4 + $0x2e0] sm:$0xff] %v1582
    %1711 = vst [vmem:[%s4 + $0x2e8] sm:$0xff] %v1583
    %1712 = vst [vmem:[%s4 + $0x2f0] sm:$0xff] %v1584
    %1713 = vst [vmem:[%s4 + $0x2f8] sm:$0xff] %v1585
    %1714 = vst [vmem:[%s4 + $0x300] sm:$0xff] %v1586
    %1715 = vst [vmem:[%s4 + $0x308] sm:$0xff] %v1587
    %1716 = vst [vmem:[%s4 + $0x310] sm:$0xff] %v1588
    %1717 = vst [vmem:[%s4 + $0x318] sm:$0xff] %v1589
    %1718 = vst [vmem:[%s4 + $0x320] sm:$0xff] %v1590
    %1719 = vst [vmem:[%s4 + $0x328] sm:$0xff] %v1591
    %1720 = vst [vmem:[%s4 + $0x330] sm:$0xff] %v1592
    %1721 = vst [vmem:[%s4 + $0x338] sm:$0xff] %v1593
    %1722 = vst [vmem:[%s4 + $0x340] sm:$0xff] %v1594
    %1723 = vst [vmem:[%s4 + $0x348] sm:$0xff] %v1595
    %1724 = vst [vmem:[%s4 + $0x350] sm:$0xff] %v1596
    %1725 = vst [vmem:[%s4 + $0x358] sm:$0xff] %v1597
    %1726 = vst [vmem:[%s4 + $0x360] sm:$0xff] %v1598
    %1727 = vst [vmem:[%s4 + $0x368] sm:$0xff] %v1599
    %1728 = vst [vmem:[%s4 + $0x370] sm:$0xff] %v1600
    %1729 = vst [vmem:[%s4 + $0x378] sm:$0xff] %v1601
    %1730 = vst [vmem:[%s4 + $0x380] sm:$0xff] %v1602
    %1731 = vst [vmem:[%s4 + $0x388] sm:$0xff] %v1603
    %1732 = vst [vmem:[%s4 + $0x390] sm:$0xff] %v1604
    %1733 = vst [vmem:[%s4 + $0x398] sm:$0xff] %v1605
    %1734 = vst [vmem:[%s4 + $0x3a0] sm:$0xff] %v1606
    %1735 = vst [vmem:[%s4 + $0x3a8] sm:$0xff] %v1607
    %1736 = vst [vmem:[%s4 + $0x3b0] sm:$0xff] %v1608
    %1737 = vst [vmem:[%s4 + $0x3b8] sm:$0xff] %v1609
    %1738 = vst [vmem:[%s4 + $0x3c0] sm:$0xff] %v1610
    %1739 = vst [vmem:[%s4 + $0x3c8] sm:$0xff] %v1611
    %1740 = vst [vmem:[%s4 + $0x3d0] sm:$0xff] %v1612
    %1741 = vst [vmem:[%s4 + $0x3d8] sm:$0xff] %v1613
    %1742 = vst [vmem:[%s4 + $0x3e0] sm:$0xff] %v1614
    %1743 = vst [vmem:[%s4 + $0x3e8] sm:$0xff] %v1615
    %1744 = vst [vmem:[%s4 + $0x3f0] sm:$0xff] %v1616
    %1745 = vst [vmem:[%s4 + $0x3f8] sm:$0xff] %v1617
  $region25: #{bottleneck_forward.3} parent=0 // pred_fallthru
    _
  // Predicated region
  $region26: #{bottleneck_forward.3} parent=0 // pred_check
    _
  $region27: #{bottleneck_forward.3} parent=0 // pred_check_branch
    %1747 = sbr.rel (0) target = $region29
  $region28: #{bottleneck_forward.3} parent=0 // pred_region
    _
  $region29: #{bottleneck_forward.3} parent=0 // pred_fallthru
    _
  // Predicated region
  $region30: #{bottleneck_forward.3} parent=0 // pred_check
    _
  $region31: #{bottleneck_forward.3} parent=0 // pred_check_branch
    %1749 = sbr.rel (0) target = $region33
  $region32: #{bottleneck_forward.3} parent=0 // pred_region
    _
  $region33: #{bottleneck_forward.3} parent=0 // pred_fallthru
    _

// kernel: bottleneck_forward.4
$region0: #{bottleneck_forward.4}
  #allocation0 [shape = 'u32[]', space=smem, size = 0x4, offset = 0x4, fixed_abs, tag = 'smem constant byte address 0x4 - core index']
  #allocation1 [shape = 'u32[144,128]{1,0:T(1,128)}', space=vmem, size = 0x12000, scoped, tag = 'internal scratch']
  %s0 = inlined_call_operand.vmem [shape: f32[2,20,20,128], index: 0, kind: input, shape index: {}]
  %s1 = inlined_call_operand.vmem [shape: f32[9,128,128], index: 1, kind: input, shape index: {}]
  %s2 = inlined_call_operand.vmem [shape: f32[1,128], index: 2, kind: input, shape index: {}]
  %s3 = inlined_call_operand.vmem [shape: f32[2,16,16,128], index: 3, kind: output, shape index: {}]
  %s4 = sld [smem:[#allocation0]]
  $region45: #{bottleneck_forward.4} parent=0
    _
  %s6 = ssub.s32 1, %s4
  %s7 = scalar_select 0, %s6, %s4
  loop: start=0, step=1, limit=4
  $region2: #{bottleneck_forward.4} parent=0 // loop_pre_header
    _
  $region3: #{bottleneck_forward.4} parent=0 // loop_header
    %s9 = sphi 0, %s13
    %p10 = scmp.ge.s32.totalorder %s9, 4
    %s19 = sphi 0, %s21
    %s22 = sphi 0, %s19
    %s23 = sphi 0, %s22
    %s39 = sphi 0, %s23
    %s43 = sphi 0, %s43
    %s45 = sphi 0, %s43
    %s46 = sphi 0, %s45
    %s60 = sphi 0, %s46
    %s64 = sphi 0, %s64
    %s66 = sphi 0, %s64
    %s67 = sphi 0, %s66
    %s81 = sphi 0, %s67
    %s87 = sphi 0, %s89
    %s90 = sphi 0, %s87
    %s91 = sphi 0, %s90
    %s107 = sphi 0, %s91
  $region4: #{bottleneck_forward.4} parent=0 // loop_header_branch
    %12 = sbr.rel (%p10) target = $region8
  $region5: #{bottleneck_forward.4} parent=0 // loop_body
    %s14 = ssub.s32 %s9, 1
    %s15 = ssub.s32 %s9, 2
    %s16 = sadd.s32 %s9, 1
    %s17 = ssub.s32 %s9, %s16
    %p18 = scmp.eq.s32.totalorder %s17, 0
    %s20 = sadd.s32 %s19, 1
    %s21 = scalar_select %p18, %s19, %s20
    %p24 = pneg %p18
    %p25 = scmp.eq.s32.totalorder %s9, 1
    %p26 = por %p24, %p25
    %p27 = scmp.ne.s32.totalorder %s19, %s22
    %p28 = scmp.eq.s32.totalorder %s9, 0
    %p29 = por %p27, %p28
    %p30 = scmp.ne.s32.totalorder %s19, %s22
    %p31 = scmp.eq.s32.totalorder %s14, 1
    %p32 = por %p30, %p31
    %p33 = scmp.ne.s32.totalorder %s22, %s23
    %p34 = scmp.eq.s32.totalorder %s14, 0
    %p35 = por %p33, %p34
    %p36 = scmp.ne.s32.totalorder %s22, %s23
    %p37 = scmp.eq.s32.totalorder %s15, 1
    %p38 = por %p36, %p37
    %p40 = scmp.ne.s32.totalorder %s23, %s39
    %p41 = scmp.eq.s32.totalorder %s15, 0
    %p42 = por %p40, %p41
    %s44 = sadd.s32 %s43, 1
    %p47 = scmp.eq.s32.totalorder %s9, 1
    %p48 = scmp.ne.s32.totalorder %s43, %s45
    %p49 = scmp.eq.s32.totalorder %s9, 0
    %p50 = por %p48, %p49
    %p51 = scmp.ne.s32.totalorder %s43, %s45
    %p52 = scmp.eq.s32.totalorder %s14, 1
    %p53 = por %p51, %p52
    %p54 = scmp.ne.s32.totalorder %s45, %s46
    %p55 = scmp.eq.s32.totalorder %s14, 0
    %p56 = por %p54, %p55
    %p57 = scmp.ne.s32.totalorder %s45, %s46
    %p58 = scmp.eq.s32.totalorder %s15, 1
    %p59 = por %p57, %p58
    %p61 = scmp.ne.s32.totalorder %s46, %s60
    %p62 = scmp.eq.s32.totalorder %s15, 0
    %p63 = por %p61, %p62
    %s65 = sadd.s32 %s64, 1
    %p68 = scmp.eq.s32.totalorder %s9, 1
    %p69 = scmp.ne.s32.totalorder %s64, %s66
    %p70 = scmp.eq.s32.totalorder %s9, 0
    %p71 = por %p69, %p70
    %p72 = scmp.ne.s32.totalorder %s64, %s66
    %p73 = scmp.eq.s32.totalorder %s14, 1
    %p74 = por %p72, %p73
    %p75 = scmp.ne.s32.totalorder %s66, %s67
    %p76 = scmp.eq.s32.totalorder %s14, 0
    %p77 = por %p75, %p76
    %p78 = scmp.ne.s32.totalorder %s66, %s67
    %p79 = scmp.eq.s32.totalorder %s15, 1
    %p80 = por %p78, %p79
    %p82 = scmp.ne.s32.totalorder %s67, %s81
    %p83 = scmp.eq.s32.totalorder %s15, 0
    %p84 = por %p82, %p83
    %s85 = ssub.s32 %s9, %s16
    %p86 = scmp.eq.s32.totalorder %s85, 0
    %s88 = sadd.s32 %s87, 1
    %s89 = scalar_select %p86, %s87, %s88
    %p92 = pneg %p86
    %p93 = scmp.eq.s32.totalorder %s9, 1
    %p94 = por %p92, %p93
    %p95 = scmp.ne.s32.totalorder %s87, %s90
    %p96 = scmp.eq.s32.totalorder %s9, 0
    %p97 = por %p95, %p96
    %p98 = scmp.ne.s32.totalorder %s87, %s90
    %p99 = scmp.eq.s32.totalorder %s14, 1
    %p100 = por %p98, %p99
    %p101 = scmp.ne.s32.totalorder %s90, %s91
    %p102 = scmp.eq.s32.totalorder %s14, 0
    %p103 = por %p101, %p102
    %p104 = scmp.ne.s32.totalorder %s90, %s91
    %p105 = scmp.eq.s32.totalorder %s15, 1
    %p106 = por %p104, %p105
    %p108 = scmp.ne.s32.totalorder %s91, %s107
    %p109 = scmp.eq.s32.totalorder %s15, 0
    %p110 = por %p108, %p109
    %p111 = scmp.le.s32.totalorder 1, %s9
    %p112 = scmp.lt.s32.totalorder %s9, 3
    %p113 = pnand %p111, %p112
    %p114 = pneg %p113
    // Predicated region
    $region9: #{bottleneck_forward.4} parent=5 // pred_check
      _
    $region10: #{bottleneck_forward.4} parent=5 // pred_check_branch
      %116 = sbr.rel (%p113) target = $region12
    $region11: #{bottleneck_forward.4} parent=5 // pred_region
      %s117 = ssub.s32 %s9, 1
      // Predicated region
      $region13: #{bottleneck_forward.4} parent=11 // pred_check
        %p118 = pneg %p56
      $region14: #{bottleneck_forward.4} parent=11 // pred_check_branch
        %120 = sbr.rel (%p118) target = $region16
      $region15: #{bottleneck_forward.4} parent=11 // pred_region
        _
      $region16: #{bottleneck_forward.4} parent=11 // pred_fallthru
        _
      // Predicated region
      $region17: #{bottleneck_forward.4} parent=11 // pred_check
        %p121 = pneg %p77
      $region18: #{bottleneck_forward.4} parent=11 // pred_check_branch
        %123 = sbr.rel (%p121) target = $region20
      $region19: #{bottleneck_forward.4} parent=11 // pred_region
        _
      $region20: #{bottleneck_forward.4} parent=11 // pred_fallthru
        _
    $region12: #{bottleneck_forward.4} parent=5 // pred_fallthru
      _
    %p124 = scmp.lt.s32.totalorder %s9, 2
    // Predicated region
    $region21: #{bottleneck_forward.4} parent=5 // pred_check
      %p125 = pneg %p124
    $region22: #{bottleneck_forward.4} parent=5 // pred_check_branch
      %127 = sbr.rel (%p125) target = $region24
    $region23: #{bottleneck_forward.4} parent=5 // pred_region
      // Predicated region
      $region25: #{bottleneck_forward.4} parent=23 // pred_check
        %p128 = pneg %p29
      $region26: #{bottleneck_forward.4} parent=23 // pred_check_branch
        %130 = sbr.rel (%p128) target = $region28
      $region27: #{bottleneck_forward.4} parent=23 // pred_region
        %p131 = scmp.lt.s32.totalorder %s9, 1
        %s132 = scalar_select %p131, %s9, 1
        %s133 = smul.addr %s132, 60
        %s134 = smul.addr %s133, 8
        %s135 = scalar_lea.vmem %s0, %s134
      $region28: #{bottleneck_forward.4} parent=23 // pred_fallthru
        _
    $region24: #{bottleneck_forward.4} parent=5 // pred_fallthru
      _
    %p136 = scmp.le.s32.totalorder 1, %s9
    %p137 = scmp.lt.s32.totalorder %s9, 3
    %p138 = pnand %p136, %p137
    %p139 = pneg %p138
    // Predicated region
    $region29: #{bottleneck_forward.4} parent=5 // pred_check
      _
    $region30: #{bottleneck_forward.4} parent=5 // pred_check_branch
      %141 = sbr.rel (%p138) target = $region32
    $region31: #{bottleneck_forward.4} parent=5 // pred_region
      %s142 = ssub.s32 %s9, 1
      %p143 = scmp.lt.s32.totalorder %s14, 1
      %s144 = scalar_select %p143, %s14, 1
      %s145 = smul.addr %s144, 60
      %s146 = smul.addr %s145, 8
      %s147 = scalar_lea.vmem %s0, %s146
      %p148 = pneg %p35
      %p149 = pneg %p32
      %p150 = pneg %p56
      %p151 = pneg %p53
      %p152 = pneg %p77
      %p153 = pneg %p74
      %p154 = pneg %p103
      %p155 = pneg %p100
      %p156 = scmp.lt.s32.totalorder %s14, 1
      %s157 = scalar_select %p156, %s14, 1
      %s158 = smul.addr %s157, 32
      %s159 = smul.addr %s158, 8
      %s160 = scalar_lea.vmem %s3, %s159
      %p161 = scmp.lt.s32.totalorder %s14, 1
      %s162 = scalar_select %p161, %s14, 1
      %s163 = smul.addr %s162, 60
      %s164 = smul.addr %s163, 8
      %s165 = scalar_lea.vmem %s0, %s164
      %p166 = scmp.lt.s32.totalorder %s14, 1
      %s167 = scalar_select %p166, %s14, 1
      %s168 = smul.addr %s167, 32
      %s169 = smul.addr %s168, 8
      %s170 = scalar_lea.vmem %s3, %s169
      %v171 = vld [vmem:[%s165] sm:$0xff]
      %v172 = vld [vmem:[%s165 + $0x8] sm:$0xff]
      %v173 = vld [vmem:[%s165 + $0x10] sm:$0xf]
      %v174 = vld [vmem:[%s165 + $0x18] sm:$0xff]
      %v175 = vld [vmem:[%s165 + $0x20] sm:$0xff]
      %v176 = vld [vmem:[%s165 + $0x28] sm:$0xf]
      %v177 = vld [vmem:[%s165 + $0x30] sm:$0xff]
      %v178 = vld [vmem:[%s165 + $0x38] sm:$0xff]
      %v179 = vld [vmem:[%s165 + $0x40] sm:$0xf]
      %v180 = vld [vmem:[%s165 + $0x48] sm:$0xff]
      %v181 = vld [vmem:[%s165 + $0x50] sm:$0xff]
      %v182 = vld [vmem:[%s165 + $0x58] sm:$0xf]
      %v183 = vld [vmem:[%s165 + $0x60] sm:$0xff]
      %v184 = vld [vmem:[%s165 + $0x68] sm:$0xff]
      %v185 = vld [vmem:[%s165 + $0x70] sm:$0xf]
      %v186 = vld [vmem:[%s165 + $0x78] sm:$0xff]
      %v187 = vld [vmem:[%s165 + $0x80] sm:$0xff]
      %v188 = vld [vmem:[%s165 + $0x88] sm:$0xf]
      %v189 = vld [vmem:[%s165 + $0x90] sm:$0xff]
      %v190 = vld [vmem:[%s165 + $0x98] sm:$0xff]
      %v191 = vld [vmem:[%s165 + $0xa0] sm:$0xf]
      %v192 = vld [vmem:[%s165 + $0xa8] sm:$0xff]
      %v193 = vld [vmem:[%s165 + $0xb0] sm:$0xff]
      %v194 = vld [vmem:[%s165 + $0xb8] sm:$0xf]
      %v195 = vld [vmem:[%s165 + $0xc0] sm:$0xff]
      %v196 = vld [vmem:[%s165 + $0xc8] sm:$0xff]
      %v197 = vld [vmem:[%s165 + $0xd0] sm:$0xf]
      %v198 = vld [vmem:[%s165 + $0xd8] sm:$0xff]
      %v199 = vld [vmem:[%s165 + $0xe0] sm:$0xff]
      %v200 = vld [vmem:[%s165 + $0xe8] sm:$0xf]
      %v201 = vld [vmem:[%s165 + $0xf0] sm:$0xff]
      %v202 = vld [vmem:[%s165 + $0xf8] sm:$0xff]
      %v203 = vld [vmem:[%s165 + $0x100] sm:$0xf]
      %v204 = vld [vmem:[%s165 + $0x108] sm:$0xff]
      %v205 = vld [vmem:[%s165 + $0x110] sm:$0xff]
      %v206 = vld [vmem:[%s165 + $0x118] sm:$0xf]
      %v207 = vld [vmem:[%s165 + $0x120] sm:$0xff]
      %v208 = vld [vmem:[%s165 + $0x128] sm:$0xff]
      %v209 = vld [vmem:[%s165 + $0x130] sm:$0xf]
      %v210 = vld [vmem:[%s165 + $0x138] sm:$0xff]
      %v211 = vld [vmem:[%s165 + $0x140] sm:$0xff]
      %v212 = vld [vmem:[%s165 + $0x148] sm:$0xf]
      %v213 = vld [vmem:[%s165 + $0x150] sm:$0xff]
      %v214 = vld [vmem:[%s165 + $0x158] sm:$0xff]
      %v215 = vld [vmem:[%s165 + $0x160] sm:$0xf]
      %v216 = vld [vmem:[%s165 + $0x168] sm:$0xff]
      %v217 = vld [vmem:[%s165 + $0x170] sm:$0xff]
      %v218 = vld [vmem:[%s165 + $0x178] sm:$0xf]
      %v219 = vld [vmem:[%s165 + $0x180] sm:$0xff]
      %v220 = vld [vmem:[%s165 + $0x188] sm:$0xff]
      %v221 = vld [vmem:[%s165 + $0x190] sm:$0xf]
      %v222 = vld [vmem:[%s165 + $0x198] sm:$0xff]
      %v223 = vld [vmem:[%s165 + $0x1a0] sm:$0xff]
      %v224 = vld [vmem:[%s165 + $0x1a8] sm:$0xf]
      %v225 = vld [vmem:[%s165 + $0x1b0] sm:$0xff]
      %v226 = vld [vmem:[%s165 + $0x1b8] sm:$0xff]
      %v227 = vld [vmem:[%s165 + $0x1c0] sm:$0xf]
      %v228 = vld [vmem:[%s165 + $0x1c8] sm:$0xff]
      %v229 = vld [vmem:[%s165 + $0x1d0] sm:$0xff]
      %v230 = vld [vmem:[%s165 + $0x1d8] sm:$0xf]
      %v231 = vld [vmem:[%s1] sm:$0xff]
      %v232 = vld [vmem:[%s1 + $0x8] sm:$0xff]
      %v233 = vld [vmem:[%s1 + $0x10] sm:$0xff]
      %v234 = vld [vmem:[%s1 + $0x18] sm:$0xff]
      %v235 = vld [vmem:[%s1 + $0x20] sm:$0xff]
      %v236 = vld [vmem:[%s1 + $0x28] sm:$0xff]
      %v237 = vld [vmem:[%s1 + $0x30] sm:$0xff]
      %v238 = vld [vmem:[%s1 + $0x38] sm:$0xff]
      %v239 = vld [vmem:[%s1 + $0x40] sm:$0xff]
      %v240 = vld [vmem:[%s1 + $0x48] sm:$0xff]
      %v241 = vld [vmem:[%s1 + $0x50] sm:$0xff]
      %v242 = vld [vmem:[%s1 + $0x58] sm:$0xff]
      %v243 = vld [vmem:[%s1 + $0x60] sm:$0xff]
      %v244 = vld [vmem:[%s1 + $0x68] sm:$0xff]
      %v245 = vld [vmem:[%s1 + $0x70] sm:$0xff]
      %v246 = vld [vmem:[%s1 + $0x78] sm:$0xff]
      %vm295 = vcmask 1045504
      %v296 = vrot.slane %v171, 2
      %v297 = vrot.slane %v172, 2
      %v298 = vsel %vm295, %v296, %v297
      %v299 = vrot.slane %v173, 2
      %v300 = vsel %vm295, %v297, %v299
      %v301 = vrot.slane %v174, 2
      %v302 = vrot.slane %v175, 2
      %v303 = vsel %vm295, %v301, %v302
      %v304 = vrot.slane %v176, 2
      %v305 = vsel %vm295, %v302, %v304
      %v306 = vrot.slane %v177, 2
      %v307 = vrot.slane %v178, 2
      %v308 = vsel %vm295, %v306, %v307
      %v309 = vrot.slane %v179, 2
      %v310 = vsel %vm295, %v307, %v309
      %v311 = vrot.slane %v180, 2
      %v312 = vrot.slane %v181, 2
      %v313 = vsel %vm295, %v311, %v312
      %v314 = vrot.slane %v182, 2
      %v315 = vsel %vm295, %v312, %v314
      %v316 = vrot.slane %v183, 2
      %v317 = vrot.slane %v184, 2
      %v318 = vsel %vm295, %v316, %v317
      %v319 = vrot.slane %v185, 2
      %v320 = vsel %vm295, %v317, %v319
      %v321 = vrot.slane %v186, 2
      %v322 = vrot.slane %v187, 2
      %v323 = vsel %vm295, %v321, %v322
      %v324 = vrot.slane %v188, 2
      %v325 = vsel %vm295, %v322, %v324
      %v326 = vrot.slane %v189, 2
      %v327 = vrot.slane %v190, 2
      %v328 = vsel %vm295, %v326, %v327
      %v329 = vrot.slane %v191, 2
      %v330 = vsel %vm295, %v327, %v329
      %v331 = vrot.slane %v192, 2
      %v332 = vrot.slane %v193, 2
      %v333 = vsel %vm295, %v331, %v332
      %v334 = vrot.slane %v194, 2
      %v335 = vsel %vm295, %v332, %v334
      %v336 = vrot.slane %v195, 2
      %v337 = vrot.slane %v196, 2
      %v338 = vsel %vm295, %v336, %v337
      %v339 = vrot.slane %v197, 2
      %v340 = vsel %vm295, %v337, %v339
      %v341 = vrot.slane %v198, 2
      %v342 = vrot.slane %v199, 2
      %v343 = vsel %vm295, %v341, %v342
      %v344 = vrot.slane %v200, 2
      %v345 = vsel %vm295, %v342, %v344
      %v346 = vrot.slane %v201, 2
      %v347 = vrot.slane %v202, 2
      %v348 = vsel %vm295, %v346, %v347
      %v349 = vrot.slane %v203, 2
      %v350 = vsel %vm295, %v347, %v349
      %v351 = vrot.slane %v204, 2
      %v352 = vrot.slane %v205, 2
      %v353 = vsel %vm295, %v351, %v352
      %v354 = vrot.slane %v206, 2
      %v355 = vsel %vm295, %v352, %v354
      %v356 = vrot.slane %v207, 2
      %v357 = vrot.slane %v208, 2
      %v358 = vsel %vm295, %v356, %v357
      %v359 = vrot.slane %v209, 2
      %v360 = vsel %vm295, %v357, %v359
      %v361 = vrot.slane %v210, 2
      %v362 = vrot.slane %v211, 2
      %v363 = vsel %vm295, %v361, %v362
      %v364 = vrot.slane %v212, 2
      %v365 = vsel %vm295, %v362, %v364
      %v366 = vrot.slane %v213, 2
      %v367 = vrot.slane %v214, 2
      %v368 = vsel %vm295, %v366, %v367
      %v369 = vrot.slane %v215, 2
      %v370 = vsel %vm295, %v367, %v369
      %v371 = vrot.slane %v216, 2
      %v372 = vrot.slane %v217, 2
      %v373 = vsel %vm295, %v371, %v372
      %v374 = vrot.slane %v218, 2
      %v375 = vsel %vm295, %v372, %v374
      %s408 = scalar_lea.vmem %s1, 128
      %v409 = vld [vmem:[%s408] sm:$0xff]
      %v410 = vld [vmem:[%s408 + $0x8] sm:$0xff]
      %v411 = vld [vmem:[%s408 + $0x10] sm:$0xff]
      %v412 = vld [vmem:[%s408 + $0x18] sm:$0xff]
      %v413 = vld [vmem:[%s408 + $0x20] sm:$0xff]
      %v414 = vld [vmem:[%s408 + $0x28] sm:$0xff]
      %v415 = vld [vmem:[%s408 + $0x30] sm:$0xff]
      %v416 = vld [vmem:[%s408 + $0x38] sm:$0xff]
      %v417 = vld [vmem:[%s408 + $0x40] sm:$0xff]
      %v418 = vld [vmem:[%s408 + $0x48] sm:$0xff]
      %v419 = vld [vmem:[%s408 + $0x50] sm:$0xff]
      %v420 = vld [vmem:[%s408 + $0x58] sm:$0xff]
      %v421 = vld [vmem:[%s408 + $0x60] sm:$0xff]
      %v422 = vld [vmem:[%s408 + $0x68] sm:$0xff]
      %v423 = vld [vmem:[%s408 + $0x70] sm:$0xff]
      %v424 = vld [vmem:[%s408 + $0x78] sm:$0xff]
      %425 = vmatprep.subr.mxu0 0.0
      %426 = vmatpush1.msra.mxu0 %v409
      %427 = vmatprep.subr.mxu0 0.0
      %428 = vmatpush1.msra.mxu0 %v410
      %429 = vmatprep.subr.mxu0 0.0
      %430 = vmatpush1.msra.mxu0 %v411
      %431 = vmatprep.subr.mxu0 0.0
      %432 = vmatpush1.msra.mxu0 %v412
      %433 = vmatprep.subr.mxu0 0.0
      %434 = vmatpush1.msra.mxu0 %v413
      %435 = vmatprep.subr.mxu0 0.0
      %436 = vmatpush1.msra.mxu0 %v414
      %437 = vmatprep.subr.mxu0 0.0
      %438 = vmatpush1.msra.mxu0 %v415
      %439 = vmatprep.subr.mxu0 0.0
      %440 = vmatpush1.msra.mxu0 %v416
      %441 = vmatprep.subr.mxu0 0.0
      %442 = vmatpush1.msra.mxu0 %v417
      %443 = vmatprep.subr.mxu0 0.0
      %444 = vmatpush1.msra.mxu0 %v418
      %445 = vmatprep.subr.mxu0 0.0
      %446 = vmatpush1.msra.mxu0 %v419
      %447 = vmatprep.subr.mxu0 0.0
      %448 = vmatpush1.msra.mxu0 %v420
      %449 = vmatprep.subr.mxu0 0.0
      %450 = vmatpush1.msra.mxu0 %v421
      %451 = vmatprep.subr.mxu0 0.0
      %452 = vmatpush1.msra.mxu0 %v422
      %453 = vmatprep.subr.mxu0 0.0
      %454 = vmatpush1.msra.mxu0 %v423
      %455 = vmatprep.subr.mxu0 0.0
      %456 = vmatpush1.msra.mxu0 %v424
      %457 = vmatprep.subr.mxu0 0.0
      %458 = vmatpush1.msra.mxu0 0.0
      %459 = vmatprep.subr.mxu0 0.0
      %460 = vmatpush1.msra.mxu0 0.0
      %461 = vmatprep.subr.mxu0 0.0
      %462 = vmatpush1.msra.mxu0 0.0
      %463 = vmatprep.subr.mxu0 0.0
      %464 = vmatpush1.msra.mxu0 0.0
      %465 = vmatprep.subr.mxu0 0.0
      %466 = vmatpush1.msra.mxu0 0.0
      %467 = vmatprep.subr.mxu0 0.0
      %468 = vmatpush1.msra.mxu0 0.0
      %469 = vmatprep.subr.mxu0 0.0
      %470 = vmatpush1.msra.mxu0 0.0
      %471 = vmatprep.subr.mxu0 0.0
      %472 = vmatpush1.msra.mxu0 0.0
      %473 = vmatprep.subr.mxu0 0.0
      %474 = vmatpush1.msra.mxu0 0.0
      %475 = vmatprep.subr.mxu0 0.0
      %476 = vmatpush1.msra.mxu0 0.0
      %477 = vmatprep.subr.mxu0 0.0
      %478 = vmatpush1.msra.mxu0 0.0
      %479 = vmatprep.subr.mxu0 0.0
      %480 = vmatpush1.msra.mxu0 0.0
      %481 = vmatprep.subr.mxu0 0.0
      %482 = vmatpush1.msra.mxu0 0.0
      %483 = vmatprep.subr.mxu0 0.0
      %484 = vmatpush1.msra.mxu0 0.0
      %485 = vmatprep.subr.mxu0 0.0
      %486 = vmatpush1.msra.mxu0 0.0
      %487 = vmatprep.subr.mxu0 0.0
      %488 = vmatpush1.msra.mxu0 0.0
      %489 = vmatprep.mubr.f32.mxu0 0.0
      %490 = vmatmul.mubr.f32.gmra.mrb[0].mxu0 %v298
      %v491 = vpop.f32.mrb[0].mxu0
      %v492 = vadd.f32 0.0, %v491
      %v493 = vpop.f32.mrb[0].mxu0
      %494 = vmatprep.mubr.f32.mxu0 0.0
      %495 = vmatmul.mubr.f32.gmra.mrb[0].mxu0 %v300
      %v496 = vpop.f32.mrb[0].mxu0
      %v497 = vadd.f32 0.0, %v496
      %v498 = vpop.f32.mrb[0].mxu0
      %499 = vmatprep.mubr.f32.mxu0 0.0
      %500 = vmatmul.mubr.f32.gmra.mrb[0].mxu0 %v303
      %v501 = vpop.f32.mrb[0].mxu0
      %v502 = vadd.f32 0.0, %v501
      %v503 = vpop.f32.mrb[0].mxu0
      %504 = vmatprep.mubr.f32.mxu0 0.0
      %505 = vmatmul.mubr.f32.gmra.mrb[0].mxu0 %v305
      %v506 = vpop.f32.mrb[0].mxu0
      %v507 = vadd.f32 0.0, %v506
      %v508 = vpop.f32.mrb[0].mxu0
      %509 = vmatprep.mubr.f32.mxu0 0.0
      %510 = vmatmul.mubr.f32.gmra.mrb[0].mxu0 %v308
      %v511 = vpop.f32.mrb[0].mxu0
      %v512 = vadd.f32 0.0, %v511
      %v513 = vpop.f32.mrb[0].mxu0
      %514 = vmatprep.mubr.f32.mxu0 0.0
      %515 = vmatmul.mubr.f32.gmra.mrb[0].mxu0 %v310
      %v516 = vpop.f32.mrb[0].mxu0
      %v517 = vadd.f32 0.0, %v516
      %v518 = vpop.f32.mrb[0].mxu0
      %519 = vmatprep.mubr.f32.mxu0 0.0
      %520 = vmatmul.mubr.f32.gmra.mrb[0].mxu0 %v313
      %v521 = vpop.f32.mrb[0].mxu0
      %v522 = vadd.f32 0.0, %v521
      %v523 = vpop.f32.mrb[0].mxu0
      %524 = vmatprep.mubr.f32.mxu0 0.0
      %525 = vmatmul.mubr.f32.gmra.mrb[0].mxu0 %v315
      %v526 = vpop.f32.mrb[0].mxu0
      %v527 = vadd.f32 0.0, %v526
      %v528 = vpop.f32.mrb[0].mxu0
      %529 = vmatprep.mubr.f32.mxu0 0.0
      %530 = vmatmul.mubr.f32.gmra.mrb[0].mxu0 %v318
      %v531 = vpop.f32.mrb[0].mxu0
      %v532 = vadd.f32 0.0, %v531
      %v533 = vpop.f32.mrb[0].mxu0
      %534 = vmatprep.mubr.f32.mxu0 0.0
      %535 = vmatmul.mubr.f32.gmra.mrb[0].mxu0 %v320
      %v536 = vpop.f32.mrb[0].mxu0
      %v537 = vadd.f32 0.0, %v536
      %v538 = vpop.f32.mrb[0].mxu0
      %539 = vmatprep.mubr.f32.mxu0 0.0
      %540 = vmatmul.mubr.f32.gmra.mrb[0].mxu0 %v323
      %v541 = vpop.f32.mrb[0].mxu0
      %v542 = vadd.f32 0.0, %v541
      %v543 = vpop.f32.mrb[0].mxu0
      %544 = vmatprep.mubr.f32.mxu0 0.0
      %545 = vmatmul.mubr.f32.gmra.mrb[0].mxu0 %v325
      %v546 = vpop.f32.mrb[0].mxu0
      %v547 = vadd.f32 0.0, %v546
      %v548 = vpop.f32.mrb[0].mxu0
      %549 = vmatprep.mubr.f32.mxu0 0.0
      %550 = vmatmul.mubr.f32.gmra.mrb[0].mxu0 %v328
      %v551 = vpop.f32.mrb[0].mxu0
      %v552 = vadd.f32 0.0, %v551
      %v553 = vpop.f32.mrb[0].mxu0
      %554 = vmatprep.mubr.f32.mxu0 0.0
      %555 = vmatmul.mubr.f32.gmra.mrb[0].mxu0 %v330
      %v556 = vpop.f32.mrb[0].mxu0
      %v557 = vadd.f32 0.0, %v556
      %v558 = vpop.f32.mrb[0].mxu0
      %559 = vmatprep.mubr.f32.mxu0 0.0
      %560 = vmatmul.mubr.f32.gmra.mrb[0].mxu0 %v333
      %v561 = vpop.f32.mrb[0].mxu0
      %v562 = vadd.f32 0.0, %v561
      %v563 = vpop.f32.mrb[0].mxu0
      %564 = vmatprep.mubr.f32.mxu0 0.0
      %565 = vmatmul.mubr.f32.gmra.mrb[0].mxu0 %v335
      %v566 = vpop.f32.mrb[0].mxu0
      %v567 = vadd.f32 0.0, %v566
      %v568 = vpop.f32.mrb[0].mxu0
      %569 = vmatprep.mubr.f32.mxu0 0.0
      %570 = vmatmul.mubr.f32.gmra.mrb[0].mxu0 %v338
      %v571 = vpop.f32.mrb[0].mxu0
      %v572 = vadd.f32 0.0, %v571
      %v573 = vpop.f32.mrb[0].mxu0
      %574 = vmatprep.mubr.f32.mxu0 0.0
      %575 = vmatmul.mubr.f32.gmra.mrb[0].mxu0 %v340
      %v576 = vpop.f32.mrb[0].mxu0
      %v577 = vadd.f32 0.0, %v576
      %v578 = vpop.f32.mrb[0].mxu0
      %579 = vmatprep.mubr.f32.mxu0 0.0
      %580 = vmatmul.mubr.f32.gmra.mrb[0].mxu0 %v343
      %v581 = vpop.f32.mrb[0].mxu0
      %v582 = vadd.f32 0.0, %v581
      %v583 = vpop.f32.mrb[0].mxu0
      %584 = vmatprep.mubr.f32.mxu0 0.0
      %585 = vmatmul.mubr.f32.gmra.mrb[0].mxu0 %v345
      %v586 = vpop.f32.mrb[0].mxu0
      %v587 = vadd.f32 0.0, %v586
      %v588 = vpop.f32.mrb[0].mxu0
      %589 = vmatprep.mubr.f32.mxu0 0.0
      %590 = vmatmul.mubr.f32.gmra.mrb[0].mxu0 %v348
      %v591 = vpop.f32.mrb[0].mxu0
      %v592 = vadd.f32 0.0, %v591
      %v593 = vpop.f32.mrb[0].mxu0
      %594 = vmatprep.mubr.f32.mxu0 0.0
      %595 = vmatmul.mubr.f32.gmra.mrb[0].mxu0 %v350
      %v596 = vpop.f32.mrb[0].mxu0
      %v597 = vadd.f32 0.0, %v596
      %v598 = vpop.f32.mrb[0].mxu0
      %599 = vmatprep.mubr.f32.mxu0 0.0
      %600 = vmatmul.mubr.f32.gmra.mrb[0].mxu0 %v353
      %v601 = vpop.f32.mrb[0].mxu0
      %v602 = vadd.f32 0.0, %v601
      %v603 = vpop.f32.mrb[0].mxu0
      %604 = vmatprep.mubr.f32.mxu0 0.0
      %605 = vmatmul.mubr.f32.gmra.mrb[0].mxu0 %v355
      %v606 = vpop.f32.mrb[0].mxu0
      %v607 = vadd.f32 0.0, %v606
      %v608 = vpop.f32.mrb[0].mxu0
      %609 = vmatprep.mubr.f32.mxu0 0.0
      %610 = vmatmul.mubr.f32.gmra.mrb[0].mxu0 %v358
      %v611 = vpop.f32.mrb[0].mxu0
      %v612 = vadd.f32 0.0, %v611
      %v613 = vpop.f32.mrb[0].mxu0
      %614 = vmatprep.mubr.f32.mxu0 0.0
      %615 = vmatmul.mubr.f32.gmra.mrb[0].mxu0 %v360
      %v616 = vpop.f32.mrb[0].mxu0
      %v617 = vadd.f32 0.0, %v616
      %v618 = vpop.f32.mrb[0].mxu0
      %619 = vmatprep.mubr.f32.mxu0 0.0
      %620 = vmatmul.mubr.f32.gmra.mrb[0].mxu0 %v363
      %v621 = vpop.f32.mrb[0].mxu0
      %v622 = vadd.f32 0.0, %v621
      %v623 = vpop.f32.mrb[0].mxu0
      %624 = vmatprep.mubr.f32.mxu0 0.0
      %625 = vmatmul.mubr.f32.gmra.mrb[0].mxu0 %v365
      %v626 = vpop.f32.mrb[0].mxu0
      %v627 = vadd.f32 0.0, %v626
      %v628 = vpop.f32.mrb[0].mxu0
      %629 = vmatprep.mubr.f32.mxu0 0.0
      %630 = vmatmul.mubr.f32.gmra.mrb[0].mxu0 %v368
      %v631 = vpop.f32.mrb[0].mxu0
      %v632 = vadd.f32 0.0, %v631
      %v633 = vpop.f32.mrb[0].mxu0
      %634 = vmatprep.mubr.f32.mxu0 0.0
      %635 = vmatmul.mubr.f32.gmra.mrb[0].mxu0 %v370
      %v636 = vpop.f32.mrb[0].mxu0
      %v637 = vadd.f32 0.0, %v636
      %v638 = vpop.f32.mrb[0].mxu0
      %639 = vmatprep.mubr.f32.mxu0 0.0
      %640 = vmatmul.mubr.f32.gmra.mrb[0].mxu0 %v373
      %v641 = vpop.f32.mrb[0].mxu0
      %v642 = vadd.f32 0.0, %v641
      %v643 = vpop.f32.mrb[0].mxu0
      %644 = vmatprep.mubr.f32.mxu0 0.0
      %645 = vmatmul.mubr.f32.gmra.mrb[0].mxu0 %v375
      %v646 = vpop.f32.mrb[0].mxu0
      %v647 = vadd.f32 0.0, %v646
      %v648 = vpop.f32.mrb[0].mxu0
      %649 = vdwg.mxu0
      %650 = vmatprep.subr.mxu0 0.0
      %651 = vmatpush1.msra.mxu0 %v231
      %652 = vmatprep.subr.mxu0 0.0
      %653 = vmatpush1.msra.mxu0 %v232
      %654 = vmatprep.subr.mxu0 0.0
      %655 = vmatpush1.msra.mxu0 %v233
      %656 = vmatprep.subr.mxu0 0.0
      %657 = vmatpush1.msra.mxu0 %v234
      %658 = vmatprep.subr.mxu0 0.0
      %659 = vmatpush1.msra.mxu0 %v235
      %660 = vmatprep.subr.mxu0 0.0
      %661 = vmatpush1.msra.mxu0 %v236
      %662 = vmatprep.subr.mxu0 0.0
      %663 = vmatpush1.msra.mxu0 %v237
      %664 = vmatprep.subr.mxu0 0.0
      %665 = vmatpush1.msra.mxu0 %v238
      %666 = vmatprep.subr.mxu0 0.0
      %667 = vmatpush1.msra.mxu0 %v239
      %668 = vmatprep.subr.mxu0 0.0
      %669 = vmatpush1.msra.mxu0 %v240
      %670 = vmatprep.subr.mxu0 0.0
      %671 = vmatpush1.msra.mxu0 %v241
      %672 = vmatprep.subr.mxu0 0.0
      %673 = vmatpush1.msra.mxu0 %v242
      %674 = vmatprep.subr.mxu0 0.0
      %675 = vmatpush1.msra.mxu0 %v243
      %676 = vmatprep.subr.mxu0 0.0
      %677 = vmatpush1.msra.mxu0 %v244
      %678 = vmatprep.subr.mxu0 0.0
      %679 = vmatpush1.msra.mxu0 %v245
      %680 = vmatprep.subr.mxu0 0.0
      %681 = vmatpush1.msra.mxu0 %v246
      %682 = vmatprep.subr.mxu0 0.0
      %683 = vmatpush1.msra.mxu0 0.0
      %684 = vmatprep.subr.mxu0 0.0
      %685 = vmatpush1.msra.mxu0 0.0
      %686 = vmatprep.subr.mxu0 0.0
      %687 = vmatpush1.msra.mxu0 0.0
      %688 = vmatprep.subr.mxu0 0.0
      %689 = vmatpush1.msra.mxu0 0.0
      %690 = vmatprep.subr.mxu0 0.0
      %691 = vmatpush1.msra.mxu0 0.0
      %692 = vmatprep.subr.mxu0 0.0
      %693 = vmatpush1.msra.mxu0 0.0
      %694 = vmatprep.subr.mxu0 0.0
      %695 = vmatpush1.msra.mxu0 0.0
      %696 = vmatprep.subr.mxu0 0.0
      %697 = vmatpush1.msra.mxu0 0.0
      %698 = vmatprep.subr.mxu0 0.0
      %699 = vmatpush1.msra.mxu0 0.0
      %700 = vmatprep.subr.mxu0 0.0
      %701 = vmatpush1.msra.mxu0 0.0
      %702 = vmatprep.subr.mxu0 0.0
      %703 = vmatpush1.msra.mxu0 0.0
      %704 = vmatprep.subr.mxu0 0.0
      %705 = vmatpush1.msra.mxu0 0.0
      %706 = vmatprep.subr.mxu0 0.0
      %707 = vmatpush1.msra.mxu0 0.0
      %708 = vmatprep.subr.mxu0 0.0
      %709 = vmatpush1.msra.mxu0 0.0
      %710 = vmatprep.subr.mxu0 0.0
      %711 = vmatpush1.msra.mxu0 0.0
      %712 = vmatprep.subr.mxu0 0.0
      %713 = vmatpush1.msra.mxu0 0.0
      %714 = vmatprep.mubr.f32.mxu0 0.0
      %715 = vmatmul.mubr.f32.gmra.mrb[0].mxu0 %v171
      %v716 = vpop.f32.mrb[0].mxu0
      %v717 = vadd.f32 %v492, %v716
      %v718 = vpop.f32.mrb[0].mxu0
      %719 = vmatprep.mubr.f32.mxu0 0.0
      %720 = vmatmul.mubr.f32.gmra.mrb[0].mxu0 %v172
      %v721 = vpop.f32.mrb[0].mxu0
      %v722 = vadd.f32 %v497, %v721
      %v723 = vpop.f32.mrb[0].mxu0
      %724 = vmatprep.mubr.f32.mxu0 0.0
      %725 = vmatmul.mubr.f32.gmra.mrb[0].mxu0 %v174
      %v726 = vpop.f32.mrb[0].mxu0
      %v727 = vadd.f32 %v502, %v726
      %v728 = vpop.f32.mrb[0].mxu0
      %729 = vmatprep.mubr.f32.mxu0 0.0
      %730 = vmatmul.mubr.f32.gmra.mrb[0].mxu0 %v175
      %v731 = vpop.f32.mrb[0].mxu0
      %v732 = vadd.f32 %v507, %v731
      %v733 = vpop.f32.mrb[0].mxu0
      %734 = vmatprep.mubr.f32.mxu0 0.0
      %735 = vmatmul.mubr.f32.gmra.mrb[0].mxu0 %v177
      %v736 = vpop.f32.mrb[0].mxu0
      %v737 = vadd.f32 %v512, %v736
      %v738 = vpop.f32.mrb[0].mxu0
      %739 = vmatprep.mubr.f32.mxu0 0.0
      %740 = vmatmul.mubr.f32.gmra.mrb[0].mxu0 %v178
      %v741 = vpop.f32.mrb[0].mxu0
      %v742 = vadd.f32 %v517, %v741
      %v743 = vpop.f32.mrb[0].mxu0
      %744 = vmatprep.mubr.f32.mxu0 0.0
      %745 = vmatmul.mubr.f32.gmra.mrb[0].mxu0 %v180
      %v746 = vpop.f32.mrb[0].mxu0
      %v747 = vadd.f32 %v522, %v746
      %v748 = vpop.f32.mrb[0].mxu0
      %749 = vmatprep.mubr.f32.mxu0 0.0
      %750 = vmatmul.mubr.f32.gmra.mrb[0].mxu0 %v181
      %v751 = vpop.f32.mrb[0].mxu0
      %v752 = vadd.f32 %v527, %v751
      %v753 = vpop.f32.mrb[0].mxu0
      %754 = vmatprep.mubr.f32.mxu0 0.0
      %755 = vmatmul.mubr.f32.gmra.mrb[0].mxu0 %v183
      %v756 = vpop.f32.mrb[0].mxu0
      %v757 = vadd.f32 %v532, %v756
      %v758 = vpop.f32.mrb[0].mxu0
      %759 = vmatprep.mubr.f32.mxu0 0.0
      %760 = vmatmul.mubr.f32.gmra.mrb[0].mxu0 %v184
      %v761 = vpop.f32.mrb[0].mxu0
      %v762 = vadd.f32 %v537, %v761
      %v763 = vpop.f32.mrb[0].mxu0
      %764 = vmatprep.mubr.f32.mxu0 0.0
      %765 = vmatmul.mubr.f32.gmra.mrb[0].mxu0 %v186
      %v766 = vpop.f32.mrb[0].mxu0
      %v767 = vadd.f32 %v542, %v766
      %v768 = vpop.f32.mrb[0].mxu0
      %769 = vmatprep.mubr.f32.mxu0 0.0
      %770 = vmatmul.mubr.f32.gmra.mrb[0].mxu0 %v187
      %v771 = vpop.f32.mrb[0].mxu0
      %v772 = vadd.f32 %v547, %v771
      %v773 = vpop.f32.mrb[0].mxu0
      %774 = vmatprep.mubr.f32.mxu0 0.0
      %775 = vmatmul.mubr.f32.gmra.mrb[0].mxu0 %v189
      %v776 = vpop.f32.mrb[0].mxu0
      %v777 = vadd.f32 %v552, %v776
      %v778 = vpop.f32.mrb[0].mxu0
      %779 = vmatprep.mubr.f32.mxu0 0.0
      %780 = vmatmul.mubr.f32.gmra.mrb[0].mxu0 %v190
      %v781 = vpop.f32.mrb[0].mxu0
      %v782 = vadd.f32 %v557, %v781
      %v783 = vpop.f32.mrb[0].mxu0
      %784 = vmatprep.mubr.f32.mxu0 0.0
      %785 = vmatmul.mubr.f32.gmra.mrb[0].mxu0 %v192
      %v786 = vpop.f32.mrb[0].mxu0
      %v787 = vadd.f32 %v562, %v786
      %v788 = vpop.f32.mrb[0].mxu0
      %789 = vmatprep.mubr.f32.mxu0 0.0
      %790 = vmatmul.mubr.f32.gmra.mrb[0].mxu0 %v193
      %v791 = vpop.f32.mrb[0].mxu0
      %v792 = vadd.f32 %v567, %v791
      %v793 = vpop.f32.mrb[0].mxu0
      %794 = vmatprep.mubr.f32.mxu0 0.0
      %795 = vmatmul.mubr.f32.gmra.mrb[0].mxu0 %v195
      %v796 = vpop.f32.mrb[0].mxu0
      %v797 = vadd.f32 %v572, %v796
      %v798 = vpop.f32.mrb[0].mxu0
      %799 = vmatprep.mubr.f32.mxu0 0.0
      %800 = vmatmul.mubr.f32.gmra.mrb[0].mxu0 %v196
      %v801 = vpop.f32.mrb[0].mxu0
      %v802 = vadd.f32 %v577, %v801
      %v803 = vpop.f32.mrb[0].mxu0
      %804 = vmatprep.mubr.f32.mxu0 0.0
      %805 = vmatmul.mubr.f32.gmra.mrb[0].mxu0 %v198
      %v806 = vpop.f32.mrb[0].mxu0
      %v807 = vadd.f32 %v582, %v806
      %v808 = vpop.f32.mrb[0].mxu0
      %809 = vmatprep.mubr.f32.mxu0 0.0
      %810 = vmatmul.mubr.f32.gmra.mrb[0].mxu0 %v199
      %v811 = vpop.f32.mrb[0].mxu0
      %v812 = vadd.f32 %v587, %v811
      %v813 = vpop.f32.mrb[0].mxu0
      %814 = vmatprep.mubr.f32.mxu0 0.0
      %815 = vmatmul.mubr.f32.gmra.mrb[0].mxu0 %v201
      %v816 = vpop.f32.mrb[0].mxu0
      %v817 = vadd.f32 %v592, %v816
      %v818 = vpop.f32.mrb[0].mxu0
      %819 = vmatprep.mubr.f32.mxu0 0.0
      %820 = vmatmul.mubr.f32.gmra.mrb[0].mxu0 %v202
      %v821 = vpop.f32.mrb[0].mxu0
      %v822 = vadd.f32 %v597, %v821
      %v823 = vpop.f32.mrb[0].mxu0
      %824 = vmatprep.mubr.f32.mxu0 0.0
      %825 = vmatmul.mubr.f32.gmra.mrb[0].mxu0 %v204
      %v826 = vpop.f32.mrb[0].mxu0
      %v827 = vadd.f32 %v602, %v826
      %v828 = vpop.f32.mrb[0].mxu0
      %829 = vmatprep.mubr.f32.mxu0 0.0
      %830 = vmatmul.mubr.f32.gmra.mrb[0].mxu0 %v205
      %v831 = vpop.f32.mrb[0].mxu0
      %v832 = vadd.f32 %v607, %v831
      %v833 = vpop.f32.mrb[0].mxu0
      %834 = vmatprep.mubr.f32.mxu0 0.0
      %835 = vmatmul.mubr.f32.gmra.mrb[0].mxu0 %v207
      %v836 = vpop.f32.mrb[0].mxu0
      %v837 = vadd.f32 %v612, %v836
      %v838 = vpop.f32.mrb[0].mxu0
      %839 = vmatprep.mubr.f32.mxu0 0.0
      %840 = vmatmul.mubr.f32.gmra.mrb[0].mxu0 %v208
      %v841 = vpop.f32.mrb[0].mxu0
      %v842 = vadd.f32 %v617, %v841
      %v843 = vpop.f32.mrb[0].mxu0
      %844 = vmatprep.mubr.f32.mxu0 0.0
      %845 = vmatmul.mubr.f32.gmra.mrb[0].mxu0 %v210
      %v846 = vpop.f32.mrb[0].mxu0
      %v847 = vadd.f32 %v622, %v846
      %v848 = vpop.f32.mrb[0].mxu0
      %849 = vmatprep.mubr.f32.mxu0 0.0
      %850 = vmatmul.mubr.f32.gmra.mrb[0].mxu0 %v211
      %v851 = vpop.f32.mrb[0].mxu0
      %v852 = vadd.f32 %v627, %v851
      %v853 = vpop.f32.mrb[0].mxu0
      %854 = vmatprep.mubr.f32.mxu0 0.0
      %855 = vmatmul.mubr.f32.gmra.mrb[0].mxu0 %v213
      %v856 = vpop.f32.mrb[0].mxu0
      %v857 = vadd.f32 %v632, %v856
      %v858 = vpop.f32.mrb[0].mxu0
      %859 = vmatprep.mubr.f32.mxu0 0.0
      %860 = vmatmul.mubr.f32.gmra.mrb[0].mxu0 %v214
      %v861 = vpop.f32.mrb[0].mxu0
      %v862 = vadd.f32 %v637, %v861
      %v863 = vpop.f32.mrb[0].mxu0
      %864 = vmatprep.mubr.f32.mxu0 0.0
      %865 = vmatmul.mubr.f32.gmra.mrb[0].mxu0 %v216
      %v866 = vpop.f32.mrb[0].mxu0
      %v867 = vadd.f32 %v642, %v866
      %v868 = vpop.f32.mrb[0].mxu0
      %869 = vmatprep.mubr.f32.mxu0 0.0
      %870 = vmatmul.mubr.f32.gmra.mrb[0].mxu0 %v217
      %v871 = vpop.f32.mrb[0].mxu0
      %v872 = vadd.f32 %v647, %v871
      %v873 = vpop.f32.mrb[0].mxu0
      %874 = vdwg.mxu0
      %vm875 = vcmask 1043456
      %v876 = vrot.slane %v171, 4
      %v877 = vrot.slane %v172, 4
      %v878 = vsel %vm875, %v876, %v877
      %v879 = vrot.slane %v173, 4
      %v880 = vsel %vm875, %v877, %v879
      %v881 = vrot.slane %v174, 4
      %v882 = vrot.slane %v175, 4
      %v883 = vsel %vm875, %v881, %v882
      %v884 = vrot.slane %v176, 4
      %v885 = vsel %vm875, %v882, %v884
      %v886 = vrot.slane %v177, 4
      %v887 = vrot.slane %v178, 4
      %v888 = vsel %vm875, %v886, %v887
      %v889 = vrot.slane %v179, 4
      %v890 = vsel %vm875, %v887, %v889
      %v891 = vrot.slane %v180, 4
      %v892 = vrot.slane %v181, 4
      %v893 = vsel %vm875, %v891, %v892
      %v894 = vrot.slane %v182, 4
      %v895 = vsel %vm875, %v892, %v894
      %v896 = vrot.slane %v183, 4
      %v897 = vrot.slane %v184, 4
      %v898 = vsel %vm875, %v896, %v897
      %v899 = vrot.slane %v185, 4
      %v900 = vsel %vm875, %v897, %v899
      %v901 = vrot.slane %v186, 4
      %v902 = vrot.slane %v187, 4
      %v903 = vsel %vm875, %v901, %v902
      %v904 = vrot.slane %v188, 4
      %v905 = vsel %vm875, %v902, %v904
      %v906 = vrot.slane %v189, 4
      %v907 = vrot.slane %v190, 4
      %v908 = vsel %vm875, %v906, %v907
      %v909 = vrot.slane %v191, 4
      %v910 = vsel %vm875, %v907, %v909
      %v911 = vrot.slane %v192, 4
      %v912 = vrot.slane %v193, 4
      %v913 = vsel %vm875, %v911, %v912
      %v914 = vrot.slane %v194, 4
      %v915 = vsel %vm875, %v912, %v914
      %v916 = vrot.slane %v195, 4
      %v917 = vrot.slane %v196, 4
      %v918 = vsel %vm875, %v916, %v917
      %v919 = vrot.slane %v197, 4
      %v920 = vsel %vm875, %v917, %v919
      %v921 = vrot.slane %v198, 4
      %v922 = vrot.slane %v199, 4
      %v923 = vsel %vm875, %v921, %v922
      %v924 = vrot.slane %v200, 4
      %v925 = vsel %vm875, %v922, %v924
      %v926 = vrot.slane %v201, 4
      %v927 = vrot.slane %v202, 4
      %v928 = vsel %vm875, %v926, %v927
      %v929 = vrot.slane %v203, 4
      %v930 = vsel %vm875, %v927, %v929
      %v931 = vrot.slane %v204, 4
      %v932 = vrot.slane %v205, 4
      %v933 = vsel %vm875, %v931, %v932
      %v934 = vrot.slane %v206, 4
      %v935 = vsel %vm875, %v932, %v934
      %v936 = vrot.slane %v207, 4
      %v937 = vrot.slane %v208, 4
      %v938 = vsel %vm875, %v936, %v937
      %v939 = vrot.slane %v209, 4
      %v940 = vsel %vm875, %v937, %v939
      %v941 = vrot.slane %v210, 4
      %v942 = vrot.slane %v211, 4
      %v943 = vsel %vm875, %v941, %v942
      %v944 = vrot.slane %v212, 4
      %v945 = vsel %vm875, %v942, %v944
      %v946 = vrot.slane %v213, 4
      %v947 = vrot.slane %v214, 4
      %v948 = vsel %vm875, %v946, %v947
      %v949 = vrot.slane %v215, 4
      %v950 = vsel %vm875, %v947, %v949
      %v951 = vrot.slane %v216, 4
      %v952 = vrot.slane %v217, 4
      %v953 = vsel %vm875, %v951, %v952
      %v954 = vrot.slane %v218, 4
      %v955 = vsel %vm875, %v952, %v954
      %s988 = scalar_lea.vmem %s1, 256
      %v989 = vld [vmem:[%s988] sm:$0xff]
      %v990 = vld [vmem:[%s988 + $0x8] sm:$0xff]
      %v991 = vld [vmem:[%s988 + $0x10] sm:$0xff]
      %v992 = vld [vmem:[%s988 + $0x18] sm:$0xff]
      %v993 = vld [vmem:[%s988 + $0x20] sm:$0xff]
      %v994 = vld [vmem:[%s988 + $0x28] sm:$0xff]
      %v995 = vld [vmem:[%s988 + $0x30] sm:$0xff]
      %v996 = vld [vmem:[%s988 + $0x38] sm:$0xff]
      %v997 = vld [vmem:[%s988 + $0x40] sm:$0xff]
      %v998 = vld [vmem:[%s988 + $0x48] sm:$0xff]
      %v999 = vld [vmem:[%s988 + $0x50] sm:$0xff]
      %v1000 = vld [vmem:[%s988 + $0x58] sm:$0xff]
      %v1001 = vld [vmem:[%s988 + $0x60] sm:$0xff]
      %v1002 = vld [vmem:[%s988 + $0x68] sm:$0xff]
      %v1003 = vld [vmem:[%s988 + $0x70] sm:$0xff]
      %v1004 = vld [vmem:[%s988 + $0x78] sm:$0xff]
      %1005 = vmatprep.subr.mxu0 0.0
      %1006 = vmatpush1.msra.mxu0 %v989
      %1007 = vmatprep.subr.mxu0 0.0
      %1008 = vmatpush1.msra.mxu0 %v990
      %1009 = vmatprep.subr.mxu0 0.0
      %1010 = vmatpush1.msra.mxu0 %v991
      %1011 = vmatprep.subr.mxu0 0.0
      %1012 = vmatpush1.msra.mxu0 %v992
      %1013 = vmatprep.subr.mxu0 0.0
      %1014 = vmatpush1.msra.mxu0 %v993
      %1015 = vmatprep.subr.mxu0 0.0
      %1016 = vmatpush1.msra.mxu0 %v994
      %1017 = vmatprep.subr.mxu0 0.0
      %1018 = vmatpush1.msra.mxu0 %v995
      %1019 = vmatprep.subr.mxu0 0.0
      %1020 = vmatpush1.msra.mxu0 %v996
      %1021 = vmatprep.subr.mxu0 0.0
      %1022 = vmatpush1.msra.mxu0 %v997
      %1023 = vmatprep.subr.mxu0 0.0
      %1024 = vmatpush1.msra.mxu0 %v998
      %1025 = vmatprep.subr.mxu0 0.0
      %1026 = vmatpush1.msra.mxu0 %v999
      %1027 = vmatprep.subr.mxu0 0.0
      %1028 = vmatpush1.msra.mxu0 %v1000
      %1029 = vmatprep.subr.mxu0 0.0
      %1030 = vmatpush1.msra.mxu0 %v1001
      %1031 = vmatprep.subr.mxu0 0.0
      %1032 = vmatpush1.msra.mxu0 %v1002
      %1033 = vmatprep.subr.mxu0 0.0
      %1034 = vmatpush1.msra.mxu0 %v1003
      %1035 = vmatprep.subr.mxu0 0.0
      %1036 = vmatpush1.msra.mxu0 %v1004
      %1037 = vmatprep.subr.mxu0 0.0
      %1038 = vmatpush1.msra.mxu0 0.0
      %1039 = vmatprep.subr.mxu0 0.0
      %1040 = vmatpush1.msra.mxu0 0.0
      %1041 = vmatprep.subr.mxu0 0.0
      %1042 = vmatpush1.msra.mxu0 0.0
      %1043 = vmatprep.subr.mxu0 0.0
      %1044 = vmatpush1.msra.mxu0 0.0
      %1045 = vmatprep.subr.mxu0 0.0
      %1046 = vmatpush1.msra.mxu0 0.0
      %1047 = vmatprep.subr.mxu0 0.0
      %1048 = vmatpush1.msra.mxu0 0.0
      %1049 = vmatprep.subr.mxu0 0.0
      %1050 = vmatpush1.msra.mxu0 0.0
      %1051 = vmatprep.subr.mxu0 0.0
      %1052 = vmatpush1.msra.mxu0 0.0
      %1053 = vmatprep.subr.mxu0 0.0
      %1054 = vmatpush1.msra.mxu0 0.0
      %1055 = vmatprep.subr.mxu0 0.0
      %1056 = vmatpush1.msra.mxu0 0.0
      %1057 = vmatprep.subr.mxu0 0.0
      %1058 = vmatpush1.msra.mxu0 0.0
      %1059 = vmatprep.subr.mxu0 0.0
      %1060 = vmatpush1.msra.mxu0 0.0
      %1061 = vmatprep.subr.mxu0 0.0
      %1062 = vmatpush1.msra.mxu0 0.0
      %1063 = vmatprep.subr.mxu0 0.0
      %1064 = vmatpush1.msra.mxu0 0.0
      %1065 = vmatprep.subr.mxu0 0.0
      %1066 = vmatpush1.msra.mxu0 0.0
      %1067 = vmatprep.subr.mxu0 0.0
      %1068 = vmatpush1.msra.mxu0 0.0
      %1069 = vmatprep.mubr.f32.mxu0 0.0
      %1070 = vmatmul.mubr.f32.gmra.mrb[0].mxu0 %v878
      %v1071 = vpop.f32.mrb[0].mxu0
      %v1072 = vadd.f32 0.0, %v1071
      %v1073 = vpop.f32.mrb[0].mxu0
      %1074 = vmatprep.mubr.f32.mxu0 0.0
      %1075 = vmatmul.mubr.f32.gmra.mrb[0].mxu0 %v880
      %v1076 = vpop.f32.mrb[0].mxu0
      %v1077 = vadd.f32 0.0, %v1076
      %v1078 = vpop.f32.mrb[0].mxu0
      %1079 = vmatprep.mubr.f32.mxu0 0.0
      %1080 = vmatmul.mubr.f32.gmra.mrb[0].mxu0 %v883
      %v1081 = vpop.f32.mrb[0].mxu0
      %v1082 = vadd.f32 0.0, %v1081
      %v1083 = vpop.f32.mrb[0].mxu0
      %1084 = vmatprep.mubr.f32.mxu0 0.0
      %1085 = vmatmul.mubr.f32.gmra.mrb[0].mxu0 %v885
      %v1086 = vpop.f32.mrb[0].mxu0
      %v1087 = vadd.f32 0.0, %v1086
      %v1088 = vpop.f32.mrb[0].mxu0
      %1089 = vmatprep.mubr.f32.mxu0 0.0
      %1090 = vmatmul.mubr.f32.gmra.mrb[0].mxu0 %v888
      %v1091 = vpop.f32.mrb[0].mxu0
      %v1092 = vadd.f32 0.0, %v1091
      %v1093 = vpop.f32.mrb[0].mxu0
      %1094 = vmatprep.mubr.f32.mxu0 0.0
      %1095 = vmatmul.mubr.f32.gmra.mrb[0].mxu0 %v890
      %v1096 = vpop.f32.mrb[0].mxu0
      %v1097 = vadd.f32 0.0, %v1096
      %v1098 = vpop.f32.mrb[0].mxu0
      %1099 = vmatprep.mubr.f32.mxu0 0.0
      %1100 = vmatmul.mubr.f32.gmra.mrb[0].mxu0 %v893
      %v1101 = vpop.f32.mrb[0].mxu0
      %v1102 = vadd.f32 0.0, %v1101
      %v1103 = vpop.f32.mrb[0].mxu0
      %1104 = vmatprep.mubr.f32.mxu0 0.0
      %1105 = vmatmul.mubr.f32.gmra.mrb[0].mxu0 %v895
      %v1106 = vpop.f32.mrb[0].mxu0
      %v1107 = vadd.f32 0.0, %v1106
      %v1108 = vpop.f32.mrb[0].mxu0
      %1109 = vmatprep.mubr.f32.mxu0 0.0
      %1110 = vmatmul.mubr.f32.gmra.mrb[0].mxu0 %v898
      %v1111 = vpop.f32.mrb[0].mxu0
      %v1112 = vadd.f32 0.0, %v1111
      %v1113 = vpop.f32.mrb[0].mxu0
      %1114 = vmatprep.mubr.f32.mxu0 0.0
      %1115 = vmatmul.mubr.f32.gmra.mrb[0].mxu0 %v900
      %v1116 = vpop.f32.mrb[0].mxu0
      %v1117 = vadd.f32 0.0, %v1116
      %v1118 = vpop.f32.mrb[0].mxu0
      %1119 = vmatprep.mubr.f32.mxu0 0.0
      %1120 = vmatmul.mubr.f32.gmra.mrb[0].mxu0 %v903
      %v1121 = vpop.f32.mrb[0].mxu0
      %v1122 = vadd.f32 0.0, %v1121
      %v1123 = vpop.f32.mrb[0].mxu0
      %1124 = vmatprep.mubr.f32.mxu0 0.0
      %1125 = vmatmul.mubr.f32.gmra.mrb[0].mxu0 %v905
      %v1126 = vpop.f32.mrb[0].mxu0
      %v1127 = vadd.f32 0.0, %v1126
      %v1128 = vpop.f32.mrb[0].mxu0
      %1129 = vmatprep.mubr.f32.mxu0 0.0
      %1130 = vmatmul.mubr.f32.gmra.mrb[0].mxu0 %v908
      %v1131 = vpop.f32.mrb[0].mxu0
      %v1132 = vadd.f32 0.0, %v1131
      %v1133 = vpop.f32.mrb[0].mxu0
      %1134 = vmatprep.mubr.f32.mxu0 0.0
      %1135 = vmatmul.mubr.f32.gmra.mrb[0].mxu0 %v910
      %v1136 = vpop.f32.mrb[0].mxu0
      %v1137 = vadd.f32 0.0, %v1136
      %v1138 = vpop.f32.mrb[0].mxu0
      %1139 = vmatprep.mubr.f32.mxu0 0.0
      %1140 = vmatmul.mubr.f32.gmra.mrb[0].mxu0 %v913
      %v1141 = vpop.f32.mrb[0].mxu0
      %v1142 = vadd.f32 0.0, %v1141
      %v1143 = vpop.f32.mrb[0].mxu0
      %1144 = vmatprep.mubr.f32.mxu0 0.0
      %1145 = vmatmul.mubr.f32.gmra.mrb[0].mxu0 %v915
      %v1146 = vpop.f32.mrb[0].mxu0
      %v1147 = vadd.f32 0.0, %v1146
      %v1148 = vpop.f32.mrb[0].mxu0
      %1149 = vmatprep.mubr.f32.mxu0 0.0
      %1150 = vmatmul.mubr.f32.gmra.mrb[0].mxu0 %v918
      %v1151 = vpop.f32.mrb[0].mxu0
      %v1152 = vadd.f32 0.0, %v1151
      %v1153 = vpop.f32.mrb[0].mxu0
      %1154 = vmatprep.mubr.f32.mxu0 0.0
      %1155 = vmatmul.mubr.f32.gmra.mrb[0].mxu0 %v920
      %v1156 = vpop.f32.mrb[0].mxu0
      %v1157 = vadd.f32 0.0, %v1156
      %v1158 = vpop.f32.mrb[0].mxu0
      %1159 = vmatprep.mubr.f32.mxu0 0.0
      %1160 = vmatmul.mubr.f32.gmra.mrb[0].mxu0 %v923
      %v1161 = vpop.f32.mrb[0].mxu0
      %v1162 = vadd.f32 0.0, %v1161
      %v1163 = vpop.f32.mrb[0].mxu0
      %1164 = vmatprep.mubr.f32.mxu0 0.0
      %1165 = vmatmul.mubr.f32.gmra.mrb[0].mxu0 %v925
      %v1166 = vpop.f32.mrb[0].mxu0
      %v1167 = vadd.f32 0.0, %v1166
      %v1168 = vpop.f32.mrb[0].mxu0
      %1169 = vmatprep.mubr.f32.mxu0 0.0
      %1170 = vmatmul.mubr.f32.gmra.mrb[0].mxu0 %v928
      %v1171 = vpop.f32.mrb[0].mxu0
      %v1172 = vadd.f32 0.0, %v1171
      %v1173 = vpop.f32.mrb[0].mxu0
      %1174 = vmatprep.mubr.f32.mxu0 0.0
      %1175 = vmatmul.mubr.f32.gmra.mrb[0].mxu0 %v930
      %v1176 = vpop.f32.mrb[0].mxu0
      %v1177 = vadd.f32 0.0, %v1176
      %v1178 = vpop.f32.mrb[0].mxu0
      %1179 = vmatprep.mubr.f32.mxu0 0.0
      %1180 = vmatmul.mubr.f32.gmra.mrb[0].mxu0 %v933
      %v1181 = vpop.f32.mrb[0].mxu0
      %v1182 = vadd.f32 0.0, %v1181
      %v1183 = vpop.f32.mrb[0].mxu0
      %1184 = vmatprep.mubr.f32.mxu0 0.0
      %1185 = vmatmul.mubr.f32.gmra.mrb[0].mxu0 %v935
      %v1186 = vpop.f32.mrb[0].mxu0
      %v1187 = vadd.f32 0.0, %v1186
      %v1188 = vpop.f32.mrb[0].mxu0
      %1189 = vmatprep.mubr.f32.mxu0 0.0
      %1190 = vmatmul.mubr.f32.gmra.mrb[0].mxu0 %v938
      %v1191 = vpop.f32.mrb[0].mxu0
      %v1192 = vadd.f32 0.0, %v1191
      %v1193 = vpop.f32.mrb[0].mxu0
      %1194 = vmatprep.mubr.f32.mxu0 0.0
      %1195 = vmatmul.mubr.f32.gmra.mrb[0].mxu0 %v940
      %v1196 = vpop.f32.mrb[0].mxu0
      %v1197 = vadd.f32 0.0, %v1196
      %v1198 = vpop.f32.mrb[0].mxu0
      %1199 = vmatprep.mubr.f32.mxu0 0.0
      %1200 = vmatmul.mubr.f32.gmra.mrb[0].mxu0 %v943
      %v1201 = vpop.f32.mrb[0].mxu0
      %v1202 = vadd.f32 0.0, %v1201
      %v1203 = vpop.f32.mrb[0].mxu0
      %1204 = vmatprep.mubr.f32.mxu0 0.0
      %1205 = vmatmul.mubr.f32.gmra.mrb[0].mxu0 %v945
      %v1206 = vpop.f32.mrb[0].mxu0
      %v1207 = vadd.f32 0.0, %v1206
      %v1208 = vpop.f32.mrb[0].mxu0
      %1209 = vmatprep.mubr.f32.mxu0 0.0
      %1210 = vmatmul.mubr.f32.gmra.mrb[0].mxu0 %v948
      %v1211 = vpop.f32.mrb[0].mxu0
      %v1212 = vadd.f32 0.0, %v1211
      %v1213 = vpop.f32.mrb[0].mxu0
      %1214 = vmatprep.mubr.f32.mxu0 0.0
      %1215 = vmatmul.mubr.f32.gmra.mrb[0].mxu0 %v950
      %v1216 = vpop.f32.mrb[0].mxu0
      %v1217 = vadd.f32 0.0, %v1216
      %v1218 = vpop.f32.mrb[0].mxu0
      %1219 = vmatprep.mubr.f32.mxu0 0.0
      %1220 = vmatmul.mubr.f32.gmra.mrb[0].mxu0 %v953
      %v1221 = vpop.f32.mrb[0].mxu0
      %v1222 = vadd.f32 0.0, %v1221
      %v1223 = vpop.f32.mrb[0].mxu0
      %1224 = vmatprep.mubr.f32.mxu0 0.0
      %1225 = vmatmul.mubr.f32.gmra.mrb[0].mxu0 %v955
      %v1226 = vpop.f32.mrb[0].mxu0
      %v1227 = vadd.f32 0.0, %v1226
      %v1228 = vpop.f32.mrb[0].mxu0
      %1229 = vdwg.mxu0
      %v1230 = vadd.f32 %v717, %v1072
      %v1231 = vadd.f32 %v722, %v1077
      %v1232 = vadd.f32 %v727, %v1082
      %v1233 = vadd.f32 %v732, %v1087
      %v1234 = vadd.f32 %v737, %v1092
      %v1235 = vadd.f32 %v742, %v1097
      %v1236 = vadd.f32 %v747, %v1102
      %v1237 = vadd.f32 %v752, %v1107
      %v1238 = vadd.f32 %v757, %v1112
      %v1239 = vadd.f32 %v762, %v1117
      %v1240 = vadd.f32 %v767, %v1122
      %v1241 = vadd.f32 %v772, %v1127
      %v1242 = vadd.f32 %v777, %v1132
      %v1243 = vadd.f32 %v782, %v1137
      %v1244 = vadd.f32 %v787, %v1142
      %v1245 = vadd.f32 %v792, %v1147
      %v1246 = vadd.f32 %v797, %v1152
      %v1247 = vadd.f32 %v802, %v1157
      %v1248 = vadd.f32 %v807, %v1162
      %v1249 = vadd.f32 %v812, %v1167
      %v1250 = vadd.f32 %v817, %v1172
      %v1251 = vadd.f32 %v822, %v1177
      %v1252 = vadd.f32 %v827, %v1182
      %v1253 = vadd.f32 %v832, %v1187
      %v1254 = vadd.f32 %v837, %v1192
      %v1255 = vadd.f32 %v842, %v1197
      %v1256 = vadd.f32 %v847, %v1202
      %v1257 = vadd.f32 %v852, %v1207
      %v1258 = vadd.f32 %v857, %v1212
      %v1259 = vadd.f32 %v862, %v1217
      %v1260 = vadd.f32 %v867, %v1222
      %v1261 = vadd.f32 %v872, %v1227
      %s1262 = scalar_lea.vmem %s1, 384
      %v1263 = vld [vmem:[%s1262] sm:$0xff]
      %v1264 = vld [vmem:[%s1262 + $0x8] sm:$0xff]
      %v1265 = vld [vmem:[%s1262 + $0x10] sm:$0xff]
      %v1266 = vld [vmem:[%s1262 + $0x18] sm:$0xff]
      %v1267 = vld [vmem:[%s1262 + $0x20] sm:$0xff]
      %v1268 = vld [vmem:[%s1262 + $0x28] sm:$0xff]
      %v1269 = vld [vmem:[%s1262 + $0x30] sm:$0xff]
      %v1270 = vld [vmem:[%s1262 + $0x38] sm:$0xff]
      %v1271 = vld [vmem:[%s1262 + $0x40] sm:$0xff]
      %v1272 = vld [vmem:[%s1262 + $0x48] sm:$0xff]
      %v1273 = vld [vmem:[%s1262 + $0x50] sm:$0xff]
      %v1274 = vld [vmem:[%s1262 + $0x58] sm:$0xff]
      %v1275 = vld [vmem:[%s1262 + $0x60] sm:$0xff]
      %v1276 = vld [vmem:[%s1262 + $0x68] sm:$0xff]
      %v1277 = vld [vmem:[%s1262 + $0x70] sm:$0xff]
      %v1278 = vld [vmem:[%s1262 + $0x78] sm:$0xff]
      %1279 = vmatprep.subr.mxu0 0.0
      %1280 = vmatpush1.msra.mxu0 %v1263
      %1281 = vmatprep.subr.mxu0 0.0
      %1282 = vmatpush1.msra.mxu0 %v1264
      %1283 = vmatprep.subr.mxu0 0.0
      %1284 = vmatpush1.msra.mxu0 %v1265
      %1285 = vmatprep.subr.mxu0 0.0
      %1286 = vmatpush1.msra.mxu0 %v1266
      %1287 = vmatprep.subr.mxu0 0.0
      %1288 = vmatpush1.msra.mxu0 %v1267
      %1289 = vmatprep.subr.mxu0 0.0
      %1290 = vmatpush1.msra.mxu0 %v1268
      %1291 = vmatprep.subr.mxu0 0.0
      %1292 = vmatpush1.msra.mxu0 %v1269
      %1293 = vmatprep.subr.mxu0 0.0
      %1294 = vmatpush1.msra.mxu0 %v1270
      %1295 = vmatprep.subr.mxu0 0.0
      %1296 = vmatpush1.msra.mxu0 %v1271
      %1297 = vmatprep.subr.mxu0 0.0
      %1298 = vmatpush1.msra.mxu0 %v1272
      %1299 = vmatprep.subr.mxu0 0.0
      %1300 = vmatpush1.msra.mxu0 %v1273
      %1301 = vmatprep.subr.mxu0 0.0
      %1302 = vmatpush1.msra.mxu0 %v1274
      %1303 = vmatprep.subr.mxu0 0.0
      %1304 = vmatpush1.msra.mxu0 %v1275
      %1305 = vmatprep.subr.mxu0 0.0
      %1306 = vmatpush1.msra.mxu0 %v1276
      %1307 = vmatprep.subr.mxu0 0.0
      %1308 = vmatpush1.msra.mxu0 %v1277
      %1309 = vmatprep.subr.mxu0 0.0
      %1310 = vmatpush1.msra.mxu0 %v1278
      %1311 = vmatprep.subr.mxu0 0.0
      %1312 = vmatpush1.msra.mxu0 0.0
      %1313 = vmatprep.subr.mxu0 0.0
      %1314 = vmatpush1.msra.mxu0 0.0
      %1315 = vmatprep.subr.mxu0 0.0
      %1316 = vmatpush1.msra.mxu0 0.0
      %1317 = vmatprep.subr.mxu0 0.0
      %1318 = vmatpush1.msra.mxu0 0.0
      %1319 = vmatprep.subr.mxu0 0.0
      %1320 = vmatpush1.msra.mxu0 0.0
      %1321 = vmatprep.subr.mxu0 0.0
      %1322 = vmatpush1.msra.mxu0 0.0
      %1323 = vmatprep.subr.mxu0 0.0
      %1324 = vmatpush1.msra.mxu0 0.0
      %1325 = vmatprep.subr.mxu0 0.0
      %1326 = vmatpush1.msra.mxu0 0.0
      %1327 = vmatprep.subr.mxu0 0.0
      %1328 = vmatpush1.msra.mxu0 0.0
      %1329 = vmatprep.subr.mxu0 0.0
      %1330 = vmatpush1.msra.mxu0 0.0
      %1331 = vmatprep.subr.mxu0 0.0
      %1332 = vmatpush1.msra.mxu0 0.0
      %1333 = vmatprep.subr.mxu0 0.0
      %1334 = vmatpush1.msra.mxu0 0.0
      %1335 = vmatprep.subr.mxu0 0.0
      %1336 = vmatpush1.msra.mxu0 0.0
      %1337 = vmatprep.subr.mxu0 0.0
      %1338 = vmatpush1.msra.mxu0 0.0
      %1339 = vmatprep.subr.mxu0 0.0
      %1340 = vmatpush1.msra.mxu0 0.0
      %1341 = vmatprep.subr.mxu0 0.0
      %1342 = vmatpush1.msra.mxu0 0.0
      %1343 = vmatprep.mubr.f32.mxu0 0.0
      %1344 = vmatmul.mubr.f32.gmra.mrb[0].mxu0 %v177
      %v1345 = vpop.f32.mrb[0].mxu0
      %v1346 = vadd.f32 0.0, %v1345
      %v1347 = vpop.f32.mrb[0].mxu0
      %1348 = vmatprep.mubr.f32.mxu0 0.0
      %1349 = vmatmul.mubr.f32.gmra.mrb[0].mxu0 %v178
      %v1350 = vpop.f32.mrb[0].mxu0
      %v1351 = vadd.f32 0.0, %v1350
      %v1352 = vpop.f32.mrb[0].mxu0
      %1353 = vmatprep.mubr.f32.mxu0 0.0
      %1354 = vmatmul.mubr.f32.gmra.mrb[0].mxu0 %v180
      %v1355 = vpop.f32.mrb[0].mxu0
      %v1356 = vadd.f32 0.0, %v1355
      %v1357 = vpop.f32.mrb[0].mxu0
      %1358 = vmatprep.mubr.f32.mxu0 0.0
      %1359 = vmatmul.mubr.f32.gmra.mrb[0].mxu0 %v181
      %v1360 = vpop.f32.mrb[0].mxu0
      %v1361 = vadd.f32 0.0, %v1360
      %v1362 = vpop.f32.mrb[0].mxu0
      %1363 = vmatprep.mubr.f32.mxu0 0.0
      %1364 = vmatmul.mubr.f32.gmra.mrb[0].mxu0 %v183
      %v1365 = vpop.f32.mrb[0].mxu0
      %v1366 = vadd.f32 0.0, %v1365
      %v1367 = vpop.f32.mrb[0].mxu0
      %1368 = vmatprep.mubr.f32.mxu0 0.0
      %1369 = vmatmul.mubr.f32.gmra.mrb[0].mxu0 %v184
      %v1370 = vpop.f32.mrb[0].mxu0
      %v1371 = vadd.f32 0.0, %v1370
      %v1372 = vpop.f32.mrb[0].mxu0
      %1373 = vmatprep.mubr.f32.mxu0 0.0
      %1374 = vmatmul.mubr.f32.gmra.mrb[0].mxu0 %v186
      %v1375 = vpop.f32.mrb[0].mxu0
      %v1376 = vadd.f32 0.0, %v1375
      %v1377 = vpop.f32.mrb[0].mxu0
      %1378 = vmatprep.mubr.f32.mxu0 0.0
      %1379 = vmatmul.mubr.f32.gmra.mrb[0].mxu0 %v187
      %v1380 = vpop.f32.mrb[0].mxu0
      %v1381 = vadd.f32 0.0, %v1380
      %v1382 = vpop.f32.mrb[0].mxu0
      %1383 = vmatprep.mubr.f32.mxu0 0.0
      %1384 = vmatmul.mubr.f32.gmra.mrb[0].mxu0 %v189
      %v1385 = vpop.f32.mrb[0].mxu0
      %v1386 = vadd.f32 0.0, %v1385
      %v1387 = vpop.f32.mrb[0].mxu0
      %1388 = vmatprep.mubr.f32.mxu0 0.0
      %1389 = vmatmul.mubr.f32.gmra.mrb[0].mxu0 %v190
      %v1390 = vpop.f32.mrb[0].mxu0
      %v1391 = vadd.f32 0.0, %v1390
      %v1392 = vpop.f32.mrb[0].mxu0
      %1393 = vmatprep.mubr.f32.mxu0 0.0
      %1394 = vmatmul.mubr.f32.gmra.mrb[0].mxu0 %v192
      %v1395 = vpop.f32.mrb[0].mxu0
      %v1396 = vadd.f32 0.0, %v1395
      %v1397 = vpop.f32.mrb[0].mxu0
      %1398 = vmatprep.mubr.f32.mxu0 0.0
      %1399 = vmatmul.mubr.f32.gmra.mrb[0].mxu0 %v193
      %v1400 = vpop.f32.mrb[0].mxu0
      %v1401 = vadd.f32 0.0, %v1400
      %v1402 = vpop.f32.mrb[0].mxu0
      %1403 = vmatprep.mubr.f32.mxu0 0.0
      %1404 = vmatmul.mubr.f32.gmra.mrb[0].mxu0 %v195
      %v1405 = vpop.f32.mrb[0].mxu0
      %v1406 = vadd.f32 0.0, %v1405
      %v1407 = vpop.f32.mrb[0].mxu0
      %1408 = vmatprep.mubr.f32.mxu0 0.0
      %1409 = vmatmul.mubr.f32.gmra.mrb[0].mxu0 %v196
      %v1410 = vpop.f32.mrb[0].mxu0
      %v1411 = vadd.f32 0.0, %v1410
      %v1412 = vpop.f32.mrb[0].mxu0
      %1413 = vmatprep.mubr.f32.mxu0 0.0
      %1414 = vmatmul.mubr.f32.gmra.mrb[0].mxu0 %v198
      %v1415 = vpop.f32.mrb[0].mxu0
      %v1416 = vadd.f32 0.0, %v1415
      %v1417 = vpop.f32.mrb[0].mxu0
      %1418 = vmatprep.mubr.f32.mxu0 0.0
      %1419 = vmatmul.mubr.f32.gmra.mrb[0].mxu0 %v199
      %v1420 = vpop.f32.mrb[0].mxu0
      %v1421 = vadd.f32 0.0, %v1420
      %v1422 = vpop.f32.mrb[0].mxu0
      %1423 = vmatprep.mubr.f32.mxu0 0.0
      %1424 = vmatmul.mubr.f32.gmra.mrb[0].mxu0 %v201
      %v1425 = vpop.f32.mrb[0].mxu0
      %v1426 = vadd.f32 0.0, %v1425
      %v1427 = vpop.f32.mrb[0].mxu0
      %1428 = vmatprep.mubr.f32.mxu0 0.0
      %1429 = vmatmul.mubr.f32.gmra.mrb[0].mxu0 %v202
      %v1430 = vpop.f32.mrb[0].mxu0
      %v1431 = vadd.f32 0.0, %v1430
      %v1432 = vpop.f32.mrb[0].mxu0
      %1433 = vmatprep.mubr.f32.mxu0 0.0
      %1434 = vmatmul.mubr.f32.gmra.mrb[0].mxu0 %v204
      %v1435 = vpop.f32.mrb[0].mxu0
      %v1436 = vadd.f32 0.0, %v1435
      %v1437 = vpop.f32.mrb[0].mxu0
      %1438 = vmatprep.mubr.f32.mxu0 0.0
      %1439 = vmatmul.mubr.f32.gmra.mrb[0].mxu0 %v205
      %v1440 = vpop.f32.mrb[0].mxu0
      %v1441 = vadd.f32 0.0, %v1440
      %v1442 = vpop.f32.mrb[0].mxu0
      %1443 = vmatprep.mubr.f32.mxu0 0.0
      %1444 = vmatmul.mubr.f32.gmra.mrb[0].mxu0 %v207
      %v1445 = vpop.f32.mrb[0].mxu0
      %v1446 = vadd.f32 0.0, %v1445
      %v1447 = vpop.f32.mrb[0].mxu0
      %1448 = vmatprep.mubr.f32.mxu0 0.0
      %1449 = vmatmul.mubr.f32.gmra.mrb[0].mxu0 %v208
      %v1450 = vpop.f32.mrb[0].mxu0
      %v1451 = vadd.f32 0.0, %v1450
      %v1452 = vpop.f32.mrb[0].mxu0
      %1453 = vmatprep.mubr.f32.mxu0 0.0
      %1454 = vmatmul.mubr.f32.gmra.mrb[0].mxu0 %v210
      %v1455 = vpop.f32.mrb[0].mxu0
      %v1456 = vadd.f32 0.0, %v1455
      %v1457 = vpop.f32.mrb[0].mxu0
      %1458 = vmatprep.mubr.f32.mxu0 0.0
      %1459 = vmatmul.mubr.f32.gmra.mrb[0].mxu0 %v211
      %v1460 = vpop.f32.mrb[0].mxu0
      %v1461 = vadd.f32 0.0, %v1460
      %v1462 = vpop.f32.mrb[0].mxu0
      %1463 = vmatprep.mubr.f32.mxu0 0.0
      %1464 = vmatmul.mubr.f32.gmra.mrb[0].mxu0 %v213
      %v1465 = vpop.f32.mrb[0].mxu0
      %v1466 = vadd.f32 0.0, %v1465
      %v1467 = vpop.f32.mrb[0].mxu0
      %1468 = vmatprep.mubr.f32.mxu0 0.0
      %1469 = vmatmul.mubr.f32.gmra.mrb[0].mxu0 %v214
      %v1470 = vpop.f32.mrb[0].mxu0
      %v1471 = vadd.f32 0.0, %v1470
      %v1472 = vpop.f32.mrb[0].mxu0
      %1473 = vmatprep.mubr.f32.mxu0 0.0
      %1474 = vmatmul.mubr.f32.gmra.mrb[0].mxu0 %v216
      %v1475 = vpop.f32.mrb[0].mxu0
      %v1476 = vadd.f32 0.0, %v1475
      %v1477 = vpop.f32.mrb[0].mxu0
      %1478 = vmatprep.mubr.f32.mxu0 0.0
      %1479 = vmatmul.mubr.f32.gmra.mrb[0].mxu0 %v217
      %v1480 = vpop.f32.mrb[0].mxu0
      %v1481 = vadd.f32 0.0, %v1480
      %v1482 = vpop.f32.mrb[0].mxu0
      %1483 = vmatprep.mubr.f32.mxu0 0.0
      %1484 = vmatmul.mubr.f32.gmra.mrb[0].mxu0 %v219
      %v1485 = vpop.f32.mrb[0].mxu0
      %v1486 = vadd.f32 0.0, %v1485
      %v1487 = vpop.f32.mrb[0].mxu0
      %1488 = vmatprep.mubr.f32.mxu0 0.0
      %1489 = vmatmul.mubr.f32.gmra.mrb[0].mxu0 %v220
      %v1490 = vpop.f32.mrb[0].mxu0
      %v1491 = vadd.f32 0.0, %v1490
      %v1492 = vpop.f32.mrb[0].mxu0
      %1493 = vmatprep.mubr.f32.mxu0 0.0
      %1494 = vmatmul.mubr.f32.gmra.mrb[0].mxu0 %v222
      %v1495 = vpop.f32.mrb[0].mxu0
      %v1496 = vadd.f32 0.0, %v1495
      %v1497 = vpop.f32.mrb[0].mxu0
      %1498 = vmatprep.mubr.f32.mxu0 0.0
      %1499 = vmatmul.mubr.f32.gmra.mrb[0].mxu0 %v223
      %v1500 = vpop.f32.mrb[0].mxu0
      %v1501 = vadd.f32 0.0, %v1500
      %v1502 = vpop.f32.mrb[0].mxu0
      %1503 = vdwg.mxu0
      %v1504 = vadd.f32 %v1230, %v1346
      %v1505 = vadd.f32 %v1231, %v1351
      %v1506 = vadd.f32 %v1232, %v1356
      %v1507 = vadd.f32 %v1233, %v1361
      %v1508 = vadd.f32 %v1234, %v1366
      %v1509 = vadd.f32 %v1235, %v1371
      %v1510 = vadd.f32 %v1236, %v1376
      %v1511 = vadd.f32 %v1237, %v1381
      %v1512 = vadd.f32 %v1238, %v1386
      %v1513 = vadd.f32 %v1239, %v1391
      %v1514 = vadd.f32 %v1240, %v1396
      %v1515 = vadd.f32 %v1241, %v1401
      %v1516 = vadd.f32 %v1242, %v1406
      %v1517 = vadd.f32 %v1243, %v1411
      %v1518 = vadd.f32 %v1244, %v1416
      %v1519 = vadd.f32 %v1245, %v1421
      %v1520 = vadd.f32 %v1246, %v1426
      %v1521 = vadd.f32 %v1247, %v1431
      %v1522 = vadd.f32 %v1248, %v1436
      %v1523 = vadd.f32 %v1249, %v1441
      %v1524 = vadd.f32 %v1250, %v1446
      %v1525 = vadd.f32 %v1251, %v1451
      %v1526 = vadd.f32 %v1252, %v1456
      %v1527 = vadd.f32 %v1253, %v1461
      %v1528 = vadd.f32 %v1254, %v1466
      %v1529 = vadd.f32 %v1255, %v1471
      %v1530 = vadd.f32 %v1256, %v1476
      %v1531 = vadd.f32 %v1257, %v1481
      %v1532 = vadd.f32 %v1258, %v1486
      %v1533 = vadd.f32 %v1259, %v1491
      %v1534 = vadd.f32 %v1260, %v1496
      %v1535 = vadd.f32 %v1261, %v1501
      %v1542 = vrot.slane %v219, 2
      %v1543 = vrot.slane %v220, 2
      %v1544 = vsel %vm295, %v1542, %v1543
      %v1545 = vrot.slane %v221, 2
      %v1546 = vsel %vm295, %v1543, %v1545
      %v1547 = vrot.slane %v222, 2
      %v1548 = vrot.slane %v223, 2
      %v1549 = vsel %vm295, %v1547, %v1548
      %v1550 = vrot.slane %v224, 2
      %v1551 = vsel %vm295, %v1548, %v1550
      %s1556 = scalar_lea.vmem %s1, 512
      %v1557 = vld [vmem:[%s1556] sm:$0xff]
      %v1558 = vld [vmem:[%s1556 + $0x8] sm:$0xff]
      %v1559 = vld [vmem:[%s1556 + $0x10] sm:$0xff]
      %v1560 = vld [vmem:[%s1556 + $0x18] sm:$0xff]
      %v1561 = vld [vmem:[%s1556 + $0x20] sm:$0xff]
      %v1562 = vld [vmem:[%s1556 + $0x28] sm:$0xff]
      %v1563 = vld [vmem:[%s1556 + $0x30] sm:$0xff]
      %v1564 = vld [vmem:[%s1556 + $0x38] sm:$0xff]
      %v1565 = vld [vmem:[%s1556 + $0x40] sm:$0xff]
      %v1566 = vld [vmem:[%s1556 + $0x48] sm:$0xff]
      %v1567 = vld [vmem:[%s1556 + $0x50] sm:$0xff]
      %v1568 = vld [vmem:[%s1556 + $0x58] sm:$0xff]
      %v1569 = vld [vmem:[%s1556 + $0x60] sm:$0xff]
      %v1570 = vld [vmem:[%s1556 + $0x68] sm:$0xff]
      %v1571 = vld [vmem:[%s1556 + $0x70] sm:$0xff]
      %v1572 = vld [vmem:[%s1556 + $0x78] sm:$0xff]
      %1573 = vmatprep.subr.mxu0 0.0
      %1574 = vmatpush1.msra.mxu0 %v1557
      %1575 = vmatprep.subr.mxu0 0.0
      %1576 = vmatpush1.msra.mxu0 %v1558
      %1577 = vmatprep.subr.mxu0 0.0
      %1578 = vmatpush1.msra.mxu0 %v1559
      %1579 = vmatprep.subr.mxu0 0.0
      %1580 = vmatpush1.msra.mxu0 %v1560
      %1581 = vmatprep.subr.mxu0 0.0
      %1582 = vmatpush1.msra.mxu0 %v1561
      %1583 = vmatprep.subr.mxu0 0.0
      %1584 = vmatpush1.msra.mxu0 %v1562
      %1585 = vmatprep.subr.mxu0 0.0
      %1586 = vmatpush1.msra.mxu0 %v1563
      %1587 = vmatprep.subr.mxu0 0.0
      %1588 = vmatpush1.msra.mxu0 %v1564
      %1589 = vmatprep.subr.mxu0 0.0
      %1590 = vmatpush1.msra.mxu0 %v1565
      %1591 = vmatprep.subr.mxu0 0.0
      %1592 = vmatpush1.msra.mxu0 %v1566
      %1593 = vmatprep.subr.mxu0 0.0
      %1594 = vmatpush1.msra.mxu0 %v1567
      %1595 = vmatprep.subr.mxu0 0.0
      %1596 = vmatpush1.msra.mxu0 %v1568
      %1597 = vmatprep.subr.mxu0 0.0
      %1598 = vmatpush1.msra.mxu0 %v1569
      %1599 = vmatprep.subr.mxu0 0.0
      %1600 = vmatpush1.msra.mxu0 %v1570
      %1601 = vmatprep.subr.mxu0 0.0
      %1602 = vmatpush1.msra.mxu0 %v1571
      %1603 = vmatprep.subr.mxu0 0.0
      %1604 = vmatpush1.msra.mxu0 %v1572
      %1605 = vmatprep.subr.mxu0 0.0
      %1606 = vmatpush1.msra.mxu0 0.0
      %1607 = vmatprep.subr.mxu0 0.0
      %1608 = vmatpush1.msra.mxu0 0.0
      %1609 = vmatprep.subr.mxu0 0.0
      %1610 = vmatpush1.msra.mxu0 0.0
      %1611 = vmatprep.subr.mxu0 0.0
      %1612 = vmatpush1.msra.mxu0 0.0
      %1613 = vmatprep.subr.mxu0 0.0
      %1614 = vmatpush1.msra.mxu0 0.0
      %1615 = vmatprep.subr.mxu0 0.0
      %1616 = vmatpush1.msra.mxu0 0.0
      %1617 = vmatprep.subr.mxu0 0.0
      %1618 = vmatpush1.msra.mxu0 0.0
      %1619 = vmatprep.subr.mxu0 0.0
      %1620 = vmatpush1.msra.mxu0 0.0
      %1621 = vmatprep.subr.mxu0 0.0
      %1622 = vmatpush1.msra.mxu0 0.0
      %1623 = vmatprep.subr.mxu0 0.0
      %1624 = vmatpush1.msra.mxu0 0.0
      %1625 = vmatprep.subr.mxu0 0.0
      %1626 = vmatpush1.msra.mxu0 0.0
      %1627 = vmatprep.subr.mxu0 0.0
      %1628 = vmatpush1.msra.mxu0 0.0
      %1629 = vmatprep.subr.mxu0 0.0
      %1630 = vmatpush1.msra.mxu0 0.0
      %1631 = vmatprep.subr.mxu0 0.0
      %1632 = vmatpush1.msra.mxu0 0.0
      %1633 = vmatprep.subr.mxu0 0.0
      %1634 = vmatpush1.msra.mxu0 0.0
      %1635 = vmatprep.subr.mxu0 0.0
      %1636 = vmatpush1.msra.mxu0 0.0
      %1637 = vmatprep.mubr.f32.mxu0 0.0
      %1638 = vmatmul.mubr.f32.gmra.mrb[0].mxu0 %v308
      %v1639 = vpop.f32.mrb[0].mxu0
      %v1640 = vadd.f32 0.0, %v1639
      %v1641 = vpop.f32.mrb[0].mxu0
      %1642 = vmatprep.mubr.f32.mxu0 0.0
      %1643 = vmatmul.mubr.f32.gmra.mrb[0].mxu0 %v310
      %v1644 = vpop.f32.mrb[0].mxu0
      %v1645 = vadd.f32 0.0, %v1644
      %v1646 = vpop.f32.mrb[0].mxu0
      %1647 = vmatprep.mubr.f32.mxu0 0.0
      %1648 = vmatmul.mubr.f32.gmra.mrb[0].mxu0 %v313
      %v1649 = vpop.f32.mrb[0].mxu0
      %v1650 = vadd.f32 0.0, %v1649
      %v1651 = vpop.f32.mrb[0].mxu0
      %1652 = vmatprep.mubr.f32.mxu0 0.0
      %1653 = vmatmul.mubr.f32.gmra.mrb[0].mxu0 %v315
      %v1654 = vpop.f32.mrb[0].mxu0
      %v1655 = vadd.f32 0.0, %v1654
      %v1656 = vpop.f32.mrb[0].mxu0
      %1657 = vmatprep.mubr.f32.mxu0 0.0
      %1658 = vmatmul.mubr.f32.gmra.mrb[0].mxu0 %v318
      %v1659 = vpop.f32.mrb[0].mxu0
      %v1660 = vadd.f32 0.0, %v1659
      %v1661 = vpop.f32.mrb[0].mxu0
      %1662 = vmatprep.mubr.f32.mxu0 0.0
      %1663 = vmatmul.mubr.f32.gmra.mrb[0].mxu0 %v320
      %v1664 = vpop.f32.mrb[0].mxu0
      %v1665 = vadd.f32 0.0, %v1664
      %v1666 = vpop.f32.mrb[0].mxu0
      %1667 = vmatprep.mubr.f32.mxu0 0.0
      %1668 = vmatmul.mubr.f32.gmra.mrb[0].mxu0 %v323
      %v1669 = vpop.f32.mrb[0].mxu0
      %v1670 = vadd.f32 0.0, %v1669
      %v1671 = vpop.f32.mrb[0].mxu0
      %1672 = vmatprep.mubr.f32.mxu0 0.0
      %1673 = vmatmul.mubr.f32.gmra.mrb[0].mxu0 %v325
      %v1674 = vpop.f32.mrb[0].mxu0
      %v1675 = vadd.f32 0.0, %v1674
      %v1676 = vpop.f32.mrb[0].mxu0
      %1677 = vmatprep.mubr.f32.mxu0 0.0
      %1678 = vmatmul.mubr.f32.gmra.mrb[0].mxu0 %v328
      %v1679 = vpop.f32.mrb[0].mxu0
      %v1680 = vadd.f32 0.0, %v1679
      %v1681 = vpop.f32.mrb[0].mxu0
      %1682 = vmatprep.mubr.f32.mxu0 0.0
      %1683 = vmatmul.mubr.f32.gmra.mrb[0].mxu0 %v330
      %v1684 = vpop.f32.mrb[0].mxu0
      %v1685 = vadd.f32 0.0, %v1684
      %v1686 = vpop.f32.mrb[0].mxu0
      %1687 = vmatprep.mubr.f32.mxu0 0.0
      %1688 = vmatmul.mubr.f32.gmra.mrb[0].mxu0 %v333
      %v1689 = vpop.f32.mrb[0].mxu0
      %v1690 = vadd.f32 0.0, %v1689
      %v1691 = vpop.f32.mrb[0].mxu0
      %1692 = vmatprep.mubr.f32.mxu0 0.0
      %1693 = vmatmul.mubr.f32.gmra.mrb[0].mxu0 %v335
      %v1694 = vpop.f32.mrb[0].mxu0
      %v1695 = vadd.f32 0.0, %v1694
      %v1696 = vpop.f32.mrb[0].mxu0
      %1697 = vmatprep.mubr.f32.mxu0 0.0
      %1698 = vmatmul.mubr.f32.gmra.mrb[0].mxu0 %v338
      %v1699 = vpop.f32.mrb[0].mxu0
      %v1700 = vadd.f32 0.0, %v1699
      %v1701 = vpop.f32.mrb[0].mxu0
      %1702 = vmatprep.mubr.f32.mxu0 0.0
      %1703 = vmatmul.mubr.f32.gmra.mrb[0].mxu0 %v340
      %v1704 = vpop.f32.mrb[0].mxu0
      %v1705 = vadd.f32 0.0, %v1704
      %v1706 = vpop.f32.mrb[0].mxu0
      %1707 = vmatprep.mubr.f32.mxu0 0.0
      %1708 = vmatmul.mubr.f32.gmra.mrb[0].mxu0 %v343
      %v1709 = vpop.f32.mrb[0].mxu0
      %v1710 = vadd.f32 0.0, %v1709
      %v1711 = vpop.f32.mrb[0].mxu0
      %1712 = vmatprep.mubr.f32.mxu0 0.0
      %1713 = vmatmul.mubr.f32.gmra.mrb[0].mxu0 %v345
      %v1714 = vpop.f32.mrb[0].mxu0
      %v1715 = vadd.f32 0.0, %v1714
      %v1716 = vpop.f32.mrb[0].mxu0
      %1717 = vmatprep.mubr.f32.mxu0 0.0
      %1718 = vmatmul.mubr.f32.gmra.mrb[0].mxu0 %v348
      %v1719 = vpop.f32.mrb[0].mxu0
      %v1720 = vadd.f32 0.0, %v1719
      %v1721 = vpop.f32.mrb[0].mxu0
      %1722 = vmatprep.mubr.f32.mxu0 0.0
      %1723 = vmatmul.mubr.f32.gmra.mrb[0].mxu0 %v350
      %v1724 = vpop.f32.mrb[0].mxu0
      %v1725 = vadd.f32 0.0, %v1724
      %v1726 = vpop.f32.mrb[0].mxu0
      %1727 = vmatprep.mubr.f32.mxu0 0.0
      %1728 = vmatmul.mubr.f32.gmra.mrb[0].mxu0 %v353
      %v1729 = vpop.f32.mrb[0].mxu0
      %v1730 = vadd.f32 0.0, %v1729
      %v1731 = vpop.f32.mrb[0].mxu0
      %1732 = vmatprep.mubr.f32.mxu0 0.0
      %1733 = vmatmul.mubr.f32.gmra.mrb[0].mxu0 %v355
      %v1734 = vpop.f32.mrb[0].mxu0
      %v1735 = vadd.f32 0.0, %v1734
      %v1736 = vpop.f32.mrb[0].mxu0
      %1737 = vmatprep.mubr.f32.mxu0 0.0
      %1738 = vmatmul.mubr.f32.gmra.mrb[0].mxu0 %v358
      %v1739 = vpop.f32.mrb[0].mxu0
      %v1740 = vadd.f32 0.0, %v1739
      %v1741 = vpop.f32.mrb[0].mxu0
      %1742 = vmatprep.mubr.f32.mxu0 0.0
      %1743 = vmatmul.mubr.f32.gmra.mrb[0].mxu0 %v360
      %v1744 = vpop.f32.mrb[0].mxu0
      %v1745 = vadd.f32 0.0, %v1744
      %v1746 = vpop.f32.mrb[0].mxu0
      %1747 = vmatprep.mubr.f32.mxu0 0.0
      %1748 = vmatmul.mubr.f32.gmra.mrb[0].mxu0 %v363
      %v1749 = vpop.f32.mrb[0].mxu0
      %v1750 = vadd.f32 0.0, %v1749
      %v1751 = vpop.f32.mrb[0].mxu0
      %1752 = vmatprep.mubr.f32.mxu0 0.0
      %1753 = vmatmul.mubr.f32.gmra.mrb[0].mxu0 %v365
      %v1754 = vpop.f32.mrb[0].mxu0
      %v1755 = vadd.f32 0.0, %v1754
      %v1756 = vpop.f32.mrb[0].mxu0
      %1757 = vmatprep.mubr.f32.mxu0 0.0
      %1758 = vmatmul.mubr.f32.gmra.mrb[0].mxu0 %v368
      %v1759 = vpop.f32.mrb[0].mxu0
      %v1760 = vadd.f32 0.0, %v1759
      %v1761 = vpop.f32.mrb[0].mxu0
      %1762 = vmatprep.mubr.f32.mxu0 0.0
      %1763 = vmatmul.mubr.f32.gmra.mrb[0].mxu0 %v370
      %v1764 = vpop.f32.mrb[0].mxu0
      %v1765 = vadd.f32 0.0, %v1764
      %v1766 = vpop.f32.mrb[0].mxu0
      %1767 = vmatprep.mubr.f32.mxu0 0.0
      %1768 = vmatmul.mubr.f32.gmra.mrb[0].mxu0 %v373
      %v1769 = vpop.f32.mrb[0].mxu0
      %v1770 = vadd.f32 0.0, %v1769
      %v1771 = vpop.f32.mrb[0].mxu0
      %1772 = vmatprep.mubr.f32.mxu0 0.0
      %1773 = vmatmul.mubr.f32.gmra.mrb[0].mxu0 %v375
      %v1774 = vpop.f32.mrb[0].mxu0
      %v1775 = vadd.f32 0.0, %v1774
      %v1776 = vpop.f32.mrb[0].mxu0
      %1777 = vmatprep.mubr.f32.mxu0 0.0
      %1778 = vmatmul.mubr.f32.gmra.mrb[0].mxu0 %v1544
      %v1779 = vpop.f32.mrb[0].mxu0
      %v1780 = vadd.f32 0.0, %v1779
      %v1781 = vpop.f32.mrb[0].mxu0
      %1782 = vmatprep.mubr.f32.mxu0 0.0
      %1783 = vmatmul.mubr.f32.gmra.mrb[0].mxu0 %v1546
      %v1784 = vpop.f32.mrb[0].mxu0
      %v1785 = vadd.f32 0.0, %v1784
      %v1786 = vpop.f32.mrb[0].mxu0
      %1787 = vmatprep.mubr.f32.mxu0 0.0
      %1788 = vmatmul.mubr.f32.gmra.mrb[0].mxu0 %v1549
      %v1789 = vpop.f32.mrb[0].mxu0
      %v1790 = vadd.f32 0.0, %v1789
      %v1791 = vpop.f32.mrb[0].mxu0
      %1792 = vmatprep.mubr.f32.mxu0 0.0
      %1793 = vmatmul.mubr.f32.gmra.mrb[0].mxu0 %v1551
      %v1794 = vpop.f32.mrb[0].mxu0
      %v1795 = vadd.f32 0.0, %v1794
      %v1796 = vpop.f32.mrb[0].mxu0
      %1797 = vdwg.mxu0
      %v1798 = vadd.f32 %v1504, %v1640
      %v1799 = vadd.f32 %v1505, %v1645
      %v1800 = vadd.f32 %v1506, %v1650
      %v1801 = vadd.f32 %v1507, %v1655
      %v1802 = vadd.f32 %v1508, %v1660
      %v1803 = vadd.f32 %v1509, %v1665
      %v1804 = vadd.f32 %v1510, %v1670
      %v1805 = vadd.f32 %v1511, %v1675
      %v1806 = vadd.f32 %v1512, %v1680
      %v1807 = vadd.f32 %v1513, %v1685
      %v1808 = vadd.f32 %v1514, %v1690
      %v1809 = vadd.f32 %v1515, %v1695
      %v1810 = vadd.f32 %v1516, %v1700
      %v1811 = vadd.f32 %v1517, %v1705
      %v1812 = vadd.f32 %v1518, %v1710
      %v1813 = vadd.f32 %v1519, %v1715
      %v1814 = vadd.f32 %v1520, %v1720
      %v1815 = vadd.f32 %v1521, %v1725
      %v1816 = vadd.f32 %v1522, %v1730
      %v1817 = vadd.f32 %v1523, %v1735
      %v1818 = vadd.f32 %v1524, %v1740
      %v1819 = vadd.f32 %v1525, %v1745
      %v1820 = vadd.f32 %v1526, %v1750
      %v1821 = vadd.f32 %v1527, %v1755
      %v1822 = vadd.f32 %v1528, %v1760
      %v1823 = vadd.f32 %v1529, %v1765
      %v1824 = vadd.f32 %v1530, %v1770
      %v1825 = vadd.f32 %v1531, %v1775
      %v1826 = vadd.f32 %v1532, %v1780
      %v1827 = vadd.f32 %v1533, %v1785
      %v1828 = vadd.f32 %v1534, %v1790
      %v1829 = vadd.f32 %v1535, %v1795
      %v1830 = vrot.slane %v219, 4
      %v1831 = vrot.slane %v220, 4
      %v1832 = vsel %vm875, %v1830, %v1831
      %v1833 = vrot.slane %v221, 4
      %v1834 = vsel %vm875, %v1831, %v1833
      %v1835 = vrot.slane %v222, 4
      %v1836 = vrot.slane %v223, 4
      %v1837 = vsel %vm875, %v1835, %v1836
      %v1838 = vrot.slane %v224, 4
      %v1839 = vsel %vm875, %v1836, %v1838
      %s1844 = scalar_lea.vmem %s1, 640
      %v1845 = vld [vmem:[%s1844] sm:$0xff]
      %v1846 = vld [vmem:[%s1844 + $0x8] sm:$0xff]
      %v1847 = vld [vmem:[%s1844 + $0x10] sm:$0xff]
      %v1848 = vld [vmem:[%s1844 + $0x18] sm:$0xff]
      %v1849 = vld [vmem:[%s1844 + $0x20] sm:$0xff]
      %v1850 = vld [vmem:[%s1844 + $0x28] sm:$0xff]
      %v1851 = vld [vmem:[%s1844 + $0x30] sm:$0xff]
      %v1852 = vld [vmem:[%s1844 + $0x38] sm:$0xff]
      %v1853 = vld [vmem:[%s1844 + $0x40] sm:$0xff]
      %v1854 = vld [vmem:[%s1844 + $0x48] sm:$0xff]
      %v1855 = vld [vmem:[%s1844 + $0x50] sm:$0xff]
      %v1856 = vld [vmem:[%s1844 + $0x58] sm:$0xff]
      %v1857 = vld [vmem:[%s1844 + $0x60] sm:$0xff]
      %v1858 = vld [vmem:[%s1844 + $0x68] sm:$0xff]
      %v1859 = vld [vmem:[%s1844 + $0x70] sm:$0xff]
      %v1860 = vld [vmem:[%s1844 + $0x78] sm:$0xff]
      %1861 = vmatprep.subr.mxu0 0.0
      %1862 = vmatpush1.msra.mxu0 %v1845
      %1863 = vmatprep.subr.mxu0 0.0
      %1864 = vmatpush1.msra.mxu0 %v1846
      %1865 = vmatprep.subr.mxu0 0.0
      %1866 = vmatpush1.msra.mxu0 %v1847
      %1867 = vmatprep.subr.mxu0 0.0
      %1868 = vmatpush1.msra.mxu0 %v1848
      %1869 = vmatprep.subr.mxu0 0.0
      %1870 = vmatpush1.msra.mxu0 %v1849
      %1871 = vmatprep.subr.mxu0 0.0
      %1872 = vmatpush1.msra.mxu0 %v1850
      %1873 = vmatprep.subr.mxu0 0.0
      %1874 = vmatpush1.msra.mxu0 %v1851
      %1875 = vmatprep.subr.mxu0 0.0
      %1876 = vmatpush1.msra.mxu0 %v1852
      %1877 = vmatprep.subr.mxu0 0.0
      %1878 = vmatpush1.msra.mxu0 %v1853
      %1879 = vmatprep.subr.mxu0 0.0
      %1880 = vmatpush1.msra.mxu0 %v1854
      %1881 = vmatprep.subr.mxu0 0.0
      %1882 = vmatpush1.msra.mxu0 %v1855
      %1883 = vmatprep.subr.mxu0 0.0
      %1884 = vmatpush1.msra.mxu0 %v1856
      %1885 = vmatprep.subr.mxu0 0.0
      %1886 = vmatpush1.msra.mxu0 %v1857
      %1887 = vmatprep.subr.mxu0 0.0
      %1888 = vmatpush1.msra.mxu0 %v1858
      %1889 = vmatprep.subr.mxu0 0.0
      %1890 = vmatpush1.msra.mxu0 %v1859
      %1891 = vmatprep.subr.mxu0 0.0
      %1892 = vmatpush1.msra.mxu0 %v1860
      %1893 = vmatprep.subr.mxu0 0.0
      %1894 = vmatpush1.msra.mxu0 0.0
      %1895 = vmatprep.subr.mxu0 0.0
      %1896 = vmatpush1.msra.mxu0 0.0
      %1897 = vmatprep.subr.mxu0 0.0
      %1898 = vmatpush1.msra.mxu0 0.0
      %1899 = vmatprep.subr.mxu0 0.0
      %1900 = vmatpush1.msra.mxu0 0.0
      %1901 = vmatprep.subr.mxu0 0.0
      %1902 = vmatpush1.msra.mxu0 0.0
      %1903 = vmatprep.subr.mxu0 0.0
      %1904 = vmatpush1.msra.mxu0 0.0
      %1905 = vmatprep.subr.mxu0 0.0
      %1906 = vmatpush1.msra.mxu0 0.0
      %1907 = vmatprep.subr.mxu0 0.0
      %1908 = vmatpush1.msra.mxu0 0.0
      %1909 = vmatprep.subr.mxu0 0.0
      %1910 = vmatpush1.msra.mxu0 0.0
      %1911 = vmatprep.subr.mxu0 0.0
      %1912 = vmatpush1.msra.mxu0 0.0
      %1913 = vmatprep.subr.mxu0 0.0
      %1914 = vmatpush1.msra.mxu0 0.0
      %1915 = vmatprep.subr.mxu0 0.0
      %1916 = vmatpush1.msra.mxu0 0.0
      %1917 = vmatprep.subr.mxu0 0.0
      %1918 = vmatpush1.msra.mxu0 0.0
      %1919 = vmatprep.subr.mxu0 0.0
      %1920 = vmatpush1.msra.mxu0 0.0
      %1921 = vmatprep.subr.mxu0 0.0
      %1922 = vmatpush1.msra.mxu0 0.0
      %1923 = vmatprep.subr.mxu0 0.0
      %1924 = vmatpush1.msra.mxu0 0.0
      %1925 = vmatprep.mubr.f32.mxu0 0.0
      %1926 = vmatmul.mubr.f32.gmra.mrb[0].mxu0 %v888
      %v1927 = vpop.f32.mrb[0].mxu0
      %v1928 = vadd.f32 0.0, %v1927
      %v1929 = vpop.f32.mrb[0].mxu0
      %1930 = vmatprep.mubr.f32.mxu0 0.0
      %1931 = vmatmul.mubr.f32.gmra.mrb[0].mxu0 %v890
      %v1932 = vpop.f32.mrb[0].mxu0
      %v1933 = vadd.f32 0.0, %v1932
      %v1934 = vpop.f32.mrb[0].mxu0
      %1935 = vmatprep.mubr.f32.mxu0 0.0
      %1936 = vmatmul.mubr.f32.gmra.mrb[0].mxu0 %v893
      %v1937 = vpop.f32.mrb[0].mxu0
      %v1938 = vadd.f32 0.0, %v1937
      %v1939 = vpop.f32.mrb[0].mxu0
      %1940 = vmatprep.mubr.f32.mxu0 0.0
      %1941 = vmatmul.mubr.f32.gmra.mrb[0].mxu0 %v895
      %v1942 = vpop.f32.mrb[0].mxu0
      %v1943 = vadd.f32 0.0, %v1942
      %v1944 = vpop.f32.mrb[0].mxu0
      %1945 = vmatprep.mubr.f32.mxu0 0.0
      %1946 = vmatmul.mubr.f32.gmra.mrb[0].mxu0 %v898
      %v1947 = vpop.f32.mrb[0].mxu0
      %v1948 = vadd.f32 0.0, %v1947
      %v1949 = vpop.f32.mrb[0].mxu0
      %1950 = vmatprep.mubr.f32.mxu0 0.0
      %1951 = vmatmul.mubr.f32.gmra.mrb[0].mxu0 %v900
      %v1952 = vpop.f32.mrb[0].mxu0
      %v1953 = vadd.f32 0.0, %v1952
      %v1954 = vpop.f32.mrb[0].mxu0
      %1955 = vmatprep.mubr.f32.mxu0 0.0
      %1956 = vmatmul.mubr.f32.gmra.mrb[0].mxu0 %v903
      %v1957 = vpop.f32.mrb[0].mxu0
      %v1958 = vadd.f32 0.0, %v1957
      %v1959 = vpop.f32.mrb[0].mxu0
      %1960 = vmatprep.mubr.f32.mxu0 0.0
      %1961 = vmatmul.mubr.f32.gmra.mrb[0].mxu0 %v905
      %v1962 = vpop.f32.mrb[0].mxu0
      %v1963 = vadd.f32 0.0, %v1962
      %v1964 = vpop.f32.mrb[0].mxu0
      %1965 = vmatprep.mubr.f32.mxu0 0.0
      %1966 = vmatmul.mubr.f32.gmra.mrb[0].mxu0 %v908
      %v1967 = vpop.f32.mrb[0].mxu0
      %v1968 = vadd.f32 0.0, %v1967
      %v1969 = vpop.f32.mrb[0].mxu0
      %1970 = vmatprep.mubr.f32.mxu0 0.0
      %1971 = vmatmul.mubr.f32.gmra.mrb[0].mxu0 %v910
      %v1972 = vpop.f32.mrb[0].mxu0
      %v1973 = vadd.f32 0.0, %v1972
      %v1974 = vpop.f32.mrb[0].mxu0
      %1975 = vmatprep.mubr.f32.mxu0 0.0
      %1976 = vmatmul.mubr.f32.gmra.mrb[0].mxu0 %v913
      %v1977 = vpop.f32.mrb[0].mxu0
      %v1978 = vadd.f32 0.0, %v1977
      %v1979 = vpop.f32.mrb[0].mxu0
      %1980 = vmatprep.mubr.f32.mxu0 0.0
      %1981 = vmatmul.mubr.f32.gmra.mrb[0].mxu0 %v915
      %v1982 = vpop.f32.mrb[0].mxu0
      %v1983 = vadd.f32 0.0, %v1982
      %v1984 = vpop.f32.mrb[0].mxu0
      %1985 = vmatprep.mubr.f32.mxu0 0.0
      %1986 = vmatmul.mubr.f32.gmra.mrb[0].mxu0 %v918
      %v1987 = vpop.f32.mrb[0].mxu0
      %v1988 = vadd.f32 0.0, %v1987
      %v1989 = vpop.f32.mrb[0].mxu0
      %1990 = vmatprep.mubr.f32.mxu0 0.0
      %1991 = vmatmul.mubr.f32.gmra.mrb[0].mxu0 %v920
      %v1992 = vpop.f32.mrb[0].mxu0
      %v1993 = vadd.f32 0.0, %v1992
      %v1994 = vpop.f32.mrb[0].mxu0
      %1995 = vmatprep.mubr.f32.mxu0 0.0
      %1996 = vmatmul.mubr.f32.gmra.mrb[0].mxu0 %v923
      %v1997 = vpop.f32.mrb[0].mxu0
      %v1998 = vadd.f32 0.0, %v1997
      %v1999 = vpop.f32.mrb[0].mxu0
      %2000 = vmatprep.mubr.f32.mxu0 0.0
      %2001 = vmatmul.mubr.f32.gmra.mrb[0].mxu0 %v925
      %v2002 = vpop.f32.mrb[0].mxu0
      %v2003 = vadd.f32 0.0, %v2002
      %v2004 = vpop.f32.mrb[0].mxu0
      %2005 = vmatprep.mubr.f32.mxu0 0.0
      %2006 = vmatmul.mubr.f32.gmra.mrb[0].mxu0 %v928
      %v2007 = vpop.f32.mrb[0].mxu0
      %v2008 = vadd.f32 0.0, %v2007
      %v2009 = vpop.f32.mrb[0].mxu0
      %2010 = vmatprep.mubr.f32.mxu0 0.0
      %2011 = vmatmul.mubr.f32.gmra.mrb[0].mxu0 %v930
      %v2012 = vpop.f32.mrb[0].mxu0
      %v2013 = vadd.f32 0.0, %v2012
      %v2014 = vpop.f32.mrb[0].mxu0
      %2015 = vmatprep.mubr.f32.mxu0 0.0
      %2016 = vmatmul.mubr.f32.gmra.mrb[0].mxu0 %v933
      %v2017 = vpop.f32.mrb[0].mxu0
      %v2018 = vadd.f32 0.0, %v2017
      %v2019 = vpop.f32.mrb[0].mxu0
      %2020 = vmatprep.mubr.f32.mxu0 0.0
      %2021 = vmatmul.mubr.f32.gmra.mrb[0].mxu0 %v935
      %v2022 = vpop.f32.mrb[0].mxu0
      %v2023 = vadd.f32 0.0, %v2022
      %v2024 = vpop.f32.mrb[0].mxu0
      %2025 = vmatprep.mubr.f32.mxu0 0.0
      %2026 = vmatmul.mubr.f32.gmra.mrb[0].mxu0 %v938
      %v2027 = vpop.f32.mrb[0].mxu0
      %v2028 = vadd.f32 0.0, %v2027
      %v2029 = vpop.f32.mrb[0].mxu0
      %2030 = vmatprep.mubr.f32.mxu0 0.0
      %2031 = vmatmul.mubr.f32.gmra.mrb[0].mxu0 %v940
      %v2032 = vpop.f32.mrb[0].mxu0
      %v2033 = vadd.f32 0.0, %v2032
      %v2034 = vpop.f32.mrb[0].mxu0
      %2035 = vmatprep.mubr.f32.mxu0 0.0
      %2036 = vmatmul.mubr.f32.gmra.mrb[0].mxu0 %v943
      %v2037 = vpop.f32.mrb[0].mxu0
      %v2038 = vadd.f32 0.0, %v2037
      %v2039 = vpop.f32.mrb[0].mxu0
      %2040 = vmatprep.mubr.f32.mxu0 0.0
      %2041 = vmatmul.mubr.f32.gmra.mrb[0].mxu0 %v945
      %v2042 = vpop.f32.mrb[0].mxu0
      %v2043 = vadd.f32 0.0, %v2042
      %v2044 = vpop.f32.mrb[0].mxu0
      %2045 = vmatprep.mubr.f32.mxu0 0.0
      %2046 = vmatmul.mubr.f32.gmra.mrb[0].mxu0 %v948
      %v2047 = vpop.f32.mrb[0].mxu0
      %v2048 = vadd.f32 0.0, %v2047
      %v2049 = vpop.f32.mrb[0].mxu0
      %2050 = vmatprep.mubr.f32.mxu0 0.0
      %2051 = vmatmul.mubr.f32.gmra.mrb[0].mxu0 %v950
      %v2052 = vpop.f32.mrb[0].mxu0
      %v2053 = vadd.f32 0.0, %v2052
      %v2054 = vpop.f32.mrb[0].mxu0
      %2055 = vmatprep.mubr.f32.mxu0 0.0
      %2056 = vmatmul.mubr.f32.gmra.mrb[0].mxu0 %v953
      %v2057 = vpop.f32.mrb[0].mxu0
      %v2058 = vadd.f32 0.0, %v2057
      %v2059 = vpop.f32.mrb[0].mxu0
      %2060 = vmatprep.mubr.f32.mxu0 0.0
      %2061 = vmatmul.mubr.f32.gmra.mrb[0].mxu0 %v955
      %v2062 = vpop.f32.mrb[0].mxu0
      %v2063 = vadd.f32 0.0, %v2062
      %v2064 = vpop.f32.mrb[0].mxu0
      %2065 = vmatprep.mubr.f32.mxu0 0.0
      %2066 = vmatmul.mubr.f32.gmra.mrb[0].mxu0 %v1832
      %v2067 = vpop.f32.mrb[0].mxu0
      %v2068 = vadd.f32 0.0, %v2067
      %v2069 = vpop.f32.mrb[0].mxu0
      %2070 = vmatprep.mubr.f32.mxu0 0.0
      %2071 = vmatmul.mubr.f32.gmra.mrb[0].mxu0 %v1834
      %v2072 = vpop.f32.mrb[0].mxu0
      %v2073 = vadd.f32 0.0, %v2072
      %v2074 = vpop.f32.mrb[0].mxu0
      %2075 = vmatprep.mubr.f32.mxu0 0.0
      %2076 = vmatmul.mubr.f32.gmra.mrb[0].mxu0 %v1837
      %v2077 = vpop.f32.mrb[0].mxu0
      %v2078 = vadd.f32 0.0, %v2077
      %v2079 = vpop.f32.mrb[0].mxu0
      %2080 = vmatprep.mubr.f32.mxu0 0.0
      %2081 = vmatmul.mubr.f32.gmra.mrb[0].mxu0 %v1839
      %v2082 = vpop.f32.mrb[0].mxu0
      %v2083 = vadd.f32 0.0, %v2082
      %v2084 = vpop.f32.mrb[0].mxu0
      %2085 = vdwg.mxu0
      %v2086 = vadd.f32 %v1798, %v1928
      %v2087 = vadd.f32 %v1799, %v1933
      %v2088 = vadd.f32 %v1800, %v1938
      %v2089 = vadd.f32 %v1801, %v1943
      %v2090 = vadd.f32 %v1802, %v1948
      %v2091 = vadd.f32 %v1803, %v1953
      %v2092 = vadd.f32 %v1804, %v1958
      %v2093 = vadd.f32 %v1805, %v1963
      %v2094 = vadd.f32 %v1806, %v1968
      %v2095 = vadd.f32 %v1807, %v1973
      %v2096 = vadd.f32 %v1808, %v1978
      %v2097 = vadd.f32 %v1809, %v1983
      %v2098 = vadd.f32 %v1810, %v1988
      %v2099 = vadd.f32 %v1811, %v1993
      %v2100 = vadd.f32 %v1812, %v1998
      %v2101 = vadd.f32 %v1813, %v2003
      %v2102 = vadd.f32 %v1814, %v2008
      %v2103 = vadd.f32 %v1815, %v2013
      %v2104 = vadd.f32 %v1816, %v2018
      %v2105 = vadd.f32 %v1817, %v2023
      %v2106 = vadd.f32 %v1818, %v2028
      %v2107 = vadd.f32 %v1819, %v2033
      %v2108 = vadd.f32 %v1820, %v2038
      %v2109 = vadd.f32 %v1821, %v2043
      %v2110 = vadd.f32 %v1822, %v2048
      %v2111 = vadd.f32 %v1823, %v2053
      %v2112 = vadd.f32 %v1824, %v2058
      %v2113 = vadd.f32 %v1825, %v2063
      %v2114 = vadd.f32 %v1826, %v2068
      %v2115 = vadd.f32 %v1827, %v2073
      %v2116 = vadd.f32 %v1828, %v2078
      %v2117 = vadd.f32 %v1829, %v2083
      %s2118 = scalar_lea.vmem %s1, 768
      %v2119 = vld [vmem:[%s2118] sm:$0xff]
      %v2120 = vld [vmem:[%s2118 + $0x8] sm:$0xff]
      %v2121 = vld [vmem:[%s2118 + $0x10] sm:$0xff]
      %v2122 = vld [vmem:[%s2118 + $0x18] sm:$0xff]
      %v2123 = vld [vmem:[%s2118 + $0x20] sm:$0xff]
      %v2124 = vld [vmem:[%s2118 + $0x28] sm:$0xff]
      %v2125 = vld [vmem:[%s2118 + $0x30] sm:$0xff]
      %v2126 = vld [vmem:[%s2118 + $0x38] sm:$0xff]
      %v2127 = vld [vmem:[%s2118 + $0x40] sm:$0xff]
      %v2128 = vld [vmem:[%s2118 + $0x48] sm:$0xff]
      %v2129 = vld [vmem:[%s2118 + $0x50] sm:$0xff]
      %v2130 = vld [vmem:[%s2118 + $0x58] sm:$0xff]
      %v2131 = vld [vmem:[%s2118 + $0x60] sm:$0xff]
      %v2132 = vld [vmem:[%s2118 + $0x68] sm:$0xff]
      %v2133 = vld [vmem:[%s2118 + $0x70] sm:$0xff]
      %v2134 = vld [vmem:[%s2118 + $0x78] sm:$0xff]
      %2135 = vmatprep.subr.mxu0 0.0
      %2136 = vmatpush1.msra.mxu0 %v2119
      %2137 = vmatprep.subr.mxu0 0.0
      %2138 = vmatpush1.msra.mxu0 %v2120
      %2139 = vmatprep.subr.mxu0 0.0
      %2140 = vmatpush1.msra.mxu0 %v2121
      %2141 = vmatprep.subr.mxu0 0.0
      %2142 = vmatpush1.msra.mxu0 %v2122
      %2143 = vmatprep.subr.mxu0 0.0
      %2144 = vmatpush1.msra.mxu0 %v2123
      %2145 = vmatprep.subr.mxu0 0.0
      %2146 = vmatpush1.msra.mxu0 %v2124
      %2147 = vmatprep.subr.mxu0 0.0
      %2148 = vmatpush1.msra.mxu0 %v2125
      %2149 = vmatprep.subr.mxu0 0.0
      %2150 = vmatpush1.msra.mxu0 %v2126
      %2151 = vmatprep.subr.mxu0 0.0
      %2152 = vmatpush1.msra.mxu0 %v2127
      %2153 = vmatprep.subr.mxu0 0.0
      %2154 = vmatpush1.msra.mxu0 %v2128
      %2155 = vmatprep.subr.mxu0 0.0
      %2156 = vmatpush1.msra.mxu0 %v2129
      %2157 = vmatprep.subr.mxu0 0.0
      %2158 = vmatpush1.msra.mxu0 %v2130
      %2159 = vmatprep.subr.mxu0 0.0
      %2160 = vmatpush1.msra.mxu0 %v2131
      %2161 = vmatprep.subr.mxu0 0.0
      %2162 = vmatpush1.msra.mxu0 %v2132
      %2163 = vmatprep.subr.mxu0 0.0
      %2164 = vmatpush1.msra.mxu0 %v2133
      %2165 = vmatprep.subr.mxu0 0.0
      %2166 = vmatpush1.msra.mxu0 %v2134
      %2167 = vmatprep.subr.mxu0 0.0
      %2168 = vmatpush1.msra.mxu0 0.0
      %2169 = vmatprep.subr.mxu0 0.0
      %2170 = vmatpush1.msra.mxu0 0.0
      %2171 = vmatprep.subr.mxu0 0.0
      %2172 = vmatpush1.msra.mxu0 0.0
      %2173 = vmatprep.subr.mxu0 0.0
      %2174 = vmatpush1.msra.mxu0 0.0
      %2175 = vmatprep.subr.mxu0 0.0
      %2176 = vmatpush1.msra.mxu0 0.0
      %2177 = vmatprep.subr.mxu0 0.0
      %2178 = vmatpush1.msra.mxu0 0.0
      %2179 = vmatprep.subr.mxu0 0.0
      %2180 = vmatpush1.msra.mxu0 0.0
      %2181 = vmatprep.subr.mxu0 0.0
      %2182 = vmatpush1.msra.mxu0 0.0
      %2183 = vmatprep.subr.mxu0 0.0
      %2184 = vmatpush1.msra.mxu0 0.0
      %2185 = vmatprep.subr.mxu0 0.0
      %2186 = vmatpush1.msra.mxu0 0.0
      %2187 = vmatprep.subr.mxu0 0.0
      %2188 = vmatpush1.msra.mxu0 0.0
      %2189 = vmatprep.subr.mxu0 0.0
      %2190 = vmatpush1.msra.mxu0 0.0
      %2191 = vmatprep.subr.mxu0 0.0
      %2192 = vmatpush1.msra.mxu0 0.0
      %2193 = vmatprep.subr.mxu0 0.0
      %2194 = vmatpush1.msra.mxu0 0.0
      %2195 = vmatprep.subr.mxu0 0.0
      %2196 = vmatpush1.msra.mxu0 0.0
      %2197 = vmatprep.subr.mxu0 0.0
      %2198 = vmatpush1.msra.mxu0 0.0
      %2199 = vmatprep.mubr.f32.mxu0 0.0
      %2200 = vmatmul.mubr.f32.gmra.mrb[0].mxu0 %v183
      %v2201 = vpop.f32.mrb[0].mxu0
      %v2202 = vadd.f32 0.0, %v2201
      %v2203 = vpop.f32.mrb[0].mxu0
      %2204 = vmatprep.mubr.f32.mxu0 0.0
      %2205 = vmatmul.mubr.f32.gmra.mrb[0].mxu0 %v184
      %v2206 = vpop.f32.mrb[0].mxu0
      %v2207 = vadd.f32 0.0, %v2206
      %v2208 = vpop.f32.mrb[0].mxu0
      %2209 = vmatprep.mubr.f32.mxu0 0.0
      %2210 = vmatmul.mubr.f32.gmra.mrb[0].mxu0 %v186
      %v2211 = vpop.f32.mrb[0].mxu0
      %v2212 = vadd.f32 0.0, %v2211
      %v2213 = vpop.f32.mrb[0].mxu0
      %2214 = vmatprep.mubr.f32.mxu0 0.0
      %2215 = vmatmul.mubr.f32.gmra.mrb[0].mxu0 %v187
      %v2216 = vpop.f32.mrb[0].mxu0
      %v2217 = vadd.f32 0.0, %v2216
      %v2218 = vpop.f32.mrb[0].mxu0
      %2219 = vmatprep.mubr.f32.mxu0 0.0
      %2220 = vmatmul.mubr.f32.gmra.mrb[0].mxu0 %v189
      %v2221 = vpop.f32.mrb[0].mxu0
      %v2222 = vadd.f32 0.0, %v2221
      %v2223 = vpop.f32.mrb[0].mxu0
      %2224 = vmatprep.mubr.f32.mxu0 0.0
      %2225 = vmatmul.mubr.f32.gmra.mrb[0].mxu0 %v190
      %v2226 = vpop.f32.mrb[0].mxu0
      %v2227 = vadd.f32 0.0, %v2226
      %v2228 = vpop.f32.mrb[0].mxu0
      %2229 = vmatprep.mubr.f32.mxu0 0.0
      %2230 = vmatmul.mubr.f32.gmra.mrb[0].mxu0 %v192
      %v2231 = vpop.f32.mrb[0].mxu0
      %v2232 = vadd.f32 0.0, %v2231
      %v2233 = vpop.f32.mrb[0].mxu0
      %2234 = vmatprep.mubr.f32.mxu0 0.0
      %2235 = vmatmul.mubr.f32.gmra.mrb[0].mxu0 %v193
      %v2236 = vpop.f32.mrb[0].mxu0
      %v2237 = vadd.f32 0.0, %v2236
      %v2238 = vpop.f32.mrb[0].mxu0
      %2239 = vmatprep.mubr.f32.mxu0 0.0
      %2240 = vmatmul.mubr.f32.gmra.mrb[0].mxu0 %v195
      %v2241 = vpop.f32.mrb[0].mxu0
      %v2242 = vadd.f32 0.0, %v2241
      %v2243 = vpop.f32.mrb[0].mxu0
      %2244 = vmatprep.mubr.f32.mxu0 0.0
      %2245 = vmatmul.mubr.f32.gmra.mrb[0].mxu0 %v196
      %v2246 = vpop.f32.mrb[0].mxu0
      %v2247 = vadd.f32 0.0, %v2246
      %v2248 = vpop.f32.mrb[0].mxu0
      %2249 = vmatprep.mubr.f32.mxu0 0.0
      %2250 = vmatmul.mubr.f32.gmra.mrb[0].mxu0 %v198
      %v2251 = vpop.f32.mrb[0].mxu0
      %v2252 = vadd.f32 0.0, %v2251
      %v2253 = vpop.f32.mrb[0].mxu0
      %2254 = vmatprep.mubr.f32.mxu0 0.0
      %2255 = vmatmul.mubr.f32.gmra.mrb[0].mxu0 %v199
      %v2256 = vpop.f32.mrb[0].mxu0
      %v2257 = vadd.f32 0.0, %v2256
      %v2258 = vpop.f32.mrb[0].mxu0
      %2259 = vmatprep.mubr.f32.mxu0 0.0
      %2260 = vmatmul.mubr.f32.gmra.mrb[0].mxu0 %v201
      %v2261 = vpop.f32.mrb[0].mxu0
      %v2262 = vadd.f32 0.0, %v2261
      %v2263 = vpop.f32.mrb[0].mxu0
      %2264 = vmatprep.mubr.f32.mxu0 0.0
      %2265 = vmatmul.mubr.f32.gmra.mrb[0].mxu0 %v202
      %v2266 = vpop.f32.mrb[0].mxu0
      %v2267 = vadd.f32 0.0, %v2266
      %v2268 = vpop.f32.mrb[0].mxu0
      %2269 = vmatprep.mubr.f32.mxu0 0.0
      %2270 = vmatmul.mubr.f32.gmra.mrb[0].mxu0 %v204
      %v2271 = vpop.f32.mrb[0].mxu0
      %v2272 = vadd.f32 0.0, %v2271
      %v2273 = vpop.f32.mrb[0].mxu0
      %2274 = vmatprep.mubr.f32.mxu0 0.0
      %2275 = vmatmul.mubr.f32.gmra.mrb[0].mxu0 %v205
      %v2276 = vpop.f32.mrb[0].mxu0
      %v2277 = vadd.f32 0.0, %v2276
      %v2278 = vpop.f32.mrb[0].mxu0
      %2279 = vmatprep.mubr.f32.mxu0 0.0
      %2280 = vmatmul.mubr.f32.gmra.mrb[0].mxu0 %v207
      %v2281 = vpop.f32.mrb[0].mxu0
      %v2282 = vadd.f32 0.0, %v2281
      %v2283 = vpop.f32.mrb[0].mxu0
      %2284 = vmatprep.mubr.f32.mxu0 0.0
      %2285 = vmatmul.mubr.f32.gmra.mrb[0].mxu0 %v208
      %v2286 = vpop.f32.mrb[0].mxu0
      %v2287 = vadd.f32 0.0, %v2286
      %v2288 = vpop.f32.mrb[0].mxu0
      %2289 = vmatprep.mubr.f32.mxu0 0.0
      %2290 = vmatmul.mubr.f32.gmra.mrb[0].mxu0 %v210
      %v2291 = vpop.f32.mrb[0].mxu0
      %v2292 = vadd.f32 0.0, %v2291
      %v2293 = vpop.f32.mrb[0].mxu0
      %2294 = vmatprep.mubr.f32.mxu0 0.0
      %2295 = vmatmul.mubr.f32.gmra.mrb[0].mxu0 %v211
      %v2296 = vpop.f32.mrb[0].mxu0
      %v2297 = vadd.f32 0.0, %v2296
      %v2298 = vpop.f32.mrb[0].mxu0
      %2299 = vmatprep.mubr.f32.mxu0 0.0
      %2300 = vmatmul.mubr.f32.gmra.mrb[0].mxu0 %v213
      %v2301 = vpop.f32.mrb[0].mxu0
      %v2302 = vadd.f32 0.0, %v2301
      %v2303 = vpop.f32.mrb[0].mxu0
      %2304 = vmatprep.mubr.f32.mxu0 0.0
      %2305 = vmatmul.mubr.f32.gmra.mrb[0].mxu0 %v214
      %v2306 = vpop.f32.mrb[0].mxu0
      %v2307 = vadd.f32 0.0, %v2306
      %v2308 = vpop.f32.mrb[0].mxu0
      %2309 = vmatprep.mubr.f32.mxu0 0.0
      %2310 = vmatmul.mubr.f32.gmra.mrb[0].mxu0 %v216
      %v2311 = vpop.f32.mrb[0].mxu0
      %v2312 = vadd.f32 0.0, %v2311
      %v2313 = vpop.f32.mrb[0].mxu0
      %2314 = vmatprep.mubr.f32.mxu0 0.0
      %2315 = vmatmul.mubr.f32.gmra.mrb[0].mxu0 %v217
      %v2316 = vpop.f32.mrb[0].mxu0
      %v2317 = vadd.f32 0.0, %v2316
      %v2318 = vpop.f32.mrb[0].mxu0
      %2319 = vmatprep.mubr.f32.mxu0 0.0
      %2320 = vmatmul.mubr.f32.gmra.mrb[0].mxu0 %v219
      %v2321 = vpop.f32.mrb[0].mxu0
      %v2322 = vadd.f32 0.0, %v2321
      %v2323 = vpop.f32.mrb[0].mxu0
      %2324 = vmatprep.mubr.f32.mxu0 0.0
      %2325 = vmatmul.mubr.f32.gmra.mrb[0].mxu0 %v220
      %v2326 = vpop.f32.mrb[0].mxu0
      %v2327 = vadd.f32 0.0, %v2326
      %v2328 = vpop.f32.mrb[0].mxu0
      %2329 = vmatprep.mubr.f32.mxu0 0.0
      %2330 = vmatmul.mubr.f32.gmra.mrb[0].mxu0 %v222
      %v2331 = vpop.f32.mrb[0].mxu0
      %v2332 = vadd.f32 0.0, %v2331
      %v2333 = vpop.f32.mrb[0].mxu0
      %2334 = vmatprep.mubr.f32.mxu0 0.0
      %2335 = vmatmul.mubr.f32.gmra.mrb[0].mxu0 %v223
      %v2336 = vpop.f32.mrb[0].mxu0
      %v2337 = vadd.f32 0.0, %v2336
      %v2338 = vpop.f32.mrb[0].mxu0
      %2339 = vmatprep.mubr.f32.mxu0 0.0
      %2340 = vmatmul.mubr.f32.gmra.mrb[0].mxu0 %v225
      %v2341 = vpop.f32.mrb[0].mxu0
      %v2342 = vadd.f32 0.0, %v2341
      %v2343 = vpop.f32.mrb[0].mxu0
      %2344 = vmatprep.mubr.f32.mxu0 0.0
      %2345 = vmatmul.mubr.f32.gmra.mrb[0].mxu0 %v226
      %v2346 = vpop.f32.mrb[0].mxu0
      %v2347 = vadd.f32 0.0, %v2346
      %v2348 = vpop.f32.mrb[0].mxu0
      %2349 = vmatprep.mubr.f32.mxu0 0.0
      %2350 = vmatmul.mubr.f32.gmra.mrb[0].mxu0 %v228
      %v2351 = vpop.f32.mrb[0].mxu0
      %v2352 = vadd.f32 0.0, %v2351
      %v2353 = vpop.f32.mrb[0].mxu0
      %2354 = vmatprep.mubr.f32.mxu0 0.0
      %2355 = vmatmul.mubr.f32.gmra.mrb[0].mxu0 %v229
      %v2356 = vpop.f32.mrb[0].mxu0
      %v2357 = vadd.f32 0.0, %v2356
      %v2358 = vpop.f32.mrb[0].mxu0
      %2359 = vdwg.mxu0
      %v2360 = vadd.f32 %v2086, %v2202
      %v2361 = vadd.f32 %v2087, %v2207
      %v2362 = vadd.f32 %v2088, %v2212
      %v2363 = vadd.f32 %v2089, %v2217
      %v2364 = vadd.f32 %v2090, %v2222
      %v2365 = vadd.f32 %v2091, %v2227
      %v2366 = vadd.f32 %v2092, %v2232
      %v2367 = vadd.f32 %v2093, %v2237
      %v2368 = vadd.f32 %v2094, %v2242
      %v2369 = vadd.f32 %v2095, %v2247
      %v2370 = vadd.f32 %v2096, %v2252
      %v2371 = vadd.f32 %v2097, %v2257
      %v2372 = vadd.f32 %v2098, %v2262
      %v2373 = vadd.f32 %v2099, %v2267
      %v2374 = vadd.f32 %v2100, %v2272
      %v2375 = vadd.f32 %v2101, %v2277
      %v2376 = vadd.f32 %v2102, %v2282
      %v2377 = vadd.f32 %v2103, %v2287
      %v2378 = vadd.f32 %v2104, %v2292
      %v2379 = vadd.f32 %v2105, %v2297
      %v2380 = vadd.f32 %v2106, %v2302
      %v2381 = vadd.f32 %v2107, %v2307
      %v2382 = vadd.f32 %v2108, %v2312
      %v2383 = vadd.f32 %v2109, %v2317
      %v2384 = vadd.f32 %v2110, %v2322
      %v2385 = vadd.f32 %v2111, %v2327
      %v2386 = vadd.f32 %v2112, %v2332
      %v2387 = vadd.f32 %v2113, %v2337
      %v2388 = vadd.f32 %v2114, %v2342
      %v2389 = vadd.f32 %v2115, %v2347
      %v2390 = vadd.f32 %v2116, %v2352
      %v2391 = vadd.f32 %v2117, %v2357
      %v2398 = vrot.slane %v225, 2
      %v2399 = vrot.slane %v226, 2
      %v2400 = vsel %vm295, %v2398, %v2399
      %v2401 = vrot.slane %v227, 2
      %v2402 = vsel %vm295, %v2399, %v2401
      %v2403 = vrot.slane %v228, 2
      %v2404 = vrot.slane %v229, 2
      %v2405 = vsel %vm295, %v2403, %v2404
      %v2406 = vrot.slane %v230, 2
      %v2407 = vsel %vm295, %v2404, %v2406
      %s2412 = scalar_lea.vmem %s1, 896
      %v2413 = vld [vmem:[%s2412] sm:$0xff]
      %v2414 = vld [vmem:[%s2412 + $0x8] sm:$0xff]
      %v2415 = vld [vmem:[%s2412 + $0x10] sm:$0xff]
      %v2416 = vld [vmem:[%s2412 + $0x18] sm:$0xff]
      %v2417 = vld [vmem:[%s2412 + $0x20] sm:$0xff]
      %v2418 = vld [vmem:[%s2412 + $0x28] sm:$0xff]
      %v2419 = vld [vmem:[%s2412 + $0x30] sm:$0xff]
      %v2420 = vld [vmem:[%s2412 + $0x38] sm:$0xff]
      %v2421 = vld [vmem:[%s2412 + $0x40] sm:$0xff]
      %v2422 = vld [vmem:[%s2412 + $0x48] sm:$0xff]
      %v2423 = vld [vmem:[%s2412 + $0x50] sm:$0xff]
      %v2424 = vld [vmem:[%s2412 + $0x58] sm:$0xff]
      %v2425 = vld [vmem:[%s2412 + $0x60] sm:$0xff]
      %v2426 = vld [vmem:[%s2412 + $0x68] sm:$0xff]
      %v2427 = vld [vmem:[%s2412 + $0x70] sm:$0xff]
      %v2428 = vld [vmem:[%s2412 + $0x78] sm:$0xff]
      %2429 = vmatprep.subr.mxu0 0.0
      %2430 = vmatpush1.msra.mxu0 %v2413
      %2431 = vmatprep.subr.mxu0 0.0
      %2432 = vmatpush1.msra.mxu0 %v2414
      %2433 = vmatprep.subr.mxu0 0.0
      %2434 = vmatpush1.msra.mxu0 %v2415
      %2435 = vmatprep.subr.mxu0 0.0
      %2436 = vmatpush1.msra.mxu0 %v2416
      %2437 = vmatprep.subr.mxu0 0.0
      %2438 = vmatpush1.msra.mxu0 %v2417
      %2439 = vmatprep.subr.mxu0 0.0
      %2440 = vmatpush1.msra.mxu0 %v2418
      %2441 = vmatprep.subr.mxu0 0.0
      %2442 = vmatpush1.msra.mxu0 %v2419
      %2443 = vmatprep.subr.mxu0 0.0
      %2444 = vmatpush1.msra.mxu0 %v2420
      %2445 = vmatprep.subr.mxu0 0.0
      %2446 = vmatpush1.msra.mxu0 %v2421
      %2447 = vmatprep.subr.mxu0 0.0
      %2448 = vmatpush1.msra.mxu0 %v2422
      %2449 = vmatprep.subr.mxu0 0.0
      %2450 = vmatpush1.msra.mxu0 %v2423
      %2451 = vmatprep.subr.mxu0 0.0
      %2452 = vmatpush1.msra.mxu0 %v2424
      %2453 = vmatprep.subr.mxu0 0.0
      %2454 = vmatpush1.msra.mxu0 %v2425
      %2455 = vmatprep.subr.mxu0 0.0
      %2456 = vmatpush1.msra.mxu0 %v2426
      %2457 = vmatprep.subr.mxu0 0.0
      %2458 = vmatpush1.msra.mxu0 %v2427
      %2459 = vmatprep.subr.mxu0 0.0
      %2460 = vmatpush1.msra.mxu0 %v2428
      %2461 = vmatprep.subr.mxu0 0.0
      %2462 = vmatpush1.msra.mxu0 0.0
      %2463 = vmatprep.subr.mxu0 0.0
      %2464 = vmatpush1.msra.mxu0 0.0
      %2465 = vmatprep.subr.mxu0 0.0
      %2466 = vmatpush1.msra.mxu0 0.0
      %2467 = vmatprep.subr.mxu0 0.0
      %2468 = vmatpush1.msra.mxu0 0.0
      %2469 = vmatprep.subr.mxu0 0.0
      %2470 = vmatpush1.msra.mxu0 0.0
      %2471 = vmatprep.subr.mxu0 0.0
      %2472 = vmatpush1.msra.mxu0 0.0
      %2473 = vmatprep.subr.mxu0 0.0
      %2474 = vmatpush1.msra.mxu0 0.0
      %2475 = vmatprep.subr.mxu0 0.0
      %2476 = vmatpush1.msra.mxu0 0.0
      %2477 = vmatprep.subr.mxu0 0.0
      %2478 = vmatpush1.msra.mxu0 0.0
      %2479 = vmatprep.subr.mxu0 0.0
      %2480 = vmatpush1.msra.mxu0 0.0
      %2481 = vmatprep.subr.mxu0 0.0
      %2482 = vmatpush1.msra.mxu0 0.0
      %2483 = vmatprep.subr.mxu0 0.0
      %2484 = vmatpush1.msra.mxu0 0.0
      %2485 = vmatprep.subr.mxu0 0.0
      %2486 = vmatpush1.msra.mxu0 0.0
      %2487 = vmatprep.subr.mxu0 0.0
      %2488 = vmatpush1.msra.mxu0 0.0
      %2489 = vmatprep.subr.mxu0 0.0
      %2490 = vmatpush1.msra.mxu0 0.0
      %2491 = vmatprep.subr.mxu0 0.0
      %2492 = vmatpush1.msra.mxu0 0.0
      %2493 = vmatprep.mubr.f32.mxu0 0.0
      %2494 = vmatmul.mubr.f32.gmra.mrb[0].mxu0 %v318
      %v2495 = vpop.f32.mrb[0].mxu0
      %v2496 = vadd.f32 0.0, %v2495
      %v2497 = vpop.f32.mrb[0].mxu0
      %2498 = vmatprep.mubr.f32.mxu0 0.0
      %2499 = vmatmul.mubr.f32.gmra.mrb[0].mxu0 %v320
      %v2500 = vpop.f32.mrb[0].mxu0
      %v2501 = vadd.f32 0.0, %v2500
      %v2502 = vpop.f32.mrb[0].mxu0
      %2503 = vmatprep.mubr.f32.mxu0 0.0
      %2504 = vmatmul.mubr.f32.gmra.mrb[0].mxu0 %v323
      %v2505 = vpop.f32.mrb[0].mxu0
      %v2506 = vadd.f32 0.0, %v2505
      %v2507 = vpop.f32.mrb[0].mxu0
      %2508 = vmatprep.mubr.f32.mxu0 0.0
      %2509 = vmatmul.mubr.f32.gmra.mrb[0].mxu0 %v325
      %v2510 = vpop.f32.mrb[0].mxu0
      %v2511 = vadd.f32 0.0, %v2510
      %v2512 = vpop.f32.mrb[0].mxu0
      %2513 = vmatprep.mubr.f32.mxu0 0.0
      %2514 = vmatmul.mubr.f32.gmra.mrb[0].mxu0 %v328
      %v2515 = vpop.f32.mrb[0].mxu0
      %v2516 = vadd.f32 0.0, %v2515
      %v2517 = vpop.f32.mrb[0].mxu0
      %2518 = vmatprep.mubr.f32.mxu0 0.0
      %2519 = vmatmul.mubr.f32.gmra.mrb[0].mxu0 %v330
      %v2520 = vpop.f32.mrb[0].mxu0
      %v2521 = vadd.f32 0.0, %v2520
      %v2522 = vpop.f32.mrb[0].mxu0
      %2523 = vmatprep.mubr.f32.mxu0 0.0
      %2524 = vmatmul.mubr.f32.gmra.mrb[0].mxu0 %v333
      %v2525 = vpop.f32.mrb[0].mxu0
      %v2526 = vadd.f32 0.0, %v2525
      %v2527 = vpop.f32.mrb[0].mxu0
      %2528 = vmatprep.mubr.f32.mxu0 0.0
      %2529 = vmatmul.mubr.f32.gmra.mrb[0].mxu0 %v335
      %v2530 = vpop.f32.mrb[0].mxu0
      %v2531 = vadd.f32 0.0, %v2530
      %v2532 = vpop.f32.mrb[0].mxu0
      %2533 = vmatprep.mubr.f32.mxu0 0.0
      %2534 = vmatmul.mubr.f32.gmra.mrb[0].mxu0 %v338
      %v2535 = vpop.f32.mrb[0].mxu0
      %v2536 = vadd.f32 0.0, %v2535
      %v2537 = vpop.f32.mrb[0].mxu0
      %2538 = vmatprep.mubr.f32.mxu0 0.0
      %2539 = vmatmul.mubr.f32.gmra.mrb[0].mxu0 %v340
      %v2540 = vpop.f32.mrb[0].mxu0
      %v2541 = vadd.f32 0.0, %v2540
      %v2542 = vpop.f32.mrb[0].mxu0
      %2543 = vmatprep.mubr.f32.mxu0 0.0
      %2544 = vmatmul.mubr.f32.gmra.mrb[0].mxu0 %v343
      %v2545 = vpop.f32.mrb[0].mxu0
      %v2546 = vadd.f32 0.0, %v2545
      %v2547 = vpop.f32.mrb[0].mxu0
      %2548 = vmatprep.mubr.f32.mxu0 0.0
      %2549 = vmatmul.mubr.f32.gmra.mrb[0].mxu0 %v345
      %v2550 = vpop.f32.mrb[0].mxu0
      %v2551 = vadd.f32 0.0, %v2550
      %v2552 = vpop.f32.mrb[0].mxu0
      %2553 = vmatprep.mubr.f32.mxu0 0.0
      %2554 = vmatmul.mubr.f32.gmra.mrb[0].mxu0 %v348
      %v2555 = vpop.f32.mrb[0].mxu0
      %v2556 = vadd.f32 0.0, %v2555
      %v2557 = vpop.f32.mrb[0].mxu0
      %2558 = vmatprep.mubr.f32.mxu0 0.0
      %2559 = vmatmul.mubr.f32.gmra.mrb[0].mxu0 %v350
      %v2560 = vpop.f32.mrb[0].mxu0
      %v2561 = vadd.f32 0.0, %v2560
      %v2562 = vpop.f32.mrb[0].mxu0
      %2563 = vmatprep.mubr.f32.mxu0 0.0
      %2564 = vmatmul.mubr.f32.gmra.mrb[0].mxu0 %v353
      %v2565 = vpop.f32.mrb[0].mxu0
      %v2566 = vadd.f32 0.0, %v2565
      %v2567 = vpop.f32.mrb[0].mxu0
      %2568 = vmatprep.mubr.f32.mxu0 0.0
      %2569 = vmatmul.mubr.f32.gmra.mrb[0].mxu0 %v355
      %v2570 = vpop.f32.mrb[0].mxu0
      %v2571 = vadd.f32 0.0, %v2570
      %v2572 = vpop.f32.mrb[0].mxu0
      %2573 = vmatprep.mubr.f32.mxu0 0.0
      %2574 = vmatmul.mubr.f32.gmra.mrb[0].mxu0 %v358
      %v2575 = vpop.f32.mrb[0].mxu0
      %v2576 = vadd.f32 0.0, %v2575
      %v2577 = vpop.f32.mrb[0].mxu0
      %2578 = vmatprep.mubr.f32.mxu0 0.0
      %2579 = vmatmul.mubr.f32.gmra.mrb[0].mxu0 %v360
      %v2580 = vpop.f32.mrb[0].mxu0
      %v2581 = vadd.f32 0.0, %v2580
      %v2582 = vpop.f32.mrb[0].mxu0
      %2583 = vmatprep.mubr.f32.mxu0 0.0
      %2584 = vmatmul.mubr.f32.gmra.mrb[0].mxu0 %v363
      %v2585 = vpop.f32.mrb[0].mxu0
      %v2586 = vadd.f32 0.0, %v2585
      %v2587 = vpop.f32.mrb[0].mxu0
      %2588 = vmatprep.mubr.f32.mxu0 0.0
      %2589 = vmatmul.mubr.f32.gmra.mrb[0].mxu0 %v365
      %v2590 = vpop.f32.mrb[0].mxu0
      %v2591 = vadd.f32 0.0, %v2590
      %v2592 = vpop.f32.mrb[0].mxu0
      %2593 = vmatprep.mubr.f32.mxu0 0.0
      %2594 = vmatmul.mubr.f32.gmra.mrb[0].mxu0 %v368
      %v2595 = vpop.f32.mrb[0].mxu0
      %v2596 = vadd.f32 0.0, %v2595
      %v2597 = vpop.f32.mrb[0].mxu0
      %2598 = vmatprep.mubr.f32.mxu0 0.0
      %2599 = vmatmul.mubr.f32.gmra.mrb[0].mxu0 %v370
      %v2600 = vpop.f32.mrb[0].mxu0
      %v2601 = vadd.f32 0.0, %v2600
      %v2602 = vpop.f32.mrb[0].mxu0
      %2603 = vmatprep.mubr.f32.mxu0 0.0
      %2604 = vmatmul.mubr.f32.gmra.mrb[0].mxu0 %v373
      %v2605 = vpop.f32.mrb[0].mxu0
      %v2606 = vadd.f32 0.0, %v2605
      %v2607 = vpop.f32.mrb[0].mxu0
      %2608 = vmatprep.mubr.f32.mxu0 0.0
      %2609 = vmatmul.mubr.f32.gmra.mrb[0].mxu0 %v375
      %v2610 = vpop.f32.mrb[0].mxu0
      %v2611 = vadd.f32 0.0, %v2610
      %v2612 = vpop.f32.mrb[0].mxu0
      %2613 = vmatprep.mubr.f32.mxu0 0.0
      %2614 = vmatmul.mubr.f32.gmra.mrb[0].mxu0 %v1544
      %v2615 = vpop.f32.mrb[0].mxu0
      %v2616 = vadd.f32 0.0, %v2615
      %v2617 = vpop.f32.mrb[0].mxu0
      %2618 = vmatprep.mubr.f32.mxu0 0.0
      %2619 = vmatmul.mubr.f32.gmra.mrb[0].mxu0 %v1546
      %v2620 = vpop.f32.mrb[0].mxu0
      %v2621 = vadd.f32 0.0, %v2620
      %v2622 = vpop.f32.mrb[0].mxu0
      %2623 = vmatprep.mubr.f32.mxu0 0.0
      %2624 = vmatmul.mubr.f32.gmra.mrb[0].mxu0 %v1549
      %v2625 = vpop.f32.mrb[0].mxu0
      %v2626 = vadd.f32 0.0, %v2625
      %v2627 = vpop.f32.mrb[0].mxu0
      %2628 = vmatprep.mubr.f32.mxu0 0.0
      %2629 = vmatmul.mubr.f32.gmra.mrb[0].mxu0 %v1551
      %v2630 = vpop.f32.mrb[0].mxu0
      %v2631 = vadd.f32 0.0, %v2630
      %v2632 = vpop.f32.mrb[0].mxu0
      %2633 = vmatprep.mubr.f32.mxu0 0.0
      %2634 = vmatmul.mubr.f32.gmra.mrb[0].mxu0 %v2400
      %v2635 = vpop.f32.mrb[0].mxu0
      %v2636 = vadd.f32 0.0, %v2635
      %v2637 = vpop.f32.mrb[0].mxu0
      %2638 = vmatprep.mubr.f32.mxu0 0.0
      %2639 = vmatmul.mubr.f32.gmra.mrb[0].mxu0 %v2402
      %v2640 = vpop.f32.mrb[0].mxu0
      %v2641 = vadd.f32 0.0, %v2640
      %v2642 = vpop.f32.mrb[0].mxu0
      %2643 = vmatprep.mubr.f32.mxu0 0.0
      %2644 = vmatmul.mubr.f32.gmra.mrb[0].mxu0 %v2405
      %v2645 = vpop.f32.mrb[0].mxu0
      %v2646 = vadd.f32 0.0, %v2645
      %v2647 = vpop.f32.mrb[0].mxu0
      %2648 = vmatprep.mubr.f32.mxu0 0.0
      %2649 = vmatmul.mubr.f32.gmra.mrb[0].mxu0 %v2407
      %v2650 = vpop.f32.mrb[0].mxu0
      %v2651 = vadd.f32 0.0, %v2650
      %v2652 = vpop.f32.mrb[0].mxu0
      %2653 = vdwg.mxu0
      %v2654 = vadd.f32 %v2360, %v2496
      %v2655 = vadd.f32 %v2361, %v2501
      %v2656 = vadd.f32 %v2362, %v2506
      %v2657 = vadd.f32 %v2363, %v2511
      %v2658 = vadd.f32 %v2364, %v2516
      %v2659 = vadd.f32 %v2365, %v2521
      %v2660 = vadd.f32 %v2366, %v2526
      %v2661 = vadd.f32 %v2367, %v2531
      %v2662 = vadd.f32 %v2368, %v2536
      %v2663 = vadd.f32 %v2369, %v2541
      %v2664 = vadd.f32 %v2370, %v2546
      %v2665 = vadd.f32 %v2371, %v2551
      %v2666 = vadd.f32 %v2372, %v2556
      %v2667 = vadd.f32 %v2373, %v2561
      %v2668 = vadd.f32 %v2374, %v2566
      %v2669 = vadd.f32 %v2375, %v2571
      %v2670 = vadd.f32 %v2376, %v2576
      %v2671 = vadd.f32 %v2377, %v2581
      %v2672 = vadd.f32 %v2378, %v2586
      %v2673 = vadd.f32 %v2379, %v2591
      %v2674 = vadd.f32 %v2380, %v2596
      %v2675 = vadd.f32 %v2381, %v2601
      %v2676 = vadd.f32 %v2382, %v2606
      %v2677 = vadd.f32 %v2383, %v2611
      %v2678 = vadd.f32 %v2384, %v2616
      %v2679 = vadd.f32 %v2385, %v2621
      %v2680 = vadd.f32 %v2386, %v2626
      %v2681 = vadd.f32 %v2387, %v2631
      %v2682 = vadd.f32 %v2388, %v2636
      %v2683 = vadd.f32 %v2389, %v2641
      %v2684 = vadd.f32 %v2390, %v2646
      %v2685 = vadd.f32 %v2391, %v2651
      %v2686 = vrot.slane %v225, 4
      %v2687 = vrot.slane %v226, 4
      %v2688 = vsel %vm875, %v2686, %v2687
      %v2689 = vrot.slane %v227, 4
      %v2690 = vsel %vm875, %v2687, %v2689
      %v2691 = vrot.slane %v228, 4
      %v2692 = vrot.slane %v229, 4
      %v2693 = vsel %vm875, %v2691, %v2692
      %v2694 = vrot.slane %v230, 4
      %v2695 = vsel %vm875, %v2692, %v2694
      %s2700 = scalar_lea.vmem %s1, 1024
      %v2701 = vld [vmem:[%s2700] sm:$0xff]
      %v2702 = vld [vmem:[%s2700 + $0x8] sm:$0xff]
      %v2703 = vld [vmem:[%s2700 + $0x10] sm:$0xff]
      %v2704 = vld [vmem:[%s2700 + $0x18] sm:$0xff]
      %v2705 = vld [vmem:[%s2700 + $0x20] sm:$0xff]
      %v2706 = vld [vmem:[%s2700 + $0x28] sm:$0xff]
      %v2707 = vld [vmem:[%s2700 + $0x30] sm:$0xff]
      %v2708 = vld [vmem:[%s2700 + $0x38] sm:$0xff]
      %v2709 = vld [vmem:[%s2700 + $0x40] sm:$0xff]
      %v2710 = vld [vmem:[%s2700 + $0x48] sm:$0xff]
      %v2711 = vld [vmem:[%s2700 + $0x50] sm:$0xff]
      %v2712 = vld [vmem:[%s2700 + $0x58] sm:$0xff]
      %v2713 = vld [vmem:[%s2700 + $0x60] sm:$0xff]
      %v2714 = vld [vmem:[%s2700 + $0x68] sm:$0xff]
      %v2715 = vld [vmem:[%s2700 + $0x70] sm:$0xff]
      %v2716 = vld [vmem:[%s2700 + $0x78] sm:$0xff]
      %2717 = vmatprep.subr.mxu0 0.0
      %2718 = vmatpush1.msra.mxu0 %v2701
      %2719 = vmatprep.subr.mxu0 0.0
      %2720 = vmatpush1.msra.mxu0 %v2702
      %2721 = vmatprep.subr.mxu0 0.0
      %2722 = vmatpush1.msra.mxu0 %v2703
      %2723 = vmatprep.subr.mxu0 0.0
      %2724 = vmatpush1.msra.mxu0 %v2704
      %2725 = vmatprep.subr.mxu0 0.0
      %2726 = vmatpush1.msra.mxu0 %v2705
      %2727 = vmatprep.subr.mxu0 0.0
      %2728 = vmatpush1.msra.mxu0 %v2706
      %2729 = vmatprep.subr.mxu0 0.0
      %2730 = vmatpush1.msra.mxu0 %v2707
      %2731 = vmatprep.subr.mxu0 0.0
      %2732 = vmatpush1.msra.mxu0 %v2708
      %2733 = vmatprep.subr.mxu0 0.0
      %2734 = vmatpush1.msra.mxu0 %v2709
      %2735 = vmatprep.subr.mxu0 0.0
      %2736 = vmatpush1.msra.mxu0 %v2710
      %2737 = vmatprep.subr.mxu0 0.0
      %2738 = vmatpush1.msra.mxu0 %v2711
      %2739 = vmatprep.subr.mxu0 0.0
      %2740 = vmatpush1.msra.mxu0 %v2712
      %2741 = vmatprep.subr.mxu0 0.0
      %2742 = vmatpush1.msra.mxu0 %v2713
      %2743 = vmatprep.subr.mxu0 0.0
      %2744 = vmatpush1.msra.mxu0 %v2714
      %2745 = vmatprep.subr.mxu0 0.0
      %2746 = vmatpush1.msra.mxu0 %v2715
      %2747 = vmatprep.subr.mxu0 0.0
      %2748 = vmatpush1.msra.mxu0 %v2716
      %2749 = vmatprep.subr.mxu0 0.0
      %2750 = vmatpush1.msra.mxu0 0.0
      %2751 = vmatprep.subr.mxu0 0.0
      %2752 = vmatpush1.msra.mxu0 0.0
      %2753 = vmatprep.subr.mxu0 0.0
      %2754 = vmatpush1.msra.mxu0 0.0
      %2755 = vmatprep.subr.mxu0 0.0
      %2756 = vmatpush1.msra.mxu0 0.0
      %2757 = vmatprep.subr.mxu0 0.0
      %2758 = vmatpush1.msra.mxu0 0.0
      %2759 = vmatprep.subr.mxu0 0.0
      %2760 = vmatpush1.msra.mxu0 0.0
      %2761 = vmatprep.subr.mxu0 0.0
      %2762 = vmatpush1.msra.mxu0 0.0
      %2763 = vmatprep.subr.mxu0 0.0
      %2764 = vmatpush1.msra.mxu0 0.0
      %2765 = vmatprep.subr.mxu0 0.0
      %2766 = vmatpush1.msra.mxu0 0.0
      %2767 = vmatprep.subr.mxu0 0.0
      %2768 = vmatpush1.msra.mxu0 0.0
      %2769 = vmatprep.subr.mxu0 0.0
      %2770 = vmatpush1.msra.mxu0 0.0
      %2771 = vmatprep.subr.mxu0 0.0
      %2772 = vmatpush1.msra.mxu0 0.0
      %2773 = vmatprep.subr.mxu0 0.0
      %2774 = vmatpush1.msra.mxu0 0.0
      %2775 = vmatprep.subr.mxu0 0.0
      %2776 = vmatpush1.msra.mxu0 0.0
      %2777 = vmatprep.subr.mxu0 0.0
      %2778 = vmatpush1.msra.mxu0 0.0
      %2779 = vmatprep.subr.mxu0 0.0
      %2780 = vmatpush1.msra.mxu0 0.0
      %2781 = vmatprep.mubr.f32.mxu0 0.0
      %2782 = vmatmul.mubr.f32.gmra.mrb[0].mxu0 %v898
      %v2783 = vpop.f32.mrb[0].mxu0
      %v2784 = vadd.f32 0.0, %v2783
      %v2785 = vpop.f32.mrb[0].mxu0
      %2786 = vmatprep.mubr.f32.mxu0 0.0
      %2787 = vmatmul.mubr.f32.gmra.mrb[0].mxu0 %v900
      %v2788 = vpop.f32.mrb[0].mxu0
      %v2789 = vadd.f32 0.0, %v2788
      %v2790 = vpop.f32.mrb[0].mxu0
      %2791 = vmatprep.mubr.f32.mxu0 0.0
      %2792 = vmatmul.mubr.f32.gmra.mrb[0].mxu0 %v903
      %v2793 = vpop.f32.mrb[0].mxu0
      %v2794 = vadd.f32 0.0, %v2793
      %v2795 = vpop.f32.mrb[0].mxu0
      %2796 = vmatprep.mubr.f32.mxu0 0.0
      %2797 = vmatmul.mubr.f32.gmra.mrb[0].mxu0 %v905
      %v2798 = vpop.f32.mrb[0].mxu0
      %v2799 = vadd.f32 0.0, %v2798
      %v2800 = vpop.f32.mrb[0].mxu0
      %2801 = vmatprep.mubr.f32.mxu0 0.0
      %2802 = vmatmul.mubr.f32.gmra.mrb[0].mxu0 %v908
      %v2803 = vpop.f32.mrb[0].mxu0
      %v2804 = vadd.f32 0.0, %v2803
      %v2805 = vpop.f32.mrb[0].mxu0
      %2806 = vmatprep.mubr.f32.mxu0 0.0
      %2807 = vmatmul.mubr.f32.gmra.mrb[0].mxu0 %v910
      %v2808 = vpop.f32.mrb[0].mxu0
      %v2809 = vadd.f32 0.0, %v2808
      %v2810 = vpop.f32.mrb[0].mxu0
      %2811 = vmatprep.mubr.f32.mxu0 0.0
      %2812 = vmatmul.mubr.f32.gmra.mrb[0].mxu0 %v913
      %v2813 = vpop.f32.mrb[0].mxu0
      %v2814 = vadd.f32 0.0, %v2813
      %v2815 = vpop.f32.mrb[0].mxu0
      %2816 = vmatprep.mubr.f32.mxu0 0.0
      %2817 = vmatmul.mubr.f32.gmra.mrb[0].mxu0 %v915
      %v2818 = vpop.f32.mrb[0].mxu0
      %v2819 = vadd.f32 0.0, %v2818
      %v2820 = vpop.f32.mrb[0].mxu0
      %2821 = vmatprep.mubr.f32.mxu0 0.0
      %2822 = vmatmul.mubr.f32.gmra.mrb[0].mxu0 %v918
      %v2823 = vpop.f32.mrb[0].mxu0
      %v2824 = vadd.f32 0.0, %v2823
      %v2825 = vpop.f32.mrb[0].mxu0
      %2826 = vmatprep.mubr.f32.mxu0 0.0
      %2827 = vmatmul.mubr.f32.gmra.mrb[0].mxu0 %v920
      %v2828 = vpop.f32.mrb[0].mxu0
      %v2829 = vadd.f32 0.0, %v2828
      %v2830 = vpop.f32.mrb[0].mxu0
      %2831 = vmatprep.mubr.f32.mxu0 0.0
      %2832 = vmatmul.mubr.f32.gmra.mrb[0].mxu0 %v923
      %v2833 = vpop.f32.mrb[0].mxu0
      %v2834 = vadd.f32 0.0, %v2833
      %v2835 = vpop.f32.mrb[0].mxu0
      %2836 = vmatprep.mubr.f32.mxu0 0.0
      %2837 = vmatmul.mubr.f32.gmra.mrb[0].mxu0 %v925
      %v2838 = vpop.f32.mrb[0].mxu0
      %v2839 = vadd.f32 0.0, %v2838
      %v2840 = vpop.f32.mrb[0].mxu0
      %2841 = vmatprep.mubr.f32.mxu0 0.0
      %2842 = vmatmul.mubr.f32.gmra.mrb[0].mxu0 %v928
      %v2843 = vpop.f32.mrb[0].mxu0
      %v2844 = vadd.f32 0.0, %v2843
      %v2845 = vpop.f32.mrb[0].mxu0
      %2846 = vmatprep.mubr.f32.mxu0 0.0
      %2847 = vmatmul.mubr.f32.gmra.mrb[0].mxu0 %v930
      %v2848 = vpop.f32.mrb[0].mxu0
      %v2849 = vadd.f32 0.0, %v2848
      %v2850 = vpop.f32.mrb[0].mxu0
      %2851 = vmatprep.mubr.f32.mxu0 0.0
      %2852 = vmatmul.mubr.f32.gmra.mrb[0].mxu0 %v933
      %v2853 = vpop.f32.mrb[0].mxu0
      %v2854 = vadd.f32 0.0, %v2853
      %v2855 = vpop.f32.mrb[0].mxu0
      %2856 = vmatprep.mubr.f32.mxu0 0.0
      %2857 = vmatmul.mubr.f32.gmra.mrb[0].mxu0 %v935
      %v2858 = vpop.f32.mrb[0].mxu0
      %v2859 = vadd.f32 0.0, %v2858
      %v2860 = vpop.f32.mrb[0].mxu0
      %2861 = vmatprep.mubr.f32.mxu0 0.0
      %2862 = vmatmul.mubr.f32.gmra.mrb[0].mxu0 %v938
      %v2863 = vpop.f32.mrb[0].mxu0
      %v2864 = vadd.f32 0.0, %v2863
      %v2865 = vpop.f32.mrb[0].mxu0
      %2866 = vmatprep.mubr.f32.mxu0 0.0
      %2867 = vmatmul.mubr.f32.gmra.mrb[0].mxu0 %v940
      %v2868 = vpop.f32.mrb[0].mxu0
      %v2869 = vadd.f32 0.0, %v2868
      %v2870 = vpop.f32.mrb[0].mxu0
      %2871 = vmatprep.mubr.f32.mxu0 0.0
      %2872 = vmatmul.mubr.f32.gmra.mrb[0].mxu0 %v943
      %v2873 = vpop.f32.mrb[0].mxu0
      %v2874 = vadd.f32 0.0, %v2873
      %v2875 = vpop.f32.mrb[0].mxu0
      %2876 = vmatprep.mubr.f32.mxu0 0.0
      %2877 = vmatmul.mubr.f32.gmra.mrb[0].mxu0 %v945
      %v2878 = vpop.f32.mrb[0].mxu0
      %v2879 = vadd.f32 0.0, %v2878
      %v2880 = vpop.f32.mrb[0].mxu0
      %2881 = vmatprep.mubr.f32.mxu0 0.0
      %2882 = vmatmul.mubr.f32.gmra.mrb[0].mxu0 %v948
      %v2883 = vpop.f32.mrb[0].mxu0
      %v2884 = vadd.f32 0.0, %v2883
      %v2885 = vpop.f32.mrb[0].mxu0
      %2886 = vmatprep.mubr.f32.mxu0 0.0
      %2887 = vmatmul.mubr.f32.gmra.mrb[0].mxu0 %v950
      %v2888 = vpop.f32.mrb[0].mxu0
      %v2889 = vadd.f32 0.0, %v2888
      %v2890 = vpop.f32.mrb[0].mxu0
      %2891 = vmatprep.mubr.f32.mxu0 0.0
      %2892 = vmatmul.mubr.f32.gmra.mrb[0].mxu0 %v953
      %v2893 = vpop.f32.mrb[0].mxu0
      %v2894 = vadd.f32 0.0, %v2893
      %v2895 = vpop.f32.mrb[0].mxu0
      %2896 = vmatprep.mubr.f32.mxu0 0.0
      %2897 = vmatmul.mubr.f32.gmra.mrb[0].mxu0 %v955
      %v2898 = vpop.f32.mrb[0].mxu0
      %v2899 = vadd.f32 0.0, %v2898
      %v2900 = vpop.f32.mrb[0].mxu0
      %2901 = vmatprep.mubr.f32.mxu0 0.0
      %2902 = vmatmul.mubr.f32.gmra.mrb[0].mxu0 %v1832
      %v2903 = vpop.f32.mrb[0].mxu0
      %v2904 = vadd.f32 0.0, %v2903
      %v2905 = vpop.f32.mrb[0].mxu0
      %2906 = vmatprep.mubr.f32.mxu0 0.0
      %2907 = vmatmul.mubr.f32.gmra.mrb[0].mxu0 %v1834
      %v2908 = vpop.f32.mrb[0].mxu0
      %v2909 = vadd.f32 0.0, %v2908
      %v2910 = vpop.f32.mrb[0].mxu0
      %2911 = vmatprep.mubr.f32.mxu0 0.0
      %2912 = vmatmul.mubr.f32.gmra.mrb[0].mxu0 %v1837
      %v2913 = vpop.f32.mrb[0].mxu0
      %v2914 = vadd.f32 0.0, %v2913
      %v2915 = vpop.f32.mrb[0].mxu0
      %2916 = vmatprep.mubr.f32.mxu0 0.0
      %2917 = vmatmul.mubr.f32.gmra.mrb[0].mxu0 %v1839
      %v2918 = vpop.f32.mrb[0].mxu0
      %v2919 = vadd.f32 0.0, %v2918
      %v2920 = vpop.f32.mrb[0].mxu0
      %2921 = vmatprep.mubr.f32.mxu0 0.0
      %2922 = vmatmul.mubr.f32.gmra.mrb[0].mxu0 %v2688
      %v2923 = vpop.f32.mrb[0].mxu0
      %v2924 = vadd.f32 0.0, %v2923
      %v2925 = vpop.f32.mrb[0].mxu0
      %2926 = vmatprep.mubr.f32.mxu0 0.0
      %2927 = vmatmul.mubr.f32.gmra.mrb[0].mxu0 %v2690
      %v2928 = vpop.f32.mrb[0].mxu0
      %v2929 = vadd.f32 0.0, %v2928
      %v2930 = vpop.f32.mrb[0].mxu0
      %2931 = vmatprep.mubr.f32.mxu0 0.0
      %2932 = vmatmul.mubr.f32.gmra.mrb[0].mxu0 %v2693
      %v2933 = vpop.f32.mrb[0].mxu0
      %v2934 = vadd.f32 0.0, %v2933
      %v2935 = vpop.f32.mrb[0].mxu0
      %2936 = vmatprep.mubr.f32.mxu0 0.0
      %2937 = vmatmul.mubr.f32.gmra.mrb[0].mxu0 %v2695
      %v2938 = vpop.f32.mrb[0].mxu0
      %v2939 = vadd.f32 0.0, %v2938
      %v2940 = vpop.f32.mrb[0].mxu0
      %2941 = vdwg.mxu0
      %v2942 = vadd.f32 %v2654, %v2784
      %v2943 = vadd.f32 %v2655, %v2789
      %v2944 = vadd.f32 %v2656, %v2794
      %v2945 = vadd.f32 %v2657, %v2799
      %v2946 = vadd.f32 %v2658, %v2804
      %v2947 = vadd.f32 %v2659, %v2809
      %v2948 = vadd.f32 %v2660, %v2814
      %v2949 = vadd.f32 %v2661, %v2819
      %v2950 = vadd.f32 %v2662, %v2824
      %v2951 = vadd.f32 %v2663, %v2829
      %v2952 = vadd.f32 %v2664, %v2834
      %v2953 = vadd.f32 %v2665, %v2839
      %v2954 = vadd.f32 %v2666, %v2844
      %v2955 = vadd.f32 %v2667, %v2849
      %v2956 = vadd.f32 %v2668, %v2854
      %v2957 = vadd.f32 %v2669, %v2859
      %v2958 = vadd.f32 %v2670, %v2864
      %v2959 = vadd.f32 %v2671, %v2869
      %v2960 = vadd.f32 %v2672, %v2874
      %v2961 = vadd.f32 %v2673, %v2879
      %v2962 = vadd.f32 %v2674, %v2884
      %v2963 = vadd.f32 %v2675, %v2889
      %v2964 = vadd.f32 %v2676, %v2894
      %v2965 = vadd.f32 %v2677, %v2899
      %v2966 = vadd.f32 %v2678, %v2904
      %v2967 = vadd.f32 %v2679, %v2909
      %v2968 = vadd.f32 %v2680, %v2914
      %v2969 = vadd.f32 %v2681, %v2919
      %v2970 = vadd.f32 %v2682, %v2924
      %v2971 = vadd.f32 %v2683, %v2929
      %v2972 = vadd.f32 %v2684, %v2934
      %v2973 = vadd.f32 %v2685, %v2939
      %v2974 = vld [vmem:[%s2] sm:$0x1]
      %v2976 = vlaneseq
      %v2977 = vshrl.u32 %v2976, 7
      %v2978 = vsub.s32 0, %v2977
      %v2979 = vrot.slane %v2974, %v2978
      %v2981 = vadd.f32 %v2942, %v2979
      %v2982 = vadd.f32 %v2943, %v2979
      %v2983 = vadd.f32 %v2944, %v2979
      %v2984 = vadd.f32 %v2945, %v2979
      %v2985 = vadd.f32 %v2946, %v2979
      %v2986 = vadd.f32 %v2947, %v2979
      %v2987 = vadd.f32 %v2948, %v2979
      %v2988 = vadd.f32 %v2949, %v2979
      %v2989 = vadd.f32 %v2950, %v2979
      %v2990 = vadd.f32 %v2951, %v2979
      %v2991 = vadd.f32 %v2952, %v2979
      %v2992 = vadd.f32 %v2953, %v2979
      %v2993 = vadd.f32 %v2954, %v2979
      %v2994 = vadd.f32 %v2955, %v2979
      %v2995 = vadd.f32 %v2956, %v2979
      %v2996 = vadd.f32 %v2957, %v2979
      %v2997 = vadd.f32 %v2958, %v2979
      %v2998 = vadd.f32 %v2959, %v2979
      %v2999 = vadd.f32 %v2960, %v2979
      %v3000 = vadd.f32 %v2961, %v2979
      %v3001 = vadd.f32 %v2962, %v2979
      %v3002 = vadd.f32 %v2963, %v2979
      %v3003 = vadd.f32 %v2964, %v2979
      %v3004 = vadd.f32 %v2965, %v2979
      %v3005 = vadd.f32 %v2966, %v2979
      %v3006 = vadd.f32 %v2967, %v2979
      %v3007 = vadd.f32 %v2968, %v2979
      %v3008 = vadd.f32 %v2969, %v2979
      %v3009 = vadd.f32 %v2970, %v2979
      %v3010 = vadd.f32 %v2971, %v2979
      %v3011 = vadd.f32 %v2972, %v2979
      %v3012 = vadd.f32 %v2973, %v2979
      %v3013 = vmax.f32 %v2981, 0.0
      %v3014 = vmax.f32 %v2982, 0.0
      %v3015 = vmax.f32 %v2983, 0.0
      %v3016 = vmax.f32 %v2984, 0.0
      %v3017 = vmax.f32 %v2985, 0.0
      %v3018 = vmax.f32 %v2986, 0.0
      %v3019 = vmax.f32 %v2987, 0.0
      %v3020 = vmax.f32 %v2988, 0.0
      %v3021 = vmax.f32 %v2989, 0.0
      %v3022 = vmax.f32 %v2990, 0.0
      %v3023 = vmax.f32 %v2991, 0.0
      %v3024 = vmax.f32 %v2992, 0.0
      %v3025 = vmax.f32 %v2993, 0.0
      %v3026 = vmax.f32 %v2994, 0.0
      %v3027 = vmax.f32 %v2995, 0.0
      %v3028 = vmax.f32 %v2996, 0.0
      %v3029 = vmax.f32 %v2997, 0.0
      %v3030 = vmax.f32 %v2998, 0.0
      %v3031 = vmax.f32 %v2999, 0.0
      %v3032 = vmax.f32 %v3000, 0.0
      %v3033 = vmax.f32 %v3001, 0.0
      %v3034 = vmax.f32 %v3002, 0.0
      %v3035 = vmax.f32 %v3003, 0.0
      %v3036 = vmax.f32 %v3004, 0.0
      %v3037 = vmax.f32 %v3005, 0.0
      %v3038 = vmax.f32 %v3006, 0.0
      %v3039 = vmax.f32 %v3007, 0.0
      %v3040 = vmax.f32 %v3008, 0.0
      %v3041 = vmax.f32 %v3009, 0.0
      %v3042 = vmax.f32 %v3010, 0.0
      %v3043 = vmax.f32 %v3011, 0.0
      %v3044 = vmax.f32 %v3012, 0.0
      %3045 = vst [vmem:[%s170] sm:$0xff] %v3013
      %3046 = vst [vmem:[%s170 + $0x8] sm:$0xff] %v3014
      %3047 = vst [vmem:[%s170 + $0x10] sm:$0xff] %v3015
      %3048 = vst [vmem:[%s170 + $0x18] sm:$0xff] %v3016
      %3049 = vst [vmem:[%s170 + $0x20] sm:$0xff] %v3017
      %3050 = vst [vmem:[%s170 + $0x28] sm:$0xff] %v3018
      %3051 = vst [vmem:[%s170 + $0x30] sm:$0xff] %v3019
      %3052 = vst [vmem:[%s170 + $0x38] sm:$0xff] %v3020
      %3053 = vst [vmem:[%s170 + $0x40] sm:$0xff] %v3021
      %3054 = vst [vmem:[%s170 + $0x48] sm:$0xff] %v3022
      %3055 = vst [vmem:[%s170 + $0x50] sm:$0xff] %v3023
      %3056 = vst [vmem:[%s170 + $0x58] sm:$0xff] %v3024
      %3057 = vst [vmem:[%s170 + $0x60] sm:$0xff] %v3025
      %3058 = vst [vmem:[%s170 + $0x68] sm:$0xff] %v3026
      %3059 = vst [vmem:[%s170 + $0x70] sm:$0xff] %v3027
      %3060 = vst [vmem:[%s170 + $0x78] sm:$0xff] %v3028
      %3061 = vst [vmem:[%s170 + $0x80] sm:$0xff] %v3029
      %3062 = vst [vmem:[%s170 + $0x88] sm:$0xff] %v3030
      %3063 = vst [vmem:[%s170 + $0x90] sm:$0xff] %v3031
      %3064 = vst [vmem:[%s170 + $0x98] sm:$0xff] %v3032
      %3065 = vst [vmem:[%s170 + $0xa0] sm:$0xff] %v3033
      %3066 = vst [vmem:[%s170 + $0xa8] sm:$0xff] %v3034
      %3067 = vst [vmem:[%s170 + $0xb0] sm:$0xff] %v3035
      %3068 = vst [vmem:[%s170 + $0xb8] sm:$0xff] %v3036
      %3069 = vst [vmem:[%s170 + $0xc0] sm:$0xff] %v3037
      %3070 = vst [vmem:[%s170 + $0xc8] sm:$0xff] %v3038
      %3071 = vst [vmem:[%s170 + $0xd0] sm:$0xff] %v3039
      %3072 = vst [vmem:[%s170 + $0xd8] sm:$0xff] %v3040
      %3073 = vst [vmem:[%s170 + $0xe0] sm:$0xff] %v3041
      %3074 = vst [vmem:[%s170 + $0xe8] sm:$0xff] %v3042
      %3075 = vst [vmem:[%s170 + $0xf0] sm:$0xff] %v3043
      %3076 = vst [vmem:[%s170 + $0xf8] sm:$0xff] %v3044
      %p3077 = scmp.lt.s32.totalorder %s14, 1
      %s3078 = scalar_select %p3077, %s14, 1
      %s3079 = smul.addr %s3078, 32
      %s3080 = smul.addr %s3079, 8
      %s3081 = scalar_lea.vmem %s3, %s3080
      // Predicated region
      $region33: #{bottleneck_forward.4} parent=31 // pred_check
        %p3082 = pneg %p100
      $region34: #{bottleneck_forward.4} parent=31 // pred_check_branch
        %3084 = sbr.rel (%p3082) target = $region36
      $region35: #{bottleneck_forward.4} parent=31 // pred_region
        _
      $region36: #{bottleneck_forward.4} parent=31 // pred_fallthru
        _
    $region32: #{bottleneck_forward.4} parent=5 // pred_fallthru
      _
    %p3085 = scmp.le.s32.totalorder 2, %s9
    // Predicated region
    $region37: #{bottleneck_forward.4} parent=5 // pred_check
      %p3086 = pneg %p3085
    $region38: #{bottleneck_forward.4} parent=5 // pred_check_branch
      %3088 = sbr.rel (%p3086) target = $region40
    $region39: #{bottleneck_forward.4} parent=5 // pred_region
      %s3089 = ssub.s32 %s9, 2
      // Predicated region
      $region41: #{bottleneck_forward.4} parent=39 // pred_check
        %p3090 = pneg %p106
      $region42: #{bottleneck_forward.4} parent=39 // pred_check_branch
        %3092 = sbr.rel (%p3090) target = $region44
      $region43: #{bottleneck_forward.4} parent=39 // pred_region
        %p3093 = scmp.lt.s32.totalorder %s15, 1
        %s3094 = scalar_select %p3093, %s15, 1
        %s3095 = smul.addr %s3094, 32
        %s3096 = smul.addr %s3095, 8
        %s3097 = scalar_lea.vmem %s3, %s3096
      $region44: #{bottleneck_forward.4} parent=39 // pred_fallthru
        _
    $region40: #{bottleneck_forward.4} parent=5 // pred_fallthru
      _
  $region6: #{bottleneck_forward.4} parent=0 // loop_footer
    %s13 = sadd.s32 1, %s9
  $region7: #{bottleneck_forward.4} parent=0 // loop_footer_branch
    %8 = sbr.rel target = $region3
  $region8: #{bottleneck_forward.4} parent=0 // loop_exit
    _

</llo_original>
